<compile_context>
chip_gen: v7x
topology: tpu7x:2x2x1
jax: 0.10.0
libtpu: 0.0.40
codegen_flags: <defaults>
</compile_context>

<pallas_src>
import jax
import jax.numpy as jnp
from jax.experimental import pallas as pl
from jax.experimental.pallas import tpu as pltpu

LANE = 128


def _round_up(x, m):
    return (x + m - 1) // m * m


# ---------------------------------------------------------------------------
# Fused Pallas kernel: conv1+BN1+ReLU -> conv2+BN2 (+residual) + ReLU
# ---------------------------------------------------------------------------
def _fused_block_kernel(xpad_ref, w1_ref, shift1_ref, w2_ref, shift2_ref,
                        out_ref, mid_ref, acc_ref):
    _, H, W, Cp = out_ref.shape
    xv = xpad_ref[0]                                      # (H+2, W+2, Cp) bf16

    # ---- stage 1: conv1 (BN scale folded into w1) + shift1, ReLU ----------
    acc_ref[...] = jnp.broadcast_to(shift1_ref[...], acc_ref.shape)   # BN shift as init
    for k in range(9):                                    # 9 taps -> f32 VMEM accumulator
        dy, dx = divmod(k, 3)
        xs = xv[dy:dy + H, dx:dx + W, :].reshape(H * W, Cp)
        acc_ref[...] += jnp.dot(xs, w1_ref[k], preferred_element_type=jnp.float32)

    # keep out1 resident in VMEM (padded border, bf16) — no HBM round trip
    mid_ref[...] = jnp.zeros_like(mid_ref)
    mid_ref[pl.ds(1, H), pl.ds(1, W), :] = (
        jnp.maximum(acc_ref[...], 0.0).reshape(H, W, Cp).astype(mid_ref.dtype))

    # ---- stage 2: conv2 (BN scale folded) + shift2 + residual, ReLU -------
    acc_ref[...] = jnp.broadcast_to(shift2_ref[...], acc_ref.shape)
    mv = mid_ref[...]
    for k in range(9):
        dy, dx = divmod(k, 3)
        xs = mv[dy:dy + H, dx:dx + W, :].reshape(H * W, Cp)
        acc_ref[...] += jnp.dot(xs, w2_ref[k], preferred_element_type=jnp.float32)

    res = xv[1:H + 1, 1:W + 1, :].astype(jnp.float32).reshape(H * W, Cp)
    y = jnp.maximum(acc_ref[...] + res, 0.0)
    out_ref[...] = y.reshape(1, H, W, Cp).astype(out_ref.dtype)


def _basic_block_forward(xpad, w1, shift1, w2, shift2, *, cp, H, W):
    N = xpad.shape[0]
    Hp, Wp = H + 2, W + 2

    flops = 2 * 2 * 9 * N * H * W * cp * cp               # 2 stages, 9 taps, mul+add
    bytes_accessed = (xpad.size * xpad.dtype.itemsize
                      + N * H * W * cp * 4
                      + (w1.size + w2.size) * 2
                      + (shift1.size + shift2.size) * 4)

    grid_spec = pltpu.PrefetchScalarGridSpec(
        num_scalar_prefetch=0,
        grid=(N,),
        in_specs=[
            pl.BlockSpec((1, Hp, Wp, cp), lambda n: (n, 0, 0, 0)),   # padded input image
            pl.BlockSpec((9, cp, cp), lambda n: (0, 0, 0)),          # w1 (scale folded)
            pl.BlockSpec((1, cp), lambda n: (0, 0)),                 # shift1
            pl.BlockSpec((9, cp, cp), lambda n: (0, 0, 0)),          # w2 (scale folded)
            pl.BlockSpec((1, cp), lambda n: (0, 0)),                 # shift2
        ],
        out_specs=pl.BlockSpec((1, H, W, cp), lambda n: (n, 0, 0, 0)),
        scratch_shapes=[
            pltpu.VMEM((Hp, Wp, cp), jnp.bfloat16),   # padded intermediate activation
            pltpu.VMEM((H * W, cp), jnp.float32),     # f32 matmul accumulator
        ],
    )

    return pl.pallas_call(
        _fused_block_kernel,
        out_shape=jax.ShapeDtypeStruct((N, H, W, cp), jnp.float32),
        grid_spec=grid_spec,
        compiler_params=pltpu.CompilerParams(
            dimension_semantics=("parallel",),        # batch axis -> megacore on v7x
            vmem_limit_bytes=48 * 1024 * 1024),
        cost_estimate=pl.CostEstimate(flops=flops, transcendentals=0,
                                      bytes_accessed=bytes_accessed),
    )(xpad, w1, shift1, w2, shift2)


# ---------------------------------------------------------------------------
# Parameter setup (deterministic, synthetic) + module wrapper
# ---------------------------------------------------------------------------
def _fold_bn(gamma, beta, mean, var, eps=1e-5):
    scale = gamma / jnp.sqrt(var + eps)
    shift = beta - mean * scale
    return scale, shift


class BasicBlockPallas:
    expansion = 1

    def __init__(self, inplanes, planes, stride=1, downsample=None, *, key):
        assert stride == 1 and downsample is None and inplanes == planes, \
            "only the default stride=1 / downsample=None / inplanes==planes config is implemented"
        self.inplanes, self.planes = inplanes, planes
        self.cp = _round_up(planes, LANE)                 # lane-dense channel padding

        k1, k2 = jax.random.split(key)
        w1 = 0.1 * jax.random.normal(k1, (planes, inplanes, 3, 3), jnp.float32)
        w2 = 0.1 * jax.random.normal(k2, (planes, planes, 3, 3), jnp.float32)
        c = jnp.arange(planes, dtype=jnp.float32)
        scale1, shift1 = _fold_bn(1.0 + 0.01 * c, 0.02 * c, 0.01 * c, 1.0 + 0.05 * c)
        scale2, shift2 = _fold_bn(1.0 - 0.01 * c, -0.02 * c, -0.01 * c, 1.0 + 0.03 * c)

        # (Cout, Cin, 3, 3) -> (9, Cin, Cout), bake BN scale into the weights,
        # zero-pad channels to the lane width, cast MXU operands to bf16.
        self.w1 = self._prep_w(w1, scale1)
        self.w2 = self._prep_w(w2, scale2)
        self.shift1 = self._prep_shift(shift1)
        self.shift2 = self._prep_shift(shift2)

    def _prep_w(self, w_oihw, scale):
        cout, cin = w_oihw.shape[0], w_oihw.shape[1]
        w9 = jnp.transpose(w_oihw, (2, 3, 1, 0)).reshape(9, cin, cout) * scale[None, None, :]
        wp = jnp.zeros((9, self.cp, self.cp), jnp.float32).at[:, :cin, :cout].set(w9)
        return wp.astype(jnp.bfloat16)

    def _prep_shift(self, shift):
        return jnp.zeros((1, self.cp), jnp.float32).at[0, :self.planes].set(shift)

    def __call__(self, x_nchw):
        n, c, h, w = x_nchw.shape
        x = jnp.transpose(x_nchw, (0, 2, 3, 1)).astype(jnp.float32)      # NCHW -> NHWC
        xpad = jnp.pad(x, ((0, 0), (1, 1), (1, 1), (0, self.cp - c))).astype(jnp.bfloat16)
        out = _basic_block_forward(xpad, self.w1, self.shift1, self.w2, self.shift2,
                                   cp=self.cp, H=h, W=w)
        # Dropout(p=0.5): identity in eval mode.
        return jnp.transpose(out[..., :self.planes], (0, 3, 1, 2))       # NHWC -> NCHW


# Pure-JAX reference (same math incl. bf16 operand casts) for a sanity check.
def _reference(block, x_nchw):
    cin, cout = block.inplanes, block.planes
    w1 = block.w1[:, :cin, :cout]                # bf16, BN scale already folded in
    w2 = block.w2[:, :cout, :cout]
    s1 = block.shift1[:, :cout]
    s2 = block.shift2[:, :cout]

    def conv(v, w9):                             # v: (N,H,W,Ci) f32, w9: (9,Ci,Co) bf16
        n, h, w, _ = v.shape
        vp = jnp.pad(v, ((0, 0), (1, 1), (1, 1), (0, 0))).astype(jnp.bfloat16)
        acc = jnp.zeros((n, h, w, w9.shape[-1]), jnp.float32)
        for k in range(9):
            dy, dx = divmod(k, 3)
            xs = vp[:, dy:dy + h, dx:dx + w, :]
            acc = acc + jnp.einsum("nhwc,cd->nhwd", xs, w9[k],
                                   preferred_element_type=jnp.float32)
        return acc

    x = jnp.transpose(x_nchw, (0, 2, 3, 1)).astype(jnp.float32)
    o1 = jnp.maximum(conv(x, w1) + s1, 0.0)
    res = x.astype(jnp.bfloat16).astype(jnp.float32)   # kernel adds the bf16 residual
    o2 = jnp.maximum(conv(o1, w2) + s2 + res, 0.0)
    return jnp.transpose(o2, (0, 3, 1, 2))


if __name__ == "__main__":
    key = jax.random.PRNGKey(0)
    kx, kp = jax.random.split(key)
    N, C, H, W = 2, 4, 16, 16                      # PyTorch input is NCHW
    x = jax.random.normal(kx, (N, C, H, W), jnp.float32)

    block = BasicBlockPallas(inplanes=C, planes=C, stride=1, downsample=None, key=kp)
    y = jax.block_until_ready(block(x))

    y_ref = _reference(block, x)
    assert y.shape == (N, C, H, W)
    assert jnp.allclose(y, y_ref, atol=2e-2, rtol=2e-2), \
        float(jnp.max(jnp.abs(y - y_ref)))
    print("KERNEL_OK")
</pallas_src>

<mosaic_0001>
module attributes {stable_mosaic.version = 11 : i64} {
  func.func @_fused_block_kernel(%arg0: i32, %arg1: memref<1x18x18x128xbf16, #tpu.memory_space<vmem>>, %arg2: memref<9x128x128xbf16, #tpu.memory_space<vmem>>, %arg3: memref<1x128xf32, #tpu.memory_space<vmem>>, %arg4: memref<9x128x128xbf16, #tpu.memory_space<vmem>>, %arg5: memref<1x128xf32, #tpu.memory_space<vmem>>, %arg6: memref<1x16x16x128xf32, #tpu.memory_space<vmem>>, %arg7: memref<18x18x128xbf16, #tpu.memory_space<vmem>>, %arg8: memref<256x128xf32, #tpu.memory_space<vmem>>) attributes {dimension_semantics = [#tpu.dimension_semantics<parallel>], iteration_bounds = array<i64: 2>, scalar_prefetch = 0 : i64, scratch_operands = 2 : i64, tpu.core_type = #tpu.core_type<tc>, window_params = [{transform_indices = @transform_0, window_bounds = array<i64: 1, 18, 18, 128>}, {pipeline_mode = #tpu.pipeline_mode<synchronous>, transform_indices = @transform_1, window_bounds = array<i64: 9, 128, 128>}, {pipeline_mode = #tpu.pipeline_mode<synchronous>, transform_indices = @transform_2, window_bounds = array<i64: 1, 128>}, {pipeline_mode = #tpu.pipeline_mode<synchronous>, transform_indices = @transform_3, window_bounds = array<i64: 9, 128, 128>}, {pipeline_mode = #tpu.pipeline_mode<synchronous>, transform_indices = @transform_4, window_bounds = array<i64: 1, 128>}, {transform_indices = @transform_5, window_bounds = array<i64: 1, 16, 16, 128>}]} {
    %c0 = arith.constant 0 : index
    %c0_0 = arith.constant 0 : index
    %c0_1 = arith.constant 0 : index
    %c0_2 = arith.constant 0 : index
    %0 = vector.load %arg1[%c0, %c0_0, %c0_1, %c0_2] : memref<1x18x18x128xbf16, #tpu.memory_space<vmem>>, vector<1x18x18x128xbf16>
    %1 = vector.shape_cast %0 : vector<1x18x18x128xbf16> to vector<18x18x128xbf16>
    %c0_3 = arith.constant 0 : index
    %c0_4 = arith.constant 0 : index
    %2 = vector.load %arg3[%c0_3, %c0_4] : memref<1x128xf32, #tpu.memory_space<vmem>>, vector<1x128xf32>
    %3 = vector.shape_cast %2 : vector<1x128xf32> to vector<1x128xf32>
    %4 = vector.broadcast %3 : vector<1x128xf32> to vector<256x128xf32>
    %c0_5 = arith.constant 0 : index
    %c0_6 = arith.constant 0 : index
    %5 = vector.load %arg8[%c0_5, %c0_6] : memref<256x128xf32, #tpu.memory_space<vmem>>, vector<256x128xf32>
    tpu.vector_store %arg8[%c0_5, %c0_6], %4 {strides = array<i32>} : memref<256x128xf32, #tpu.memory_space<vmem>>, vector<256x128xf32>,
    %6 = vector.extract_strided_slice %1 {offsets = [0, 0, 0], sizes = [16, 16, 128], strides = [1, 1, 1]} : vector<18x18x128xbf16> to vector<16x16x128xbf16>
    %7 = vector.shape_cast %6 : vector<16x16x128xbf16> to vector<256x128xbf16>
    %c0_7 = arith.constant 0 : index
    %c0_8 = arith.constant 0 : index
    %8 = vector.load %arg8[%c0_7, %c0_8] : memref<256x128xf32, #tpu.memory_space<vmem>>, vector<256x128xf32>
    %c0_9 = arith.constant 0 : index
    %c0_10 = arith.constant 0 : index
    %c0_11 = arith.constant 0 : index
    %9 = vector.load %arg2[%c0_9, %c0_10, %c0_11] : memref<9x128x128xbf16, #tpu.memory_space<vmem>>, vector<1x128x128xbf16>
    %10 = vector.shape_cast %9 : vector<1x128x128xbf16> to vector<128x128xbf16>
    %cst = arith.constant dense<0.000000e+00> : vector<256x128xf32>
    %11 = tpu.matmul %7, %10, %cst {dimension_numbers = #tpu.dot_dimension_numbers<[1], [0], [0], [1], [0, 0, 1, 1], [], []>} : vector<256x128xbf16>, vector<128x128xbf16>, vector<256x128xf32> -> vector<256x128xf32>
    %12 = arith.addf %8, %11 : vector<256x128xf32>
    %c0_12 = arith.constant 0 : index
    %c0_13 = arith.constant 0 : index
    %13 = vector.load %arg8[%c0_12, %c0_13] : memref<256x128xf32, #tpu.memory_space<vmem>>, vector<256x128xf32>
    tpu.vector_store %arg8[%c0_12, %c0_13], %12 {strides = array<i32>} : memref<256x128xf32, #tpu.memory_space<vmem>>, vector<256x128xf32>,
    %14 = vector.extract_strided_slice %1 {offsets = [0, 1, 0], sizes = [16, 16, 128], strides = [1, 1, 1]} : vector<18x18x128xbf16> to vector<16x16x128xbf16>
    %15 = vector.shape_cast %14 : vector<16x16x128xbf16> to vector<256x128xbf16>
    %c0_14 = arith.constant 0 : index
    %c0_15 = arith.constant 0 : index
    %16 = vector.load %arg8[%c0_14, %c0_15] : memref<256x128xf32, #tpu.memory_space<vmem>>, vector<256x128xf32>
    %c1 = arith.constant 1 : index
    %c0_16 = arith.constant 0 : index
    %c0_17 = arith.constant 0 : index
    %17 = vector.load %arg2[%c1, %c0_16, %c0_17] : memref<9x128x128xbf16, #tpu.memory_space<vmem>>, vector<1x128x128xbf16>
    %18 = vector.shape_cast %17 : vector<1x128x128xbf16> to vector<128x128xbf16>
    %cst_18 = arith.constant dense<0.000000e+00> : vector<256x128xf32>
    %19 = tpu.matmul %15, %18, %cst_18 {dimension_numbers = #tpu.dot_dimension_numbers<[1], [0], [0], [1], [0, 0, 1, 1], [], []>} : vector<256x128xbf16>, vector<128x128xbf16>, vector<256x128xf32> -> vector<256x128xf32>
    %20 = arith.addf %16, %19 : vector<256x128xf32>
    %c0_19 = arith.constant 0 : index
    %c0_20 = arith.constant 0 : index
    %21 = vector.load %arg8[%c0_19, %c0_20] : memref<256x128xf32, #tpu.memory_space<vmem>>, vector<256x128xf32>
    tpu.vector_store %arg8[%c0_19, %c0_20], %20 {strides = array<i32>} : memref<256x128xf32, #tpu.memory_space<vmem>>, vector<256x128xf32>,
    %22 = vector.extract_strided_slice %1 {offsets = [0, 2, 0], sizes = [16, 16, 128], strides = [1, 1, 1]} : vector<18x18x128xbf16> to vector<16x16x128xbf16>
    %23 = vector.shape_cast %22 : vector<16x16x128xbf16> to vector<256x128xbf16>
    %c0_21 = arith.constant 0 : index
    %c0_22 = arith.constant 0 : index
    %24 = vector.load %arg8[%c0_21, %c0_22] : memref<256x128xf32, #tpu.memory_space<vmem>>, vector<256x128xf32>
    %c2 = arith.constant 2 : index
    %c0_23 = arith.constant 0 : index
    %c0_24 = arith.constant 0 : index
    %25 = vector.load %arg2[%c2, %c0_23, %c0_24] : memref<9x128x128xbf16, #tpu.memory_space<vmem>>, vector<1x128x128xbf16>
    %26 = vector.shape_cast %25 : vector<1x128x128xbf16> to vector<128x128xbf16>
    %cst_25 = arith.constant dense<0.000000e+00> : vector<256x128xf32>
    %27 = tpu.matmul %23, %26, %cst_25 {dimension_numbers = #tpu.dot_dimension_numbers<[1], [0], [0], [1], [0, 0, 1, 1], [], []>} : vector<256x128xbf16>, vector<128x128xbf16>, vector<256x128xf32> -> vector<256x128xf32>
    %28 = arith.addf %24, %27 : vector<256x128xf32>
    %c0_26 = arith.constant 0 : index
    %c0_27 = arith.constant 0 : index
    %29 = vector.load %arg8[%c0_26, %c0_27] : memref<256x128xf32, #tpu.memory_space<vmem>>, vector<256x128xf32>
    tpu.vector_store %arg8[%c0_26, %c0_27], %28 {strides = array<i32>} : memref<256x128xf32, #tpu.memory_space<vmem>>, vector<256x128xf32>,
    %30 = vector.extract_strided_slice %1 {offsets = [1, 0, 0], sizes = [16, 16, 128], strides = [1, 1, 1]} : vector<18x18x128xbf16> to vector<16x16x128xbf16>
    %31 = vector.shape_cast %30 : vector<16x16x128xbf16> to vector<256x128xbf16>
    %c0_28 = arith.constant 0 : index
    %c0_29 = arith.constant 0 : index
    %32 = vector.load %arg8[%c0_28, %c0_29] : memref<256x128xf32, #tpu.memory_space<vmem>>, vector<256x128xf32>
    %c3 = arith.constant 3 : index
    %c0_30 = arith.constant 0 : index
    %c0_31 = arith.constant 0 : index
    %33 = vector.load %arg2[%c3, %c0_30, %c0_31] : memref<9x128x128xbf16, #tpu.memory_space<vmem>>, vector<1x128x128xbf16>
    %34 = vector.shape_cast %33 : vector<1x128x128xbf16> to vector<128x128xbf16>
    %cst_32 = arith.constant dense<0.000000e+00> : vector<256x128xf32>
    %35 = tpu.matmul %31, %34, %cst_32 {dimension_numbers = #tpu.dot_dimension_numbers<[1], [0], [0], [1], [0, 0, 1, 1], [], []>} : vector<256x128xbf16>, vector<128x128xbf16>, vector<256x128xf32> -> vector<256x128xf32>
    %36 = arith.addf %32, %35 : vector<256x128xf32>
    %c0_33 = arith.constant 0 : index
    %c0_34 = arith.constant 0 : index
    %37 = vector.load %arg8[%c0_33, %c0_34] : memref<256x128xf32, #tpu.memory_space<vmem>>, vector<256x128xf32>
    tpu.vector_store %arg8[%c0_33, %c0_34], %36 {strides = array<i32>} : memref<256x128xf32, #tpu.memory_space<vmem>>, vector<256x128xf32>,
    %38 = vector.extract_strided_slice %1 {offsets = [1, 1, 0], sizes = [16, 16, 128], strides = [1, 1, 1]} : vector<18x18x128xbf16> to vector<16x16x128xbf16>
    %39 = vector.shape_cast %38 : vector<16x16x128xbf16> to vector<256x128xbf16>
    %c0_35 = arith.constant 0 : index
    %c0_36 = arith.constant 0 : index
    %40 = vector.load %arg8[%c0_35, %c0_36] : memref<256x128xf32, #tpu.memory_space<vmem>>, vector<256x128xf32>
    %c4 = arith.constant 4 : index
    %c0_37 = arith.constant 0 : index
    %c0_38 = arith.constant 0 : index
    %41 = vector.load %arg2[%c4, %c0_37, %c0_38] : memref<9x128x128xbf16, #tpu.memory_space<vmem>>, vector<1x128x128xbf16>
    %42 = vector.shape_cast %41 : vector<1x128x128xbf16> to vector<128x128xbf16>
    %cst_39 = arith.constant dense<0.000000e+00> : vector<256x128xf32>
    %43 = tpu.matmul %39, %42, %cst_39 {dimension_numbers = #tpu.dot_dimension_numbers<[1], [0], [0], [1], [0, 0, 1, 1], [], []>} : vector<256x128xbf16>, vector<128x128xbf16>, vector<256x128xf32> -> vector<256x128xf32>
    %44 = arith.addf %40, %43 : vector<256x128xf32>
    %c0_40 = arith.constant 0 : index
    %c0_41 = arith.constant 0 : index
    %45 = vector.load %arg8[%c0_40, %c0_41] : memref<256x128xf32, #tpu.memory_space<vmem>>, vector<256x128xf32>
    tpu.vector_store %arg8[%c0_40, %c0_41], %44 {strides = array<i32>} : memref<256x128xf32, #tpu.memory_space<vmem>>, vector<256x128xf32>,
    %46 = vector.extract_strided_slice %1 {offsets = [1, 2, 0], sizes = [16, 16, 128], strides = [1, 1, 1]} : vector<18x18x128xbf16> to vector<16x16x128xbf16>
    %47 = vector.shape_cast %46 : vector<16x16x128xbf16> to vector<256x128xbf16>
    %c0_42 = arith.constant 0 : index
    %c0_43 = arith.constant 0 : index
    %48 = vector.load %arg8[%c0_42, %c0_43] : memref<256x128xf32, #tpu.memory_space<vmem>>, vector<256x128xf32>
    %c5 = arith.constant 5 : index
    %c0_44 = arith.constant 0 : index
    %c0_45 = arith.constant 0 : index
    %49 = vector.load %arg2[%c5, %c0_44, %c0_45] : memref<9x128x128xbf16, #tpu.memory_space<vmem>>, vector<1x128x128xbf16>
    %50 = vector.shape_cast %49 : vector<1x128x128xbf16> to vector<128x128xbf16>
    %cst_46 = arith.constant dense<0.000000e+00> : vector<256x128xf32>
    %51 = tpu.matmul %47, %50, %cst_46 {dimension_numbers = #tpu.dot_dimension_numbers<[1], [0], [0], [1], [0, 0, 1, 1], [], []>} : vector<256x128xbf16>, vector<128x128xbf16>, vector<256x128xf32> -> vector<256x128xf32>
    %52 = arith.addf %48, %51 : vector<256x128xf32>
    %c0_47 = arith.constant 0 : index
    %c0_48 = arith.constant 0 : index
    %53 = vector.load %arg8[%c0_47, %c0_48] : memref<256x128xf32, #tpu.memory_space<vmem>>, vector<256x128xf32>
    tpu.vector_store %arg8[%c0_47, %c0_48], %52 {strides = array<i32>} : memref<256x128xf32, #tpu.memory_space<vmem>>, vector<256x128xf32>,
    %54 = vector.extract_strided_slice %1 {offsets = [2, 0, 0], sizes = [16, 16, 128], strides = [1, 1, 1]} : vector<18x18x128xbf16> to vector<16x16x128xbf16>
    %55 = vector.shape_cast %54 : vector<16x16x128xbf16> to vector<256x128xbf16>
    %c0_49 = arith.constant 0 : index
    %c0_50 = arith.constant 0 : index
    %56 = vector.load %arg8[%c0_49, %c0_50] : memref<256x128xf32, #tpu.memory_space<vmem>>, vector<256x128xf32>
    %c6 = arith.constant 6 : index
    %c0_51 = arith.constant 0 : index
    %c0_52 = arith.constant 0 : index
    %57 = vector.load %arg2[%c6, %c0_51, %c0_52] : memref<9x128x128xbf16, #tpu.memory_space<vmem>>, vector<1x128x128xbf16>
    %58 = vector.shape_cast %57 : vector<1x128x128xbf16> to vector<128x128xbf16>
    %cst_53 = arith.constant dense<0.000000e+00> : vector<256x128xf32>
    %59 = tpu.matmul %55, %58, %cst_53 {dimension_numbers = #tpu.dot_dimension_numbers<[1], [0], [0], [1], [0, 0, 1, 1], [], []>} : vector<256x128xbf16>, vector<128x128xbf16>, vector<256x128xf32> -> vector<256x128xf32>
    %60 = arith.addf %56, %59 : vector<256x128xf32>
    %c0_54 = arith.constant 0 : index
    %c0_55 = arith.constant 0 : index
    %61 = vector.load %arg8[%c0_54, %c0_55] : memref<256x128xf32, #tpu.memory_space<vmem>>, vector<256x128xf32>
    tpu.vector_store %arg8[%c0_54, %c0_55], %60 {strides = array<i32>} : memref<256x128xf32, #tpu.memory_space<vmem>>, vector<256x128xf32>,
    %62 = vector.extract_strided_slice %1 {offsets = [2, 1, 0], sizes = [16, 16, 128], strides = [1, 1, 1]} : vector<18x18x128xbf16> to vector<16x16x128xbf16>
    %63 = vector.shape_cast %62 : vector<16x16x128xbf16> to vector<256x128xbf16>
    %c0_56 = arith.constant 0 : index
    %c0_57 = arith.constant 0 : index
    %64 = vector.load %arg8[%c0_56, %c0_57] : memref<256x128xf32, #tpu.memory_space<vmem>>, vector<256x128xf32>
    %c7 = arith.constant 7 : index
    %c0_58 = arith.constant 0 : index
    %c0_59 = arith.constant 0 : index
    %65 = vector.load %arg2[%c7, %c0_58, %c0_59] : memref<9x128x128xbf16, #tpu.memory_space<vmem>>, vector<1x128x128xbf16>
    %66 = vector.shape_cast %65 : vector<1x128x128xbf16> to vector<128x128xbf16>
    %cst_60 = arith.constant dense<0.000000e+00> : vector<256x128xf32>
    %67 = tpu.matmul %63, %66, %cst_60 {dimension_numbers = #tpu.dot_dimension_numbers<[1], [0], [0], [1], [0, 0, 1, 1], [], []>} : vector<256x128xbf16>, vector<128x128xbf16>, vector<256x128xf32> -> vector<256x128xf32>
    %68 = arith.addf %64, %67 : vector<256x128xf32>
    %c0_61 = arith.constant 0 : index
    %c0_62 = arith.constant 0 : index
    %69 = vector.load %arg8[%c0_61, %c0_62] : memref<256x128xf32, #tpu.memory_space<vmem>>, vector<256x128xf32>
    tpu.vector_store %arg8[%c0_61, %c0_62], %68 {strides = array<i32>} : memref<256x128xf32, #tpu.memory_space<vmem>>, vector<256x128xf32>,
    %70 = vector.extract_strided_slice %1 {offsets = [2, 2, 0], sizes = [16, 16, 128], strides = [1, 1, 1]} : vector<18x18x128xbf16> to vector<16x16x128xbf16>
    %71 = vector.shape_cast %70 : vector<16x16x128xbf16> to vector<256x128xbf16>
    %c0_63 = arith.constant 0 : index
    %c0_64 = arith.constant 0 : index
    %72 = vector.load %arg8[%c0_63, %c0_64] : memref<256x128xf32, #tpu.memory_space<vmem>>, vector<256x128xf32>
    %c8 = arith.constant 8 : index
    %c0_65 = arith.constant 0 : index
    %c0_66 = arith.constant 0 : index
    %73 = vector.load %arg2[%c8, %c0_65, %c0_66] : memref<9x128x128xbf16, #tpu.memory_space<vmem>>, vector<1x128x128xbf16>
    %74 = vector.shape_cast %73 : vector<1x128x128xbf16> to vector<128x128xbf16>
    %cst_67 = arith.constant dense<0.000000e+00> : vector<256x128xf32>
    %75 = tpu.matmul %71, %74, %cst_67 {dimension_numbers = #tpu.dot_dimension_numbers<[1], [0], [0], [1], [0, 0, 1, 1], [], []>} : vector<256x128xbf16>, vector<128x128xbf16>, vector<256x128xf32> -> vector<256x128xf32>
    %76 = arith.addf %72, %75 : vector<256x128xf32>
    %c0_68 = arith.constant 0 : index
    %c0_69 = arith.constant 0 : index
    %77 = vector.load %arg8[%c0_68, %c0_69] : memref<256x128xf32, #tpu.memory_space<vmem>>, vector<256x128xf32>
    tpu.vector_store %arg8[%c0_68, %c0_69], %76 {strides = array<i32>} : memref<256x128xf32, #tpu.memory_space<vmem>>, vector<256x128xf32>,
    %cst_70 = arith.constant 0.000000e+00 : bf16
    %78 = vector.broadcast %cst_70 : bf16 to vector<18x18x128xbf16>
    %c0_71 = arith.constant 0 : index
    %c0_72 = arith.constant 0 : index
    %c0_73 = arith.constant 0 : index
    %79 = vector.load %arg7[%c0_71, %c0_72, %c0_73] : memref<18x18x128xbf16, #tpu.memory_space<vmem>>, vector<18x18x128xbf16>
    tpu.vector_store %arg7[%c0_71, %c0_72, %c0_73], %78 {strides = array<i32>} : memref<18x18x128xbf16, #tpu.memory_space<vmem>>, vector<18x18x128xbf16>,
    %c0_74 = arith.constant 0 : index
    %c0_75 = arith.constant 0 : index
    %80 = vector.load %arg8[%c0_74, %c0_75] : memref<256x128xf32, #tpu.memory_space<vmem>>, vector<256x128xf32>
    %cst_76 = arith.constant 0.000000e+00 : f32
    %81 = vector.broadcast %cst_76 : f32 to vector<256x128xf32>
    %82 = arith.maximumf %80, %81 : vector<256x128xf32>
    %83 = vector.shape_cast %82 : vector<256x128xf32> to vector<16x16x128xf32>
    %84 = arith.truncf %83 : vector<16x16x128xf32> to vector<16x16x128xbf16>
    %c1_77 = arith.constant 1 : index
    %c1_78 = arith.constant 1 : index
    %c0_79 = arith.constant 0 : index
    %85 = vector.load %arg7[%c1_77, %c1_78, %c0_79] : memref<18x18x128xbf16, #tpu.memory_space<vmem>>, vector<16x16x128xbf16>
    tpu.vector_store %arg7[%c1_77, %c1_78, %c0_79], %84 {strides = array<i32>} : memref<18x18x128xbf16, #tpu.memory_space<vmem>>, vector<16x16x128xbf16>,
    %c0_80 = arith.constant 0 : index
    %c0_81 = arith.constant 0 : index
    %86 = vector.load %arg5[%c0_80, %c0_81] : memref<1x128xf32, #tpu.memory_space<vmem>>, vector<1x128xf32>
    %87 = vector.shape_cast %86 : vector<1x128xf32> to vector<1x128xf32>
    %88 = vector.broadcast %87 : vector<1x128xf32> to vector<256x128xf32>
    %c0_82 = arith.constant 0 : index
    %c0_83 = arith.constant 0 : index
    %89 = vector.load %arg8[%c0_82, %c0_83] : memref<256x128xf32, #tpu.memory_space<vmem>>, vector<256x128xf32>
    tpu.vector_store %arg8[%c0_82, %c0_83], %88 {strides = array<i32>} : memref<256x128xf32, #tpu.memory_space<vmem>>, vector<256x128xf32>,
    %c0_84 = arith.constant 0 : index
    %c0_85 = arith.constant 0 : index
    %c0_86 = arith.constant 0 : index
    %90 = vector.load %arg7[%c0_84, %c0_85, %c0_86] : memref<18x18x128xbf16, #tpu.memory_space<vmem>>, vector<18x18x128xbf16>
    %91 = vector.extract_strided_slice %90 {offsets = [0, 0, 0], sizes = [16, 16, 128], strides = [1, 1, 1]} : vector<18x18x128xbf16> to vector<16x16x128xbf16>
    %92 = vector.shape_cast %91 : vector<16x16x128xbf16> to vector<256x128xbf16>
    %c0_87 = arith.constant 0 : index
    %c0_88 = arith.constant 0 : index
    %93 = vector.load %arg8[%c0_87, %c0_88] : memref<256x128xf32, #tpu.memory_space<vmem>>, vector<256x128xf32>
    %c0_89 = arith.constant 0 : index
    %c0_90 = arith.constant 0 : index
    %c0_91 = arith.constant 0 : index
    %94 = vector.load %arg4[%c0_89, %c0_90, %c0_91] : memref<9x128x128xbf16, #tpu.memory_space<vmem>>, vector<1x128x128xbf16>
    %95 = vector.shape_cast %94 : vector<1x128x128xbf16> to vector<128x128xbf16>
    %cst_92 = arith.constant dense<0.000000e+00> : vector<256x128xf32>
    %96 = tpu.matmul %92, %95, %cst_92 {dimension_numbers = #tpu.dot_dimension_numbers<[1], [0], [0], [1], [0, 0, 1, 1], [], []>} : vector<256x128xbf16>, vector<128x128xbf16>, vector<256x128xf32> -> vector<256x128xf32>
    %97 = arith.addf %93, %96 : vector<256x128xf32>
    %c0_93 = arith.constant 0 : index
    %c0_94 = arith.constant 0 : index
    %98 = vector.load %arg8[%c0_93, %c0_94] : memref<256x128xf32, #tpu.memory_space<vmem>>, vector<256x128xf32>
    tpu.vector_store %arg8[%c0_93, %c0_94], %97 {strides = array<i32>} : memref<256x128xf32, #tpu.memory_space<vmem>>, vector<256x128xf32>,
    %99 = vector.extract_strided_slice %90 {offsets = [0, 1, 0], sizes = [16, 16, 128], strides = [1, 1, 1]} : vector<18x18x128xbf16> to vector<16x16x128xbf16>
    %100 = vector.shape_cast %99 : vector<16x16x128xbf16> to vector<256x128xbf16>
    %c0_95 = arith.constant 0 : index
    %c0_96 = arith.constant 0 : index
    %101 = vector.load %arg8[%c0_95, %c0_96] : memref<256x128xf32, #tpu.memory_space<vmem>>, vector<256x128xf32>
    %c1_97 = arith.constant 1 : index
    %c0_98 = arith.constant 0 : index
    %c0_99 = arith.constant 0 : index
    %102 = vector.load %arg4[%c1_97, %c0_98, %c0_99] : memref<9x128x128xbf16, #tpu.memory_space<vmem>>, vector<1x128x128xbf16>
    %103 = vector.shape_cast %102 : vector<1x128x128xbf16> to vector<128x128xbf16>
    %cst_100 = arith.constant dense<0.000000e+00> : vector<256x128xf32>
    %104 = tpu.matmul %100, %103, %cst_100 {dimension_numbers = #tpu.dot_dimension_numbers<[1], [0], [0], [1], [0, 0, 1, 1], [], []>} : vector<256x128xbf16>, vector<128x128xbf16>, vector<256x128xf32> -> vector<256x128xf32>
    %105 = arith.addf %101, %104 : vector<256x128xf32>
    %c0_101 = arith.constant 0 : index
    %c0_102 = arith.constant 0 : index
    %106 = vector.load %arg8[%c0_101, %c0_102] : memref<256x128xf32, #tpu.memory_space<vmem>>, vector<256x128xf32>
    tpu.vector_store %arg8[%c0_101, %c0_102], %105 {strides = array<i32>} : memref<256x128xf32, #tpu.memory_space<vmem>>, vector<256x128xf32>,
    %107 = vector.extract_strided_slice %90 {offsets = [0, 2, 0], sizes = [16, 16, 128], strides = [1, 1, 1]} : vector<18x18x128xbf16> to vector<16x16x128xbf16>
    %108 = vector.shape_cast %107 : vector<16x16x128xbf16> to vector<256x128xbf16>
    %c0_103 = arith.constant 0 : index
    %c0_104 = arith.constant 0 : index
    %109 = vector.load %arg8[%c0_103, %c0_104] : memref<256x128xf32, #tpu.memory_space<vmem>>, vector<256x128xf32>
    %c2_105 = arith.constant 2 : index
    %c0_106 = arith.constant 0 : index
    %c0_107 = arith.constant 0 : index
    %110 = vector.load %arg4[%c2_105, %c0_106, %c0_107] : memref<9x128x128xbf16, #tpu.memory_space<vmem>>, vector<1x128x128xbf16>
    %111 = vector.shape_cast %110 : vector<1x128x128xbf16> to vector<128x128xbf16>
    %cst_108 = arith.constant dense<0.000000e+00> : vector<256x128xf32>
    %112 = tpu.matmul %108, %111, %cst_108 {dimension_numbers = #tpu.dot_dimension_numbers<[1], [0], [0], [1], [0, 0, 1, 1], [], []>} : vector<256x128xbf16>, vector<128x128xbf16>, vector<256x128xf32> -> vector<256x128xf32>
    %113 = arith.addf %109, %112 : vector<256x128xf32>
    %c0_109 = arith.constant 0 : index
    %c0_110 = arith.constant 0 : index
    %114 = vector.load %arg8[%c0_109, %c0_110] : memref<256x128xf32, #tpu.memory_space<vmem>>, vector<256x128xf32>
    tpu.vector_store %arg8[%c0_109, %c0_110], %113 {strides = array<i32>} : memref<256x128xf32, #tpu.memory_space<vmem>>, vector<256x128xf32>,
    %115 = vector.extract_strided_slice %90 {offsets = [1, 0, 0], sizes = [16, 16, 128], strides = [1, 1, 1]} : vector<18x18x128xbf16> to vector<16x16x128xbf16>
    %116 = vector.shape_cast %115 : vector<16x16x128xbf16> to vector<256x128xbf16>
    %c0_111 = arith.constant 0 : index
    %c0_112 = arith.constant 0 : index
    %117 = vector.load %arg8[%c0_111, %c0_112] : memref<256x128xf32, #tpu.memory_space<vmem>>, vector<256x128xf32>
    %c3_113 = arith.constant 3 : index
    %c0_114 = arith.constant 0 : index
    %c0_115 = arith.constant 0 : index
    %118 = vector.load %arg4[%c3_113, %c0_114, %c0_115] : memref<9x128x128xbf16, #tpu.memory_space<vmem>>, vector<1x128x128xbf16>
    %119 = vector.shape_cast %118 : vector<1x128x128xbf16> to vector<128x128xbf16>
    %cst_116 = arith.constant dense<0.000000e+00> : vector<256x128xf32>
    %120 = tpu.matmul %116, %119, %cst_116 {dimension_numbers = #tpu.dot_dimension_numbers<[1], [0], [0], [1], [0, 0, 1, 1], [], []>} : vector<256x128xbf16>, vector<128x128xbf16>, vector<256x128xf32> -> vector<256x128xf32>
    %121 = arith.addf %117, %120 : vector<256x128xf32>
    %c0_117 = arith.constant 0 : index
    %c0_118 = arith.constant 0 : index
    %122 = vector.load %arg8[%c0_117, %c0_118] : memref<256x128xf32, #tpu.memory_space<vmem>>, vector<256x128xf32>
    tpu.vector_store %arg8[%c0_117, %c0_118], %121 {strides = array<i32>} : memref<256x128xf32, #tpu.memory_space<vmem>>, vector<256x128xf32>,
    %123 = vector.extract_strided_slice %90 {offsets = [1, 1, 0], sizes = [16, 16, 128], strides = [1, 1, 1]} : vector<18x18x128xbf16> to vector<16x16x128xbf16>
    %124 = vector.shape_cast %123 : vector<16x16x128xbf16> to vector<256x128xbf16>
    %c0_119 = arith.constant 0 : index
    %c0_120 = arith.constant 0 : index
    %125 = vector.load %arg8[%c0_119, %c0_120] : memref<256x128xf32, #tpu.memory_space<vmem>>, vector<256x128xf32>
    %c4_121 = arith.constant 4 : index
    %c0_122 = arith.constant 0 : index
    %c0_123 = arith.constant 0 : index
    %126 = vector.load %arg4[%c4_121, %c0_122, %c0_123] : memref<9x128x128xbf16, #tpu.memory_space<vmem>>, vector<1x128x128xbf16>
    %127 = vector.shape_cast %126 : vector<1x128x128xbf16> to vector<128x128xbf16>
    %cst_124 = arith.constant dense<0.000000e+00> : vector<256x128xf32>
    %128 = tpu.matmul %124, %127, %cst_124 {dimension_numbers = #tpu.dot_dimension_numbers<[1], [0], [0], [1], [0, 0, 1, 1], [], []>} : vector<256x128xbf16>, vector<128x128xbf16>, vector<256x128xf32> -> vector<256x128xf32>
    %129 = arith.addf %125, %128 : vector<256x128xf32>
    %c0_125 = arith.constant 0 : index
    %c0_126 = arith.constant 0 : index
    %130 = vector.load %arg8[%c0_125, %c0_126] : memref<256x128xf32, #tpu.memory_space<vmem>>, vector<256x128xf32>
    tpu.vector_store %arg8[%c0_125, %c0_126], %129 {strides = array<i32>} : memref<256x128xf32, #tpu.memory_space<vmem>>, vector<256x128xf32>,
    %131 = vector.extract_strided_slice %90 {offsets = [1, 2, 0], sizes = [16, 16, 128], strides = [1, 1, 1]} : vector<18x18x128xbf16> to vector<16x16x128xbf16>
    %132 = vector.shape_cast %131 : vector<16x16x128xbf16> to vector<256x128xbf16>
    %c0_127 = arith.constant 0 : index
    %c0_128 = arith.constant 0 : index
    %133 = vector.load %arg8[%c0_127, %c0_128] : memref<256x128xf32, #tpu.memory_space<vmem>>, vector<256x128xf32>
    %c5_129 = arith.constant 5 : index
    %c0_130 = arith.constant 0 : index
    %c0_131 = arith.constant 0 : index
    %134 = vector.load %arg4[%c5_129, %c0_130, %c0_131] : memref<9x128x128xbf16, #tpu.memory_space<vmem>>, vector<1x128x128xbf16>
    %135 = vector.shape_cast %134 : vector<1x128x128xbf16> to vector<128x128xbf16>
    %cst_132 = arith.constant dense<0.000000e+00> : vector<256x128xf32>
    %136 = tpu.matmul %132, %135, %cst_132 {dimension_numbers = #tpu.dot_dimension_numbers<[1], [0], [0], [1], [0, 0, 1, 1], [], []>} : vector<256x128xbf16>, vector<128x128xbf16>, vector<256x128xf32> -> vector<256x128xf32>
    %137 = arith.addf %133, %136 : vector<256x128xf32>
    %c0_133 = arith.constant 0 : index
    %c0_134 = arith.constant 0 : index
    %138 = vector.load %arg8[%c0_133, %c0_134] : memref<256x128xf32, #tpu.memory_space<vmem>>, vector<256x128xf32>
    tpu.vector_store %arg8[%c0_133, %c0_134], %137 {strides = array<i32>} : memref<256x128xf32, #tpu.memory_space<vmem>>, vector<256x128xf32>,
    %139 = vector.extract_strided_slice %90 {offsets = [2, 0, 0], sizes = [16, 16, 128], strides = [1, 1, 1]} : vector<18x18x128xbf16> to vector<16x16x128xbf16>
    %140 = vector.shape_cast %139 : vector<16x16x128xbf16> to vector<256x128xbf16>
    %c0_135 = arith.constant 0 : index
    %c0_136 = arith.constant 0 : index
    %141 = vector.load %arg8[%c0_135, %c0_136] : memref<256x128xf32, #tpu.memory_space<vmem>>, vector<256x128xf32>
    %c6_137 = arith.constant 6 : index
    %c0_138 = arith.constant 0 : index
    %c0_139 = arith.constant 0 : index
    %142 = vector.load %arg4[%c6_137, %c0_138, %c0_139] : memref<9x128x128xbf16, #tpu.memory_space<vmem>>, vector<1x128x128xbf16>
    %143 = vector.shape_cast %142 : vector<1x128x128xbf16> to vector<128x128xbf16>
    %cst_140 = arith.constant dense<0.000000e+00> : vector<256x128xf32>
    %144 = tpu.matmul %140, %143, %cst_140 {dimension_numbers = #tpu.dot_dimension_numbers<[1], [0], [0], [1], [0, 0, 1, 1], [], []>} : vector<256x128xbf16>, vector<128x128xbf16>, vector<256x128xf32> -> vector<256x128xf32>
    %145 = arith.addf %141, %144 : vector<256x128xf32>
    %c0_141 = arith.constant 0 : index
    %c0_142 = arith.constant 0 : index
    %146 = vector.load %arg8[%c0_141, %c0_142] : memref<256x128xf32, #tpu.memory_space<vmem>>, vector<256x128xf32>
    tpu.vector_store %arg8[%c0_141, %c0_142], %145 {strides = array<i32>} : memref<256x128xf32, #tpu.memory_space<vmem>>, vector<256x128xf32>,
    %147 = vector.extract_strided_slice %90 {offsets = [2, 1, 0], sizes = [16, 16, 128], strides = [1, 1, 1]} : vector<18x18x128xbf16> to vector<16x16x128xbf16>
    %148 = vector.shape_cast %147 : vector<16x16x128xbf16> to vector<256x128xbf16>
    %c0_143 = arith.constant 0 : index
    %c0_144 = arith.constant 0 : index
    %149 = vector.load %arg8[%c0_143, %c0_144] : memref<256x128xf32, #tpu.memory_space<vmem>>, vector<256x128xf32>
    %c7_145 = arith.constant 7 : index
    %c0_146 = arith.constant 0 : index
    %c0_147 = arith.constant 0 : index
    %150 = vector.load %arg4[%c7_145, %c0_146, %c0_147] : memref<9x128x128xbf16, #tpu.memory_space<vmem>>, vector<1x128x128xbf16>
    %151 = vector.shape_cast %150 : vector<1x128x128xbf16> to vector<128x128xbf16>
    %cst_148 = arith.constant dense<0.000000e+00> : vector<256x128xf32>
    %152 = tpu.matmul %148, %151, %cst_148 {dimension_numbers = #tpu.dot_dimension_numbers<[1], [0], [0], [1], [0, 0, 1, 1], [], []>} : vector<256x128xbf16>, vector<128x128xbf16>, vector<256x128xf32> -> vector<256x128xf32>
    %153 = arith.addf %149, %152 : vector<256x128xf32>
    %c0_149 = arith.constant 0 : index
    %c0_150 = arith.constant 0 : index
    %154 = vector.load %arg8[%c0_149, %c0_150] : memref<256x128xf32, #tpu.memory_space<vmem>>, vector<256x128xf32>
    tpu.vector_store %arg8[%c0_149, %c0_150], %153 {strides = array<i32>} : memref<256x128xf32, #tpu.memory_space<vmem>>, vector<256x128xf32>,
    %155 = vector.extract_strided_slice %90 {offsets = [2, 2, 0], sizes = [16, 16, 128], strides = [1, 1, 1]} : vector<18x18x128xbf16> to vector<16x16x128xbf16>
    %156 = vector.shape_cast %155 : vector<16x16x128xbf16> to vector<256x128xbf16>
    %c0_151 = arith.constant 0 : index
    %c0_152 = arith.constant 0 : index
    %157 = vector.load %arg8[%c0_151, %c0_152] : memref<256x128xf32, #tpu.memory_space<vmem>>, vector<256x128xf32>
    %c8_153 = arith.constant 8 : index
    %c0_154 = arith.constant 0 : index
    %c0_155 = arith.constant 0 : index
    %158 = vector.load %arg4[%c8_153, %c0_154, %c0_155] : memref<9x128x128xbf16, #tpu.memory_space<vmem>>, vector<1x128x128xbf16>
    %159 = vector.shape_cast %158 : vector<1x128x128xbf16> to vector<128x128xbf16>
    %cst_156 = arith.constant dense<0.000000e+00> : vector<256x128xf32>
    %160 = tpu.matmul %156, %159, %cst_156 {dimension_numbers = #tpu.dot_dimension_numbers<[1], [0], [0], [1], [0, 0, 1, 1], [], []>} : vector<256x128xbf16>, vector<128x128xbf16>, vector<256x128xf32> -> vector<256x128xf32>
    %161 = arith.addf %157, %160 : vector<256x128xf32>
    %c0_157 = arith.constant 0 : index
    %c0_158 = arith.constant 0 : index
    %162 = vector.load %arg8[%c0_157, %c0_158] : memref<256x128xf32, #tpu.memory_space<vmem>>, vector<256x128xf32>
    tpu.vector_store %arg8[%c0_157, %c0_158], %161 {strides = array<i32>} : memref<256x128xf32, #tpu.memory_space<vmem>>, vector<256x128xf32>,
    %163 = vector.extract_strided_slice %1 {offsets = [1, 1, 0], sizes = [16, 16, 128], strides = [1, 1, 1]} : vector<18x18x128xbf16> to vector<16x16x128xbf16>
    %164 = arith.extf %163 : vector<16x16x128xbf16> to vector<16x16x128xf32>
    %165 = vector.shape_cast %164 : vector<16x16x128xf32> to vector<256x128xf32>
    %c0_159 = arith.constant 0 : index
    %c0_160 = arith.constant 0 : index
    %166 = vector.load %arg8[%c0_159, %c0_160] : memref<256x128xf32, #tpu.memory_space<vmem>>, vector<256x128xf32>
    %167 = arith.addf %166, %165 : vector<256x128xf32>
    %cst_161 = arith.constant 0.000000e+00 : f32
    %168 = vector.broadcast %cst_161 : f32 to vector<256x128xf32>
    %169 = arith.maximumf %167, %168 : vector<256x128xf32>
    %170 = vector.shape_cast %169 : vector<256x128xf32> to vector<1x16x16x128xf32>
    %c0_162 = arith.constant 0 : index
    %c0_163 = arith.constant 0 : index
    %c0_164 = arith.constant 0 : index
    %c0_165 = arith.constant 0 : index
    %171 = vector.load %arg6[%c0_162, %c0_163, %c0_164, %c0_165] : memref<1x16x16x128xf32, #tpu.memory_space<vmem>>, vector<1x16x16x128xf32>
    tpu.vector_store %arg6[%c0_162, %c0_163, %c0_164, %c0_165], %170 {strides = array<i32>} : memref<1x16x16x128xf32, #tpu.memory_space<vmem>>, vector<1x16x16x128xf32>,
    return
  }
  func.func @transform_0(%arg0: i32) -> (i32, i32, i32, i32) {
    %c0_i32 = arith.constant 0 : i32
    %c0_i32_0 = arith.constant 0 : i32
    %c0_i32_1 = arith.constant 0 : i32
    %c0_i32_2 = arith.constant 0 : i32
    return %arg0, %c0_i32, %c0_i32_0, %c0_i32_1 : i32, i32, i32, i32
  }
  func.func @transform_1(%arg0: i32) -> (i32, i32, i32) {
    %c0_i32 = arith.constant 0 : i32
    %c0_i32_0 = arith.constant 0 : i32
    %c0_i32_1 = arith.constant 0 : i32
    %c0_i32_2 = arith.constant 0 : i32
    return %c0_i32, %c0_i32_0, %c0_i32_1 : i32, i32, i32
  }
  func.func @transform_2(%arg0: i32) -> (i32, i32) {
    %c0_i32 = arith.constant 0 : i32
    %c0_i32_0 = arith.constant 0 : i32
    %c0_i32_1 = arith.constant 0 : i32
    return %c0_i32, %c0_i32_0 : i32, i32
  }
  func.func @transform_3(%arg0: i32) -> (i32, i32, i32) {
    %c0_i32 = arith.constant 0 : i32
    %c0_i32_0 = arith.constant 0 : i32
    %c0_i32_1 = arith.constant 0 : i32
    %c0_i32_2 = arith.constant 0 : i32
    return %c0_i32, %c0_i32_0, %c0_i32_1 : i32, i32, i32
  }
  func.func @transform_4(%arg0: i32) -> (i32, i32) {
    %c0_i32 = arith.constant 0 : i32
    %c0_i32_0 = arith.constant 0 : i32
    %c0_i32_1 = arith.constant 0 : i32
    return %c0_i32, %c0_i32_0 : i32, i32
  }
  func.func @transform_5(%arg0: i32) -> (i32, i32, i32, i32) {
    %c0_i32 = arith.constant 0 : i32
    %c0_i32_0 = arith.constant 0 : i32
    %c0_i32_1 = arith.constant 0 : i32
    %c0_i32_2 = arith.constant 0 : i32
    return %arg0, %c0_i32, %c0_i32_0, %c0_i32_1 : i32, i32, i32, i32
  }
}

</mosaic_0001>

<llo_original>
// kernel: tpu_custom_call.1
$region0: #{tpu_custom_call.1}
  #allocation0 [shape = 'u32[]', space=smem, size = 0x4, offset = 0x4, fixed_abs, tag = 'smem constant byte address 0x4 - core index']
  #allocation1 [shape = 'u32[144,128]{1,0:T(1,128)}', space=vmem, size = 0x12000, scoped, tag = 'internal scratch']
  #allocation2 [shape = 'bf16[18,18,128]{2,1,0:T(8,128)(2,1)}', space=vmem, size = 0x1b000, scoped, tag = 'scratch operand']
  #allocation3 [shape = 'f32[256,128]{1,0:T(8,128)}', space=vmem, size = 0x20000, scoped, tag = 'scratch operand']
  %s0 = inlined_call_operand.vmem [shape: bf16[2,18,18,128], index: 0, kind: input, shape index: {}]
  %s1 = inlined_call_operand.vmem [shape: bf16[9,128,128], index: 1, kind: input, shape index: {}]
  %s2 = inlined_call_operand.vmem [shape: f32[1,128], index: 2, kind: input, shape index: {}]
  %s3 = inlined_call_operand.hbm [shape: bf16[9,128,128], index: 3, kind: input, shape index: {}]
  %s4 = inlined_call_operand.vmem [shape: f32[1,128], index: 4, kind: input, shape index: {}]
  %s5 = inlined_call_operand.hbm [shape: f32[2,16,16,128], index: 5, kind: output, shape index: {}]
  %s6 = sld [smem:[#allocation0]]
  $region57: #{tpu_custom_call.1} parent=0
    _
  %s8 = ssub.s32 1, %s6
  %s9 = scalar_select 0, %s8, %s6
  $region1: #{tpu_custom_call.1} parent=0
    #allocation4 [shape = 'u8[294912]{0}', space=vmem, size = 0x48000, scoped, tag = 'input window, operand 3, single buffered']
    #allocation5 [shape = 's32[2]{0}', space=sflag, size = 0x8, scoped, tag = 'scoped memory for tpu_custom_call.1']
    #allocation6 [shape = 's32[2]{0}', space=sflag, size = 0x8, scoped, tag = 'scoped memory for tpu_custom_call.1']
    #allocation7 [shape = 'u8[262144]{0}', space=vmem, size = 0x40000, scoped, tag = 'output window, operand 0']
    %10 = vsyncpa [#allocation5], 0
    %11 = vsyncpa [#allocation6], 0
    %s12 = scalar_lea.sflag [#allocation6], 1
    %13 = vsyncpa %s12, 0
    loop: start=0, step=1, limit=4
    $region2: #{tpu_custom_call.1} parent=1 // loop_pre_header
      _
    $region3: #{tpu_custom_call.1} parent=1 // loop_header
      %s15 = sphi 0, %s19
      %p16 = scmp.ge.s32.totalorder %s15, 4
      %s25 = sphi 0, %s27
      %s28 = sphi 0, %s25
      %s29 = sphi 0, %s28
      %s45 = sphi 0, %s29
      %s49 = sphi 0, %s49
      %s51 = sphi 0, %s49
      %s52 = sphi 0, %s51
      %s66 = sphi 0, %s52
      %s70 = sphi 0, %s70
      %s72 = sphi 0, %s70
      %s73 = sphi 0, %s72
      %s87 = sphi 0, %s73
      %s91 = sphi 0, %s91
      %s93 = sphi 0, %s91
      %s94 = sphi 0, %s93
      %s108 = sphi 0, %s94
      %s112 = sphi 0, %s112
      %s114 = sphi 0, %s112
      %s115 = sphi 0, %s114
      %s129 = sphi 0, %s115
      %s135 = sphi 0, %s137
      %s138 = sphi 0, %s135
      %s139 = sphi 0, %s138
      %s155 = sphi 0, %s139
    $region4: #{tpu_custom_call.1} parent=1 // loop_header_branch
      %18 = sbr.rel (%p16) target = $region8
    $region5: #{tpu_custom_call.1} parent=1 // loop_body
      %s20 = ssub.s32 %s15, 1
      %s21 = ssub.s32 %s15, 2
      %s22 = sadd.s32 %s15, 1
      %s23 = ssub.s32 %s15, %s22
      %p24 = scmp.eq.s32.totalorder %s23, 0
      %s26 = sadd.s32 %s25, 1
      %s27 = scalar_select %p24, %s25, %s26
      %p30 = pneg %p24
      %p31 = scmp.eq.s32.totalorder %s15, 1
      %p32 = por %p30, %p31
      %p33 = scmp.ne.s32.totalorder %s25, %s28
      %p34 = scmp.eq.s32.totalorder %s15, 0
      %p35 = por %p33, %p34
      %p36 = scmp.ne.s32.totalorder %s25, %s28
      %p37 = scmp.eq.s32.totalorder %s20, 1
      %p38 = por %p36, %p37
      %p39 = scmp.ne.s32.totalorder %s28, %s29
      %p40 = scmp.eq.s32.totalorder %s20, 0
      %p41 = por %p39, %p40
      %p42 = scmp.ne.s32.totalorder %s28, %s29
      %p43 = scmp.eq.s32.totalorder %s21, 1
      %p44 = por %p42, %p43
      %p46 = scmp.ne.s32.totalorder %s29, %s45
      %p47 = scmp.eq.s32.totalorder %s21, 0
      %p48 = por %p46, %p47
      %s50 = sadd.s32 %s49, 1
      %p53 = scmp.eq.s32.totalorder %s15, 1
      %p54 = scmp.ne.s32.totalorder %s49, %s51
      %p55 = scmp.eq.s32.totalorder %s15, 0
      %p56 = por %p54, %p55
      %p57 = scmp.ne.s32.totalorder %s49, %s51
      %p58 = scmp.eq.s32.totalorder %s20, 1
      %p59 = por %p57, %p58
      %p60 = scmp.ne.s32.totalorder %s51, %s52
      %p61 = scmp.eq.s32.totalorder %s20, 0
      %p62 = por %p60, %p61
      %p63 = scmp.ne.s32.totalorder %s51, %s52
      %p64 = scmp.eq.s32.totalorder %s21, 1
      %p65 = por %p63, %p64
      %p67 = scmp.ne.s32.totalorder %s52, %s66
      %p68 = scmp.eq.s32.totalorder %s21, 0
      %p69 = por %p67, %p68
      %s71 = sadd.s32 %s70, 1
      %p74 = scmp.eq.s32.totalorder %s15, 1
      %p75 = scmp.ne.s32.totalorder %s70, %s72
      %p76 = scmp.eq.s32.totalorder %s15, 0
      %p77 = por %p75, %p76
      %p78 = scmp.ne.s32.totalorder %s70, %s72
      %p79 = scmp.eq.s32.totalorder %s20, 1
      %p80 = por %p78, %p79
      %p81 = scmp.ne.s32.totalorder %s72, %s73
      %p82 = scmp.eq.s32.totalorder %s20, 0
      %p83 = por %p81, %p82
      %p84 = scmp.ne.s32.totalorder %s72, %s73
      %p85 = scmp.eq.s32.totalorder %s21, 1
      %p86 = por %p84, %p85
      %p88 = scmp.ne.s32.totalorder %s73, %s87
      %p89 = scmp.eq.s32.totalorder %s21, 0
      %p90 = por %p88, %p89
      %s92 = sadd.s32 %s91, 1
      %p95 = scmp.eq.s32.totalorder %s15, 1
      %p96 = scmp.ne.s32.totalorder %s91, %s93
      %p97 = scmp.eq.s32.totalorder %s15, 0
      %p98 = por %p96, %p97
      %p99 = scmp.ne.s32.totalorder %s91, %s93
      %p100 = scmp.eq.s32.totalorder %s20, 1
      %p101 = por %p99, %p100
      %p102 = scmp.ne.s32.totalorder %s93, %s94
      %p103 = scmp.eq.s32.totalorder %s20, 0
      %p104 = por %p102, %p103
      %p105 = scmp.ne.s32.totalorder %s93, %s94
      %p106 = scmp.eq.s32.totalorder %s21, 1
      %p107 = por %p105, %p106
      %p109 = scmp.ne.s32.totalorder %s94, %s108
      %p110 = scmp.eq.s32.totalorder %s21, 0
      %p111 = por %p109, %p110
      %s113 = sadd.s32 %s112, 1
      %p116 = scmp.eq.s32.totalorder %s15, 1
      %p117 = scmp.ne.s32.totalorder %s112, %s114
      %p118 = scmp.eq.s32.totalorder %s15, 0
      %p119 = por %p117, %p118
      %p120 = scmp.ne.s32.totalorder %s112, %s114
      %p121 = scmp.eq.s32.totalorder %s20, 1
      %p122 = por %p120, %p121
      %p123 = scmp.ne.s32.totalorder %s114, %s115
      %p124 = scmp.eq.s32.totalorder %s20, 0
      %p125 = por %p123, %p124
      %p126 = scmp.ne.s32.totalorder %s114, %s115
      %p127 = scmp.eq.s32.totalorder %s21, 1
      %p128 = por %p126, %p127
      %p130 = scmp.ne.s32.totalorder %s115, %s129
      %p131 = scmp.eq.s32.totalorder %s21, 0
      %p132 = por %p130, %p131
      %s133 = ssub.s32 %s15, %s22
      %p134 = scmp.eq.s32.totalorder %s133, 0
      %s136 = sadd.s32 %s135, 1
      %s137 = scalar_select %p134, %s135, %s136
      %p140 = pneg %p134
      %p141 = scmp.eq.s32.totalorder %s15, 1
      %p142 = por %p140, %p141
      %p143 = scmp.ne.s32.totalorder %s135, %s138
      %p144 = scmp.eq.s32.totalorder %s15, 0
      %p145 = por %p143, %p144
      %p146 = scmp.ne.s32.totalorder %s135, %s138
      %p147 = scmp.eq.s32.totalorder %s20, 1
      %p148 = por %p146, %p147
      %p149 = scmp.ne.s32.totalorder %s138, %s139
      %p150 = scmp.eq.s32.totalorder %s20, 0
      %p151 = por %p149, %p150
      %p152 = scmp.ne.s32.totalorder %s138, %s139
      %p153 = scmp.eq.s32.totalorder %s21, 1
      %p154 = por %p152, %p153
      %p156 = scmp.ne.s32.totalorder %s139, %s155
      %p157 = scmp.eq.s32.totalorder %s21, 0
      %p158 = por %p156, %p157
      %p159 = scmp.le.s32.totalorder 1, %s15
      %p160 = scmp.lt.s32.totalorder %s15, 3
      %p161 = pnand %p159, %p160
      %p162 = pneg %p161
      // Predicated region
      $region9: #{tpu_custom_call.1} parent=5 // pred_check
        _
      $region10: #{tpu_custom_call.1} parent=5 // pred_check_branch
        %164 = sbr.rel (%p161) target = $region12
      $region11: #{tpu_custom_call.1} parent=5 // pred_region
        %s165 = ssub.s32 %s15, 1
        // Predicated region
        $region13: #{tpu_custom_call.1} parent=11 // pred_check
          %p166 = pneg %p62
        $region14: #{tpu_custom_call.1} parent=11 // pred_check_branch
          %168 = sbr.rel (%p166) target = $region16
        $region15: #{tpu_custom_call.1} parent=11 // pred_region
          _
        $region16: #{tpu_custom_call.1} parent=11 // pred_fallthru
          _
        // Predicated region
        $region17: #{tpu_custom_call.1} parent=11 // pred_check
          %p169 = pneg %p83
        $region18: #{tpu_custom_call.1} parent=11 // pred_check_branch
          %171 = sbr.rel (%p169) target = $region20
        $region19: #{tpu_custom_call.1} parent=11 // pred_region
          _
        $region20: #{tpu_custom_call.1} parent=11 // pred_fallthru
          _
        // Predicated region
        $region21: #{tpu_custom_call.1} parent=11 // pred_check
          %p172 = pneg %p104
        $region22: #{tpu_custom_call.1} parent=11 // pred_check_branch
          %174 = sbr.rel (%p172) target = $region24
        $region23: #{tpu_custom_call.1} parent=11 // pred_region
          %s176 = ssub.s32 9216, 9216
          %177 = vsyncadd [#allocation5], %s176
          %s178 = sshll.u32 [#allocation4], 4
          %s179 = int_to_ptr.vmem [resolvable:$true] %s178
          %184 = dma.hbm_to_vmem [thread:$0]  %s3, 9216, %s179, [#allocation5], 64, 64, 4
        $region24: #{tpu_custom_call.1} parent=11 // pred_fallthru
          _
        // Predicated region
        $region25: #{tpu_custom_call.1} parent=11 // pred_check
          %p185 = pneg %p125
        $region26: #{tpu_custom_call.1} parent=11 // pred_check_branch
          %187 = sbr.rel (%p185) target = $region28
        $region27: #{tpu_custom_call.1} parent=11 // pred_region
          _
        $region28: #{tpu_custom_call.1} parent=11 // pred_fallthru
          _
      $region12: #{tpu_custom_call.1} parent=5 // pred_fallthru
        _
      %p188 = scmp.lt.s32.totalorder %s15, 2
      // Predicated region
      $region29: #{tpu_custom_call.1} parent=5 // pred_check
        %p189 = pneg %p188
      $region30: #{tpu_custom_call.1} parent=5 // pred_check_branch
        %191 = sbr.rel (%p189) target = $region32
      $region31: #{tpu_custom_call.1} parent=5 // pred_region
        // Predicated region
        $region33: #{tpu_custom_call.1} parent=31 // pred_check
          %p192 = pneg %p35
        $region34: #{tpu_custom_call.1} parent=31 // pred_check_branch
          %194 = sbr.rel (%p192) target = $region36
        $region35: #{tpu_custom_call.1} parent=31 // pred_region
          %p195 = scmp.lt.s32.totalorder %s15, 1
          %s196 = scalar_select %p195, %s15, 1
          %s197 = smul.addr %s196, 54
          %s198 = smul.addr %s197, 4
          %s199 = scalar_lea.vmem %s0, %s198
        $region36: #{tpu_custom_call.1} parent=31 // pred_fallthru
          _
      $region32: #{tpu_custom_call.1} parent=5 // pred_fallthru
        _
      %p200 = scmp.le.s32.totalorder 1, %s15
      %p201 = scmp.lt.s32.totalorder %s15, 3
      %p202 = pnand %p200, %p201
      %p203 = pneg %p202
      // Predicated region
      $region37: #{tpu_custom_call.1} parent=5 // pred_check
        _
      $region38: #{tpu_custom_call.1} parent=5 // pred_check_branch
        %205 = sbr.rel (%p202) target = $region40
      $region39: #{tpu_custom_call.1} parent=5 // pred_region
        %s206 = ssub.s32 %s15, 1
        // Predicated region
        $region41: #{tpu_custom_call.1} parent=39 // pred_check
          %p207 = pneg %p104
        $region42: #{tpu_custom_call.1} parent=39 // pred_check_branch
          %209 = sbr.rel (%p207) target = $region44
        $region43: #{tpu_custom_call.1} parent=39 // pred_region
          %210 = dma.done [#allocation5], 9216
        $region44: #{tpu_custom_call.1} parent=39 // pred_fallthru
          _
        %p211 = scmp.lt.s32.totalorder %s20, 1
        %s212 = scalar_select %p211, %s20, 1
        %s213 = smul.addr %s212, 54
        %s214 = smul.addr %s213, 4
        %s215 = scalar_lea.vmem %s0, %s214
        %p216 = pneg %p41
        %p217 = pneg %p38
        %p218 = pneg %p62
        %p219 = pneg %p59
        %p220 = pneg %p83
        %p221 = pneg %p80
        %p222 = pneg %p104
        %p223 = pneg %p101
        %p224 = pneg %p125
        %p225 = pneg %p122
        %p226 = pneg %p151
        %p227 = pneg %p148
        %s228 = sand.u32 %s138, 1
        %s229 = scalar_lea.sflag [#allocation6], %s228
        %s230 = sand.u32 %s138, 1
        %s231 = smul.addr %s230, 256
        %s232 = scalar_lea.vmem [#allocation7], %s231
        %p233 = scmp.lt.s32.totalorder %s20, 1
        %s234 = scalar_select %p233, %s20, 1
        %s235 = smul.addr %s234, 54
        %s236 = smul.addr %s235, 4
        %s237 = scalar_lea.vmem %s0, %s236
        %v239 = vld [vmem:[%s237] sm:$0xf]
        %v240 = vld [vmem:[%s237 + $0x4] sm:$0xf]
        %v241 = vld [vmem:[%s237 + $0x8] sm:$0x1]
        %v242 = vld [vmem:[%s237 + $0xc] sm:$0xf]
        %v243 = vld [vmem:[%s237 + $0x10] sm:$0xf]
        %v244 = vld [vmem:[%s237 + $0x14] sm:$0x1]
        %v245 = vld [vmem:[%s237 + $0x18] sm:$0xf]
        %v246 = vld [vmem:[%s237 + $0x1c] sm:$0xf]
        %v247 = vld [vmem:[%s237 + $0x20] sm:$0x1]
        %v248 = vld [vmem:[%s237 + $0x24] sm:$0xf]
        %v249 = vld [vmem:[%s237 + $0x28] sm:$0xf]
        %v250 = vld [vmem:[%s237 + $0x2c] sm:$0x1]
        %v251 = vld [vmem:[%s237 + $0x30] sm:$0xf]
        %v252 = vld [vmem:[%s237 + $0x34] sm:$0xf]
        %v253 = vld [vmem:[%s237 + $0x38] sm:$0x1]
        %v254 = vld [vmem:[%s237 + $0x3c] sm:$0xf]
        %v255 = vld [vmem:[%s237 + $0x40] sm:$0xf]
        %v256 = vld [vmem:[%s237 + $0x44] sm:$0x1]
        %v257 = vld [vmem:[%s237 + $0x48] sm:$0xf]
        %v258 = vld [vmem:[%s237 + $0x4c] sm:$0xf]
        %v259 = vld [vmem:[%s237 + $0x50] sm:$0x1]
        %v260 = vld [vmem:[%s237 + $0x54] sm:$0xf]
        %v261 = vld [vmem:[%s237 + $0x58] sm:$0xf]
        %v262 = vld [vmem:[%s237 + $0x5c] sm:$0x1]
        %v263 = vld [vmem:[%s237 + $0x60] sm:$0xf]
        %v264 = vld [vmem:[%s237 + $0x64] sm:$0xf]
        %v265 = vld [vmem:[%s237 + $0x68] sm:$0x1]
        %v266 = vld [vmem:[%s237 + $0x6c] sm:$0xf]
        %v267 = vld [vmem:[%s237 + $0x70] sm:$0xf]
        %v268 = vld [vmem:[%s237 + $0x74] sm:$0x1]
        %v269 = vld [vmem:[%s237 + $0x78] sm:$0xf]
        %v270 = vld [vmem:[%s237 + $0x7c] sm:$0xf]
        %v271 = vld [vmem:[%s237 + $0x80] sm:$0x1]
        %v272 = vld [vmem:[%s237 + $0x84] sm:$0xf]
        %v273 = vld [vmem:[%s237 + $0x88] sm:$0xf]
        %v274 = vld [vmem:[%s237 + $0x8c] sm:$0x1]
        %v275 = vld [vmem:[%s237 + $0x90] sm:$0xf]
        %v276 = vld [vmem:[%s237 + $0x94] sm:$0xf]
        %v277 = vld [vmem:[%s237 + $0x98] sm:$0x1]
        %v278 = vld [vmem:[%s237 + $0x9c] sm:$0xf]
        %v279 = vld [vmem:[%s237 + $0xa0] sm:$0xf]
        %v280 = vld [vmem:[%s237 + $0xa4] sm:$0x1]
        %v281 = vld [vmem:[%s237 + $0xa8] sm:$0xf]
        %v282 = vld [vmem:[%s237 + $0xac] sm:$0xf]
        %v283 = vld [vmem:[%s237 + $0xb0] sm:$0x1]
        %v284 = vld [vmem:[%s237 + $0xb4] sm:$0xf]
        %v285 = vld [vmem:[%s237 + $0xb8] sm:$0xf]
        %v286 = vld [vmem:[%s237 + $0xbc] sm:$0x1]
        %v287 = vld [vmem:[%s237 + $0xc0] sm:$0xf]
        %v288 = vld [vmem:[%s237 + $0xc4] sm:$0xf]
        %v289 = vld [vmem:[%s237 + $0xc8] sm:$0x1]
        %v290 = vld [vmem:[%s237 + $0xcc] sm:$0xf]
        %v291 = vld [vmem:[%s237 + $0xd0] sm:$0xf]
        %v292 = vld [vmem:[%s237 + $0xd4] sm:$0x1]
        %v293 = vld [vmem:[%s2] sm:$0x1]
        %v295 = vlaneseq
        %v296 = vshrl.u32 %v295, 7
        %v297 = vsub.s32 0, %v296
        %v298 = vrot.slane %v293, %v297
        %300 = vst [vmem:[#allocation3] sm:$0xff] %v298
        %301 = vst [vmem:[#allocation3 + $0x8] sm:$0xff] %v298
        %302 = vst [vmem:[#allocation3 + $0x10] sm:$0xff] %v298
        %303 = vst [vmem:[#allocation3 + $0x18] sm:$0xff] %v298
        %304 = vst [vmem:[#allocation3 + $0x20] sm:$0xff] %v298
        %305 = vst [vmem:[#allocation3 + $0x28] sm:$0xff] %v298
        %306 = vst [vmem:[#allocation3 + $0x30] sm:$0xff] %v298
        %307 = vst [vmem:[#allocation3 + $0x38] sm:$0xff] %v298
        %308 = vst [vmem:[#allocation3 + $0x40] sm:$0xff] %v298
        %309 = vst [vmem:[#allocation3 + $0x48] sm:$0xff] %v298
        %310 = vst [vmem:[#allocation3 + $0x50] sm:$0xff] %v298
        %311 = vst [vmem:[#allocation3 + $0x58] sm:$0xff] %v298
        %312 = vst [vmem:[#allocation3 + $0x60] sm:$0xff] %v298
        %313 = vst [vmem:[#allocation3 + $0x68] sm:$0xff] %v298
        %314 = vst [vmem:[#allocation3 + $0x70] sm:$0xff] %v298
        %315 = vst [vmem:[#allocation3 + $0x78] sm:$0xff] %v298
        %316 = vst [vmem:[#allocation3 + $0x80] sm:$0xff] %v298
        %317 = vst [vmem:[#allocation3 + $0x88] sm:$0xff] %v298
        %318 = vst [vmem:[#allocation3 + $0x90] sm:$0xff] %v298
        %319 = vst [vmem:[#allocation3 + $0x98] sm:$0xff] %v298
        %320 = vst [vmem:[#allocation3 + $0xa0] sm:$0xff] %v298
        %321 = vst [vmem:[#allocation3 + $0xa8] sm:$0xff] %v298
        %322 = vst [vmem:[#allocation3 + $0xb0] sm:$0xff] %v298
        %323 = vst [vmem:[#allocation3 + $0xb8] sm:$0xff] %v298
        %324 = vst [vmem:[#allocation3 + $0xc0] sm:$0xff] %v298
        %325 = vst [vmem:[#allocation3 + $0xc8] sm:$0xff] %v298
        %326 = vst [vmem:[#allocation3 + $0xd0] sm:$0xff] %v298
        %327 = vst [vmem:[#allocation3 + $0xd8] sm:$0xff] %v298
        %328 = vst [vmem:[#allocation3 + $0xe0] sm:$0xff] %v298
        %329 = vst [vmem:[#allocation3 + $0xe8] sm:$0xff] %v298
        %330 = vst [vmem:[#allocation3 + $0xf0] sm:$0xff] %v298
        %331 = vst [vmem:[#allocation3 + $0xf8] sm:$0xff] %v298
        %v332 = vld [vmem:[#allocation3] sm:$0xff]
        %v333 = vld [vmem:[#allocation3 + $0x8] sm:$0xff]
        %v334 = vld [vmem:[#allocation3 + $0x10] sm:$0xff]
        %v335 = vld [vmem:[#allocation3 + $0x18] sm:$0xff]
        %v336 = vld [vmem:[#allocation3 + $0x20] sm:$0xff]
        %v337 = vld [vmem:[#allocation3 + $0x28] sm:$0xff]
        %v338 = vld [vmem:[#allocation3 + $0x30] sm:$0xff]
        %v339 = vld [vmem:[#allocation3 + $0x38] sm:$0xff]
        %v340 = vld [vmem:[#allocation3 + $0x40] sm:$0xff]
        %v341 = vld [vmem:[#allocation3 + $0x48] sm:$0xff]
        %v342 = vld [vmem:[#allocation3 + $0x50] sm:$0xff]
        %v343 = vld [vmem:[#allocation3 + $0x58] sm:$0xff]
        %v344 = vld [vmem:[#allocation3 + $0x60] sm:$0xff]
        %v345 = vld [vmem:[#allocation3 + $0x68] sm:$0xff]
        %v346 = vld [vmem:[#allocation3 + $0x70] sm:$0xff]
        %v347 = vld [vmem:[#allocation3 + $0x78] sm:$0xff]
        %v348 = vld [vmem:[#allocation3 + $0x80] sm:$0xff]
        %v349 = vld [vmem:[#allocation3 + $0x88] sm:$0xff]
        %v350 = vld [vmem:[#allocation3 + $0x90] sm:$0xff]
        %v351 = vld [vmem:[#allocation3 + $0x98] sm:$0xff]
        %v352 = vld [vmem:[#allocation3 + $0xa0] sm:$0xff]
        %v353 = vld [vmem:[#allocation3 + $0xa8] sm:$0xff]
        %v354 = vld [vmem:[#allocation3 + $0xb0] sm:$0xff]
        %v355 = vld [vmem:[#allocation3 + $0xb8] sm:$0xff]
        %v356 = vld [vmem:[#allocation3 + $0xc0] sm:$0xff]
        %v357 = vld [vmem:[#allocation3 + $0xc8] sm:$0xff]
        %v358 = vld [vmem:[#allocation3 + $0xd0] sm:$0xff]
        %v359 = vld [vmem:[#allocation3 + $0xd8] sm:$0xff]
        %v360 = vld [vmem:[#allocation3 + $0xe0] sm:$0xff]
        %v361 = vld [vmem:[#allocation3 + $0xe8] sm:$0xff]
        %v362 = vld [vmem:[#allocation3 + $0xf0] sm:$0xff]
        %v363 = vld [vmem:[#allocation3 + $0xf8] sm:$0xff]
        %v364 = vld [vmem:[%s1] sm:$0xf]
        %v365 = vld [vmem:[%s1 + $0x4] sm:$0xf]
        %v366 = vld [vmem:[%s1 + $0x8] sm:$0xf]
        %v367 = vld [vmem:[%s1 + $0xc] sm:$0xf]
        %v368 = vld [vmem:[%s1 + $0x10] sm:$0xf]
        %v369 = vld [vmem:[%s1 + $0x14] sm:$0xf]
        %v370 = vld [vmem:[%s1 + $0x18] sm:$0xf]
        %v371 = vld [vmem:[%s1 + $0x1c] sm:$0xf]
        %v372 = vld [vmem:[%s1 + $0x20] sm:$0xf]
        %v373 = vld [vmem:[%s1 + $0x24] sm:$0xf]
        %v374 = vld [vmem:[%s1 + $0x28] sm:$0xf]
        %v375 = vld [vmem:[%s1 + $0x2c] sm:$0xf]
        %v376 = vld [vmem:[%s1 + $0x30] sm:$0xf]
        %v377 = vld [vmem:[%s1 + $0x34] sm:$0xf]
        %v378 = vld [vmem:[%s1 + $0x38] sm:$0xf]
        %v379 = vld [vmem:[%s1 + $0x3c] sm:$0xf]
        %v412 = vunpack.c.l.b16 %v239
        %v413 = vunpack.c.l.b16 %v240
        %v414 = vunpack.c.l.b16 %v242
        %v415 = vunpack.c.l.b16 %v243
        %v416 = vunpack.c.l.b16 %v245
        %v417 = vunpack.c.l.b16 %v246
        %v418 = vunpack.c.l.b16 %v248
        %v419 = vunpack.c.l.b16 %v249
        %v420 = vunpack.c.l.b16 %v251
        %v421 = vunpack.c.l.b16 %v252
        %v422 = vunpack.c.l.b16 %v254
        %v423 = vunpack.c.l.b16 %v255
        %v424 = vunpack.c.l.b16 %v257
        %v425 = vunpack.c.l.b16 %v258
        %v426 = vunpack.c.l.b16 %v260
        %v427 = vunpack.c.l.b16 %v261
        %v428 = vunpack.c.l.b16 %v263
        %v429 = vunpack.c.l.b16 %v264
        %v430 = vunpack.c.l.b16 %v266
        %v431 = vunpack.c.l.b16 %v267
        %v432 = vunpack.c.l.b16 %v269
        %v433 = vunpack.c.l.b16 %v270
        %v434 = vunpack.c.l.b16 %v272
        %v435 = vunpack.c.l.b16 %v273
        %v436 = vunpack.c.l.b16 %v275
        %v437 = vunpack.c.l.b16 %v276
        %v438 = vunpack.c.l.b16 %v278
        %v439 = vunpack.c.l.b16 %v279
        %v440 = vunpack.c.l.b16 %v281
        %v441 = vunpack.c.l.b16 %v282
        %v442 = vunpack.c.l.b16 %v284
        %v443 = vunpack.c.l.b16 %v285
        %v444 = vpack.c.b16 %v413, %v412
        %v445 = vpack.c.b16 %v415, %v414
        %v446 = vpack.c.b16 %v417, %v416
        %v447 = vpack.c.b16 %v419, %v418
        %v448 = vpack.c.b16 %v421, %v420
        %v449 = vpack.c.b16 %v423, %v422
        %v450 = vpack.c.b16 %v425, %v424
        %v451 = vpack.c.b16 %v427, %v426
        %v452 = vpack.c.b16 %v429, %v428
        %v453 = vpack.c.b16 %v431, %v430
        %v454 = vpack.c.b16 %v433, %v432
        %v455 = vpack.c.b16 %v435, %v434
        %v456 = vpack.c.b16 %v437, %v436
        %v457 = vpack.c.b16 %v439, %v438
        %v458 = vpack.c.b16 %v441, %v440
        %v459 = vpack.c.b16 %v443, %v442
        %v492 = vunpack.c.l.b16 %v364
        %v493 = vunpack.c.l.b16 %v365
        %v494 = vunpack.c.l.b16 %v366
        %v495 = vunpack.c.l.b16 %v367
        %v496 = vunpack.c.l.b16 %v368
        %v497 = vunpack.c.l.b16 %v369
        %v498 = vunpack.c.l.b16 %v370
        %v499 = vunpack.c.l.b16 %v371
        %v500 = vunpack.c.l.b16 %v372
        %v501 = vunpack.c.l.b16 %v373
        %v502 = vunpack.c.l.b16 %v374
        %v503 = vunpack.c.l.b16 %v375
        %v504 = vunpack.c.l.b16 %v376
        %v505 = vunpack.c.l.b16 %v377
        %v506 = vunpack.c.l.b16 %v378
        %v507 = vunpack.c.l.b16 %v379
        %v508 = vpack.c.b16 %v493, %v492
        %v509 = vpack.c.b16 %v495, %v494
        %v510 = vpack.c.b16 %v497, %v496
        %v511 = vpack.c.b16 %v499, %v498
        %v512 = vpack.c.b16 %v501, %v500
        %v513 = vpack.c.b16 %v503, %v502
        %v514 = vpack.c.b16 %v505, %v504
        %v515 = vpack.c.b16 %v507, %v506
        %524 = vmatprep.subr.bf16.mxu0 0
        %525 = vmatpush1.bf16.msra.mxu0 %v508
        %526 = vmatprep.subr.bf16.mxu0 0
        %527 = vmatpush1.bf16.msra.mxu0 %v509
        %528 = vmatprep.subr.bf16.mxu0 0
        %529 = vmatpush1.bf16.msra.mxu0 %v510
        %530 = vmatprep.subr.bf16.mxu0 0
        %531 = vmatpush1.bf16.msra.mxu0 %v511
        %532 = vmatprep.subr.bf16.mxu0 0
        %533 = vmatpush1.bf16.msra.mxu0 %v512
        %534 = vmatprep.subr.bf16.mxu0 0
        %535 = vmatpush1.bf16.msra.mxu0 %v513
        %536 = vmatprep.subr.bf16.mxu0 0
        %537 = vmatpush1.bf16.msra.mxu0 %v514
        %538 = vmatprep.subr.bf16.mxu0 0
        %539 = vmatpush1.bf16.msra.mxu0 %v515
        %540 = vmatprep.subr.bf16.mxu0 0
        %541 = vmatpush1.bf16.msra.mxu0 0
        %542 = vmatprep.subr.bf16.mxu0 0
        %543 = vmatpush1.bf16.msra.mxu0 0
        %544 = vmatprep.subr.bf16.mxu0 0
        %545 = vmatpush1.bf16.msra.mxu0 0
        %546 = vmatprep.subr.bf16.mxu0 0
        %547 = vmatpush1.bf16.msra.mxu0 0
        %548 = vmatprep.subr.bf16.mxu0 0
        %549 = vmatpush1.bf16.msra.mxu0 0
        %550 = vmatprep.subr.bf16.mxu0 0
        %551 = vmatpush1.bf16.msra.mxu0 0
        %552 = vmatprep.subr.bf16.mxu0 0
        %553 = vmatpush1.bf16.msra.mxu0 0
        %554 = vmatprep.subr.bf16.mxu0 0
        %555 = vmatpush1.bf16.msra.mxu0 0
        %556 = vmatprep.mubr.bf16.mxu0 0
        %557 = vmatmul.mubr.bf16.gmra.mrb[0].mxu0 %v444
        %v558 = vpop.f32.mrb[0].mxu0
        %v559 = vadd.f32 0.0, %v558
        %v560 = vpop.f32.mrb[0].mxu0
        %v561 = vpop.f32.mrb[0].mxu0
        %v562 = vadd.f32 0.0, %v561
        %v563 = vpop.f32.mrb[0].mxu0
        %564 = vmatprep.mubr.bf16.mxu0 0
        %565 = vmatmul.mubr.bf16.gmra.mrb[0].mxu0 %v445
        %v566 = vpop.f32.mrb[0].mxu0
        %v567 = vadd.f32 0.0, %v566
        %v568 = vpop.f32.mrb[0].mxu0
        %v569 = vpop.f32.mrb[0].mxu0
        %v570 = vadd.f32 0.0, %v569
        %v571 = vpop.f32.mrb[0].mxu0
        %572 = vmatprep.mubr.bf16.mxu0 0
        %573 = vmatmul.mubr.bf16.gmra.mrb[0].mxu0 %v446
        %v574 = vpop.f32.mrb[0].mxu0
        %v575 = vadd.f32 0.0, %v574
        %v576 = vpop.f32.mrb[0].mxu0
        %v577 = vpop.f32.mrb[0].mxu0
        %v578 = vadd.f32 0.0, %v577
        %v579 = vpop.f32.mrb[0].mxu0
        %580 = vmatprep.mubr.bf16.mxu0 0
        %581 = vmatmul.mubr.bf16.gmra.mrb[0].mxu0 %v447
        %v582 = vpop.f32.mrb[0].mxu0
        %v583 = vadd.f32 0.0, %v582
        %v584 = vpop.f32.mrb[0].mxu0
        %v585 = vpop.f32.mrb[0].mxu0
        %v586 = vadd.f32 0.0, %v585
        %v587 = vpop.f32.mrb[0].mxu0
        %588 = vmatprep.mubr.bf16.mxu0 0
        %589 = vmatmul.mubr.bf16.gmra.mrb[0].mxu0 %v448
        %v590 = vpop.f32.mrb[0].mxu0
        %v591 = vadd.f32 0.0, %v590
        %v592 = vpop.f32.mrb[0].mxu0
        %v593 = vpop.f32.mrb[0].mxu0
        %v594 = vadd.f32 0.0, %v593
        %v595 = vpop.f32.mrb[0].mxu0
        %596 = vmatprep.mubr.bf16.mxu0 0
        %597 = vmatmul.mubr.bf16.gmra.mrb[0].mxu0 %v449
        %v598 = vpop.f32.mrb[0].mxu0
        %v599 = vadd.f32 0.0, %v598
        %v600 = vpop.f32.mrb[0].mxu0
        %v601 = vpop.f32.mrb[0].mxu0
        %v602 = vadd.f32 0.0, %v601
        %v603 = vpop.f32.mrb[0].mxu0
        %604 = vmatprep.mubr.bf16.mxu0 0
        %605 = vmatmul.mubr.bf16.gmra.mrb[0].mxu0 %v450
        %v606 = vpop.f32.mrb[0].mxu0
        %v607 = vadd.f32 0.0, %v606
        %v608 = vpop.f32.mrb[0].mxu0
        %v609 = vpop.f32.mrb[0].mxu0
        %v610 = vadd.f32 0.0, %v609
        %v611 = vpop.f32.mrb[0].mxu0
        %612 = vmatprep.mubr.bf16.mxu0 0
        %613 = vmatmul.mubr.bf16.gmra.mrb[0].mxu0 %v451
        %v614 = vpop.f32.mrb[0].mxu0
        %v615 = vadd.f32 0.0, %v614
        %v616 = vpop.f32.mrb[0].mxu0
        %v617 = vpop.f32.mrb[0].mxu0
        %v618 = vadd.f32 0.0, %v617
        %v619 = vpop.f32.mrb[0].mxu0
        %620 = vmatprep.mubr.bf16.mxu0 0
        %621 = vmatmul.mubr.bf16.gmra.mrb[0].mxu0 %v452
        %v622 = vpop.f32.mrb[0].mxu0
        %v623 = vadd.f32 0.0, %v622
        %v624 = vpop.f32.mrb[0].mxu0
        %v625 = vpop.f32.mrb[0].mxu0
        %v626 = vadd.f32 0.0, %v625
        %v627 = vpop.f32.mrb[0].mxu0
        %628 = vmatprep.mubr.bf16.mxu0 0
        %629 = vmatmul.mubr.bf16.gmra.mrb[0].mxu0 %v453
        %v630 = vpop.f32.mrb[0].mxu0
        %v631 = vadd.f32 0.0, %v630
        %v632 = vpop.f32.mrb[0].mxu0
        %v633 = vpop.f32.mrb[0].mxu0
        %v634 = vadd.f32 0.0, %v633
        %v635 = vpop.f32.mrb[0].mxu0
        %636 = vmatprep.mubr.bf16.mxu0 0
        %637 = vmatmul.mubr.bf16.gmra.mrb[0].mxu0 %v454
        %v638 = vpop.f32.mrb[0].mxu0
        %v639 = vadd.f32 0.0, %v638
        %v640 = vpop.f32.mrb[0].mxu0
        %v641 = vpop.f32.mrb[0].mxu0
        %v642 = vadd.f32 0.0, %v641
        %v643 = vpop.f32.mrb[0].mxu0
        %644 = vmatprep.mubr.bf16.mxu0 0
        %645 = vmatmul.mubr.bf16.gmra.mrb[0].mxu0 %v455
        %v646 = vpop.f32.mrb[0].mxu0
        %v647 = vadd.f32 0.0, %v646
        %v648 = vpop.f32.mrb[0].mxu0
        %v649 = vpop.f32.mrb[0].mxu0
        %v650 = vadd.f32 0.0, %v649
        %v651 = vpop.f32.mrb[0].mxu0
        %652 = vmatprep.mubr.bf16.mxu0 0
        %653 = vmatmul.mubr.bf16.gmra.mrb[0].mxu0 %v456
        %v654 = vpop.f32.mrb[0].mxu0
        %v655 = vadd.f32 0.0, %v654
        %v656 = vpop.f32.mrb[0].mxu0
        %v657 = vpop.f32.mrb[0].mxu0
        %v658 = vadd.f32 0.0, %v657
        %v659 = vpop.f32.mrb[0].mxu0
        %660 = vmatprep.mubr.bf16.mxu0 0
        %661 = vmatmul.mubr.bf16.gmra.mrb[0].mxu0 %v457
        %v662 = vpop.f32.mrb[0].mxu0
        %v663 = vadd.f32 0.0, %v662
        %v664 = vpop.f32.mrb[0].mxu0
        %v665 = vpop.f32.mrb[0].mxu0
        %v666 = vadd.f32 0.0, %v665
        %v667 = vpop.f32.mrb[0].mxu0
        %668 = vmatprep.mubr.bf16.mxu0 0
        %669 = vmatmul.mubr.bf16.gmra.mrb[0].mxu0 %v458
        %v670 = vpop.f32.mrb[0].mxu0
        %v671 = vadd.f32 0.0, %v670
        %v672 = vpop.f32.mrb[0].mxu0
        %v673 = vpop.f32.mrb[0].mxu0
        %v674 = vadd.f32 0.0, %v673
        %v675 = vpop.f32.mrb[0].mxu0
        %676 = vmatprep.mubr.bf16.mxu0 0
        %677 = vmatmul.mubr.bf16.gmra.mrb[0].mxu0 %v459
        %v678 = vpop.f32.mrb[0].mxu0
        %v679 = vadd.f32 0.0, %v678
        %v680 = vpop.f32.mrb[0].mxu0
        %v681 = vpop.f32.mrb[0].mxu0
        %v682 = vadd.f32 0.0, %v681
        %v683 = vpop.f32.mrb[0].mxu0
        %684 = vdwg.mxu0
        %v685 = vadd.f32 %v332, %v559
        %v686 = vadd.f32 %v333, %v562
        %v687 = vadd.f32 %v334, %v567
        %v688 = vadd.f32 %v335, %v570
        %v689 = vadd.f32 %v336, %v575
        %v690 = vadd.f32 %v337, %v578
        %v691 = vadd.f32 %v338, %v583
        %v692 = vadd.f32 %v339, %v586
        %v693 = vadd.f32 %v340, %v591
        %v694 = vadd.f32 %v341, %v594
        %v695 = vadd.f32 %v342, %v599
        %v696 = vadd.f32 %v343, %v602
        %v697 = vadd.f32 %v344, %v607
        %v698 = vadd.f32 %v345, %v610
        %v699 = vadd.f32 %v346, %v615
        %v700 = vadd.f32 %v347, %v618
        %v701 = vadd.f32 %v348, %v623
        %v702 = vadd.f32 %v349, %v626
        %v703 = vadd.f32 %v350, %v631
        %v704 = vadd.f32 %v351, %v634
        %v705 = vadd.f32 %v352, %v639
        %v706 = vadd.f32 %v353, %v642
        %v707 = vadd.f32 %v354, %v647
        %v708 = vadd.f32 %v355, %v650
        %v709 = vadd.f32 %v356, %v655
        %v710 = vadd.f32 %v357, %v658
        %v711 = vadd.f32 %v358, %v663
        %v712 = vadd.f32 %v359, %v666
        %v713 = vadd.f32 %v360, %v671
        %v714 = vadd.f32 %v361, %v674
        %v715 = vadd.f32 %v362, %v679
        %v716 = vadd.f32 %v363, %v682
        %717 = vst [vmem:[#allocation3] sm:$0xff] %v685
        %718 = vst [vmem:[#allocation3 + $0x8] sm:$0xff] %v686
        %719 = vst [vmem:[#allocation3 + $0x10] sm:$0xff] %v687
        %720 = vst [vmem:[#allocation3 + $0x18] sm:$0xff] %v688
        %721 = vst [vmem:[#allocation3 + $0x20] sm:$0xff] %v689
        %722 = vst [vmem:[#allocation3 + $0x28] sm:$0xff] %v690
        %723 = vst [vmem:[#allocation3 + $0x30] sm:$0xff] %v691
        %724 = vst [vmem:[#allocation3 + $0x38] sm:$0xff] %v692
        %725 = vst [vmem:[#allocation3 + $0x40] sm:$0xff] %v693
        %726 = vst [vmem:[#allocation3 + $0x48] sm:$0xff] %v694
        %727 = vst [vmem:[#allocation3 + $0x50] sm:$0xff] %v695
        %728 = vst [vmem:[#allocation3 + $0x58] sm:$0xff] %v696
        %729 = vst [vmem:[#allocation3 + $0x60] sm:$0xff] %v697
        %730 = vst [vmem:[#allocation3 + $0x68] sm:$0xff] %v698
        %731 = vst [vmem:[#allocation3 + $0x70] sm:$0xff] %v699
        %732 = vst [vmem:[#allocation3 + $0x78] sm:$0xff] %v700
        %733 = vst [vmem:[#allocation3 + $0x80] sm:$0xff] %v701
        %734 = vst [vmem:[#allocation3 + $0x88] sm:$0xff] %v702
        %735 = vst [vmem:[#allocation3 + $0x90] sm:$0xff] %v703
        %736 = vst [vmem:[#allocation3 + $0x98] sm:$0xff] %v704
        %737 = vst [vmem:[#allocation3 + $0xa0] sm:$0xff] %v705
        %738 = vst [vmem:[#allocation3 + $0xa8] sm:$0xff] %v706
        %739 = vst [vmem:[#allocation3 + $0xb0] sm:$0xff] %v707
        %740 = vst [vmem:[#allocation3 + $0xb8] sm:$0xff] %v708
        %741 = vst [vmem:[#allocation3 + $0xc0] sm:$0xff] %v709
        %742 = vst [vmem:[#allocation3 + $0xc8] sm:$0xff] %v710
        %743 = vst [vmem:[#allocation3 + $0xd0] sm:$0xff] %v711
        %744 = vst [vmem:[#allocation3 + $0xd8] sm:$0xff] %v712
        %745 = vst [vmem:[#allocation3 + $0xe0] sm:$0xff] %v713
        %746 = vst [vmem:[#allocation3 + $0xe8] sm:$0xff] %v714
        %747 = vst [vmem:[#allocation3 + $0xf0] sm:$0xff] %v715
        %748 = vst [vmem:[#allocation3 + $0xf8] sm:$0xff] %v716
        %vm749 = vsmask.f32 3328
        %vm750 = vsmask.f32 7440
        %vm751 = vmor %vm749, %vm750
        %v753 = vshrl.u32 %v239, 16
        %v755 = vrot.slane %v753, 4
        %v756 = vshll.u32 %v239, 16
        %v758 = vrot.slane %v756, 5
        %v759 = vor.u32 %v755, %v758
        %v760 = vrot.slane %v759, 4
        %v762 = vshll.u32 %v240, 16
        %v764 = vrot.slane %v762, 5
        %v765 = vsel %vm751, %v760, %v764
        %v766 = vshrl.u32 %v240, 16
        %v768 = vrot.slane %v766, 4
        %v769 = vor.u32 %v768, %v764
        %v770 = vrot.slane %v769, 4
        %v772 = vshll.u32 %v241, 16
        %v774 = vrot.slane %v772, 5
        %v775 = vsel %vm751, %v770, %v774
        %v777 = vshrl.u32 %v242, 16
        %v779 = vrot.slane %v777, 4
        %v780 = vshll.u32 %v242, 16
        %v782 = vrot.slane %v780, 5
        %v783 = vor.u32 %v779, %v782
        %v784 = vrot.slane %v783, 4
        %v786 = vshll.u32 %v243, 16
        %v788 = vrot.slane %v786, 5
        %v789 = vsel %vm751, %v784, %v788
        %v790 = vshrl.u32 %v243, 16
        %v792 = vrot.slane %v790, 4
        %v793 = vor.u32 %v792, %v788
        %v794 = vrot.slane %v793, 4
        %v796 = vshll.u32 %v244, 16
        %v798 = vrot.slane %v796, 5
        %v799 = vsel %vm751, %v794, %v798
        %v801 = vshrl.u32 %v245, 16
        %v803 = vrot.slane %v801, 4
        %v804 = vshll.u32 %v245, 16
        %v806 = vrot.slane %v804, 5
        %v807 = vor.u32 %v803, %v806
        %v808 = vrot.slane %v807, 4
        %v810 = vshll.u32 %v246, 16
        %v812 = vrot.slane %v810, 5
        %v813 = vsel %vm751, %v808, %v812
        %v814 = vshrl.u32 %v246, 16
        %v816 = vrot.slane %v814, 4
        %v817 = vor.u32 %v816, %v812
        %v818 = vrot.slane %v817, 4
        %v820 = vshll.u32 %v247, 16
        %v822 = vrot.slane %v820, 5
        %v823 = vsel %vm751, %v818, %v822
        %v825 = vshrl.u32 %v248, 16
        %v827 = vrot.slane %v825, 4
        %v828 = vshll.u32 %v248, 16
        %v830 = vrot.slane %v828, 5
        %v831 = vor.u32 %v827, %v830
        %v832 = vrot.slane %v831, 4
        %v834 = vshll.u32 %v249, 16
        %v836 = vrot.slane %v834, 5
        %v837 = vsel %vm751, %v832, %v836
        %v838 = vshrl.u32 %v249, 16
        %v840 = vrot.slane %v838, 4
        %v841 = vor.u32 %v840, %v836
        %v842 = vrot.slane %v841, 4
        %v844 = vshll.u32 %v250, 16
        %v846 = vrot.slane %v844, 5
        %v847 = vsel %vm751, %v842, %v846
        %v849 = vshrl.u32 %v251, 16
        %v851 = vrot.slane %v849, 4
        %v852 = vshll.u32 %v251, 16
        %v854 = vrot.slane %v852, 5
        %v855 = vor.u32 %v851, %v854
        %v856 = vrot.slane %v855, 4
        %v858 = vshll.u32 %v252, 16
        %v860 = vrot.slane %v858, 5
        %v861 = vsel %vm751, %v856, %v860
        %v862 = vshrl.u32 %v252, 16
        %v864 = vrot.slane %v862, 4
        %v865 = vor.u32 %v864, %v860
        %v866 = vrot.slane %v865, 4
        %v868 = vshll.u32 %v253, 16
        %v870 = vrot.slane %v868, 5
        %v871 = vsel %vm751, %v866, %v870
        %v873 = vshrl.u32 %v254, 16
        %v875 = vrot.slane %v873, 4
        %v876 = vshll.u32 %v254, 16
        %v878 = vrot.slane %v876, 5
        %v879 = vor.u32 %v875, %v878
        %v880 = vrot.slane %v879, 4
        %v882 = vshll.u32 %v255, 16
        %v884 = vrot.slane %v882, 5
        %v885 = vsel %vm751, %v880, %v884
        %v886 = vshrl.u32 %v255, 16
        %v888 = vrot.slane %v886, 4
        %v889 = vor.u32 %v888, %v884
        %v890 = vrot.slane %v889, 4
        %v892 = vshll.u32 %v256, 16
        %v894 = vrot.slane %v892, 5
        %v895 = vsel %vm751, %v890, %v894
        %v897 = vshrl.u32 %v257, 16
        %v899 = vrot.slane %v897, 4
        %v900 = vshll.u32 %v257, 16
        %v902 = vrot.slane %v900, 5
        %v903 = vor.u32 %v899, %v902
        %v904 = vrot.slane %v903, 4
        %v906 = vshll.u32 %v258, 16
        %v908 = vrot.slane %v906, 5
        %v909 = vsel %vm751, %v904, %v908
        %v910 = vshrl.u32 %v258, 16
        %v912 = vrot.slane %v910, 4
        %v913 = vor.u32 %v912, %v908
        %v914 = vrot.slane %v913, 4
        %v916 = vshll.u32 %v259, 16
        %v918 = vrot.slane %v916, 5
        %v919 = vsel %vm751, %v914, %v918
        %v921 = vshrl.u32 %v260, 16
        %v923 = vrot.slane %v921, 4
        %v924 = vshll.u32 %v260, 16
        %v926 = vrot.slane %v924, 5
        %v927 = vor.u32 %v923, %v926
        %v928 = vrot.slane %v927, 4
        %v930 = vshll.u32 %v261, 16
        %v932 = vrot.slane %v930, 5
        %v933 = vsel %vm751, %v928, %v932
        %v934 = vshrl.u32 %v261, 16
        %v936 = vrot.slane %v934, 4
        %v937 = vor.u32 %v936, %v932
        %v938 = vrot.slane %v937, 4
        %v940 = vshll.u32 %v262, 16
        %v942 = vrot.slane %v940, 5
        %v943 = vsel %vm751, %v938, %v942
        %v945 = vshrl.u32 %v263, 16
        %v947 = vrot.slane %v945, 4
        %v948 = vshll.u32 %v263, 16
        %v950 = vrot.slane %v948, 5
        %v951 = vor.u32 %v947, %v950
        %v952 = vrot.slane %v951, 4
        %v954 = vshll.u32 %v264, 16
        %v956 = vrot.slane %v954, 5
        %v957 = vsel %vm751, %v952, %v956
        %v958 = vshrl.u32 %v264, 16
        %v960 = vrot.slane %v958, 4
        %v961 = vor.u32 %v960, %v956
        %v962 = vrot.slane %v961, 4
        %v964 = vshll.u32 %v265, 16
        %v966 = vrot.slane %v964, 5
        %v967 = vsel %vm751, %v962, %v966
        %v969 = vshrl.u32 %v266, 16
        %v971 = vrot.slane %v969, 4
        %v972 = vshll.u32 %v266, 16
        %v974 = vrot.slane %v972, 5
        %v975 = vor.u32 %v971, %v974
        %v976 = vrot.slane %v975, 4
        %v978 = vshll.u32 %v267, 16
        %v980 = vrot.slane %v978, 5
        %v981 = vsel %vm751, %v976, %v980
        %v982 = vshrl.u32 %v267, 16
        %v984 = vrot.slane %v982, 4
        %v985 = vor.u32 %v984, %v980
        %v986 = vrot.slane %v985, 4
        %v988 = vshll.u32 %v268, 16
        %v990 = vrot.slane %v988, 5
        %v991 = vsel %vm751, %v986, %v990
        %v993 = vshrl.u32 %v269, 16
        %v995 = vrot.slane %v993, 4
        %v996 = vshll.u32 %v269, 16
        %v998 = vrot.slane %v996, 5
        %v999 = vor.u32 %v995, %v998
        %v1000 = vrot.slane %v999, 4
        %v1002 = vshll.u32 %v270, 16
        %v1004 = vrot.slane %v1002, 5
        %v1005 = vsel %vm751, %v1000, %v1004
        %v1006 = vshrl.u32 %v270, 16
        %v1008 = vrot.slane %v1006, 4
        %v1009 = vor.u32 %v1008, %v1004
        %v1010 = vrot.slane %v1009, 4
        %v1012 = vshll.u32 %v271, 16
        %v1014 = vrot.slane %v1012, 5
        %v1015 = vsel %vm751, %v1010, %v1014
        %v1017 = vshrl.u32 %v272, 16
        %v1019 = vrot.slane %v1017, 4
        %v1020 = vshll.u32 %v272, 16
        %v1022 = vrot.slane %v1020, 5
        %v1023 = vor.u32 %v1019, %v1022
        %v1024 = vrot.slane %v1023, 4
        %v1026 = vshll.u32 %v273, 16
        %v1028 = vrot.slane %v1026, 5
        %v1029 = vsel %vm751, %v1024, %v1028
        %v1030 = vshrl.u32 %v273, 16
        %v1032 = vrot.slane %v1030, 4
        %v1033 = vor.u32 %v1032, %v1028
        %v1034 = vrot.slane %v1033, 4
        %v1036 = vshll.u32 %v274, 16
        %v1038 = vrot.slane %v1036, 5
        %v1039 = vsel %vm751, %v1034, %v1038
        %v1041 = vshrl.u32 %v275, 16
        %v1043 = vrot.slane %v1041, 4
        %v1044 = vshll.u32 %v275, 16
        %v1046 = vrot.slane %v1044, 5
        %v1047 = vor.u32 %v1043, %v1046
        %v1048 = vrot.slane %v1047, 4
        %v1050 = vshll.u32 %v276, 16
        %v1052 = vrot.slane %v1050, 5
        %v1053 = vsel %vm751, %v1048, %v1052
        %v1054 = vshrl.u32 %v276, 16
        %v1056 = vrot.slane %v1054, 4
        %v1057 = vor.u32 %v1056, %v1052
        %v1058 = vrot.slane %v1057, 4
        %v1060 = vshll.u32 %v277, 16
        %v1062 = vrot.slane %v1060, 5
        %v1063 = vsel %vm751, %v1058, %v1062
        %v1065 = vshrl.u32 %v278, 16
        %v1067 = vrot.slane %v1065, 4
        %v1068 = vshll.u32 %v278, 16
        %v1070 = vrot.slane %v1068, 5
        %v1071 = vor.u32 %v1067, %v1070
        %v1072 = vrot.slane %v1071, 4
        %v1074 = vshll.u32 %v279, 16
        %v1076 = vrot.slane %v1074, 5
        %v1077 = vsel %vm751, %v1072, %v1076
        %v1078 = vshrl.u32 %v279, 16
        %v1080 = vrot.slane %v1078, 4
        %v1081 = vor.u32 %v1080, %v1076
        %v1082 = vrot.slane %v1081, 4
        %v1084 = vshll.u32 %v280, 16
        %v1086 = vrot.slane %v1084, 5
        %v1087 = vsel %vm751, %v1082, %v1086
        %v1089 = vshrl.u32 %v281, 16
        %v1091 = vrot.slane %v1089, 4
        %v1092 = vshll.u32 %v281, 16
        %v1094 = vrot.slane %v1092, 5
        %v1095 = vor.u32 %v1091, %v1094
        %v1096 = vrot.slane %v1095, 4
        %v1098 = vshll.u32 %v282, 16
        %v1100 = vrot.slane %v1098, 5
        %v1101 = vsel %vm751, %v1096, %v1100
        %v1102 = vshrl.u32 %v282, 16
        %v1104 = vrot.slane %v1102, 4
        %v1105 = vor.u32 %v1104, %v1100
        %v1106 = vrot.slane %v1105, 4
        %v1108 = vshll.u32 %v283, 16
        %v1110 = vrot.slane %v1108, 5
        %v1111 = vsel %vm751, %v1106, %v1110
        %v1113 = vshrl.u32 %v284, 16
        %v1115 = vrot.slane %v1113, 4
        %v1116 = vshll.u32 %v284, 16
        %v1118 = vrot.slane %v1116, 5
        %v1119 = vor.u32 %v1115, %v1118
        %v1120 = vrot.slane %v1119, 4
        %v1122 = vshll.u32 %v285, 16
        %v1124 = vrot.slane %v1122, 5
        %v1125 = vsel %vm751, %v1120, %v1124
        %v1126 = vshrl.u32 %v285, 16
        %v1128 = vrot.slane %v1126, 4
        %v1129 = vor.u32 %v1128, %v1124
        %v1130 = vrot.slane %v1129, 4
        %v1132 = vshll.u32 %v286, 16
        %v1134 = vrot.slane %v1132, 5
        %v1135 = vsel %vm751, %v1130, %v1134
        %v1136 = vld [vmem:[#allocation3] sm:$0xff]
        %v1137 = vld [vmem:[#allocation3 + $0x8] sm:$0xff]
        %v1138 = vld [vmem:[#allocation3 + $0x10] sm:$0xff]
        %v1139 = vld [vmem:[#allocation3 + $0x18] sm:$0xff]
        %v1140 = vld [vmem:[#allocation3 + $0x20] sm:$0xff]
        %v1141 = vld [vmem:[#allocation3 + $0x28] sm:$0xff]
        %v1142 = vld [vmem:[#allocation3 + $0x30] sm:$0xff]
        %v1143 = vld [vmem:[#allocation3 + $0x38] sm:$0xff]
        %v1144 = vld [vmem:[#allocation3 + $0x40] sm:$0xff]
        %v1145 = vld [vmem:[#allocation3 + $0x48] sm:$0xff]
        %v1146 = vld [vmem:[#allocation3 + $0x50] sm:$0xff]
        %v1147 = vld [vmem:[#allocation3 + $0x58] sm:$0xff]
        %v1148 = vld [vmem:[#allocation3 + $0x60] sm:$0xff]
        %v1149 = vld [vmem:[#allocation3 + $0x68] sm:$0xff]
        %v1150 = vld [vmem:[#allocation3 + $0x70] sm:$0xff]
        %v1151 = vld [vmem:[#allocation3 + $0x78] sm:$0xff]
        %v1152 = vld [vmem:[#allocation3 + $0x80] sm:$0xff]
        %v1153 = vld [vmem:[#allocation3 + $0x88] sm:$0xff]
        %v1154 = vld [vmem:[#allocation3 + $0x90] sm:$0xff]
        %v1155 = vld [vmem:[#allocation3 + $0x98] sm:$0xff]
        %v1156 = vld [vmem:[#allocation3 + $0xa0] sm:$0xff]
        %v1157 = vld [vmem:[#allocation3 + $0xa8] sm:$0xff]
        %v1158 = vld [vmem:[#allocation3 + $0xb0] sm:$0xff]
        %v1159 = vld [vmem:[#allocation3 + $0xb8] sm:$0xff]
        %v1160 = vld [vmem:[#allocation3 + $0xc0] sm:$0xff]
        %v1161 = vld [vmem:[#allocation3 + $0xc8] sm:$0xff]
        %v1162 = vld [vmem:[#allocation3 + $0xd0] sm:$0xff]
        %v1163 = vld [vmem:[#allocation3 + $0xd8] sm:$0xff]
        %v1164 = vld [vmem:[#allocation3 + $0xe0] sm:$0xff]
        %v1165 = vld [vmem:[#allocation3 + $0xe8] sm:$0xff]
        %v1166 = vld [vmem:[#allocation3 + $0xf0] sm:$0xff]
        %v1167 = vld [vmem:[#allocation3 + $0xf8] sm:$0xff]
        %s1168 = scalar_lea.vmem %s1, 64
        %v1169 = vld [vmem:[%s1168] sm:$0xf]
        %v1170 = vld [vmem:[%s1168 + $0x4] sm:$0xf]
        %v1171 = vld [vmem:[%s1168 + $0x8] sm:$0xf]
        %v1172 = vld [vmem:[%s1168 + $0xc] sm:$0xf]
        %v1173 = vld [vmem:[%s1168 + $0x10] sm:$0xf]
        %v1174 = vld [vmem:[%s1168 + $0x14] sm:$0xf]
        %v1175 = vld [vmem:[%s1168 + $0x18] sm:$0xf]
        %v1176 = vld [vmem:[%s1168 + $0x1c] sm:$0xf]
        %v1177 = vld [vmem:[%s1168 + $0x20] sm:$0xf]
        %v1178 = vld [vmem:[%s1168 + $0x24] sm:$0xf]
        %v1179 = vld [vmem:[%s1168 + $0x28] sm:$0xf]
        %v1180 = vld [vmem:[%s1168 + $0x2c] sm:$0xf]
        %v1181 = vld [vmem:[%s1168 + $0x30] sm:$0xf]
        %v1182 = vld [vmem:[%s1168 + $0x34] sm:$0xf]
        %v1183 = vld [vmem:[%s1168 + $0x38] sm:$0xf]
        %v1184 = vld [vmem:[%s1168 + $0x3c] sm:$0xf]
        %v1185 = vunpack.c.l.b16 %v765
        %v1186 = vunpack.c.l.b16 %v775
        %v1187 = vunpack.c.l.b16 %v789
        %v1188 = vunpack.c.l.b16 %v799
        %v1189 = vunpack.c.l.b16 %v813
        %v1190 = vunpack.c.l.b16 %v823
        %v1191 = vunpack.c.l.b16 %v837
        %v1192 = vunpack.c.l.b16 %v847
        %v1193 = vunpack.c.l.b16 %v861
        %v1194 = vunpack.c.l.b16 %v871
        %v1195 = vunpack.c.l.b16 %v885
        %v1196 = vunpack.c.l.b16 %v895
        %v1197 = vunpack.c.l.b16 %v909
        %v1198 = vunpack.c.l.b16 %v919
        %v1199 = vunpack.c.l.b16 %v933
        %v1200 = vunpack.c.l.b16 %v943
        %v1201 = vunpack.c.l.b16 %v957
        %v1202 = vunpack.c.l.b16 %v967
        %v1203 = vunpack.c.l.b16 %v981
        %v1204 = vunpack.c.l.b16 %v991
        %v1205 = vunpack.c.l.b16 %v1005
        %v1206 = vunpack.c.l.b16 %v1015
        %v1207 = vunpack.c.l.b16 %v1029
        %v1208 = vunpack.c.l.b16 %v1039
        %v1209 = vunpack.c.l.b16 %v1053
        %v1210 = vunpack.c.l.b16 %v1063
        %v1211 = vunpack.c.l.b16 %v1077
        %v1212 = vunpack.c.l.b16 %v1087
        %v1213 = vunpack.c.l.b16 %v1101
        %v1214 = vunpack.c.l.b16 %v1111
        %v1215 = vunpack.c.l.b16 %v1125
        %v1216 = vunpack.c.l.b16 %v1135
        %v1217 = vpack.c.b16 %v1186, %v1185
        %v1218 = vpack.c.b16 %v1188, %v1187
        %v1219 = vpack.c.b16 %v1190, %v1189
        %v1220 = vpack.c.b16 %v1192, %v1191
        %v1221 = vpack.c.b16 %v1194, %v1193
        %v1222 = vpack.c.b16 %v1196, %v1195
        %v1223 = vpack.c.b16 %v1198, %v1197
        %v1224 = vpack.c.b16 %v1200, %v1199
        %v1225 = vpack.c.b16 %v1202, %v1201
        %v1226 = vpack.c.b16 %v1204, %v1203
        %v1227 = vpack.c.b16 %v1206, %v1205
        %v1228 = vpack.c.b16 %v1208, %v1207
        %v1229 = vpack.c.b16 %v1210, %v1209
        %v1230 = vpack.c.b16 %v1212, %v1211
        %v1231 = vpack.c.b16 %v1214, %v1213
        %v1232 = vpack.c.b16 %v1216, %v1215
        %v1265 = vunpack.c.l.b16 %v1169
        %v1266 = vunpack.c.l.b16 %v1170
        %v1267 = vunpack.c.l.b16 %v1171
        %v1268 = vunpack.c.l.b16 %v1172
        %v1269 = vunpack.c.l.b16 %v1173
        %v1270 = vunpack.c.l.b16 %v1174
        %v1271 = vunpack.c.l.b16 %v1175
        %v1272 = vunpack.c.l.b16 %v1176
        %v1273 = vunpack.c.l.b16 %v1177
        %v1274 = vunpack.c.l.b16 %v1178
        %v1275 = vunpack.c.l.b16 %v1179
        %v1276 = vunpack.c.l.b16 %v1180
        %v1277 = vunpack.c.l.b16 %v1181
        %v1278 = vunpack.c.l.b16 %v1182
        %v1279 = vunpack.c.l.b16 %v1183
        %v1280 = vunpack.c.l.b16 %v1184
        %v1281 = vpack.c.b16 %v1266, %v1265
        %v1282 = vpack.c.b16 %v1268, %v1267
        %v1283 = vpack.c.b16 %v1270, %v1269
        %v1284 = vpack.c.b16 %v1272, %v1271
        %v1285 = vpack.c.b16 %v1274, %v1273
        %v1286 = vpack.c.b16 %v1276, %v1275
        %v1287 = vpack.c.b16 %v1278, %v1277
        %v1288 = vpack.c.b16 %v1280, %v1279
        %1297 = vmatprep.subr.bf16.mxu0 0
        %1298 = vmatpush1.bf16.msra.mxu0 %v1281
        %1299 = vmatprep.subr.bf16.mxu0 0
        %1300 = vmatpush1.bf16.msra.mxu0 %v1282
        %1301 = vmatprep.subr.bf16.mxu0 0
        %1302 = vmatpush1.bf16.msra.mxu0 %v1283
        %1303 = vmatprep.subr.bf16.mxu0 0
        %1304 = vmatpush1.bf16.msra.mxu0 %v1284
        %1305 = vmatprep.subr.bf16.mxu0 0
        %1306 = vmatpush1.bf16.msra.mxu0 %v1285
        %1307 = vmatprep.subr.bf16.mxu0 0
        %1308 = vmatpush1.bf16.msra.mxu0 %v1286
        %1309 = vmatprep.subr.bf16.mxu0 0
        %1310 = vmatpush1.bf16.msra.mxu0 %v1287
        %1311 = vmatprep.subr.bf16.mxu0 0
        %1312 = vmatpush1.bf16.msra.mxu0 %v1288
        %1313 = vmatprep.subr.bf16.mxu0 0
        %1314 = vmatpush1.bf16.msra.mxu0 0
        %1315 = vmatprep.subr.bf16.mxu0 0
        %1316 = vmatpush1.bf16.msra.mxu0 0
        %1317 = vmatprep.subr.bf16.mxu0 0
        %1318 = vmatpush1.bf16.msra.mxu0 0
        %1319 = vmatprep.subr.bf16.mxu0 0
        %1320 = vmatpush1.bf16.msra.mxu0 0
        %1321 = vmatprep.subr.bf16.mxu0 0
        %1322 = vmatpush1.bf16.msra.mxu0 0
        %1323 = vmatprep.subr.bf16.mxu0 0
        %1324 = vmatpush1.bf16.msra.mxu0 0
        %1325 = vmatprep.subr.bf16.mxu0 0
        %1326 = vmatpush1.bf16.msra.mxu0 0
        %1327 = vmatprep.subr.bf16.mxu0 0
        %1328 = vmatpush1.bf16.msra.mxu0 0
        %1329 = vmatprep.mubr.bf16.mxu0 0
        %1330 = vmatmul.mubr.bf16.gmra.mrb[0].mxu0 %v1217
        %v1331 = vpop.f32.mrb[0].mxu0
        %v1332 = vadd.f32 0.0, %v1331
        %v1333 = vpop.f32.mrb[0].mxu0
        %v1334 = vpop.f32.mrb[0].mxu0
        %v1335 = vadd.f32 0.0, %v1334
        %v1336 = vpop.f32.mrb[0].mxu0
        %1337 = vmatprep.mubr.bf16.mxu0 0
        %1338 = vmatmul.mubr.bf16.gmra.mrb[0].mxu0 %v1218
        %v1339 = vpop.f32.mrb[0].mxu0
        %v1340 = vadd.f32 0.0, %v1339
        %v1341 = vpop.f32.mrb[0].mxu0
        %v1342 = vpop.f32.mrb[0].mxu0
        %v1343 = vadd.f32 0.0, %v1342
        %v1344 = vpop.f32.mrb[0].mxu0
        %1345 = vmatprep.mubr.bf16.mxu0 0
        %1346 = vmatmul.mubr.bf16.gmra.mrb[0].mxu0 %v1219
        %v1347 = vpop.f32.mrb[0].mxu0
        %v1348 = vadd.f32 0.0, %v1347
        %v1349 = vpop.f32.mrb[0].mxu0
        %v1350 = vpop.f32.mrb[0].mxu0
        %v1351 = vadd.f32 0.0, %v1350
        %v1352 = vpop.f32.mrb[0].mxu0
        %1353 = vmatprep.mubr.bf16.mxu0 0
        %1354 = vmatmul.mubr.bf16.gmra.mrb[0].mxu0 %v1220
        %v1355 = vpop.f32.mrb[0].mxu0
        %v1356 = vadd.f32 0.0, %v1355
        %v1357 = vpop.f32.mrb[0].mxu0
        %v1358 = vpop.f32.mrb[0].mxu0
        %v1359 = vadd.f32 0.0, %v1358
        %v1360 = vpop.f32.mrb[0].mxu0
        %1361 = vmatprep.mubr.bf16.mxu0 0
        %1362 = vmatmul.mubr.bf16.gmra.mrb[0].mxu0 %v1221
        %v1363 = vpop.f32.mrb[0].mxu0
        %v1364 = vadd.f32 0.0, %v1363
        %v1365 = vpop.f32.mrb[0].mxu0
        %v1366 = vpop.f32.mrb[0].mxu0
        %v1367 = vadd.f32 0.0, %v1366
        %v1368 = vpop.f32.mrb[0].mxu0
        %1369 = vmatprep.mubr.bf16.mxu0 0
        %1370 = vmatmul.mubr.bf16.gmra.mrb[0].mxu0 %v1222
        %v1371 = vpop.f32.mrb[0].mxu0
        %v1372 = vadd.f32 0.0, %v1371
        %v1373 = vpop.f32.mrb[0].mxu0
        %v1374 = vpop.f32.mrb[0].mxu0
        %v1375 = vadd.f32 0.0, %v1374
        %v1376 = vpop.f32.mrb[0].mxu0
        %1377 = vmatprep.mubr.bf16.mxu0 0
        %1378 = vmatmul.mubr.bf16.gmra.mrb[0].mxu0 %v1223
        %v1379 = vpop.f32.mrb[0].mxu0
        %v1380 = vadd.f32 0.0, %v1379
        %v1381 = vpop.f32.mrb[0].mxu0
        %v1382 = vpop.f32.mrb[0].mxu0
        %v1383 = vadd.f32 0.0, %v1382
        %v1384 = vpop.f32.mrb[0].mxu0
        %1385 = vmatprep.mubr.bf16.mxu0 0
        %1386 = vmatmul.mubr.bf16.gmra.mrb[0].mxu0 %v1224
        %v1387 = vpop.f32.mrb[0].mxu0
        %v1388 = vadd.f32 0.0, %v1387
        %v1389 = vpop.f32.mrb[0].mxu0
        %v1390 = vpop.f32.mrb[0].mxu0
        %v1391 = vadd.f32 0.0, %v1390
        %v1392 = vpop.f32.mrb[0].mxu0
        %1393 = vmatprep.mubr.bf16.mxu0 0
        %1394 = vmatmul.mubr.bf16.gmra.mrb[0].mxu0 %v1225
        %v1395 = vpop.f32.mrb[0].mxu0
        %v1396 = vadd.f32 0.0, %v1395
        %v1397 = vpop.f32.mrb[0].mxu0
        %v1398 = vpop.f32.mrb[0].mxu0
        %v1399 = vadd.f32 0.0, %v1398
        %v1400 = vpop.f32.mrb[0].mxu0
        %1401 = vmatprep.mubr.bf16.mxu0 0
        %1402 = vmatmul.mubr.bf16.gmra.mrb[0].mxu0 %v1226
        %v1403 = vpop.f32.mrb[0].mxu0
        %v1404 = vadd.f32 0.0, %v1403
        %v1405 = vpop.f32.mrb[0].mxu0
        %v1406 = vpop.f32.mrb[0].mxu0
        %v1407 = vadd.f32 0.0, %v1406
        %v1408 = vpop.f32.mrb[0].mxu0
        %1409 = vmatprep.mubr.bf16.mxu0 0
        %1410 = vmatmul.mubr.bf16.gmra.mrb[0].mxu0 %v1227
        %v1411 = vpop.f32.mrb[0].mxu0
        %v1412 = vadd.f32 0.0, %v1411
        %v1413 = vpop.f32.mrb[0].mxu0
        %v1414 = vpop.f32.mrb[0].mxu0
        %v1415 = vadd.f32 0.0, %v1414
        %v1416 = vpop.f32.mrb[0].mxu0
        %1417 = vmatprep.mubr.bf16.mxu0 0
        %1418 = vmatmul.mubr.bf16.gmra.mrb[0].mxu0 %v1228
        %v1419 = vpop.f32.mrb[0].mxu0
        %v1420 = vadd.f32 0.0, %v1419
        %v1421 = vpop.f32.mrb[0].mxu0
        %v1422 = vpop.f32.mrb[0].mxu0
        %v1423 = vadd.f32 0.0, %v1422
        %v1424 = vpop.f32.mrb[0].mxu0
        %1425 = vmatprep.mubr.bf16.mxu0 0
        %1426 = vmatmul.mubr.bf16.gmra.mrb[0].mxu0 %v1229
        %v1427 = vpop.f32.mrb[0].mxu0
        %v1428 = vadd.f32 0.0, %v1427
        %v1429 = vpop.f32.mrb[0].mxu0
        %v1430 = vpop.f32.mrb[0].mxu0
        %v1431 = vadd.f32 0.0, %v1430
        %v1432 = vpop.f32.mrb[0].mxu0
        %1433 = vmatprep.mubr.bf16.mxu0 0
        %1434 = vmatmul.mubr.bf16.gmra.mrb[0].mxu0 %v1230
        %v1435 = vpop.f32.mrb[0].mxu0
        %v1436 = vadd.f32 0.0, %v1435
        %v1437 = vpop.f32.mrb[0].mxu0
        %v1438 = vpop.f32.mrb[0].mxu0
        %v1439 = vadd.f32 0.0, %v1438
        %v1440 = vpop.f32.mrb[0].mxu0
        %1441 = vmatprep.mubr.bf16.mxu0 0
        %1442 = vmatmul.mubr.bf16.gmra.mrb[0].mxu0 %v1231
        %v1443 = vpop.f32.mrb[0].mxu0
        %v1444 = vadd.f32 0.0, %v1443
        %v1445 = vpop.f32.mrb[0].mxu0
        %v1446 = vpop.f32.mrb[0].mxu0
        %v1447 = vadd.f32 0.0, %v1446
        %v1448 = vpop.f32.mrb[0].mxu0
        %1449 = vmatprep.mubr.bf16.mxu0 0
        %1450 = vmatmul.mubr.bf16.gmra.mrb[0].mxu0 %v1232
        %v1451 = vpop.f32.mrb[0].mxu0
        %v1452 = vadd.f32 0.0, %v1451
        %v1453 = vpop.f32.mrb[0].mxu0
        %v1454 = vpop.f32.mrb[0].mxu0
        %v1455 = vadd.f32 0.0, %v1454
        %v1456 = vpop.f32.mrb[0].mxu0
        %1457 = vdwg.mxu0
        %v1458 = vadd.f32 %v1136, %v1332
        %v1459 = vadd.f32 %v1137, %v1335
        %v1460 = vadd.f32 %v1138, %v1340
        %v1461 = vadd.f32 %v1139, %v1343
        %v1462 = vadd.f32 %v1140, %v1348
        %v1463 = vadd.f32 %v1141, %v1351
        %v1464 = vadd.f32 %v1142, %v1356
        %v1465 = vadd.f32 %v1143, %v1359
        %v1466 = vadd.f32 %v1144, %v1364
        %v1467 = vadd.f32 %v1145, %v1367
        %v1468 = vadd.f32 %v1146, %v1372
        %v1469 = vadd.f32 %v1147, %v1375
        %v1470 = vadd.f32 %v1148, %v1380
        %v1471 = vadd.f32 %v1149, %v1383
        %v1472 = vadd.f32 %v1150, %v1388
        %v1473 = vadd.f32 %v1151, %v1391
        %v1474 = vadd.f32 %v1152, %v1396
        %v1475 = vadd.f32 %v1153, %v1399
        %v1476 = vadd.f32 %v1154, %v1404
        %v1477 = vadd.f32 %v1155, %v1407
        %v1478 = vadd.f32 %v1156, %v1412
        %v1479 = vadd.f32 %v1157, %v1415
        %v1480 = vadd.f32 %v1158, %v1420
        %v1481 = vadd.f32 %v1159, %v1423
        %v1482 = vadd.f32 %v1160, %v1428
        %v1483 = vadd.f32 %v1161, %v1431
        %v1484 = vadd.f32 %v1162, %v1436
        %v1485 = vadd.f32 %v1163, %v1439
        %v1486 = vadd.f32 %v1164, %v1444
        %v1487 = vadd.f32 %v1165, %v1447
        %v1488 = vadd.f32 %v1166, %v1452
        %v1489 = vadd.f32 %v1167, %v1455
        %1490 = vst [vmem:[#allocation3] sm:$0xff] %v1458
        %1491 = vst [vmem:[#allocation3 + $0x8] sm:$0xff] %v1459
        %1492 = vst [vmem:[#allocation3 + $0x10] sm:$0xff] %v1460
        %1493 = vst [vmem:[#allocation3 + $0x18] sm:$0xff] %v1461
        %1494 = vst [vmem:[#allocation3 + $0x20] sm:$0xff] %v1462
        %1495 = vst [vmem:[#allocation3 + $0x28] sm:$0xff] %v1463
        %1496 = vst [vmem:[#allocation3 + $0x30] sm:$0xff] %v1464
        %1497 = vst [vmem:[#allocation3 + $0x38] sm:$0xff] %v1465
        %1498 = vst [vmem:[#allocation3 + $0x40] sm:$0xff] %v1466
        %1499 = vst [vmem:[#allocation3 + $0x48] sm:$0xff] %v1467
        %1500 = vst [vmem:[#allocation3 + $0x50] sm:$0xff] %v1468
        %1501 = vst [vmem:[#allocation3 + $0x58] sm:$0xff] %v1469
        %1502 = vst [vmem:[#allocation3 + $0x60] sm:$0xff] %v1470
        %1503 = vst [vmem:[#allocation3 + $0x68] sm:$0xff] %v1471
        %1504 = vst [vmem:[#allocation3 + $0x70] sm:$0xff] %v1472
        %1505 = vst [vmem:[#allocation3 + $0x78] sm:$0xff] %v1473
        %1506 = vst [vmem:[#allocation3 + $0x80] sm:$0xff] %v1474
        %1507 = vst [vmem:[#allocation3 + $0x88] sm:$0xff] %v1475
        %1508 = vst [vmem:[#allocation3 + $0x90] sm:$0xff] %v1476
        %1509 = vst [vmem:[#allocation3 + $0x98] sm:$0xff] %v1477
        %1510 = vst [vmem:[#allocation3 + $0xa0] sm:$0xff] %v1478
        %1511 = vst [vmem:[#allocation3 + $0xa8] sm:$0xff] %v1479
        %1512 = vst [vmem:[#allocation3 + $0xb0] sm:$0xff] %v1480
        %1513 = vst [vmem:[#allocation3 + $0xb8] sm:$0xff] %v1481
        %1514 = vst [vmem:[#allocation3 + $0xc0] sm:$0xff] %v1482
        %1515 = vst [vmem:[#allocation3 + $0xc8] sm:$0xff] %v1483
        %1516 = vst [vmem:[#allocation3 + $0xd0] sm:$0xff] %v1484
        %1517 = vst [vmem:[#allocation3 + $0xd8] sm:$0xff] %v1485
        %1518 = vst [vmem:[#allocation3 + $0xe0] sm:$0xff] %v1486
        %1519 = vst [vmem:[#allocation3 + $0xe8] sm:$0xff] %v1487
        %1520 = vst [vmem:[#allocation3 + $0xf0] sm:$0xff] %v1488
        %1521 = vst [vmem:[#allocation3 + $0xf8] sm:$0xff] %v1489
        %vm1538 = vcmask 1042432
        %vm1539 = vcmask 1046532
        %vm1540 = vmor %vm1538, %vm1539
        %v1541 = vrot.slane %v239, 5
        %v1542 = vrot.slane %v1541, 4
        %v1543 = vrot.slane %v240, 5
        %v1544 = vsel %vm1540, %v1542, %v1543
        %v1545 = vrot.slane %v1543, 4
        %v1546 = vrot.slane %v241, 5
        %v1547 = vsel %vm1540, %v1545, %v1546
        %v1548 = vrot.slane %v242, 5
        %v1549 = vrot.slane %v1548, 4
        %v1550 = vrot.slane %v243, 5
        %v1551 = vsel %vm1540, %v1549, %v1550
        %v1552 = vrot.slane %v1550, 4
        %v1553 = vrot.slane %v244, 5
        %v1554 = vsel %vm1540, %v1552, %v1553
        %v1555 = vrot.slane %v245, 5
        %v1556 = vrot.slane %v1555, 4
        %v1557 = vrot.slane %v246, 5
        %v1558 = vsel %vm1540, %v1556, %v1557
        %v1559 = vrot.slane %v1557, 4
        %v1560 = vrot.slane %v247, 5
        %v1561 = vsel %vm1540, %v1559, %v1560
        %v1562 = vrot.slane %v248, 5
        %v1563 = vrot.slane %v1562, 4
        %v1564 = vrot.slane %v249, 5
        %v1565 = vsel %vm1540, %v1563, %v1564
        %v1566 = vrot.slane %v1564, 4
        %v1567 = vrot.slane %v250, 5
        %v1568 = vsel %vm1540, %v1566, %v1567
        %v1569 = vrot.slane %v251, 5
        %v1570 = vrot.slane %v1569, 4
        %v1571 = vrot.slane %v252, 5
        %v1572 = vsel %vm1540, %v1570, %v1571
        %v1573 = vrot.slane %v1571, 4
        %v1574 = vrot.slane %v253, 5
        %v1575 = vsel %vm1540, %v1573, %v1574
        %v1576 = vrot.slane %v254, 5
        %v1577 = vrot.slane %v1576, 4
        %v1578 = vrot.slane %v255, 5
        %v1579 = vsel %vm1540, %v1577, %v1578
        %v1580 = vrot.slane %v1578, 4
        %v1581 = vrot.slane %v256, 5
        %v1582 = vsel %vm1540, %v1580, %v1581
        %v1583 = vrot.slane %v257, 5
        %v1584 = vrot.slane %v1583, 4
        %v1585 = vrot.slane %v258, 5
        %v1586 = vsel %vm1540, %v1584, %v1585
        %v1587 = vrot.slane %v1585, 4
        %v1588 = vrot.slane %v259, 5
        %v1589 = vsel %vm1540, %v1587, %v1588
        %v1590 = vrot.slane %v260, 5
        %v1591 = vrot.slane %v1590, 4
        %v1592 = vrot.slane %v261, 5
        %v1593 = vsel %vm1540, %v1591, %v1592
        %v1594 = vrot.slane %v1592, 4
        %v1595 = vrot.slane %v262, 5
        %v1596 = vsel %vm1540, %v1594, %v1595
        %v1597 = vrot.slane %v263, 5
        %v1598 = vrot.slane %v1597, 4
        %v1599 = vrot.slane %v264, 5
        %v1600 = vsel %vm1540, %v1598, %v1599
        %v1601 = vrot.slane %v1599, 4
        %v1602 = vrot.slane %v265, 5
        %v1603 = vsel %vm1540, %v1601, %v1602
        %v1604 = vrot.slane %v266, 5
        %v1605 = vrot.slane %v1604, 4
        %v1606 = vrot.slane %v267, 5
        %v1607 = vsel %vm1540, %v1605, %v1606
        %v1608 = vrot.slane %v1606, 4
        %v1609 = vrot.slane %v268, 5
        %v1610 = vsel %vm1540, %v1608, %v1609
        %v1611 = vrot.slane %v269, 5
        %v1612 = vrot.slane %v1611, 4
        %v1613 = vrot.slane %v270, 5
        %v1614 = vsel %vm1540, %v1612, %v1613
        %v1615 = vrot.slane %v1613, 4
        %v1616 = vrot.slane %v271, 5
        %v1617 = vsel %vm1540, %v1615, %v1616
        %v1618 = vrot.slane %v272, 5
        %v1619 = vrot.slane %v1618, 4
        %v1620 = vrot.slane %v273, 5
        %v1621 = vsel %vm1540, %v1619, %v1620
        %v1622 = vrot.slane %v1620, 4
        %v1623 = vrot.slane %v274, 5
        %v1624 = vsel %vm1540, %v1622, %v1623
        %v1625 = vrot.slane %v275, 5
        %v1626 = vrot.slane %v1625, 4
        %v1627 = vrot.slane %v276, 5
        %v1628 = vsel %vm1540, %v1626, %v1627
        %v1629 = vrot.slane %v1627, 4
        %v1630 = vrot.slane %v277, 5
        %v1631 = vsel %vm1540, %v1629, %v1630
        %v1632 = vrot.slane %v278, 5
        %v1633 = vrot.slane %v1632, 4
        %v1634 = vrot.slane %v279, 5
        %v1635 = vsel %vm1540, %v1633, %v1634
        %v1636 = vrot.slane %v1634, 4
        %v1637 = vrot.slane %v280, 5
        %v1638 = vsel %vm1540, %v1636, %v1637
        %v1639 = vrot.slane %v281, 5
        %v1640 = vrot.slane %v1639, 4
        %v1641 = vrot.slane %v282, 5
        %v1642 = vsel %vm1540, %v1640, %v1641
        %v1643 = vrot.slane %v1641, 4
        %v1644 = vrot.slane %v283, 5
        %v1645 = vsel %vm1540, %v1643, %v1644
        %v1646 = vrot.slane %v284, 5
        %v1647 = vrot.slane %v1646, 4
        %v1648 = vrot.slane %v285, 5
        %v1649 = vsel %vm1540, %v1647, %v1648
        %v1650 = vrot.slane %v1648, 4
        %v1651 = vrot.slane %v286, 5
        %v1652 = vsel %vm1540, %v1650, %v1651
        %v1653 = vld [vmem:[#allocation3] sm:$0xff]
        %v1654 = vld [vmem:[#allocation3 + $0x8] sm:$0xff]
        %v1655 = vld [vmem:[#allocation3 + $0x10] sm:$0xff]
        %v1656 = vld [vmem:[#allocation3 + $0x18] sm:$0xff]
        %v1657 = vld [vmem:[#allocation3 + $0x20] sm:$0xff]
        %v1658 = vld [vmem:[#allocation3 + $0x28] sm:$0xff]
        %v1659 = vld [vmem:[#allocation3 + $0x30] sm:$0xff]
        %v1660 = vld [vmem:[#allocation3 + $0x38] sm:$0xff]
        %v1661 = vld [vmem:[#allocation3 + $0x40] sm:$0xff]
        %v1662 = vld [vmem:[#allocation3 + $0x48] sm:$0xff]
        %v1663 = vld [vmem:[#allocation3 + $0x50] sm:$0xff]
        %v1664 = vld [vmem:[#allocation3 + $0x58] sm:$0xff]
        %v1665 = vld [vmem:[#allocation3 + $0x60] sm:$0xff]
        %v1666 = vld [vmem:[#allocation3 + $0x68] sm:$0xff]
        %v1667 = vld [vmem:[#allocation3 + $0x70] sm:$0xff]
        %v1668 = vld [vmem:[#allocation3 + $0x78] sm:$0xff]
        %v1669 = vld [vmem:[#allocation3 + $0x80] sm:$0xff]
        %v1670 = vld [vmem:[#allocation3 + $0x88] sm:$0xff]
        %v1671 = vld [vmem:[#allocation3 + $0x90] sm:$0xff]
        %v1672 = vld [vmem:[#allocation3 + $0x98] sm:$0xff]
        %v1673 = vld [vmem:[#allocation3 + $0xa0] sm:$0xff]
        %v1674 = vld [vmem:[#allocation3 + $0xa8] sm:$0xff]
        %v1675 = vld [vmem:[#allocation3 + $0xb0] sm:$0xff]
        %v1676 = vld [vmem:[#allocation3 + $0xb8] sm:$0xff]
        %v1677 = vld [vmem:[#allocation3 + $0xc0] sm:$0xff]
        %v1678 = vld [vmem:[#allocation3 + $0xc8] sm:$0xff]
        %v1679 = vld [vmem:[#allocation3 + $0xd0] sm:$0xff]
        %v1680 = vld [vmem:[#allocation3 + $0xd8] sm:$0xff]
        %v1681 = vld [vmem:[#allocation3 + $0xe0] sm:$0xff]
        %v1682 = vld [vmem:[#allocation3 + $0xe8] sm:$0xff]
        %v1683 = vld [vmem:[#allocation3 + $0xf0] sm:$0xff]
        %v1684 = vld [vmem:[#allocation3 + $0xf8] sm:$0xff]
        %s1685 = scalar_lea.vmem %s1, 128
        %v1686 = vld [vmem:[%s1685] sm:$0xf]
        %v1687 = vld [vmem:[%s1685 + $0x4] sm:$0xf]
        %v1688 = vld [vmem:[%s1685 + $0x8] sm:$0xf]
        %v1689 = vld [vmem:[%s1685 + $0xc] sm:$0xf]
        %v1690 = vld [vmem:[%s1685 + $0x10] sm:$0xf]
        %v1691 = vld [vmem:[%s1685 + $0x14] sm:$0xf]
        %v1692 = vld [vmem:[%s1685 + $0x18] sm:$0xf]
        %v1693 = vld [vmem:[%s1685 + $0x1c] sm:$0xf]
        %v1694 = vld [vmem:[%s1685 + $0x20] sm:$0xf]
        %v1695 = vld [vmem:[%s1685 + $0x24] sm:$0xf]
        %v1696 = vld [vmem:[%s1685 + $0x28] sm:$0xf]
        %v1697 = vld [vmem:[%s1685 + $0x2c] sm:$0xf]
        %v1698 = vld [vmem:[%s1685 + $0x30] sm:$0xf]
        %v1699 = vld [vmem:[%s1685 + $0x34] sm:$0xf]
        %v1700 = vld [vmem:[%s1685 + $0x38] sm:$0xf]
        %v1701 = vld [vmem:[%s1685 + $0x3c] sm:$0xf]
        %v1702 = vunpack.c.l.b16 %v1544
        %v1703 = vunpack.c.l.b16 %v1547
        %v1704 = vunpack.c.l.b16 %v1551
        %v1705 = vunpack.c.l.b16 %v1554
        %v1706 = vunpack.c.l.b16 %v1558
        %v1707 = vunpack.c.l.b16 %v1561
        %v1708 = vunpack.c.l.b16 %v1565
        %v1709 = vunpack.c.l.b16 %v1568
        %v1710 = vunpack.c.l.b16 %v1572
        %v1711 = vunpack.c.l.b16 %v1575
        %v1712 = vunpack.c.l.b16 %v1579
        %v1713 = vunpack.c.l.b16 %v1582
        %v1714 = vunpack.c.l.b16 %v1586
        %v1715 = vunpack.c.l.b16 %v1589
        %v1716 = vunpack.c.l.b16 %v1593
        %v1717 = vunpack.c.l.b16 %v1596
        %v1718 = vunpack.c.l.b16 %v1600
        %v1719 = vunpack.c.l.b16 %v1603
        %v1720 = vunpack.c.l.b16 %v1607
        %v1721 = vunpack.c.l.b16 %v1610
        %v1722 = vunpack.c.l.b16 %v1614
        %v1723 = vunpack.c.l.b16 %v1617
        %v1724 = vunpack.c.l.b16 %v1621
        %v1725 = vunpack.c.l.b16 %v1624
        %v1726 = vunpack.c.l.b16 %v1628
        %v1727 = vunpack.c.l.b16 %v1631
        %v1728 = vunpack.c.l.b16 %v1635
        %v1729 = vunpack.c.l.b16 %v1638
        %v1730 = vunpack.c.l.b16 %v1642
        %v1731 = vunpack.c.l.b16 %v1645
        %v1732 = vunpack.c.l.b16 %v1649
        %v1733 = vunpack.c.l.b16 %v1652
        %v1734 = vpack.c.b16 %v1703, %v1702
        %v1735 = vpack.c.b16 %v1705, %v1704
        %v1736 = vpack.c.b16 %v1707, %v1706
        %v1737 = vpack.c.b16 %v1709, %v1708
        %v1738 = vpack.c.b16 %v1711, %v1710
        %v1739 = vpack.c.b16 %v1713, %v1712
        %v1740 = vpack.c.b16 %v1715, %v1714
        %v1741 = vpack.c.b16 %v1717, %v1716
        %v1742 = vpack.c.b16 %v1719, %v1718
        %v1743 = vpack.c.b16 %v1721, %v1720
        %v1744 = vpack.c.b16 %v1723, %v1722
        %v1745 = vpack.c.b16 %v1725, %v1724
        %v1746 = vpack.c.b16 %v1727, %v1726
        %v1747 = vpack.c.b16 %v1729, %v1728
        %v1748 = vpack.c.b16 %v1731, %v1730
        %v1749 = vpack.c.b16 %v1733, %v1732
        %v1782 = vunpack.c.l.b16 %v1686
        %v1783 = vunpack.c.l.b16 %v1687
        %v1784 = vunpack.c.l.b16 %v1688
        %v1785 = vunpack.c.l.b16 %v1689
        %v1786 = vunpack.c.l.b16 %v1690
        %v1787 = vunpack.c.l.b16 %v1691
        %v1788 = vunpack.c.l.b16 %v1692
        %v1789 = vunpack.c.l.b16 %v1693
        %v1790 = vunpack.c.l.b16 %v1694
        %v1791 = vunpack.c.l.b16 %v1695
        %v1792 = vunpack.c.l.b16 %v1696
        %v1793 = vunpack.c.l.b16 %v1697
        %v1794 = vunpack.c.l.b16 %v1698
        %v1795 = vunpack.c.l.b16 %v1699
        %v1796 = vunpack.c.l.b16 %v1700
        %v1797 = vunpack.c.l.b16 %v1701
        %v1798 = vpack.c.b16 %v1783, %v1782
        %v1799 = vpack.c.b16 %v1785, %v1784
        %v1800 = vpack.c.b16 %v1787, %v1786
        %v1801 = vpack.c.b16 %v1789, %v1788
        %v1802 = vpack.c.b16 %v1791, %v1790
        %v1803 = vpack.c.b16 %v1793, %v1792
        %v1804 = vpack.c.b16 %v1795, %v1794
        %v1805 = vpack.c.b16 %v1797, %v1796
        %1814 = vmatprep.subr.bf16.mxu0 0
        %1815 = vmatpush1.bf16.msra.mxu0 %v1798
        %1816 = vmatprep.subr.bf16.mxu0 0
        %1817 = vmatpush1.bf16.msra.mxu0 %v1799
        %1818 = vmatprep.subr.bf16.mxu0 0
        %1819 = vmatpush1.bf16.msra.mxu0 %v1800
        %1820 = vmatprep.subr.bf16.mxu0 0
        %1821 = vmatpush1.bf16.msra.mxu0 %v1801
        %1822 = vmatprep.subr.bf16.mxu0 0
        %1823 = vmatpush1.bf16.msra.mxu0 %v1802
        %1824 = vmatprep.subr.bf16.mxu0 0
        %1825 = vmatpush1.bf16.msra.mxu0 %v1803
        %1826 = vmatprep.subr.bf16.mxu0 0
        %1827 = vmatpush1.bf16.msra.mxu0 %v1804
        %1828 = vmatprep.subr.bf16.mxu0 0
        %1829 = vmatpush1.bf16.msra.mxu0 %v1805
        %1830 = vmatprep.subr.bf16.mxu0 0
        %1831 = vmatpush1.bf16.msra.mxu0 0
        %1832 = vmatprep.subr.bf16.mxu0 0
        %1833 = vmatpush1.bf16.msra.mxu0 0
        %1834 = vmatprep.subr.bf16.mxu0 0
        %1835 = vmatpush1.bf16.msra.mxu0 0
        %1836 = vmatprep.subr.bf16.mxu0 0
        %1837 = vmatpush1.bf16.msra.mxu0 0
        %1838 = vmatprep.subr.bf16.mxu0 0
        %1839 = vmatpush1.bf16.msra.mxu0 0
        %1840 = vmatprep.subr.bf16.mxu0 0
        %1841 = vmatpush1.bf16.msra.mxu0 0
        %1842 = vmatprep.subr.bf16.mxu0 0
        %1843 = vmatpush1.bf16.msra.mxu0 0
        %1844 = vmatprep.subr.bf16.mxu0 0
        %1845 = vmatpush1.bf16.msra.mxu0 0
        %1846 = vmatprep.mubr.bf16.mxu0 0
        %1847 = vmatmul.mubr.bf16.gmra.mrb[0].mxu0 %v1734
        %v1848 = vpop.f32.mrb[0].mxu0
        %v1849 = vadd.f32 0.0, %v1848
        %v1850 = vpop.f32.mrb[0].mxu0
        %v1851 = vpop.f32.mrb[0].mxu0
        %v1852 = vadd.f32 0.0, %v1851
        %v1853 = vpop.f32.mrb[0].mxu0
        %1854 = vmatprep.mubr.bf16.mxu0 0
        %1855 = vmatmul.mubr.bf16.gmra.mrb[0].mxu0 %v1735
        %v1856 = vpop.f32.mrb[0].mxu0
        %v1857 = vadd.f32 0.0, %v1856
        %v1858 = vpop.f32.mrb[0].mxu0
        %v1859 = vpop.f32.mrb[0].mxu0
        %v1860 = vadd.f32 0.0, %v1859
        %v1861 = vpop.f32.mrb[0].mxu0
        %1862 = vmatprep.mubr.bf16.mxu0 0
        %1863 = vmatmul.mubr.bf16.gmra.mrb[0].mxu0 %v1736
        %v1864 = vpop.f32.mrb[0].mxu0
        %v1865 = vadd.f32 0.0, %v1864
        %v1866 = vpop.f32.mrb[0].mxu0
        %v1867 = vpop.f32.mrb[0].mxu0
        %v1868 = vadd.f32 0.0, %v1867
        %v1869 = vpop.f32.mrb[0].mxu0
        %1870 = vmatprep.mubr.bf16.mxu0 0
        %1871 = vmatmul.mubr.bf16.gmra.mrb[0].mxu0 %v1737
        %v1872 = vpop.f32.mrb[0].mxu0
        %v1873 = vadd.f32 0.0, %v1872
        %v1874 = vpop.f32.mrb[0].mxu0
        %v1875 = vpop.f32.mrb[0].mxu0
        %v1876 = vadd.f32 0.0, %v1875
        %v1877 = vpop.f32.mrb[0].mxu0
        %1878 = vmatprep.mubr.bf16.mxu0 0
        %1879 = vmatmul.mubr.bf16.gmra.mrb[0].mxu0 %v1738
        %v1880 = vpop.f32.mrb[0].mxu0
        %v1881 = vadd.f32 0.0, %v1880
        %v1882 = vpop.f32.mrb[0].mxu0
        %v1883 = vpop.f32.mrb[0].mxu0
        %v1884 = vadd.f32 0.0, %v1883
        %v1885 = vpop.f32.mrb[0].mxu0
        %1886 = vmatprep.mubr.bf16.mxu0 0
        %1887 = vmatmul.mubr.bf16.gmra.mrb[0].mxu0 %v1739
        %v1888 = vpop.f32.mrb[0].mxu0
        %v1889 = vadd.f32 0.0, %v1888
        %v1890 = vpop.f32.mrb[0].mxu0
        %v1891 = vpop.f32.mrb[0].mxu0
        %v1892 = vadd.f32 0.0, %v1891
        %v1893 = vpop.f32.mrb[0].mxu0
        %1894 = vmatprep.mubr.bf16.mxu0 0
        %1895 = vmatmul.mubr.bf16.gmra.mrb[0].mxu0 %v1740
        %v1896 = vpop.f32.mrb[0].mxu0
        %v1897 = vadd.f32 0.0, %v1896
        %v1898 = vpop.f32.mrb[0].mxu0
        %v1899 = vpop.f32.mrb[0].mxu0
        %v1900 = vadd.f32 0.0, %v1899
        %v1901 = vpop.f32.mrb[0].mxu0
        %1902 = vmatprep.mubr.bf16.mxu0 0
        %1903 = vmatmul.mubr.bf16.gmra.mrb[0].mxu0 %v1741
        %v1904 = vpop.f32.mrb[0].mxu0
        %v1905 = vadd.f32 0.0, %v1904
        %v1906 = vpop.f32.mrb[0].mxu0
        %v1907 = vpop.f32.mrb[0].mxu0
        %v1908 = vadd.f32 0.0, %v1907
        %v1909 = vpop.f32.mrb[0].mxu0
        %1910 = vmatprep.mubr.bf16.mxu0 0
        %1911 = vmatmul.mubr.bf16.gmra.mrb[0].mxu0 %v1742
        %v1912 = vpop.f32.mrb[0].mxu0
        %v1913 = vadd.f32 0.0, %v1912
        %v1914 = vpop.f32.mrb[0].mxu0
        %v1915 = vpop.f32.mrb[0].mxu0
        %v1916 = vadd.f32 0.0, %v1915
        %v1917 = vpop.f32.mrb[0].mxu0
        %1918 = vmatprep.mubr.bf16.mxu0 0
        %1919 = vmatmul.mubr.bf16.gmra.mrb[0].mxu0 %v1743
        %v1920 = vpop.f32.mrb[0].mxu0
        %v1921 = vadd.f32 0.0, %v1920
        %v1922 = vpop.f32.mrb[0].mxu0
        %v1923 = vpop.f32.mrb[0].mxu0
        %v1924 = vadd.f32 0.0, %v1923
        %v1925 = vpop.f32.mrb[0].mxu0
        %1926 = vmatprep.mubr.bf16.mxu0 0
        %1927 = vmatmul.mubr.bf16.gmra.mrb[0].mxu0 %v1744
        %v1928 = vpop.f32.mrb[0].mxu0
        %v1929 = vadd.f32 0.0, %v1928
        %v1930 = vpop.f32.mrb[0].mxu0
        %v1931 = vpop.f32.mrb[0].mxu0
        %v1932 = vadd.f32 0.0, %v1931
        %v1933 = vpop.f32.mrb[0].mxu0
        %1934 = vmatprep.mubr.bf16.mxu0 0
        %1935 = vmatmul.mubr.bf16.gmra.mrb[0].mxu0 %v1745
        %v1936 = vpop.f32.mrb[0].mxu0
        %v1937 = vadd.f32 0.0, %v1936
        %v1938 = vpop.f32.mrb[0].mxu0
        %v1939 = vpop.f32.mrb[0].mxu0
        %v1940 = vadd.f32 0.0, %v1939
        %v1941 = vpop.f32.mrb[0].mxu0
        %1942 = vmatprep.mubr.bf16.mxu0 0
        %1943 = vmatmul.mubr.bf16.gmra.mrb[0].mxu0 %v1746
        %v1944 = vpop.f32.mrb[0].mxu0
        %v1945 = vadd.f32 0.0, %v1944
        %v1946 = vpop.f32.mrb[0].mxu0
        %v1947 = vpop.f32.mrb[0].mxu0
        %v1948 = vadd.f32 0.0, %v1947
        %v1949 = vpop.f32.mrb[0].mxu0
        %1950 = vmatprep.mubr.bf16.mxu0 0
        %1951 = vmatmul.mubr.bf16.gmra.mrb[0].mxu0 %v1747
        %v1952 = vpop.f32.mrb[0].mxu0
        %v1953 = vadd.f32 0.0, %v1952
        %v1954 = vpop.f32.mrb[0].mxu0
        %v1955 = vpop.f32.mrb[0].mxu0
        %v1956 = vadd.f32 0.0, %v1955
        %v1957 = vpop.f32.mrb[0].mxu0
        %1958 = vmatprep.mubr.bf16.mxu0 0
        %1959 = vmatmul.mubr.bf16.gmra.mrb[0].mxu0 %v1748
        %v1960 = vpop.f32.mrb[0].mxu0
        %v1961 = vadd.f32 0.0, %v1960
        %v1962 = vpop.f32.mrb[0].mxu0
        %v1963 = vpop.f32.mrb[0].mxu0
        %v1964 = vadd.f32 0.0, %v1963
        %v1965 = vpop.f32.mrb[0].mxu0
        %1966 = vmatprep.mubr.bf16.mxu0 0
        %1967 = vmatmul.mubr.bf16.gmra.mrb[0].mxu0 %v1749
        %v1968 = vpop.f32.mrb[0].mxu0
        %v1969 = vadd.f32 0.0, %v1968
        %v1970 = vpop.f32.mrb[0].mxu0
        %v1971 = vpop.f32.mrb[0].mxu0
        %v1972 = vadd.f32 0.0, %v1971
        %v1973 = vpop.f32.mrb[0].mxu0
        %1974 = vdwg.mxu0
        %v1975 = vadd.f32 %v1653, %v1849
        %v1976 = vadd.f32 %v1654, %v1852
        %v1977 = vadd.f32 %v1655, %v1857
        %v1978 = vadd.f32 %v1656, %v1860
        %v1979 = vadd.f32 %v1657, %v1865
        %v1980 = vadd.f32 %v1658, %v1868
        %v1981 = vadd.f32 %v1659, %v1873
        %v1982 = vadd.f32 %v1660, %v1876
        %v1983 = vadd.f32 %v1661, %v1881
        %v1984 = vadd.f32 %v1662, %v1884
        %v1985 = vadd.f32 %v1663, %v1889
        %v1986 = vadd.f32 %v1664, %v1892
        %v1987 = vadd.f32 %v1665, %v1897
        %v1988 = vadd.f32 %v1666, %v1900
        %v1989 = vadd.f32 %v1667, %v1905
        %v1990 = vadd.f32 %v1668, %v1908
        %v1991 = vadd.f32 %v1669, %v1913
        %v1992 = vadd.f32 %v1670, %v1916
        %v1993 = vadd.f32 %v1671, %v1921
        %v1994 = vadd.f32 %v1672, %v1924
        %v1995 = vadd.f32 %v1673, %v1929
        %v1996 = vadd.f32 %v1674, %v1932
        %v1997 = vadd.f32 %v1675, %v1937
        %v1998 = vadd.f32 %v1676, %v1940
        %v1999 = vadd.f32 %v1677, %v1945
        %v2000 = vadd.f32 %v1678, %v1948
        %v2001 = vadd.f32 %v1679, %v1953
        %v2002 = vadd.f32 %v1680, %v1956
        %v2003 = vadd.f32 %v1681, %v1961
        %v2004 = vadd.f32 %v1682, %v1964
        %v2005 = vadd.f32 %v1683, %v1969
        %v2006 = vadd.f32 %v1684, %v1972
        %2007 = vst [vmem:[#allocation3] sm:$0xff] %v1975
        %2008 = vst [vmem:[#allocation3 + $0x8] sm:$0xff] %v1976
        %2009 = vst [vmem:[#allocation3 + $0x10] sm:$0xff] %v1977
        %2010 = vst [vmem:[#allocation3 + $0x18] sm:$0xff] %v1978
        %2011 = vst [vmem:[#allocation3 + $0x20] sm:$0xff] %v1979
        %2012 = vst [vmem:[#allocation3 + $0x28] sm:$0xff] %v1980
        %2013 = vst [vmem:[#allocation3 + $0x30] sm:$0xff] %v1981
        %2014 = vst [vmem:[#allocation3 + $0x38] sm:$0xff] %v1982
        %2015 = vst [vmem:[#allocation3 + $0x40] sm:$0xff] %v1983
        %2016 = vst [vmem:[#allocation3 + $0x48] sm:$0xff] %v1984
        %2017 = vst [vmem:[#allocation3 + $0x50] sm:$0xff] %v1985
        %2018 = vst [vmem:[#allocation3 + $0x58] sm:$0xff] %v1986
        %2019 = vst [vmem:[#allocation3 + $0x60] sm:$0xff] %v1987
        %2020 = vst [vmem:[#allocation3 + $0x68] sm:$0xff] %v1988
        %2021 = vst [vmem:[#allocation3 + $0x70] sm:$0xff] %v1989
        %2022 = vst [vmem:[#allocation3 + $0x78] sm:$0xff] %v1990
        %2023 = vst [vmem:[#allocation3 + $0x80] sm:$0xff] %v1991
        %2024 = vst [vmem:[#allocation3 + $0x88] sm:$0xff] %v1992
        %2025 = vst [vmem:[#allocation3 + $0x90] sm:$0xff] %v1993
        %2026 = vst [vmem:[#allocation3 + $0x98] sm:$0xff] %v1994
        %2027 = vst [vmem:[#allocation3 + $0xa0] sm:$0xff] %v1995
        %2028 = vst [vmem:[#allocation3 + $0xa8] sm:$0xff] %v1996
        %2029 = vst [vmem:[#allocation3 + $0xb0] sm:$0xff] %v1997
        %2030 = vst [vmem:[#allocation3 + $0xb8] sm:$0xff] %v1998
        %2031 = vst [vmem:[#allocation3 + $0xc0] sm:$0xff] %v1999
        %2032 = vst [vmem:[#allocation3 + $0xc8] sm:$0xff] %v2000
        %2033 = vst [vmem:[#allocation3 + $0xd0] sm:$0xff] %v2001
        %2034 = vst [vmem:[#allocation3 + $0xd8] sm:$0xff] %v2002
        %2035 = vst [vmem:[#allocation3 + $0xe0] sm:$0xff] %v2003
        %2036 = vst [vmem:[#allocation3 + $0xe8] sm:$0xff] %v2004
        %2037 = vst [vmem:[#allocation3 + $0xf0] sm:$0xff] %v2005
        %2038 = vst [vmem:[#allocation3 + $0xf8] sm:$0xff] %v2006
        %v2039 = vld [vmem:[#allocation3] sm:$0xff]
        %v2040 = vld [vmem:[#allocation3 + $0x8] sm:$0xff]
        %v2041 = vld [vmem:[#allocation3 + $0x10] sm:$0xff]
        %v2042 = vld [vmem:[#allocation3 + $0x18] sm:$0xff]
        %v2043 = vld [vmem:[#allocation3 + $0x20] sm:$0xff]
        %v2044 = vld [vmem:[#allocation3 + $0x28] sm:$0xff]
        %v2045 = vld [vmem:[#allocation3 + $0x30] sm:$0xff]
        %v2046 = vld [vmem:[#allocation3 + $0x38] sm:$0xff]
        %v2047 = vld [vmem:[#allocation3 + $0x40] sm:$0xff]
        %v2048 = vld [vmem:[#allocation3 + $0x48] sm:$0xff]
        %v2049 = vld [vmem:[#allocation3 + $0x50] sm:$0xff]
        %v2050 = vld [vmem:[#allocation3 + $0x58] sm:$0xff]
        %v2051 = vld [vmem:[#allocation3 + $0x60] sm:$0xff]
        %v2052 = vld [vmem:[#allocation3 + $0x68] sm:$0xff]
        %v2053 = vld [vmem:[#allocation3 + $0x70] sm:$0xff]
        %v2054 = vld [vmem:[#allocation3 + $0x78] sm:$0xff]
        %v2055 = vld [vmem:[#allocation3 + $0x80] sm:$0xff]
        %v2056 = vld [vmem:[#allocation3 + $0x88] sm:$0xff]
        %v2057 = vld [vmem:[#allocation3 + $0x90] sm:$0xff]
        %v2058 = vld [vmem:[#allocation3 + $0x98] sm:$0xff]
        %v2059 = vld [vmem:[#allocation3 + $0xa0] sm:$0xff]
        %v2060 = vld [vmem:[#allocation3 + $0xa8] sm:$0xff]
        %v2061 = vld [vmem:[#allocation3 + $0xb0] sm:$0xff]
        %v2062 = vld [vmem:[#allocation3 + $0xb8] sm:$0xff]
        %v2063 = vld [vmem:[#allocation3 + $0xc0] sm:$0xff]
        %v2064 = vld [vmem:[#allocation3 + $0xc8] sm:$0xff]
        %v2065 = vld [vmem:[#allocation3 + $0xd0] sm:$0xff]
        %v2066 = vld [vmem:[#allocation3 + $0xd8] sm:$0xff]
        %v2067 = vld [vmem:[#allocation3 + $0xe0] sm:$0xff]
        %v2068 = vld [vmem:[#allocation3 + $0xe8] sm:$0xff]
        %v2069 = vld [vmem:[#allocation3 + $0xf0] sm:$0xff]
        %v2070 = vld [vmem:[#allocation3 + $0xf8] sm:$0xff]
        %s2071 = scalar_lea.vmem %s1, 192
        %v2072 = vld [vmem:[%s2071] sm:$0xf]
        %v2073 = vld [vmem:[%s2071 + $0x4] sm:$0xf]
        %v2074 = vld [vmem:[%s2071 + $0x8] sm:$0xf]
        %v2075 = vld [vmem:[%s2071 + $0xc] sm:$0xf]
        %v2076 = vld [vmem:[%s2071 + $0x10] sm:$0xf]
        %v2077 = vld [vmem:[%s2071 + $0x14] sm:$0xf]
        %v2078 = vld [vmem:[%s2071 + $0x18] sm:$0xf]
        %v2079 = vld [vmem:[%s2071 + $0x1c] sm:$0xf]
        %v2080 = vld [vmem:[%s2071 + $0x20] sm:$0xf]
        %v2081 = vld [vmem:[%s2071 + $0x24] sm:$0xf]
        %v2082 = vld [vmem:[%s2071 + $0x28] sm:$0xf]
        %v2083 = vld [vmem:[%s2071 + $0x2c] sm:$0xf]
        %v2084 = vld [vmem:[%s2071 + $0x30] sm:$0xf]
        %v2085 = vld [vmem:[%s2071 + $0x34] sm:$0xf]
        %v2086 = vld [vmem:[%s2071 + $0x38] sm:$0xf]
        %v2087 = vld [vmem:[%s2071 + $0x3c] sm:$0xf]
        %v2090 = vunpack.c.l.b16 %v287
        %v2091 = vunpack.c.l.b16 %v288
        %v2092 = vpack.c.b16 %v2091, %v2090
        %v2110 = vunpack.c.l.b16 %v2072
        %v2111 = vunpack.c.l.b16 %v2073
        %v2112 = vunpack.c.l.b16 %v2074
        %v2113 = vunpack.c.l.b16 %v2075
        %v2114 = vunpack.c.l.b16 %v2076
        %v2115 = vunpack.c.l.b16 %v2077
        %v2116 = vunpack.c.l.b16 %v2078
        %v2117 = vunpack.c.l.b16 %v2079
        %v2118 = vunpack.c.l.b16 %v2080
        %v2119 = vunpack.c.l.b16 %v2081
        %v2120 = vunpack.c.l.b16 %v2082
        %v2121 = vunpack.c.l.b16 %v2083
        %v2122 = vunpack.c.l.b16 %v2084
        %v2123 = vunpack.c.l.b16 %v2085
        %v2124 = vunpack.c.l.b16 %v2086
        %v2125 = vunpack.c.l.b16 %v2087
        %v2126 = vpack.c.b16 %v2111, %v2110
        %v2127 = vpack.c.b16 %v2113, %v2112
        %v2128 = vpack.c.b16 %v2115, %v2114
        %v2129 = vpack.c.b16 %v2117, %v2116
        %v2130 = vpack.c.b16 %v2119, %v2118
        %v2131 = vpack.c.b16 %v2121, %v2120
        %v2132 = vpack.c.b16 %v2123, %v2122
        %v2133 = vpack.c.b16 %v2125, %v2124
        %2142 = vmatprep.subr.bf16.mxu0 0
        %2143 = vmatpush1.bf16.msra.mxu0 %v2126
        %2144 = vmatprep.subr.bf16.mxu0 0
        %2145 = vmatpush1.bf16.msra.mxu0 %v2127
        %2146 = vmatprep.subr.bf16.mxu0 0
        %2147 = vmatpush1.bf16.msra.mxu0 %v2128
        %2148 = vmatprep.subr.bf16.mxu0 0
        %2149 = vmatpush1.bf16.msra.mxu0 %v2129
        %2150 = vmatprep.subr.bf16.mxu0 0
        %2151 = vmatpush1.bf16.msra.mxu0 %v2130
        %2152 = vmatprep.subr.bf16.mxu0 0
        %2153 = vmatpush1.bf16.msra.mxu0 %v2131
        %2154 = vmatprep.subr.bf16.mxu0 0
        %2155 = vmatpush1.bf16.msra.mxu0 %v2132
        %2156 = vmatprep.subr.bf16.mxu0 0
        %2157 = vmatpush1.bf16.msra.mxu0 %v2133
        %2158 = vmatprep.subr.bf16.mxu0 0
        %2159 = vmatpush1.bf16.msra.mxu0 0
        %2160 = vmatprep.subr.bf16.mxu0 0
        %2161 = vmatpush1.bf16.msra.mxu0 0
        %2162 = vmatprep.subr.bf16.mxu0 0
        %2163 = vmatpush1.bf16.msra.mxu0 0
        %2164 = vmatprep.subr.bf16.mxu0 0
        %2165 = vmatpush1.bf16.msra.mxu0 0
        %2166 = vmatprep.subr.bf16.mxu0 0
        %2167 = vmatpush1.bf16.msra.mxu0 0
        %2168 = vmatprep.subr.bf16.mxu0 0
        %2169 = vmatpush1.bf16.msra.mxu0 0
        %2170 = vmatprep.subr.bf16.mxu0 0
        %2171 = vmatpush1.bf16.msra.mxu0 0
        %2172 = vmatprep.subr.bf16.mxu0 0
        %2173 = vmatpush1.bf16.msra.mxu0 0
        %2174 = vmatprep.mubr.bf16.mxu0 0
        %2175 = vmatmul.mubr.bf16.gmra.mrb[0].mxu0 %v445
        %v2176 = vpop.f32.mrb[0].mxu0
        %v2177 = vadd.f32 0.0, %v2176
        %v2178 = vpop.f32.mrb[0].mxu0
        %v2179 = vpop.f32.mrb[0].mxu0
        %v2180 = vadd.f32 0.0, %v2179
        %v2181 = vpop.f32.mrb[0].mxu0
        %2182 = vmatprep.mubr.bf16.mxu0 0
        %2183 = vmatmul.mubr.bf16.gmra.mrb[0].mxu0 %v446
        %v2184 = vpop.f32.mrb[0].mxu0
        %v2185 = vadd.f32 0.0, %v2184
        %v2186 = vpop.f32.mrb[0].mxu0
        %v2187 = vpop.f32.mrb[0].mxu0
        %v2188 = vadd.f32 0.0, %v2187
        %v2189 = vpop.f32.mrb[0].mxu0
        %2190 = vmatprep.mubr.bf16.mxu0 0
        %2191 = vmatmul.mubr.bf16.gmra.mrb[0].mxu0 %v447
        %v2192 = vpop.f32.mrb[0].mxu0
        %v2193 = vadd.f32 0.0, %v2192
        %v2194 = vpop.f32.mrb[0].mxu0
        %v2195 = vpop.f32.mrb[0].mxu0
        %v2196 = vadd.f32 0.0, %v2195
        %v2197 = vpop.f32.mrb[0].mxu0
        %2198 = vmatprep.mubr.bf16.mxu0 0
        %2199 = vmatmul.mubr.bf16.gmra.mrb[0].mxu0 %v448
        %v2200 = vpop.f32.mrb[0].mxu0
        %v2201 = vadd.f32 0.0, %v2200
        %v2202 = vpop.f32.mrb[0].mxu0
        %v2203 = vpop.f32.mrb[0].mxu0
        %v2204 = vadd.f32 0.0, %v2203
        %v2205 = vpop.f32.mrb[0].mxu0
        %2206 = vmatprep.mubr.bf16.mxu0 0
        %2207 = vmatmul.mubr.bf16.gmra.mrb[0].mxu0 %v449
        %v2208 = vpop.f32.mrb[0].mxu0
        %v2209 = vadd.f32 0.0, %v2208
        %v2210 = vpop.f32.mrb[0].mxu0
        %v2211 = vpop.f32.mrb[0].mxu0
        %v2212 = vadd.f32 0.0, %v2211
        %v2213 = vpop.f32.mrb[0].mxu0
        %2214 = vmatprep.mubr.bf16.mxu0 0
        %2215 = vmatmul.mubr.bf16.gmra.mrb[0].mxu0 %v450
        %v2216 = vpop.f32.mrb[0].mxu0
        %v2217 = vadd.f32 0.0, %v2216
        %v2218 = vpop.f32.mrb[0].mxu0
        %v2219 = vpop.f32.mrb[0].mxu0
        %v2220 = vadd.f32 0.0, %v2219
        %v2221 = vpop.f32.mrb[0].mxu0
        %2222 = vmatprep.mubr.bf16.mxu0 0
        %2223 = vmatmul.mubr.bf16.gmra.mrb[0].mxu0 %v451
        %v2224 = vpop.f32.mrb[0].mxu0
        %v2225 = vadd.f32 0.0, %v2224
        %v2226 = vpop.f32.mrb[0].mxu0
        %v2227 = vpop.f32.mrb[0].mxu0
        %v2228 = vadd.f32 0.0, %v2227
        %v2229 = vpop.f32.mrb[0].mxu0
        %2230 = vmatprep.mubr.bf16.mxu0 0
        %2231 = vmatmul.mubr.bf16.gmra.mrb[0].mxu0 %v452
        %v2232 = vpop.f32.mrb[0].mxu0
        %v2233 = vadd.f32 0.0, %v2232
        %v2234 = vpop.f32.mrb[0].mxu0
        %v2235 = vpop.f32.mrb[0].mxu0
        %v2236 = vadd.f32 0.0, %v2235
        %v2237 = vpop.f32.mrb[0].mxu0
        %2238 = vmatprep.mubr.bf16.mxu0 0
        %2239 = vmatmul.mubr.bf16.gmra.mrb[0].mxu0 %v453
        %v2240 = vpop.f32.mrb[0].mxu0
        %v2241 = vadd.f32 0.0, %v2240
        %v2242 = vpop.f32.mrb[0].mxu0
        %v2243 = vpop.f32.mrb[0].mxu0
        %v2244 = vadd.f32 0.0, %v2243
        %v2245 = vpop.f32.mrb[0].mxu0
        %2246 = vmatprep.mubr.bf16.mxu0 0
        %2247 = vmatmul.mubr.bf16.gmra.mrb[0].mxu0 %v454
        %v2248 = vpop.f32.mrb[0].mxu0
        %v2249 = vadd.f32 0.0, %v2248
        %v2250 = vpop.f32.mrb[0].mxu0
        %v2251 = vpop.f32.mrb[0].mxu0
        %v2252 = vadd.f32 0.0, %v2251
        %v2253 = vpop.f32.mrb[0].mxu0
        %2254 = vmatprep.mubr.bf16.mxu0 0
        %2255 = vmatmul.mubr.bf16.gmra.mrb[0].mxu0 %v455
        %v2256 = vpop.f32.mrb[0].mxu0
        %v2257 = vadd.f32 0.0, %v2256
        %v2258 = vpop.f32.mrb[0].mxu0
        %v2259 = vpop.f32.mrb[0].mxu0
        %v2260 = vadd.f32 0.0, %v2259
        %v2261 = vpop.f32.mrb[0].mxu0
        %2262 = vmatprep.mubr.bf16.mxu0 0
        %2263 = vmatmul.mubr.bf16.gmra.mrb[0].mxu0 %v456
        %v2264 = vpop.f32.mrb[0].mxu0
        %v2265 = vadd.f32 0.0, %v2264
        %v2266 = vpop.f32.mrb[0].mxu0
        %v2267 = vpop.f32.mrb[0].mxu0
        %v2268 = vadd.f32 0.0, %v2267
        %v2269 = vpop.f32.mrb[0].mxu0
        %2270 = vmatprep.mubr.bf16.mxu0 0
        %2271 = vmatmul.mubr.bf16.gmra.mrb[0].mxu0 %v457
        %v2272 = vpop.f32.mrb[0].mxu0
        %v2273 = vadd.f32 0.0, %v2272
        %v2274 = vpop.f32.mrb[0].mxu0
        %v2275 = vpop.f32.mrb[0].mxu0
        %v2276 = vadd.f32 0.0, %v2275
        %v2277 = vpop.f32.mrb[0].mxu0
        %2278 = vmatprep.mubr.bf16.mxu0 0
        %2279 = vmatmul.mubr.bf16.gmra.mrb[0].mxu0 %v458
        %v2280 = vpop.f32.mrb[0].mxu0
        %v2281 = vadd.f32 0.0, %v2280
        %v2282 = vpop.f32.mrb[0].mxu0
        %v2283 = vpop.f32.mrb[0].mxu0
        %v2284 = vadd.f32 0.0, %v2283
        %v2285 = vpop.f32.mrb[0].mxu0
        %2286 = vmatprep.mubr.bf16.mxu0 0
        %2287 = vmatmul.mubr.bf16.gmra.mrb[0].mxu0 %v459
        %v2288 = vpop.f32.mrb[0].mxu0
        %v2289 = vadd.f32 0.0, %v2288
        %v2290 = vpop.f32.mrb[0].mxu0
        %v2291 = vpop.f32.mrb[0].mxu0
        %v2292 = vadd.f32 0.0, %v2291
        %v2293 = vpop.f32.mrb[0].mxu0
        %2294 = vmatprep.mubr.bf16.mxu0 0
        %2295 = vmatmul.mubr.bf16.gmra.mrb[0].mxu0 %v2092
        %v2296 = vpop.f32.mrb[0].mxu0
        %v2297 = vadd.f32 0.0, %v2296
        %v2298 = vpop.f32.mrb[0].mxu0
        %v2299 = vpop.f32.mrb[0].mxu0
        %v2300 = vadd.f32 0.0, %v2299
        %v2301 = vpop.f32.mrb[0].mxu0
        %2302 = vdwg.mxu0
        %v2303 = vadd.f32 %v2039, %v2177
        %v2304 = vadd.f32 %v2040, %v2180
        %v2305 = vadd.f32 %v2041, %v2185
        %v2306 = vadd.f32 %v2042, %v2188
        %v2307 = vadd.f32 %v2043, %v2193
        %v2308 = vadd.f32 %v2044, %v2196
        %v2309 = vadd.f32 %v2045, %v2201
        %v2310 = vadd.f32 %v2046, %v2204
        %v2311 = vadd.f32 %v2047, %v2209
        %v2312 = vadd.f32 %v2048, %v2212
        %v2313 = vadd.f32 %v2049, %v2217
        %v2314 = vadd.f32 %v2050, %v2220
        %v2315 = vadd.f32 %v2051, %v2225
        %v2316 = vadd.f32 %v2052, %v2228
        %v2317 = vadd.f32 %v2053, %v2233
        %v2318 = vadd.f32 %v2054, %v2236
        %v2319 = vadd.f32 %v2055, %v2241
        %v2320 = vadd.f32 %v2056, %v2244
        %v2321 = vadd.f32 %v2057, %v2249
        %v2322 = vadd.f32 %v2058, %v2252
        %v2323 = vadd.f32 %v2059, %v2257
        %v2324 = vadd.f32 %v2060, %v2260
        %v2325 = vadd.f32 %v2061, %v2265
        %v2326 = vadd.f32 %v2062, %v2268
        %v2327 = vadd.f32 %v2063, %v2273
        %v2328 = vadd.f32 %v2064, %v2276
        %v2329 = vadd.f32 %v2065, %v2281
        %v2330 = vadd.f32 %v2066, %v2284
        %v2331 = vadd.f32 %v2067, %v2289
        %v2332 = vadd.f32 %v2068, %v2292
        %v2333 = vadd.f32 %v2069, %v2297
        %v2334 = vadd.f32 %v2070, %v2300
        %2335 = vst [vmem:[#allocation3] sm:$0xff] %v2303
        %2336 = vst [vmem:[#allocation3 + $0x8] sm:$0xff] %v2304
        %2337 = vst [vmem:[#allocation3 + $0x10] sm:$0xff] %v2305
        %2338 = vst [vmem:[#allocation3 + $0x18] sm:$0xff] %v2306
        %2339 = vst [vmem:[#allocation3 + $0x20] sm:$0xff] %v2307
        %2340 = vst [vmem:[#allocation3 + $0x28] sm:$0xff] %v2308
        %2341 = vst [vmem:[#allocation3 + $0x30] sm:$0xff] %v2309
        %2342 = vst [vmem:[#allocation3 + $0x38] sm:$0xff] %v2310
        %2343 = vst [vmem:[#allocation3 + $0x40] sm:$0xff] %v2311
        %2344 = vst [vmem:[#allocation3 + $0x48] sm:$0xff] %v2312
        %2345 = vst [vmem:[#allocation3 + $0x50] sm:$0xff] %v2313
        %2346 = vst [vmem:[#allocation3 + $0x58] sm:$0xff] %v2314
        %2347 = vst [vmem:[#allocation3 + $0x60] sm:$0xff] %v2315
        %2348 = vst [vmem:[#allocation3 + $0x68] sm:$0xff] %v2316
        %2349 = vst [vmem:[#allocation3 + $0x70] sm:$0xff] %v2317
        %2350 = vst [vmem:[#allocation3 + $0x78] sm:$0xff] %v2318
        %2351 = vst [vmem:[#allocation3 + $0x80] sm:$0xff] %v2319
        %2352 = vst [vmem:[#allocation3 + $0x88] sm:$0xff] %v2320
        %2353 = vst [vmem:[#allocation3 + $0x90] sm:$0xff] %v2321
        %2354 = vst [vmem:[#allocation3 + $0x98] sm:$0xff] %v2322
        %2355 = vst [vmem:[#allocation3 + $0xa0] sm:$0xff] %v2323
        %2356 = vst [vmem:[#allocation3 + $0xa8] sm:$0xff] %v2324
        %2357 = vst [vmem:[#allocation3 + $0xb0] sm:$0xff] %v2325
        %2358 = vst [vmem:[#allocation3 + $0xb8] sm:$0xff] %v2326
        %2359 = vst [vmem:[#allocation3 + $0xc0] sm:$0xff] %v2327
        %2360 = vst [vmem:[#allocation3 + $0xc8] sm:$0xff] %v2328
        %2361 = vst [vmem:[#allocation3 + $0xd0] sm:$0xff] %v2329
        %2362 = vst [vmem:[#allocation3 + $0xd8] sm:$0xff] %v2330
        %2363 = vst [vmem:[#allocation3 + $0xe0] sm:$0xff] %v2331
        %2364 = vst [vmem:[#allocation3 + $0xe8] sm:$0xff] %v2332
        %2365 = vst [vmem:[#allocation3 + $0xf0] sm:$0xff] %v2333
        %2366 = vst [vmem:[#allocation3 + $0xf8] sm:$0xff] %v2334
        %v2368 = vshrl.u32 %v287, 16
        %v2370 = vrot.slane %v2368, 4
        %v2371 = vshll.u32 %v287, 16
        %v2373 = vrot.slane %v2371, 5
        %v2374 = vor.u32 %v2370, %v2373
        %v2375 = vrot.slane %v2374, 4
        %v2377 = vshll.u32 %v288, 16
        %v2379 = vrot.slane %v2377, 5
        %v2380 = vsel %vm751, %v2375, %v2379
        %v2381 = vshrl.u32 %v288, 16
        %v2383 = vrot.slane %v2381, 4
        %v2384 = vor.u32 %v2383, %v2379
        %v2385 = vrot.slane %v2384, 4
        %v2387 = vshll.u32 %v289, 16
        %v2389 = vrot.slane %v2387, 5
        %v2390 = vsel %vm751, %v2385, %v2389
        %v2391 = vld [vmem:[#allocation3] sm:$0xff]
        %v2392 = vld [vmem:[#allocation3 + $0x8] sm:$0xff]
        %v2393 = vld [vmem:[#allocation3 + $0x10] sm:$0xff]
        %v2394 = vld [vmem:[#allocation3 + $0x18] sm:$0xff]
        %v2395 = vld [vmem:[#allocation3 + $0x20] sm:$0xff]
        %v2396 = vld [vmem:[#allocation3 + $0x28] sm:$0xff]
        %v2397 = vld [vmem:[#allocation3 + $0x30] sm:$0xff]
        %v2398 = vld [vmem:[#allocation3 + $0x38] sm:$0xff]
        %v2399 = vld [vmem:[#allocation3 + $0x40] sm:$0xff]
        %v2400 = vld [vmem:[#allocation3 + $0x48] sm:$0xff]
        %v2401 = vld [vmem:[#allocation3 + $0x50] sm:$0xff]
        %v2402 = vld [vmem:[#allocation3 + $0x58] sm:$0xff]
        %v2403 = vld [vmem:[#allocation3 + $0x60] sm:$0xff]
        %v2404 = vld [vmem:[#allocation3 + $0x68] sm:$0xff]
        %v2405 = vld [vmem:[#allocation3 + $0x70] sm:$0xff]
        %v2406 = vld [vmem:[#allocation3 + $0x78] sm:$0xff]
        %v2407 = vld [vmem:[#allocation3 + $0x80] sm:$0xff]
        %v2408 = vld [vmem:[#allocation3 + $0x88] sm:$0xff]
        %v2409 = vld [vmem:[#allocation3 + $0x90] sm:$0xff]
        %v2410 = vld [vmem:[#allocation3 + $0x98] sm:$0xff]
        %v2411 = vld [vmem:[#allocation3 + $0xa0] sm:$0xff]
        %v2412 = vld [vmem:[#allocation3 + $0xa8] sm:$0xff]
        %v2413 = vld [vmem:[#allocation3 + $0xb0] sm:$0xff]
        %v2414 = vld [vmem:[#allocation3 + $0xb8] sm:$0xff]
        %v2415 = vld [vmem:[#allocation3 + $0xc0] sm:$0xff]
        %v2416 = vld [vmem:[#allocation3 + $0xc8] sm:$0xff]
        %v2417 = vld [vmem:[#allocation3 + $0xd0] sm:$0xff]
        %v2418 = vld [vmem:[#allocation3 + $0xd8] sm:$0xff]
        %v2419 = vld [vmem:[#allocation3 + $0xe0] sm:$0xff]
        %v2420 = vld [vmem:[#allocation3 + $0xe8] sm:$0xff]
        %v2421 = vld [vmem:[#allocation3 + $0xf0] sm:$0xff]
        %v2422 = vld [vmem:[#allocation3 + $0xf8] sm:$0xff]
        %s2423 = scalar_lea.vmem %s1, 256
        %v2424 = vld [vmem:[%s2423] sm:$0xf]
        %v2425 = vld [vmem:[%s2423 + $0x4] sm:$0xf]
        %v2426 = vld [vmem:[%s2423 + $0x8] sm:$0xf]
        %v2427 = vld [vmem:[%s2423 + $0xc] sm:$0xf]
        %v2428 = vld [vmem:[%s2423 + $0x10] sm:$0xf]
        %v2429 = vld [vmem:[%s2423 + $0x14] sm:$0xf]
        %v2430 = vld [vmem:[%s2423 + $0x18] sm:$0xf]
        %v2431 = vld [vmem:[%s2423 + $0x1c] sm:$0xf]
        %v2432 = vld [vmem:[%s2423 + $0x20] sm:$0xf]
        %v2433 = vld [vmem:[%s2423 + $0x24] sm:$0xf]
        %v2434 = vld [vmem:[%s2423 + $0x28] sm:$0xf]
        %v2435 = vld [vmem:[%s2423 + $0x2c] sm:$0xf]
        %v2436 = vld [vmem:[%s2423 + $0x30] sm:$0xf]
        %v2437 = vld [vmem:[%s2423 + $0x34] sm:$0xf]
        %v2438 = vld [vmem:[%s2423 + $0x38] sm:$0xf]
        %v2439 = vld [vmem:[%s2423 + $0x3c] sm:$0xf]
        %v2440 = vunpack.c.l.b16 %v2380
        %v2441 = vunpack.c.l.b16 %v2390
        %v2442 = vpack.c.b16 %v2441, %v2440
        %v2460 = vunpack.c.l.b16 %v2424
        %v2461 = vunpack.c.l.b16 %v2425
        %v2462 = vunpack.c.l.b16 %v2426
        %v2463 = vunpack.c.l.b16 %v2427
        %v2464 = vunpack.c.l.b16 %v2428
        %v2465 = vunpack.c.l.b16 %v2429
        %v2466 = vunpack.c.l.b16 %v2430
        %v2467 = vunpack.c.l.b16 %v2431
        %v2468 = vunpack.c.l.b16 %v2432
        %v2469 = vunpack.c.l.b16 %v2433
        %v2470 = vunpack.c.l.b16 %v2434
        %v2471 = vunpack.c.l.b16 %v2435
        %v2472 = vunpack.c.l.b16 %v2436
        %v2473 = vunpack.c.l.b16 %v2437
        %v2474 = vunpack.c.l.b16 %v2438
        %v2475 = vunpack.c.l.b16 %v2439
        %v2476 = vpack.c.b16 %v2461, %v2460
        %v2477 = vpack.c.b16 %v2463, %v2462
        %v2478 = vpack.c.b16 %v2465, %v2464
        %v2479 = vpack.c.b16 %v2467, %v2466
        %v2480 = vpack.c.b16 %v2469, %v2468
        %v2481 = vpack.c.b16 %v2471, %v2470
        %v2482 = vpack.c.b16 %v2473, %v2472
        %v2483 = vpack.c.b16 %v2475, %v2474
        %2492 = vmatprep.subr.bf16.mxu0 0
        %2493 = vmatpush1.bf16.msra.mxu0 %v2476
        %2494 = vmatprep.subr.bf16.mxu0 0
        %2495 = vmatpush1.bf16.msra.mxu0 %v2477
        %2496 = vmatprep.subr.bf16.mxu0 0
        %2497 = vmatpush1.bf16.msra.mxu0 %v2478
        %2498 = vmatprep.subr.bf16.mxu0 0
        %2499 = vmatpush1.bf16.msra.mxu0 %v2479
        %2500 = vmatprep.subr.bf16.mxu0 0
        %2501 = vmatpush1.bf16.msra.mxu0 %v2480
        %2502 = vmatprep.subr.bf16.mxu0 0
        %2503 = vmatpush1.bf16.msra.mxu0 %v2481
        %2504 = vmatprep.subr.bf16.mxu0 0
        %2505 = vmatpush1.bf16.msra.mxu0 %v2482
        %2506 = vmatprep.subr.bf16.mxu0 0
        %2507 = vmatpush1.bf16.msra.mxu0 %v2483
        %2508 = vmatprep.subr.bf16.mxu0 0
        %2509 = vmatpush1.bf16.msra.mxu0 0
        %2510 = vmatprep.subr.bf16.mxu0 0
        %2511 = vmatpush1.bf16.msra.mxu0 0
        %2512 = vmatprep.subr.bf16.mxu0 0
        %2513 = vmatpush1.bf16.msra.mxu0 0
        %2514 = vmatprep.subr.bf16.mxu0 0
        %2515 = vmatpush1.bf16.msra.mxu0 0
        %2516 = vmatprep.subr.bf16.mxu0 0
        %2517 = vmatpush1.bf16.msra.mxu0 0
        %2518 = vmatprep.subr.bf16.mxu0 0
        %2519 = vmatpush1.bf16.msra.mxu0 0
        %2520 = vmatprep.subr.bf16.mxu0 0
        %2521 = vmatpush1.bf16.msra.mxu0 0
        %2522 = vmatprep.subr.bf16.mxu0 0
        %2523 = vmatpush1.bf16.msra.mxu0 0
        %2524 = vmatprep.mubr.bf16.mxu0 0
        %2525 = vmatmul.mubr.bf16.gmra.mrb[0].mxu0 %v1218
        %v2526 = vpop.f32.mrb[0].mxu0
        %v2527 = vadd.f32 0.0, %v2526
        %v2528 = vpop.f32.mrb[0].mxu0
        %v2529 = vpop.f32.mrb[0].mxu0
        %v2530 = vadd.f32 0.0, %v2529
        %v2531 = vpop.f32.mrb[0].mxu0
        %2532 = vmatprep.mubr.bf16.mxu0 0
        %2533 = vmatmul.mubr.bf16.gmra.mrb[0].mxu0 %v1219
        %v2534 = vpop.f32.mrb[0].mxu0
        %v2535 = vadd.f32 0.0, %v2534
        %v2536 = vpop.f32.mrb[0].mxu0
        %v2537 = vpop.f32.mrb[0].mxu0
        %v2538 = vadd.f32 0.0, %v2537
        %v2539 = vpop.f32.mrb[0].mxu0
        %2540 = vmatprep.mubr.bf16.mxu0 0
        %2541 = vmatmul.mubr.bf16.gmra.mrb[0].mxu0 %v1220
        %v2542 = vpop.f32.mrb[0].mxu0
        %v2543 = vadd.f32 0.0, %v2542
        %v2544 = vpop.f32.mrb[0].mxu0
        %v2545 = vpop.f32.mrb[0].mxu0
        %v2546 = vadd.f32 0.0, %v2545
        %v2547 = vpop.f32.mrb[0].mxu0
        %2548 = vmatprep.mubr.bf16.mxu0 0
        %2549 = vmatmul.mubr.bf16.gmra.mrb[0].mxu0 %v1221
        %v2550 = vpop.f32.mrb[0].mxu0
        %v2551 = vadd.f32 0.0, %v2550
        %v2552 = vpop.f32.mrb[0].mxu0
        %v2553 = vpop.f32.mrb[0].mxu0
        %v2554 = vadd.f32 0.0, %v2553
        %v2555 = vpop.f32.mrb[0].mxu0
        %2556 = vmatprep.mubr.bf16.mxu0 0
        %2557 = vmatmul.mubr.bf16.gmra.mrb[0].mxu0 %v1222
        %v2558 = vpop.f32.mrb[0].mxu0
        %v2559 = vadd.f32 0.0, %v2558
        %v2560 = vpop.f32.mrb[0].mxu0
        %v2561 = vpop.f32.mrb[0].mxu0
        %v2562 = vadd.f32 0.0, %v2561
        %v2563 = vpop.f32.mrb[0].mxu0
        %2564 = vmatprep.mubr.bf16.mxu0 0
        %2565 = vmatmul.mubr.bf16.gmra.mrb[0].mxu0 %v1223
        %v2566 = vpop.f32.mrb[0].mxu0
        %v2567 = vadd.f32 0.0, %v2566
        %v2568 = vpop.f32.mrb[0].mxu0
        %v2569 = vpop.f32.mrb[0].mxu0
        %v2570 = vadd.f32 0.0, %v2569
        %v2571 = vpop.f32.mrb[0].mxu0
        %2572 = vmatprep.mubr.bf16.mxu0 0
        %2573 = vmatmul.mubr.bf16.gmra.mrb[0].mxu0 %v1224
        %v2574 = vpop.f32.mrb[0].mxu0
        %v2575 = vadd.f32 0.0, %v2574
        %v2576 = vpop.f32.mrb[0].mxu0
        %v2577 = vpop.f32.mrb[0].mxu0
        %v2578 = vadd.f32 0.0, %v2577
        %v2579 = vpop.f32.mrb[0].mxu0
        %2580 = vmatprep.mubr.bf16.mxu0 0
        %2581 = vmatmul.mubr.bf16.gmra.mrb[0].mxu0 %v1225
        %v2582 = vpop.f32.mrb[0].mxu0
        %v2583 = vadd.f32 0.0, %v2582
        %v2584 = vpop.f32.mrb[0].mxu0
        %v2585 = vpop.f32.mrb[0].mxu0
        %v2586 = vadd.f32 0.0, %v2585
        %v2587 = vpop.f32.mrb[0].mxu0
        %2588 = vmatprep.mubr.bf16.mxu0 0
        %2589 = vmatmul.mubr.bf16.gmra.mrb[0].mxu0 %v1226
        %v2590 = vpop.f32.mrb[0].mxu0
        %v2591 = vadd.f32 0.0, %v2590
        %v2592 = vpop.f32.mrb[0].mxu0
        %v2593 = vpop.f32.mrb[0].mxu0
        %v2594 = vadd.f32 0.0, %v2593
        %v2595 = vpop.f32.mrb[0].mxu0
        %2596 = vmatprep.mubr.bf16.mxu0 0
        %2597 = vmatmul.mubr.bf16.gmra.mrb[0].mxu0 %v1227
        %v2598 = vpop.f32.mrb[0].mxu0
        %v2599 = vadd.f32 0.0, %v2598
        %v2600 = vpop.f32.mrb[0].mxu0
        %v2601 = vpop.f32.mrb[0].mxu0
        %v2602 = vadd.f32 0.0, %v2601
        %v2603 = vpop.f32.mrb[0].mxu0
        %2604 = vmatprep.mubr.bf16.mxu0 0
        %2605 = vmatmul.mubr.bf16.gmra.mrb[0].mxu0 %v1228
        %v2606 = vpop.f32.mrb[0].mxu0
        %v2607 = vadd.f32 0.0, %v2606
        %v2608 = vpop.f32.mrb[0].mxu0
        %v2609 = vpop.f32.mrb[0].mxu0
        %v2610 = vadd.f32 0.0, %v2609
        %v2611 = vpop.f32.mrb[0].mxu0
        %2612 = vmatprep.mubr.bf16.mxu0 0
        %2613 = vmatmul.mubr.bf16.gmra.mrb[0].mxu0 %v1229
        %v2614 = vpop.f32.mrb[0].mxu0
        %v2615 = vadd.f32 0.0, %v2614
        %v2616 = vpop.f32.mrb[0].mxu0
        %v2617 = vpop.f32.mrb[0].mxu0
        %v2618 = vadd.f32 0.0, %v2617
        %v2619 = vpop.f32.mrb[0].mxu0
        %2620 = vmatprep.mubr.bf16.mxu0 0
        %2621 = vmatmul.mubr.bf16.gmra.mrb[0].mxu0 %v1230
        %v2622 = vpop.f32.mrb[0].mxu0
        %v2623 = vadd.f32 0.0, %v2622
        %v2624 = vpop.f32.mrb[0].mxu0
        %v2625 = vpop.f32.mrb[0].mxu0
        %v2626 = vadd.f32 0.0, %v2625
        %v2627 = vpop.f32.mrb[0].mxu0
        %2628 = vmatprep.mubr.bf16.mxu0 0
        %2629 = vmatmul.mubr.bf16.gmra.mrb[0].mxu0 %v1231
        %v2630 = vpop.f32.mrb[0].mxu0
        %v2631 = vadd.f32 0.0, %v2630
        %v2632 = vpop.f32.mrb[0].mxu0
        %v2633 = vpop.f32.mrb[0].mxu0
        %v2634 = vadd.f32 0.0, %v2633
        %v2635 = vpop.f32.mrb[0].mxu0
        %2636 = vmatprep.mubr.bf16.mxu0 0
        %2637 = vmatmul.mubr.bf16.gmra.mrb[0].mxu0 %v1232
        %v2638 = vpop.f32.mrb[0].mxu0
        %v2639 = vadd.f32 0.0, %v2638
        %v2640 = vpop.f32.mrb[0].mxu0
        %v2641 = vpop.f32.mrb[0].mxu0
        %v2642 = vadd.f32 0.0, %v2641
        %v2643 = vpop.f32.mrb[0].mxu0
        %2644 = vmatprep.mubr.bf16.mxu0 0
        %2645 = vmatmul.mubr.bf16.gmra.mrb[0].mxu0 %v2442
        %v2646 = vpop.f32.mrb[0].mxu0
        %v2647 = vadd.f32 0.0, %v2646
        %v2648 = vpop.f32.mrb[0].mxu0
        %v2649 = vpop.f32.mrb[0].mxu0
        %v2650 = vadd.f32 0.0, %v2649
        %v2651 = vpop.f32.mrb[0].mxu0
        %2652 = vdwg.mxu0
        %v2653 = vadd.f32 %v2391, %v2527
        %v2654 = vadd.f32 %v2392, %v2530
        %v2655 = vadd.f32 %v2393, %v2535
        %v2656 = vadd.f32 %v2394, %v2538
        %v2657 = vadd.f32 %v2395, %v2543
        %v2658 = vadd.f32 %v2396, %v2546
        %v2659 = vadd.f32 %v2397, %v2551
        %v2660 = vadd.f32 %v2398, %v2554
        %v2661 = vadd.f32 %v2399, %v2559
        %v2662 = vadd.f32 %v2400, %v2562
        %v2663 = vadd.f32 %v2401, %v2567
        %v2664 = vadd.f32 %v2402, %v2570
        %v2665 = vadd.f32 %v2403, %v2575
        %v2666 = vadd.f32 %v2404, %v2578
        %v2667 = vadd.f32 %v2405, %v2583
        %v2668 = vadd.f32 %v2406, %v2586
        %v2669 = vadd.f32 %v2407, %v2591
        %v2670 = vadd.f32 %v2408, %v2594
        %v2671 = vadd.f32 %v2409, %v2599
        %v2672 = vadd.f32 %v2410, %v2602
        %v2673 = vadd.f32 %v2411, %v2607
        %v2674 = vadd.f32 %v2412, %v2610
        %v2675 = vadd.f32 %v2413, %v2615
        %v2676 = vadd.f32 %v2414, %v2618
        %v2677 = vadd.f32 %v2415, %v2623
        %v2678 = vadd.f32 %v2416, %v2626
        %v2679 = vadd.f32 %v2417, %v2631
        %v2680 = vadd.f32 %v2418, %v2634
        %v2681 = vadd.f32 %v2419, %v2639
        %v2682 = vadd.f32 %v2420, %v2642
        %v2683 = vadd.f32 %v2421, %v2647
        %v2684 = vadd.f32 %v2422, %v2650
        %2685 = vst [vmem:[#allocation3] sm:$0xff] %v2653
        %2686 = vst [vmem:[#allocation3 + $0x8] sm:$0xff] %v2654
        %2687 = vst [vmem:[#allocation3 + $0x10] sm:$0xff] %v2655
        %2688 = vst [vmem:[#allocation3 + $0x18] sm:$0xff] %v2656
        %2689 = vst [vmem:[#allocation3 + $0x20] sm:$0xff] %v2657
        %2690 = vst [vmem:[#allocation3 + $0x28] sm:$0xff] %v2658
        %2691 = vst [vmem:[#allocation3 + $0x30] sm:$0xff] %v2659
        %2692 = vst [vmem:[#allocation3 + $0x38] sm:$0xff] %v2660
        %2693 = vst [vmem:[#allocation3 + $0x40] sm:$0xff] %v2661
        %2694 = vst [vmem:[#allocation3 + $0x48] sm:$0xff] %v2662
        %2695 = vst [vmem:[#allocation3 + $0x50] sm:$0xff] %v2663
        %2696 = vst [vmem:[#allocation3 + $0x58] sm:$0xff] %v2664
        %2697 = vst [vmem:[#allocation3 + $0x60] sm:$0xff] %v2665
        %2698 = vst [vmem:[#allocation3 + $0x68] sm:$0xff] %v2666
        %2699 = vst [vmem:[#allocation3 + $0x70] sm:$0xff] %v2667
        %2700 = vst [vmem:[#allocation3 + $0x78] sm:$0xff] %v2668
        %2701 = vst [vmem:[#allocation3 + $0x80] sm:$0xff] %v2669
        %2702 = vst [vmem:[#allocation3 + $0x88] sm:$0xff] %v2670
        %2703 = vst [vmem:[#allocation3 + $0x90] sm:$0xff] %v2671
        %2704 = vst [vmem:[#allocation3 + $0x98] sm:$0xff] %v2672
        %2705 = vst [vmem:[#allocation3 + $0xa0] sm:$0xff] %v2673
        %2706 = vst [vmem:[#allocation3 + $0xa8] sm:$0xff] %v2674
        %2707 = vst [vmem:[#allocation3 + $0xb0] sm:$0xff] %v2675
        %2708 = vst [vmem:[#allocation3 + $0xb8] sm:$0xff] %v2676
        %2709 = vst [vmem:[#allocation3 + $0xc0] sm:$0xff] %v2677
        %2710 = vst [vmem:[#allocation3 + $0xc8] sm:$0xff] %v2678
        %2711 = vst [vmem:[#allocation3 + $0xd0] sm:$0xff] %v2679
        %2712 = vst [vmem:[#allocation3 + $0xd8] sm:$0xff] %v2680
        %2713 = vst [vmem:[#allocation3 + $0xe0] sm:$0xff] %v2681
        %2714 = vst [vmem:[#allocation3 + $0xe8] sm:$0xff] %v2682
        %2715 = vst [vmem:[#allocation3 + $0xf0] sm:$0xff] %v2683
        %2716 = vst [vmem:[#allocation3 + $0xf8] sm:$0xff] %v2684
        %v2718 = vrot.slane %v287, 5
        %v2719 = vrot.slane %v2718, 4
        %v2720 = vrot.slane %v288, 5
        %v2721 = vsel %vm1540, %v2719, %v2720
        %v2722 = vrot.slane %v2720, 4
        %v2723 = vrot.slane %v289, 5
        %v2724 = vsel %vm1540, %v2722, %v2723
        %v2725 = vld [vmem:[#allocation3] sm:$0xff]
        %v2726 = vld [vmem:[#allocation3 + $0x8] sm:$0xff]
        %v2727 = vld [vmem:[#allocation3 + $0x10] sm:$0xff]
        %v2728 = vld [vmem:[#allocation3 + $0x18] sm:$0xff]
        %v2729 = vld [vmem:[#allocation3 + $0x20] sm:$0xff]
        %v2730 = vld [vmem:[#allocation3 + $0x28] sm:$0xff]
        %v2731 = vld [vmem:[#allocation3 + $0x30] sm:$0xff]
        %v2732 = vld [vmem:[#allocation3 + $0x38] sm:$0xff]
        %v2733 = vld [vmem:[#allocation3 + $0x40] sm:$0xff]
        %v2734 = vld [vmem:[#allocation3 + $0x48] sm:$0xff]
        %v2735 = vld [vmem:[#allocation3 + $0x50] sm:$0xff]
        %v2736 = vld [vmem:[#allocation3 + $0x58] sm:$0xff]
        %v2737 = vld [vmem:[#allocation3 + $0x60] sm:$0xff]
        %v2738 = vld [vmem:[#allocation3 + $0x68] sm:$0xff]
        %v2739 = vld [vmem:[#allocation3 + $0x70] sm:$0xff]
        %v2740 = vld [vmem:[#allocation3 + $0x78] sm:$0xff]
        %v2741 = vld [vmem:[#allocation3 + $0x80] sm:$0xff]
        %v2742 = vld [vmem:[#allocation3 + $0x88] sm:$0xff]
        %v2743 = vld [vmem:[#allocation3 + $0x90] sm:$0xff]
        %v2744 = vld [vmem:[#allocation3 + $0x98] sm:$0xff]
        %v2745 = vld [vmem:[#allocation3 + $0xa0] sm:$0xff]
        %v2746 = vld [vmem:[#allocation3 + $0xa8] sm:$0xff]
        %v2747 = vld [vmem:[#allocation3 + $0xb0] sm:$0xff]
        %v2748 = vld [vmem:[#allocation3 + $0xb8] sm:$0xff]
        %v2749 = vld [vmem:[#allocation3 + $0xc0] sm:$0xff]
        %v2750 = vld [vmem:[#allocation3 + $0xc8] sm:$0xff]
        %v2751 = vld [vmem:[#allocation3 + $0xd0] sm:$0xff]
        %v2752 = vld [vmem:[#allocation3 + $0xd8] sm:$0xff]
        %v2753 = vld [vmem:[#allocation3 + $0xe0] sm:$0xff]
        %v2754 = vld [vmem:[#allocation3 + $0xe8] sm:$0xff]
        %v2755 = vld [vmem:[#allocation3 + $0xf0] sm:$0xff]
        %v2756 = vld [vmem:[#allocation3 + $0xf8] sm:$0xff]
        %s2757 = scalar_lea.vmem %s1, 320
        %v2758 = vld [vmem:[%s2757] sm:$0xf]
        %v2759 = vld [vmem:[%s2757 + $0x4] sm:$0xf]
        %v2760 = vld [vmem:[%s2757 + $0x8] sm:$0xf]
        %v2761 = vld [vmem:[%s2757 + $0xc] sm:$0xf]
        %v2762 = vld [vmem:[%s2757 + $0x10] sm:$0xf]
        %v2763 = vld [vmem:[%s2757 + $0x14] sm:$0xf]
        %v2764 = vld [vmem:[%s2757 + $0x18] sm:$0xf]
        %v2765 = vld [vmem:[%s2757 + $0x1c] sm:$0xf]
        %v2766 = vld [vmem:[%s2757 + $0x20] sm:$0xf]
        %v2767 = vld [vmem:[%s2757 + $0x24] sm:$0xf]
        %v2768 = vld [vmem:[%s2757 + $0x28] sm:$0xf]
        %v2769 = vld [vmem:[%s2757 + $0x2c] sm:$0xf]
        %v2770 = vld [vmem:[%s2757 + $0x30] sm:$0xf]
        %v2771 = vld [vmem:[%s2757 + $0x34] sm:$0xf]
        %v2772 = vld [vmem:[%s2757 + $0x38] sm:$0xf]
        %v2773 = vld [vmem:[%s2757 + $0x3c] sm:$0xf]
        %v2774 = vunpack.c.l.b16 %v2721
        %v2775 = vunpack.c.l.b16 %v2724
        %v2776 = vpack.c.b16 %v2775, %v2774
        %v2794 = vunpack.c.l.b16 %v2758
        %v2795 = vunpack.c.l.b16 %v2759
        %v2796 = vunpack.c.l.b16 %v2760
        %v2797 = vunpack.c.l.b16 %v2761
        %v2798 = vunpack.c.l.b16 %v2762
        %v2799 = vunpack.c.l.b16 %v2763
        %v2800 = vunpack.c.l.b16 %v2764
        %v2801 = vunpack.c.l.b16 %v2765
        %v2802 = vunpack.c.l.b16 %v2766
        %v2803 = vunpack.c.l.b16 %v2767
        %v2804 = vunpack.c.l.b16 %v2768
        %v2805 = vunpack.c.l.b16 %v2769
        %v2806 = vunpack.c.l.b16 %v2770
        %v2807 = vunpack.c.l.b16 %v2771
        %v2808 = vunpack.c.l.b16 %v2772
        %v2809 = vunpack.c.l.b16 %v2773
        %v2810 = vpack.c.b16 %v2795, %v2794
        %v2811 = vpack.c.b16 %v2797, %v2796
        %v2812 = vpack.c.b16 %v2799, %v2798
        %v2813 = vpack.c.b16 %v2801, %v2800
        %v2814 = vpack.c.b16 %v2803, %v2802
        %v2815 = vpack.c.b16 %v2805, %v2804
        %v2816 = vpack.c.b16 %v2807, %v2806
        %v2817 = vpack.c.b16 %v2809, %v2808
        %2826 = vmatprep.subr.bf16.mxu0 0
        %2827 = vmatpush1.bf16.msra.mxu0 %v2810
        %2828 = vmatprep.subr.bf16.mxu0 0
        %2829 = vmatpush1.bf16.msra.mxu0 %v2811
        %2830 = vmatprep.subr.bf16.mxu0 0
        %2831 = vmatpush1.bf16.msra.mxu0 %v2812
        %2832 = vmatprep.subr.bf16.mxu0 0
        %2833 = vmatpush1.bf16.msra.mxu0 %v2813
        %2834 = vmatprep.subr.bf16.mxu0 0
        %2835 = vmatpush1.bf16.msra.mxu0 %v2814
        %2836 = vmatprep.subr.bf16.mxu0 0
        %2837 = vmatpush1.bf16.msra.mxu0 %v2815
        %2838 = vmatprep.subr.bf16.mxu0 0
        %2839 = vmatpush1.bf16.msra.mxu0 %v2816
        %2840 = vmatprep.subr.bf16.mxu0 0
        %2841 = vmatpush1.bf16.msra.mxu0 %v2817
        %2842 = vmatprep.subr.bf16.mxu0 0
        %2843 = vmatpush1.bf16.msra.mxu0 0
        %2844 = vmatprep.subr.bf16.mxu0 0
        %2845 = vmatpush1.bf16.msra.mxu0 0
        %2846 = vmatprep.subr.bf16.mxu0 0
        %2847 = vmatpush1.bf16.msra.mxu0 0
        %2848 = vmatprep.subr.bf16.mxu0 0
        %2849 = vmatpush1.bf16.msra.mxu0 0
        %2850 = vmatprep.subr.bf16.mxu0 0
        %2851 = vmatpush1.bf16.msra.mxu0 0
        %2852 = vmatprep.subr.bf16.mxu0 0
        %2853 = vmatpush1.bf16.msra.mxu0 0
        %2854 = vmatprep.subr.bf16.mxu0 0
        %2855 = vmatpush1.bf16.msra.mxu0 0
        %2856 = vmatprep.subr.bf16.mxu0 0
        %2857 = vmatpush1.bf16.msra.mxu0 0
        %2858 = vmatprep.mubr.bf16.mxu0 0
        %2859 = vmatmul.mubr.bf16.gmra.mrb[0].mxu0 %v1735
        %v2860 = vpop.f32.mrb[0].mxu0
        %v2861 = vadd.f32 0.0, %v2860
        %v2862 = vpop.f32.mrb[0].mxu0
        %v2863 = vpop.f32.mrb[0].mxu0
        %v2864 = vadd.f32 0.0, %v2863
        %v2865 = vpop.f32.mrb[0].mxu0
        %2866 = vmatprep.mubr.bf16.mxu0 0
        %2867 = vmatmul.mubr.bf16.gmra.mrb[0].mxu0 %v1736
        %v2868 = vpop.f32.mrb[0].mxu0
        %v2869 = vadd.f32 0.0, %v2868
        %v2870 = vpop.f32.mrb[0].mxu0
        %v2871 = vpop.f32.mrb[0].mxu0
        %v2872 = vadd.f32 0.0, %v2871
        %v2873 = vpop.f32.mrb[0].mxu0
        %2874 = vmatprep.mubr.bf16.mxu0 0
        %2875 = vmatmul.mubr.bf16.gmra.mrb[0].mxu0 %v1737
        %v2876 = vpop.f32.mrb[0].mxu0
        %v2877 = vadd.f32 0.0, %v2876
        %v2878 = vpop.f32.mrb[0].mxu0
        %v2879 = vpop.f32.mrb[0].mxu0
        %v2880 = vadd.f32 0.0, %v2879
        %v2881 = vpop.f32.mrb[0].mxu0
        %2882 = vmatprep.mubr.bf16.mxu0 0
        %2883 = vmatmul.mubr.bf16.gmra.mrb[0].mxu0 %v1738
        %v2884 = vpop.f32.mrb[0].mxu0
        %v2885 = vadd.f32 0.0, %v2884
        %v2886 = vpop.f32.mrb[0].mxu0
        %v2887 = vpop.f32.mrb[0].mxu0
        %v2888 = vadd.f32 0.0, %v2887
        %v2889 = vpop.f32.mrb[0].mxu0
        %2890 = vmatprep.mubr.bf16.mxu0 0
        %2891 = vmatmul.mubr.bf16.gmra.mrb[0].mxu0 %v1739
        %v2892 = vpop.f32.mrb[0].mxu0
        %v2893 = vadd.f32 0.0, %v2892
        %v2894 = vpop.f32.mrb[0].mxu0
        %v2895 = vpop.f32.mrb[0].mxu0
        %v2896 = vadd.f32 0.0, %v2895
        %v2897 = vpop.f32.mrb[0].mxu0
        %2898 = vmatprep.mubr.bf16.mxu0 0
        %2899 = vmatmul.mubr.bf16.gmra.mrb[0].mxu0 %v1740
        %v2900 = vpop.f32.mrb[0].mxu0
        %v2901 = vadd.f32 0.0, %v2900
        %v2902 = vpop.f32.mrb[0].mxu0
        %v2903 = vpop.f32.mrb[0].mxu0
        %v2904 = vadd.f32 0.0, %v2903
        %v2905 = vpop.f32.mrb[0].mxu0
        %2906 = vmatprep.mubr.bf16.mxu0 0
        %2907 = vmatmul.mubr.bf16.gmra.mrb[0].mxu0 %v1741
        %v2908 = vpop.f32.mrb[0].mxu0
        %v2909 = vadd.f32 0.0, %v2908
        %v2910 = vpop.f32.mrb[0].mxu0
        %v2911 = vpop.f32.mrb[0].mxu0
        %v2912 = vadd.f32 0.0, %v2911
        %v2913 = vpop.f32.mrb[0].mxu0
        %2914 = vmatprep.mubr.bf16.mxu0 0
        %2915 = vmatmul.mubr.bf16.gmra.mrb[0].mxu0 %v1742
        %v2916 = vpop.f32.mrb[0].mxu0
        %v2917 = vadd.f32 0.0, %v2916
        %v2918 = vpop.f32.mrb[0].mxu0
        %v2919 = vpop.f32.mrb[0].mxu0
        %v2920 = vadd.f32 0.0, %v2919
        %v2921 = vpop.f32.mrb[0].mxu0
        %2922 = vmatprep.mubr.bf16.mxu0 0
        %2923 = vmatmul.mubr.bf16.gmra.mrb[0].mxu0 %v1743
        %v2924 = vpop.f32.mrb[0].mxu0
        %v2925 = vadd.f32 0.0, %v2924
        %v2926 = vpop.f32.mrb[0].mxu0
        %v2927 = vpop.f32.mrb[0].mxu0
        %v2928 = vadd.f32 0.0, %v2927
        %v2929 = vpop.f32.mrb[0].mxu0
        %2930 = vmatprep.mubr.bf16.mxu0 0
        %2931 = vmatmul.mubr.bf16.gmra.mrb[0].mxu0 %v1744
        %v2932 = vpop.f32.mrb[0].mxu0
        %v2933 = vadd.f32 0.0, %v2932
        %v2934 = vpop.f32.mrb[0].mxu0
        %v2935 = vpop.f32.mrb[0].mxu0
        %v2936 = vadd.f32 0.0, %v2935
        %v2937 = vpop.f32.mrb[0].mxu0
        %2938 = vmatprep.mubr.bf16.mxu0 0
        %2939 = vmatmul.mubr.bf16.gmra.mrb[0].mxu0 %v1745
        %v2940 = vpop.f32.mrb[0].mxu0
        %v2941 = vadd.f32 0.0, %v2940
        %v2942 = vpop.f32.mrb[0].mxu0
        %v2943 = vpop.f32.mrb[0].mxu0
        %v2944 = vadd.f32 0.0, %v2943
        %v2945 = vpop.f32.mrb[0].mxu0
        %2946 = vmatprep.mubr.bf16.mxu0 0
        %2947 = vmatmul.mubr.bf16.gmra.mrb[0].mxu0 %v1746
        %v2948 = vpop.f32.mrb[0].mxu0
        %v2949 = vadd.f32 0.0, %v2948
        %v2950 = vpop.f32.mrb[0].mxu0
        %v2951 = vpop.f32.mrb[0].mxu0
        %v2952 = vadd.f32 0.0, %v2951
        %v2953 = vpop.f32.mrb[0].mxu0
        %2954 = vmatprep.mubr.bf16.mxu0 0
        %2955 = vmatmul.mubr.bf16.gmra.mrb[0].mxu0 %v1747
        %v2956 = vpop.f32.mrb[0].mxu0
        %v2957 = vadd.f32 0.0, %v2956
        %v2958 = vpop.f32.mrb[0].mxu0
        %v2959 = vpop.f32.mrb[0].mxu0
        %v2960 = vadd.f32 0.0, %v2959
        %v2961 = vpop.f32.mrb[0].mxu0
        %2962 = vmatprep.mubr.bf16.mxu0 0
        %2963 = vmatmul.mubr.bf16.gmra.mrb[0].mxu0 %v1748
        %v2964 = vpop.f32.mrb[0].mxu0
        %v2965 = vadd.f32 0.0, %v2964
        %v2966 = vpop.f32.mrb[0].mxu0
        %v2967 = vpop.f32.mrb[0].mxu0
        %v2968 = vadd.f32 0.0, %v2967
        %v2969 = vpop.f32.mrb[0].mxu0
        %2970 = vmatprep.mubr.bf16.mxu0 0
        %2971 = vmatmul.mubr.bf16.gmra.mrb[0].mxu0 %v1749
        %v2972 = vpop.f32.mrb[0].mxu0
        %v2973 = vadd.f32 0.0, %v2972
        %v2974 = vpop.f32.mrb[0].mxu0
        %v2975 = vpop.f32.mrb[0].mxu0
        %v2976 = vadd.f32 0.0, %v2975
        %v2977 = vpop.f32.mrb[0].mxu0
        %2978 = vmatprep.mubr.bf16.mxu0 0
        %2979 = vmatmul.mubr.bf16.gmra.mrb[0].mxu0 %v2776
        %v2980 = vpop.f32.mrb[0].mxu0
        %v2981 = vadd.f32 0.0, %v2980
        %v2982 = vpop.f32.mrb[0].mxu0
        %v2983 = vpop.f32.mrb[0].mxu0
        %v2984 = vadd.f32 0.0, %v2983
        %v2985 = vpop.f32.mrb[0].mxu0
        %2986 = vdwg.mxu0
        %v2987 = vadd.f32 %v2725, %v2861
        %v2988 = vadd.f32 %v2726, %v2864
        %v2989 = vadd.f32 %v2727, %v2869
        %v2990 = vadd.f32 %v2728, %v2872
        %v2991 = vadd.f32 %v2729, %v2877
        %v2992 = vadd.f32 %v2730, %v2880
        %v2993 = vadd.f32 %v2731, %v2885
        %v2994 = vadd.f32 %v2732, %v2888
        %v2995 = vadd.f32 %v2733, %v2893
        %v2996 = vadd.f32 %v2734, %v2896
        %v2997 = vadd.f32 %v2735, %v2901
        %v2998 = vadd.f32 %v2736, %v2904
        %v2999 = vadd.f32 %v2737, %v2909
        %v3000 = vadd.f32 %v2738, %v2912
        %v3001 = vadd.f32 %v2739, %v2917
        %v3002 = vadd.f32 %v2740, %v2920
        %v3003 = vadd.f32 %v2741, %v2925
        %v3004 = vadd.f32 %v2742, %v2928
        %v3005 = vadd.f32 %v2743, %v2933
        %v3006 = vadd.f32 %v2744, %v2936
        %v3007 = vadd.f32 %v2745, %v2941
        %v3008 = vadd.f32 %v2746, %v2944
        %v3009 = vadd.f32 %v2747, %v2949
        %v3010 = vadd.f32 %v2748, %v2952
        %v3011 = vadd.f32 %v2749, %v2957
        %v3012 = vadd.f32 %v2750, %v2960
        %v3013 = vadd.f32 %v2751, %v2965
        %v3014 = vadd.f32 %v2752, %v2968
        %v3015 = vadd.f32 %v2753, %v2973
        %v3016 = vadd.f32 %v2754, %v2976
        %v3017 = vadd.f32 %v2755, %v2981
        %v3018 = vadd.f32 %v2756, %v2984
        %3019 = vst [vmem:[#allocation3] sm:$0xff] %v2987
        %3020 = vst [vmem:[#allocation3 + $0x8] sm:$0xff] %v2988
        %3021 = vst [vmem:[#allocation3 + $0x10] sm:$0xff] %v2989
        %3022 = vst [vmem:[#allocation3 + $0x18] sm:$0xff] %v2990
        %3023 = vst [vmem:[#allocation3 + $0x20] sm:$0xff] %v2991
        %3024 = vst [vmem:[#allocation3 + $0x28] sm:$0xff] %v2992
        %3025 = vst [vmem:[#allocation3 + $0x30] sm:$0xff] %v2993
        %3026 = vst [vmem:[#allocation3 + $0x38] sm:$0xff] %v2994
        %3027 = vst [vmem:[#allocation3 + $0x40] sm:$0xff] %v2995
        %3028 = vst [vmem:[#allocation3 + $0x48] sm:$0xff] %v2996
        %3029 = vst [vmem:[#allocation3 + $0x50] sm:$0xff] %v2997
        %3030 = vst [vmem:[#allocation3 + $0x58] sm:$0xff] %v2998
        %3031 = vst [vmem:[#allocation3 + $0x60] sm:$0xff] %v2999
        %3032 = vst [vmem:[#allocation3 + $0x68] sm:$0xff] %v3000
        %3033 = vst [vmem:[#allocation3 + $0x70] sm:$0xff] %v3001
        %3034 = vst [vmem:[#allocation3 + $0x78] sm:$0xff] %v3002
        %3035 = vst [vmem:[#allocation3 + $0x80] sm:$0xff] %v3003
        %3036 = vst [vmem:[#allocation3 + $0x88] sm:$0xff] %v3004
        %3037 = vst [vmem:[#allocation3 + $0x90] sm:$0xff] %v3005
        %3038 = vst [vmem:[#allocation3 + $0x98] sm:$0xff] %v3006
        %3039 = vst [vmem:[#allocation3 + $0xa0] sm:$0xff] %v3007
        %3040 = vst [vmem:[#allocation3 + $0xa8] sm:$0xff] %v3008
        %3041 = vst [vmem:[#allocation3 + $0xb0] sm:$0xff] %v3009
        %3042 = vst [vmem:[#allocation3 + $0xb8] sm:$0xff] %v3010
        %3043 = vst [vmem:[#allocation3 + $0xc0] sm:$0xff] %v3011
        %3044 = vst [vmem:[#allocation3 + $0xc8] sm:$0xff] %v3012
        %3045 = vst [vmem:[#allocation3 + $0xd0] sm:$0xff] %v3013
        %3046 = vst [vmem:[#allocation3 + $0xd8] sm:$0xff] %v3014
        %3047 = vst [vmem:[#allocation3 + $0xe0] sm:$0xff] %v3015
        %3048 = vst [vmem:[#allocation3 + $0xe8] sm:$0xff] %v3016
        %3049 = vst [vmem:[#allocation3 + $0xf0] sm:$0xff] %v3017
        %3050 = vst [vmem:[#allocation3 + $0xf8] sm:$0xff] %v3018
        %v3051 = vld [vmem:[#allocation3] sm:$0xff]
        %v3052 = vld [vmem:[#allocation3 + $0x8] sm:$0xff]
        %v3053 = vld [vmem:[#allocation3 + $0x10] sm:$0xff]
        %v3054 = vld [vmem:[#allocation3 + $0x18] sm:$0xff]
        %v3055 = vld [vmem:[#allocation3 + $0x20] sm:$0xff]
        %v3056 = vld [vmem:[#allocation3 + $0x28] sm:$0xff]
        %v3057 = vld [vmem:[#allocation3 + $0x30] sm:$0xff]
        %v3058 = vld [vmem:[#allocation3 + $0x38] sm:$0xff]
        %v3059 = vld [vmem:[#allocation3 + $0x40] sm:$0xff]
        %v3060 = vld [vmem:[#allocation3 + $0x48] sm:$0xff]
        %v3061 = vld [vmem:[#allocation3 + $0x50] sm:$0xff]
        %v3062 = vld [vmem:[#allocation3 + $0x58] sm:$0xff]
        %v3063 = vld [vmem:[#allocation3 + $0x60] sm:$0xff]
        %v3064 = vld [vmem:[#allocation3 + $0x68] sm:$0xff]
        %v3065 = vld [vmem:[#allocation3 + $0x70] sm:$0xff]
        %v3066 = vld [vmem:[#allocation3 + $0x78] sm:$0xff]
        %v3067 = vld [vmem:[#allocation3 + $0x80] sm:$0xff]
        %v3068 = vld [vmem:[#allocation3 + $0x88] sm:$0xff]
        %v3069 = vld [vmem:[#allocation3 + $0x90] sm:$0xff]
        %v3070 = vld [vmem:[#allocation3 + $0x98] sm:$0xff]
        %v3071 = vld [vmem:[#allocation3 + $0xa0] sm:$0xff]
        %v3072 = vld [vmem:[#allocation3 + $0xa8] sm:$0xff]
        %v3073 = vld [vmem:[#allocation3 + $0xb0] sm:$0xff]
        %v3074 = vld [vmem:[#allocation3 + $0xb8] sm:$0xff]
        %v3075 = vld [vmem:[#allocation3 + $0xc0] sm:$0xff]
        %v3076 = vld [vmem:[#allocation3 + $0xc8] sm:$0xff]
        %v3077 = vld [vmem:[#allocation3 + $0xd0] sm:$0xff]
        %v3078 = vld [vmem:[#allocation3 + $0xd8] sm:$0xff]
        %v3079 = vld [vmem:[#allocation3 + $0xe0] sm:$0xff]
        %v3080 = vld [vmem:[#allocation3 + $0xe8] sm:$0xff]
        %v3081 = vld [vmem:[#allocation3 + $0xf0] sm:$0xff]
        %v3082 = vld [vmem:[#allocation3 + $0xf8] sm:$0xff]
        %s3083 = scalar_lea.vmem %s1, 384
        %v3084 = vld [vmem:[%s3083] sm:$0xf]
        %v3085 = vld [vmem:[%s3083 + $0x4] sm:$0xf]
        %v3086 = vld [vmem:[%s3083 + $0x8] sm:$0xf]
        %v3087 = vld [vmem:[%s3083 + $0xc] sm:$0xf]
        %v3088 = vld [vmem:[%s3083 + $0x10] sm:$0xf]
        %v3089 = vld [vmem:[%s3083 + $0x14] sm:$0xf]
        %v3090 = vld [vmem:[%s3083 + $0x18] sm:$0xf]
        %v3091 = vld [vmem:[%s3083 + $0x1c] sm:$0xf]
        %v3092 = vld [vmem:[%s3083 + $0x20] sm:$0xf]
        %v3093 = vld [vmem:[%s3083 + $0x24] sm:$0xf]
        %v3094 = vld [vmem:[%s3083 + $0x28] sm:$0xf]
        %v3095 = vld [vmem:[%s3083 + $0x2c] sm:$0xf]
        %v3096 = vld [vmem:[%s3083 + $0x30] sm:$0xf]
        %v3097 = vld [vmem:[%s3083 + $0x34] sm:$0xf]
        %v3098 = vld [vmem:[%s3083 + $0x38] sm:$0xf]
        %v3099 = vld [vmem:[%s3083 + $0x3c] sm:$0xf]
        %v3102 = vunpack.c.l.b16 %v290
        %v3103 = vunpack.c.l.b16 %v291
        %v3104 = vpack.c.b16 %v3103, %v3102
        %v3122 = vunpack.c.l.b16 %v3084
        %v3123 = vunpack.c.l.b16 %v3085
        %v3124 = vunpack.c.l.b16 %v3086
        %v3125 = vunpack.c.l.b16 %v3087
        %v3126 = vunpack.c.l.b16 %v3088
        %v3127 = vunpack.c.l.b16 %v3089
        %v3128 = vunpack.c.l.b16 %v3090
        %v3129 = vunpack.c.l.b16 %v3091
        %v3130 = vunpack.c.l.b16 %v3092
        %v3131 = vunpack.c.l.b16 %v3093
        %v3132 = vunpack.c.l.b16 %v3094
        %v3133 = vunpack.c.l.b16 %v3095
        %v3134 = vunpack.c.l.b16 %v3096
        %v3135 = vunpack.c.l.b16 %v3097
        %v3136 = vunpack.c.l.b16 %v3098
        %v3137 = vunpack.c.l.b16 %v3099
        %v3138 = vpack.c.b16 %v3123, %v3122
        %v3139 = vpack.c.b16 %v3125, %v3124
        %v3140 = vpack.c.b16 %v3127, %v3126
        %v3141 = vpack.c.b16 %v3129, %v3128
        %v3142 = vpack.c.b16 %v3131, %v3130
        %v3143 = vpack.c.b16 %v3133, %v3132
        %v3144 = vpack.c.b16 %v3135, %v3134
        %v3145 = vpack.c.b16 %v3137, %v3136
        %3154 = vmatprep.subr.bf16.mxu0 0
        %3155 = vmatpush1.bf16.msra.mxu0 %v3138
        %3156 = vmatprep.subr.bf16.mxu0 0
        %3157 = vmatpush1.bf16.msra.mxu0 %v3139
        %3158 = vmatprep.subr.bf16.mxu0 0
        %3159 = vmatpush1.bf16.msra.mxu0 %v3140
        %3160 = vmatprep.subr.bf16.mxu0 0
        %3161 = vmatpush1.bf16.msra.mxu0 %v3141
        %3162 = vmatprep.subr.bf16.mxu0 0
        %3163 = vmatpush1.bf16.msra.mxu0 %v3142
        %3164 = vmatprep.subr.bf16.mxu0 0
        %3165 = vmatpush1.bf16.msra.mxu0 %v3143
        %3166 = vmatprep.subr.bf16.mxu0 0
        %3167 = vmatpush1.bf16.msra.mxu0 %v3144
        %3168 = vmatprep.subr.bf16.mxu0 0
        %3169 = vmatpush1.bf16.msra.mxu0 %v3145
        %3170 = vmatprep.subr.bf16.mxu0 0
        %3171 = vmatpush1.bf16.msra.mxu0 0
        %3172 = vmatprep.subr.bf16.mxu0 0
        %3173 = vmatpush1.bf16.msra.mxu0 0
        %3174 = vmatprep.subr.bf16.mxu0 0
        %3175 = vmatpush1.bf16.msra.mxu0 0
        %3176 = vmatprep.subr.bf16.mxu0 0
        %3177 = vmatpush1.bf16.msra.mxu0 0
        %3178 = vmatprep.subr.bf16.mxu0 0
        %3179 = vmatpush1.bf16.msra.mxu0 0
        %3180 = vmatprep.subr.bf16.mxu0 0
        %3181 = vmatpush1.bf16.msra.mxu0 0
        %3182 = vmatprep.subr.bf16.mxu0 0
        %3183 = vmatpush1.bf16.msra.mxu0 0
        %3184 = vmatprep.subr.bf16.mxu0 0
        %3185 = vmatpush1.bf16.msra.mxu0 0
        %3186 = vmatprep.mubr.bf16.mxu0 0
        %3187 = vmatmul.mubr.bf16.gmra.mrb[0].mxu0 %v446
        %v3188 = vpop.f32.mrb[0].mxu0
        %v3189 = vadd.f32 0.0, %v3188
        %v3190 = vpop.f32.mrb[0].mxu0
        %v3191 = vpop.f32.mrb[0].mxu0
        %v3192 = vadd.f32 0.0, %v3191
        %v3193 = vpop.f32.mrb[0].mxu0
        %3194 = vmatprep.mubr.bf16.mxu0 0
        %3195 = vmatmul.mubr.bf16.gmra.mrb[0].mxu0 %v447
        %v3196 = vpop.f32.mrb[0].mxu0
        %v3197 = vadd.f32 0.0, %v3196
        %v3198 = vpop.f32.mrb[0].mxu0
        %v3199 = vpop.f32.mrb[0].mxu0
        %v3200 = vadd.f32 0.0, %v3199
        %v3201 = vpop.f32.mrb[0].mxu0
        %3202 = vmatprep.mubr.bf16.mxu0 0
        %3203 = vmatmul.mubr.bf16.gmra.mrb[0].mxu0 %v448
        %v3204 = vpop.f32.mrb[0].mxu0
        %v3205 = vadd.f32 0.0, %v3204
        %v3206 = vpop.f32.mrb[0].mxu0
        %v3207 = vpop.f32.mrb[0].mxu0
        %v3208 = vadd.f32 0.0, %v3207
        %v3209 = vpop.f32.mrb[0].mxu0
        %3210 = vmatprep.mubr.bf16.mxu0 0
        %3211 = vmatmul.mubr.bf16.gmra.mrb[0].mxu0 %v449
        %v3212 = vpop.f32.mrb[0].mxu0
        %v3213 = vadd.f32 0.0, %v3212
        %v3214 = vpop.f32.mrb[0].mxu0
        %v3215 = vpop.f32.mrb[0].mxu0
        %v3216 = vadd.f32 0.0, %v3215
        %v3217 = vpop.f32.mrb[0].mxu0
        %3218 = vmatprep.mubr.bf16.mxu0 0
        %3219 = vmatmul.mubr.bf16.gmra.mrb[0].mxu0 %v450
        %v3220 = vpop.f32.mrb[0].mxu0
        %v3221 = vadd.f32 0.0, %v3220
        %v3222 = vpop.f32.mrb[0].mxu0
        %v3223 = vpop.f32.mrb[0].mxu0
        %v3224 = vadd.f32 0.0, %v3223
        %v3225 = vpop.f32.mrb[0].mxu0
        %3226 = vmatprep.mubr.bf16.mxu0 0
        %3227 = vmatmul.mubr.bf16.gmra.mrb[0].mxu0 %v451
        %v3228 = vpop.f32.mrb[0].mxu0
        %v3229 = vadd.f32 0.0, %v3228
        %v3230 = vpop.f32.mrb[0].mxu0
        %v3231 = vpop.f32.mrb[0].mxu0
        %v3232 = vadd.f32 0.0, %v3231
        %v3233 = vpop.f32.mrb[0].mxu0
        %3234 = vmatprep.mubr.bf16.mxu0 0
        %3235 = vmatmul.mubr.bf16.gmra.mrb[0].mxu0 %v452
        %v3236 = vpop.f32.mrb[0].mxu0
        %v3237 = vadd.f32 0.0, %v3236
        %v3238 = vpop.f32.mrb[0].mxu0
        %v3239 = vpop.f32.mrb[0].mxu0
        %v3240 = vadd.f32 0.0, %v3239
        %v3241 = vpop.f32.mrb[0].mxu0
        %3242 = vmatprep.mubr.bf16.mxu0 0
        %3243 = vmatmul.mubr.bf16.gmra.mrb[0].mxu0 %v453
        %v3244 = vpop.f32.mrb[0].mxu0
        %v3245 = vadd.f32 0.0, %v3244
        %v3246 = vpop.f32.mrb[0].mxu0
        %v3247 = vpop.f32.mrb[0].mxu0
        %v3248 = vadd.f32 0.0, %v3247
        %v3249 = vpop.f32.mrb[0].mxu0
        %3250 = vmatprep.mubr.bf16.mxu0 0
        %3251 = vmatmul.mubr.bf16.gmra.mrb[0].mxu0 %v454
        %v3252 = vpop.f32.mrb[0].mxu0
        %v3253 = vadd.f32 0.0, %v3252
        %v3254 = vpop.f32.mrb[0].mxu0
        %v3255 = vpop.f32.mrb[0].mxu0
        %v3256 = vadd.f32 0.0, %v3255
        %v3257 = vpop.f32.mrb[0].mxu0
        %3258 = vmatprep.mubr.bf16.mxu0 0
        %3259 = vmatmul.mubr.bf16.gmra.mrb[0].mxu0 %v455
        %v3260 = vpop.f32.mrb[0].mxu0
        %v3261 = vadd.f32 0.0, %v3260
        %v3262 = vpop.f32.mrb[0].mxu0
        %v3263 = vpop.f32.mrb[0].mxu0
        %v3264 = vadd.f32 0.0, %v3263
        %v3265 = vpop.f32.mrb[0].mxu0
        %3266 = vmatprep.mubr.bf16.mxu0 0
        %3267 = vmatmul.mubr.bf16.gmra.mrb[0].mxu0 %v456
        %v3268 = vpop.f32.mrb[0].mxu0
        %v3269 = vadd.f32 0.0, %v3268
        %v3270 = vpop.f32.mrb[0].mxu0
        %v3271 = vpop.f32.mrb[0].mxu0
        %v3272 = vadd.f32 0.0, %v3271
        %v3273 = vpop.f32.mrb[0].mxu0
        %3274 = vmatprep.mubr.bf16.mxu0 0
        %3275 = vmatmul.mubr.bf16.gmra.mrb[0].mxu0 %v457
        %v3276 = vpop.f32.mrb[0].mxu0
        %v3277 = vadd.f32 0.0, %v3276
        %v3278 = vpop.f32.mrb[0].mxu0
        %v3279 = vpop.f32.mrb[0].mxu0
        %v3280 = vadd.f32 0.0, %v3279
        %v3281 = vpop.f32.mrb[0].mxu0
        %3282 = vmatprep.mubr.bf16.mxu0 0
        %3283 = vmatmul.mubr.bf16.gmra.mrb[0].mxu0 %v458
        %v3284 = vpop.f32.mrb[0].mxu0
        %v3285 = vadd.f32 0.0, %v3284
        %v3286 = vpop.f32.mrb[0].mxu0
        %v3287 = vpop.f32.mrb[0].mxu0
        %v3288 = vadd.f32 0.0, %v3287
        %v3289 = vpop.f32.mrb[0].mxu0
        %3290 = vmatprep.mubr.bf16.mxu0 0
        %3291 = vmatmul.mubr.bf16.gmra.mrb[0].mxu0 %v459
        %v3292 = vpop.f32.mrb[0].mxu0
        %v3293 = vadd.f32 0.0, %v3292
        %v3294 = vpop.f32.mrb[0].mxu0
        %v3295 = vpop.f32.mrb[0].mxu0
        %v3296 = vadd.f32 0.0, %v3295
        %v3297 = vpop.f32.mrb[0].mxu0
        %3298 = vmatprep.mubr.bf16.mxu0 0
        %3299 = vmatmul.mubr.bf16.gmra.mrb[0].mxu0 %v2092
        %v3300 = vpop.f32.mrb[0].mxu0
        %v3301 = vadd.f32 0.0, %v3300
        %v3302 = vpop.f32.mrb[0].mxu0
        %v3303 = vpop.f32.mrb[0].mxu0
        %v3304 = vadd.f32 0.0, %v3303
        %v3305 = vpop.f32.mrb[0].mxu0
        %3306 = vmatprep.mubr.bf16.mxu0 0
        %3307 = vmatmul.mubr.bf16.gmra.mrb[0].mxu0 %v3104
        %v3308 = vpop.f32.mrb[0].mxu0
        %v3309 = vadd.f32 0.0, %v3308
        %v3310 = vpop.f32.mrb[0].mxu0
        %v3311 = vpop.f32.mrb[0].mxu0
        %v3312 = vadd.f32 0.0, %v3311
        %v3313 = vpop.f32.mrb[0].mxu0
        %3314 = vdwg.mxu0
        %v3315 = vadd.f32 %v3051, %v3189
        %v3316 = vadd.f32 %v3052, %v3192
        %v3317 = vadd.f32 %v3053, %v3197
        %v3318 = vadd.f32 %v3054, %v3200
        %v3319 = vadd.f32 %v3055, %v3205
        %v3320 = vadd.f32 %v3056, %v3208
        %v3321 = vadd.f32 %v3057, %v3213
        %v3322 = vadd.f32 %v3058, %v3216
        %v3323 = vadd.f32 %v3059, %v3221
        %v3324 = vadd.f32 %v3060, %v3224
        %v3325 = vadd.f32 %v3061, %v3229
        %v3326 = vadd.f32 %v3062, %v3232
        %v3327 = vadd.f32 %v3063, %v3237
        %v3328 = vadd.f32 %v3064, %v3240
        %v3329 = vadd.f32 %v3065, %v3245
        %v3330 = vadd.f32 %v3066, %v3248
        %v3331 = vadd.f32 %v3067, %v3253
        %v3332 = vadd.f32 %v3068, %v3256
        %v3333 = vadd.f32 %v3069, %v3261
        %v3334 = vadd.f32 %v3070, %v3264
        %v3335 = vadd.f32 %v3071, %v3269
        %v3336 = vadd.f32 %v3072, %v3272
        %v3337 = vadd.f32 %v3073, %v3277
        %v3338 = vadd.f32 %v3074, %v3280
        %v3339 = vadd.f32 %v3075, %v3285
        %v3340 = vadd.f32 %v3076, %v3288
        %v3341 = vadd.f32 %v3077, %v3293
        %v3342 = vadd.f32 %v3078, %v3296
        %v3343 = vadd.f32 %v3079, %v3301
        %v3344 = vadd.f32 %v3080, %v3304
        %v3345 = vadd.f32 %v3081, %v3309
        %v3346 = vadd.f32 %v3082, %v3312
        %3347 = vst [vmem:[#allocation3] sm:$0xff] %v3315
        %3348 = vst [vmem:[#allocation3 + $0x8] sm:$0xff] %v3316
        %3349 = vst [vmem:[#allocation3 + $0x10] sm:$0xff] %v3317
        %3350 = vst [vmem:[#allocation3 + $0x18] sm:$0xff] %v3318
        %3351 = vst [vmem:[#allocation3 + $0x20] sm:$0xff] %v3319
        %3352 = vst [vmem:[#allocation3 + $0x28] sm:$0xff] %v3320
        %3353 = vst [vmem:[#allocation3 + $0x30] sm:$0xff] %v3321
        %3354 = vst [vmem:[#allocation3 + $0x38] sm:$0xff] %v3322
        %3355 = vst [vmem:[#allocation3 + $0x40] sm:$0xff] %v3323
        %3356 = vst [vmem:[#allocation3 + $0x48] sm:$0xff] %v3324
        %3357 = vst [vmem:[#allocation3 + $0x50] sm:$0xff] %v3325
        %3358 = vst [vmem:[#allocation3 + $0x58] sm:$0xff] %v3326
        %3359 = vst [vmem:[#allocation3 + $0x60] sm:$0xff] %v3327
        %3360 = vst [vmem:[#allocation3 + $0x68] sm:$0xff] %v3328
        %3361 = vst [vmem:[#allocation3 + $0x70] sm:$0xff] %v3329
        %3362 = vst [vmem:[#allocation3 + $0x78] sm:$0xff] %v3330
        %3363 = vst [vmem:[#allocation3 + $0x80] sm:$0xff] %v3331
        %3364 = vst [vmem:[#allocation3 + $0x88] sm:$0xff] %v3332
        %3365 = vst [vmem:[#allocation3 + $0x90] sm:$0xff] %v3333
        %3366 = vst [vmem:[#allocation3 + $0x98] sm:$0xff] %v3334
        %3367 = vst [vmem:[#allocation3 + $0xa0] sm:$0xff] %v3335
        %3368 = vst [vmem:[#allocation3 + $0xa8] sm:$0xff] %v3336
        %3369 = vst [vmem:[#allocation3 + $0xb0] sm:$0xff] %v3337
        %3370 = vst [vmem:[#allocation3 + $0xb8] sm:$0xff] %v3338
        %3371 = vst [vmem:[#allocation3 + $0xc0] sm:$0xff] %v3339
        %3372 = vst [vmem:[#allocation3 + $0xc8] sm:$0xff] %v3340
        %3373 = vst [vmem:[#allocation3 + $0xd0] sm:$0xff] %v3341
        %3374 = vst [vmem:[#allocation3 + $0xd8] sm:$0xff] %v3342
        %3375 = vst [vmem:[#allocation3 + $0xe0] sm:$0xff] %v3343
        %3376 = vst [vmem:[#allocation3 + $0xe8] sm:$0xff] %v3344
        %3377 = vst [vmem:[#allocation3 + $0xf0] sm:$0xff] %v3345
        %3378 = vst [vmem:[#allocation3 + $0xf8] sm:$0xff] %v3346
        %v3380 = vshrl.u32 %v290, 16
        %v3382 = vrot.slane %v3380, 4
        %v3383 = vshll.u32 %v290, 16
        %v3385 = vrot.slane %v3383, 5
        %v3386 = vor.u32 %v3382, %v3385
        %v3387 = vrot.slane %v3386, 4
        %v3389 = vshll.u32 %v291, 16
        %v3391 = vrot.slane %v3389, 5
        %v3392 = vsel %vm751, %v3387, %v3391
        %v3393 = vshrl.u32 %v291, 16
        %v3395 = vrot.slane %v3393, 4
        %v3396 = vor.u32 %v3395, %v3391
        %v3397 = vrot.slane %v3396, 4
        %v3399 = vshll.u32 %v292, 16
        %v3401 = vrot.slane %v3399, 5
        %v3402 = vsel %vm751, %v3397, %v3401
        %v3403 = vld [vmem:[#allocation3] sm:$0xff]
        %v3404 = vld [vmem:[#allocation3 + $0x8] sm:$0xff]
        %v3405 = vld [vmem:[#allocation3 + $0x10] sm:$0xff]
        %v3406 = vld [vmem:[#allocation3 + $0x18] sm:$0xff]
        %v3407 = vld [vmem:[#allocation3 + $0x20] sm:$0xff]
        %v3408 = vld [vmem:[#allocation3 + $0x28] sm:$0xff]
        %v3409 = vld [vmem:[#allocation3 + $0x30] sm:$0xff]
        %v3410 = vld [vmem:[#allocation3 + $0x38] sm:$0xff]
        %v3411 = vld [vmem:[#allocation3 + $0x40] sm:$0xff]
        %v3412 = vld [vmem:[#allocation3 + $0x48] sm:$0xff]
        %v3413 = vld [vmem:[#allocation3 + $0x50] sm:$0xff]
        %v3414 = vld [vmem:[#allocation3 + $0x58] sm:$0xff]
        %v3415 = vld [vmem:[#allocation3 + $0x60] sm:$0xff]
        %v3416 = vld [vmem:[#allocation3 + $0x68] sm:$0xff]
        %v3417 = vld [vmem:[#allocation3 + $0x70] sm:$0xff]
        %v3418 = vld [vmem:[#allocation3 + $0x78] sm:$0xff]
        %v3419 = vld [vmem:[#allocation3 + $0x80] sm:$0xff]
        %v3420 = vld [vmem:[#allocation3 + $0x88] sm:$0xff]
        %v3421 = vld [vmem:[#allocation3 + $0x90] sm:$0xff]
        %v3422 = vld [vmem:[#allocation3 + $0x98] sm:$0xff]
        %v3423 = vld [vmem:[#allocation3 + $0xa0] sm:$0xff]
        %v3424 = vld [vmem:[#allocation3 + $0xa8] sm:$0xff]
        %v3425 = vld [vmem:[#allocation3 + $0xb0] sm:$0xff]
        %v3426 = vld [vmem:[#allocation3 + $0xb8] sm:$0xff]
        %v3427 = vld [vmem:[#allocation3 + $0xc0] sm:$0xff]
        %v3428 = vld [vmem:[#allocation3 + $0xc8] sm:$0xff]
        %v3429 = vld [vmem:[#allocation3 + $0xd0] sm:$0xff]
        %v3430 = vld [vmem:[#allocation3 + $0xd8] sm:$0xff]
        %v3431 = vld [vmem:[#allocation3 + $0xe0] sm:$0xff]
        %v3432 = vld [vmem:[#allocation3 + $0xe8] sm:$0xff]
        %v3433 = vld [vmem:[#allocation3 + $0xf0] sm:$0xff]
        %v3434 = vld [vmem:[#allocation3 + $0xf8] sm:$0xff]
        %s3435 = scalar_lea.vmem %s1, 448
        %v3436 = vld [vmem:[%s3435] sm:$0xf]
        %v3437 = vld [vmem:[%s3435 + $0x4] sm:$0xf]
        %v3438 = vld [vmem:[%s3435 + $0x8] sm:$0xf]
        %v3439 = vld [vmem:[%s3435 + $0xc] sm:$0xf]
        %v3440 = vld [vmem:[%s3435 + $0x10] sm:$0xf]
        %v3441 = vld [vmem:[%s3435 + $0x14] sm:$0xf]
        %v3442 = vld [vmem:[%s3435 + $0x18] sm:$0xf]
        %v3443 = vld [vmem:[%s3435 + $0x1c] sm:$0xf]
        %v3444 = vld [vmem:[%s3435 + $0x20] sm:$0xf]
        %v3445 = vld [vmem:[%s3435 + $0x24] sm:$0xf]
        %v3446 = vld [vmem:[%s3435 + $0x28] sm:$0xf]
        %v3447 = vld [vmem:[%s3435 + $0x2c] sm:$0xf]
        %v3448 = vld [vmem:[%s3435 + $0x30] sm:$0xf]
        %v3449 = vld [vmem:[%s3435 + $0x34] sm:$0xf]
        %v3450 = vld [vmem:[%s3435 + $0x38] sm:$0xf]
        %v3451 = vld [vmem:[%s3435 + $0x3c] sm:$0xf]
        %v3452 = vunpack.c.l.b16 %v3392
        %v3453 = vunpack.c.l.b16 %v3402
        %v3454 = vpack.c.b16 %v3453, %v3452
        %v3472 = vunpack.c.l.b16 %v3436
        %v3473 = vunpack.c.l.b16 %v3437
        %v3474 = vunpack.c.l.b16 %v3438
        %v3475 = vunpack.c.l.b16 %v3439
        %v3476 = vunpack.c.l.b16 %v3440
        %v3477 = vunpack.c.l.b16 %v3441
        %v3478 = vunpack.c.l.b16 %v3442
        %v3479 = vunpack.c.l.b16 %v3443
        %v3480 = vunpack.c.l.b16 %v3444
        %v3481 = vunpack.c.l.b16 %v3445
        %v3482 = vunpack.c.l.b16 %v3446
        %v3483 = vunpack.c.l.b16 %v3447
        %v3484 = vunpack.c.l.b16 %v3448
        %v3485 = vunpack.c.l.b16 %v3449
        %v3486 = vunpack.c.l.b16 %v3450
        %v3487 = vunpack.c.l.b16 %v3451
        %v3488 = vpack.c.b16 %v3473, %v3472
        %v3489 = vpack.c.b16 %v3475, %v3474
        %v3490 = vpack.c.b16 %v3477, %v3476
        %v3491 = vpack.c.b16 %v3479, %v3478
        %v3492 = vpack.c.b16 %v3481, %v3480
        %v3493 = vpack.c.b16 %v3483, %v3482
        %v3494 = vpack.c.b16 %v3485, %v3484
        %v3495 = vpack.c.b16 %v3487, %v3486
        %3504 = vmatprep.subr.bf16.mxu0 0
        %3505 = vmatpush1.bf16.msra.mxu0 %v3488
        %3506 = vmatprep.subr.bf16.mxu0 0
        %3507 = vmatpush1.bf16.msra.mxu0 %v3489
        %3508 = vmatprep.subr.bf16.mxu0 0
        %3509 = vmatpush1.bf16.msra.mxu0 %v3490
        %3510 = vmatprep.subr.bf16.mxu0 0
        %3511 = vmatpush1.bf16.msra.mxu0 %v3491
        %3512 = vmatprep.subr.bf16.mxu0 0
        %3513 = vmatpush1.bf16.msra.mxu0 %v3492
        %3514 = vmatprep.subr.bf16.mxu0 0
        %3515 = vmatpush1.bf16.msra.mxu0 %v3493
        %3516 = vmatprep.subr.bf16.mxu0 0
        %3517 = vmatpush1.bf16.msra.mxu0 %v3494
        %3518 = vmatprep.subr.bf16.mxu0 0
        %3519 = vmatpush1.bf16.msra.mxu0 %v3495
        %3520 = vmatprep.subr.bf16.mxu0 0
        %3521 = vmatpush1.bf16.msra.mxu0 0
        %3522 = vmatprep.subr.bf16.mxu0 0
        %3523 = vmatpush1.bf16.msra.mxu0 0
        %3524 = vmatprep.subr.bf16.mxu0 0
        %3525 = vmatpush1.bf16.msra.mxu0 0
        %3526 = vmatprep.subr.bf16.mxu0 0
        %3527 = vmatpush1.bf16.msra.mxu0 0
        %3528 = vmatprep.subr.bf16.mxu0 0
        %3529 = vmatpush1.bf16.msra.mxu0 0
        %3530 = vmatprep.subr.bf16.mxu0 0
        %3531 = vmatpush1.bf16.msra.mxu0 0
        %3532 = vmatprep.subr.bf16.mxu0 0
        %3533 = vmatpush1.bf16.msra.mxu0 0
        %3534 = vmatprep.subr.bf16.mxu0 0
        %3535 = vmatpush1.bf16.msra.mxu0 0
        %3536 = vmatprep.mubr.bf16.mxu0 0
        %3537 = vmatmul.mubr.bf16.gmra.mrb[0].mxu0 %v1219
        %v3538 = vpop.f32.mrb[0].mxu0
        %v3539 = vadd.f32 0.0, %v3538
        %v3540 = vpop.f32.mrb[0].mxu0
        %v3541 = vpop.f32.mrb[0].mxu0
        %v3542 = vadd.f32 0.0, %v3541
        %v3543 = vpop.f32.mrb[0].mxu0
        %3544 = vmatprep.mubr.bf16.mxu0 0
        %3545 = vmatmul.mubr.bf16.gmra.mrb[0].mxu0 %v1220
        %v3546 = vpop.f32.mrb[0].mxu0
        %v3547 = vadd.f32 0.0, %v3546
        %v3548 = vpop.f32.mrb[0].mxu0
        %v3549 = vpop.f32.mrb[0].mxu0
        %v3550 = vadd.f32 0.0, %v3549
        %v3551 = vpop.f32.mrb[0].mxu0
        %3552 = vmatprep.mubr.bf16.mxu0 0
        %3553 = vmatmul.mubr.bf16.gmra.mrb[0].mxu0 %v1221
        %v3554 = vpop.f32.mrb[0].mxu0
        %v3555 = vadd.f32 0.0, %v3554
        %v3556 = vpop.f32.mrb[0].mxu0
        %v3557 = vpop.f32.mrb[0].mxu0
        %v3558 = vadd.f32 0.0, %v3557
        %v3559 = vpop.f32.mrb[0].mxu0
        %3560 = vmatprep.mubr.bf16.mxu0 0
        %3561 = vmatmul.mubr.bf16.gmra.mrb[0].mxu0 %v1222
        %v3562 = vpop.f32.mrb[0].mxu0
        %v3563 = vadd.f32 0.0, %v3562
        %v3564 = vpop.f32.mrb[0].mxu0
        %v3565 = vpop.f32.mrb[0].mxu0
        %v3566 = vadd.f32 0.0, %v3565
        %v3567 = vpop.f32.mrb[0].mxu0
        %3568 = vmatprep.mubr.bf16.mxu0 0
        %3569 = vmatmul.mubr.bf16.gmra.mrb[0].mxu0 %v1223
        %v3570 = vpop.f32.mrb[0].mxu0
        %v3571 = vadd.f32 0.0, %v3570
        %v3572 = vpop.f32.mrb[0].mxu0
        %v3573 = vpop.f32.mrb[0].mxu0
        %v3574 = vadd.f32 0.0, %v3573
        %v3575 = vpop.f32.mrb[0].mxu0
        %3576 = vmatprep.mubr.bf16.mxu0 0
        %3577 = vmatmul.mubr.bf16.gmra.mrb[0].mxu0 %v1224
        %v3578 = vpop.f32.mrb[0].mxu0
        %v3579 = vadd.f32 0.0, %v3578
        %v3580 = vpop.f32.mrb[0].mxu0
        %v3581 = vpop.f32.mrb[0].mxu0
        %v3582 = vadd.f32 0.0, %v3581
        %v3583 = vpop.f32.mrb[0].mxu0
        %3584 = vmatprep.mubr.bf16.mxu0 0
        %3585 = vmatmul.mubr.bf16.gmra.mrb[0].mxu0 %v1225
        %v3586 = vpop.f32.mrb[0].mxu0
        %v3587 = vadd.f32 0.0, %v3586
        %v3588 = vpop.f32.mrb[0].mxu0
        %v3589 = vpop.f32.mrb[0].mxu0
        %v3590 = vadd.f32 0.0, %v3589
        %v3591 = vpop.f32.mrb[0].mxu0
        %3592 = vmatprep.mubr.bf16.mxu0 0
        %3593 = vmatmul.mubr.bf16.gmra.mrb[0].mxu0 %v1226
        %v3594 = vpop.f32.mrb[0].mxu0
        %v3595 = vadd.f32 0.0, %v3594
        %v3596 = vpop.f32.mrb[0].mxu0
        %v3597 = vpop.f32.mrb[0].mxu0
        %v3598 = vadd.f32 0.0, %v3597
        %v3599 = vpop.f32.mrb[0].mxu0
        %3600 = vmatprep.mubr.bf16.mxu0 0
        %3601 = vmatmul.mubr.bf16.gmra.mrb[0].mxu0 %v1227
        %v3602 = vpop.f32.mrb[0].mxu0
        %v3603 = vadd.f32 0.0, %v3602
        %v3604 = vpop.f32.mrb[0].mxu0
        %v3605 = vpop.f32.mrb[0].mxu0
        %v3606 = vadd.f32 0.0, %v3605
        %v3607 = vpop.f32.mrb[0].mxu0
        %3608 = vmatprep.mubr.bf16.mxu0 0
        %3609 = vmatmul.mubr.bf16.gmra.mrb[0].mxu0 %v1228
        %v3610 = vpop.f32.mrb[0].mxu0
        %v3611 = vadd.f32 0.0, %v3610
        %v3612 = vpop.f32.mrb[0].mxu0
        %v3613 = vpop.f32.mrb[0].mxu0
        %v3614 = vadd.f32 0.0, %v3613
        %v3615 = vpop.f32.mrb[0].mxu0
        %3616 = vmatprep.mubr.bf16.mxu0 0
        %3617 = vmatmul.mubr.bf16.gmra.mrb[0].mxu0 %v1229
        %v3618 = vpop.f32.mrb[0].mxu0
        %v3619 = vadd.f32 0.0, %v3618
        %v3620 = vpop.f32.mrb[0].mxu0
        %v3621 = vpop.f32.mrb[0].mxu0
        %v3622 = vadd.f32 0.0, %v3621
        %v3623 = vpop.f32.mrb[0].mxu0
        %3624 = vmatprep.mubr.bf16.mxu0 0
        %3625 = vmatmul.mubr.bf16.gmra.mrb[0].mxu0 %v1230
        %v3626 = vpop.f32.mrb[0].mxu0
        %v3627 = vadd.f32 0.0, %v3626
        %v3628 = vpop.f32.mrb[0].mxu0
        %v3629 = vpop.f32.mrb[0].mxu0
        %v3630 = vadd.f32 0.0, %v3629
        %v3631 = vpop.f32.mrb[0].mxu0
        %3632 = vmatprep.mubr.bf16.mxu0 0
        %3633 = vmatmul.mubr.bf16.gmra.mrb[0].mxu0 %v1231
        %v3634 = vpop.f32.mrb[0].mxu0
        %v3635 = vadd.f32 0.0, %v3634
        %v3636 = vpop.f32.mrb[0].mxu0
        %v3637 = vpop.f32.mrb[0].mxu0
        %v3638 = vadd.f32 0.0, %v3637
        %v3639 = vpop.f32.mrb[0].mxu0
        %3640 = vmatprep.mubr.bf16.mxu0 0
        %3641 = vmatmul.mubr.bf16.gmra.mrb[0].mxu0 %v1232
        %v3642 = vpop.f32.mrb[0].mxu0
        %v3643 = vadd.f32 0.0, %v3642
        %v3644 = vpop.f32.mrb[0].mxu0
        %v3645 = vpop.f32.mrb[0].mxu0
        %v3646 = vadd.f32 0.0, %v3645
        %v3647 = vpop.f32.mrb[0].mxu0
        %3648 = vmatprep.mubr.bf16.mxu0 0
        %3649 = vmatmul.mubr.bf16.gmra.mrb[0].mxu0 %v2442
        %v3650 = vpop.f32.mrb[0].mxu0
        %v3651 = vadd.f32 0.0, %v3650
        %v3652 = vpop.f32.mrb[0].mxu0
        %v3653 = vpop.f32.mrb[0].mxu0
        %v3654 = vadd.f32 0.0, %v3653
        %v3655 = vpop.f32.mrb[0].mxu0
        %3656 = vmatprep.mubr.bf16.mxu0 0
        %3657 = vmatmul.mubr.bf16.gmra.mrb[0].mxu0 %v3454
        %v3658 = vpop.f32.mrb[0].mxu0
        %v3659 = vadd.f32 0.0, %v3658
        %v3660 = vpop.f32.mrb[0].mxu0
        %v3661 = vpop.f32.mrb[0].mxu0
        %v3662 = vadd.f32 0.0, %v3661
        %v3663 = vpop.f32.mrb[0].mxu0
        %3664 = vdwg.mxu0
        %v3665 = vadd.f32 %v3403, %v3539
        %v3666 = vadd.f32 %v3404, %v3542
        %v3667 = vadd.f32 %v3405, %v3547
        %v3668 = vadd.f32 %v3406, %v3550
        %v3669 = vadd.f32 %v3407, %v3555
        %v3670 = vadd.f32 %v3408, %v3558
        %v3671 = vadd.f32 %v3409, %v3563
        %v3672 = vadd.f32 %v3410, %v3566
        %v3673 = vadd.f32 %v3411, %v3571
        %v3674 = vadd.f32 %v3412, %v3574
        %v3675 = vadd.f32 %v3413, %v3579
        %v3676 = vadd.f32 %v3414, %v3582
        %v3677 = vadd.f32 %v3415, %v3587
        %v3678 = vadd.f32 %v3416, %v3590
        %v3679 = vadd.f32 %v3417, %v3595
        %v3680 = vadd.f32 %v3418, %v3598
        %v3681 = vadd.f32 %v3419, %v3603
        %v3682 = vadd.f32 %v3420, %v3606
        %v3683 = vadd.f32 %v3421, %v3611
        %v3684 = vadd.f32 %v3422, %v3614
        %v3685 = vadd.f32 %v3423, %v3619
        %v3686 = vadd.f32 %v3424, %v3622
        %v3687 = vadd.f32 %v3425, %v3627
        %v3688 = vadd.f32 %v3426, %v3630
        %v3689 = vadd.f32 %v3427, %v3635
        %v3690 = vadd.f32 %v3428, %v3638
        %v3691 = vadd.f32 %v3429, %v3643
        %v3692 = vadd.f32 %v3430, %v3646
        %v3693 = vadd.f32 %v3431, %v3651
        %v3694 = vadd.f32 %v3432, %v3654
        %v3695 = vadd.f32 %v3433, %v3659
        %v3696 = vadd.f32 %v3434, %v3662
        %3697 = vst [vmem:[#allocation3] sm:$0xff] %v3665
        %3698 = vst [vmem:[#allocation3 + $0x8] sm:$0xff] %v3666
        %3699 = vst [vmem:[#allocation3 + $0x10] sm:$0xff] %v3667
        %3700 = vst [vmem:[#allocation3 + $0x18] sm:$0xff] %v3668
        %3701 = vst [vmem:[#allocation3 + $0x20] sm:$0xff] %v3669
        %3702 = vst [vmem:[#allocation3 + $0x28] sm:$0xff] %v3670
        %3703 = vst [vmem:[#allocation3 + $0x30] sm:$0xff] %v3671
        %3704 = vst [vmem:[#allocation3 + $0x38] sm:$0xff] %v3672
        %3705 = vst [vmem:[#allocation3 + $0x40] sm:$0xff] %v3673
        %3706 = vst [vmem:[#allocation3 + $0x48] sm:$0xff] %v3674
        %3707 = vst [vmem:[#allocation3 + $0x50] sm:$0xff] %v3675
        %3708 = vst [vmem:[#allocation3 + $0x58] sm:$0xff] %v3676
        %3709 = vst [vmem:[#allocation3 + $0x60] sm:$0xff] %v3677
        %3710 = vst [vmem:[#allocation3 + $0x68] sm:$0xff] %v3678
        %3711 = vst [vmem:[#allocation3 + $0x70] sm:$0xff] %v3679
        %3712 = vst [vmem:[#allocation3 + $0x78] sm:$0xff] %v3680
        %3713 = vst [vmem:[#allocation3 + $0x80] sm:$0xff] %v3681
        %3714 = vst [vmem:[#allocation3 + $0x88] sm:$0xff] %v3682
        %3715 = vst [vmem:[#allocation3 + $0x90] sm:$0xff] %v3683
        %3716 = vst [vmem:[#allocation3 + $0x98] sm:$0xff] %v3684
        %3717 = vst [vmem:[#allocation3 + $0xa0] sm:$0xff] %v3685
        %3718 = vst [vmem:[#allocation3 + $0xa8] sm:$0xff] %v3686
        %3719 = vst [vmem:[#allocation3 + $0xb0] sm:$0xff] %v3687
        %3720 = vst [vmem:[#allocation3 + $0xb8] sm:$0xff] %v3688
        %3721 = vst [vmem:[#allocation3 + $0xc0] sm:$0xff] %v3689
        %3722 = vst [vmem:[#allocation3 + $0xc8] sm:$0xff] %v3690
        %3723 = vst [vmem:[#allocation3 + $0xd0] sm:$0xff] %v3691
        %3724 = vst [vmem:[#allocation3 + $0xd8] sm:$0xff] %v3692
        %3725 = vst [vmem:[#allocation3 + $0xe0] sm:$0xff] %v3693
        %3726 = vst [vmem:[#allocation3 + $0xe8] sm:$0xff] %v3694
        %3727 = vst [vmem:[#allocation3 + $0xf0] sm:$0xff] %v3695
        %3728 = vst [vmem:[#allocation3 + $0xf8] sm:$0xff] %v3696
        %v3730 = vrot.slane %v290, 5
        %v3731 = vrot.slane %v3730, 4
        %v3732 = vrot.slane %v291, 5
        %v3733 = vsel %vm1540, %v3731, %v3732
        %v3734 = vrot.slane %v3732, 4
        %v3735 = vrot.slane %v292, 5
        %v3736 = vsel %vm1540, %v3734, %v3735
        %v3737 = vld [vmem:[#allocation3] sm:$0xff]
        %v3738 = vld [vmem:[#allocation3 + $0x8] sm:$0xff]
        %v3739 = vld [vmem:[#allocation3 + $0x10] sm:$0xff]
        %v3740 = vld [vmem:[#allocation3 + $0x18] sm:$0xff]
        %v3741 = vld [vmem:[#allocation3 + $0x20] sm:$0xff]
        %v3742 = vld [vmem:[#allocation3 + $0x28] sm:$0xff]
        %v3743 = vld [vmem:[#allocation3 + $0x30] sm:$0xff]
        %v3744 = vld [vmem:[#allocation3 + $0x38] sm:$0xff]
        %v3745 = vld [vmem:[#allocation3 + $0x40] sm:$0xff]
        %v3746 = vld [vmem:[#allocation3 + $0x48] sm:$0xff]
        %v3747 = vld [vmem:[#allocation3 + $0x50] sm:$0xff]
        %v3748 = vld [vmem:[#allocation3 + $0x58] sm:$0xff]
        %v3749 = vld [vmem:[#allocation3 + $0x60] sm:$0xff]
        %v3750 = vld [vmem:[#allocation3 + $0x68] sm:$0xff]
        %v3751 = vld [vmem:[#allocation3 + $0x70] sm:$0xff]
        %v3752 = vld [vmem:[#allocation3 + $0x78] sm:$0xff]
        %v3753 = vld [vmem:[#allocation3 + $0x80] sm:$0xff]
        %v3754 = vld [vmem:[#allocation3 + $0x88] sm:$0xff]
        %v3755 = vld [vmem:[#allocation3 + $0x90] sm:$0xff]
        %v3756 = vld [vmem:[#allocation3 + $0x98] sm:$0xff]
        %v3757 = vld [vmem:[#allocation3 + $0xa0] sm:$0xff]
        %v3758 = vld [vmem:[#allocation3 + $0xa8] sm:$0xff]
        %v3759 = vld [vmem:[#allocation3 + $0xb0] sm:$0xff]
        %v3760 = vld [vmem:[#allocation3 + $0xb8] sm:$0xff]
        %v3761 = vld [vmem:[#allocation3 + $0xc0] sm:$0xff]
        %v3762 = vld [vmem:[#allocation3 + $0xc8] sm:$0xff]
        %v3763 = vld [vmem:[#allocation3 + $0xd0] sm:$0xff]
        %v3764 = vld [vmem:[#allocation3 + $0xd8] sm:$0xff]
        %v3765 = vld [vmem:[#allocation3 + $0xe0] sm:$0xff]
        %v3766 = vld [vmem:[#allocation3 + $0xe8] sm:$0xff]
        %v3767 = vld [vmem:[#allocation3 + $0xf0] sm:$0xff]
        %v3768 = vld [vmem:[#allocation3 + $0xf8] sm:$0xff]
        %s3769 = scalar_lea.vmem %s1, 512
        %v3770 = vld [vmem:[%s3769] sm:$0xf]
        %v3771 = vld [vmem:[%s3769 + $0x4] sm:$0xf]
        %v3772 = vld [vmem:[%s3769 + $0x8] sm:$0xf]
        %v3773 = vld [vmem:[%s3769 + $0xc] sm:$0xf]
        %v3774 = vld [vmem:[%s3769 + $0x10] sm:$0xf]
        %v3775 = vld [vmem:[%s3769 + $0x14] sm:$0xf]
        %v3776 = vld [vmem:[%s3769 + $0x18] sm:$0xf]
        %v3777 = vld [vmem:[%s3769 + $0x1c] sm:$0xf]
        %v3778 = vld [vmem:[%s3769 + $0x20] sm:$0xf]
        %v3779 = vld [vmem:[%s3769 + $0x24] sm:$0xf]
        %v3780 = vld [vmem:[%s3769 + $0x28] sm:$0xf]
        %v3781 = vld [vmem:[%s3769 + $0x2c] sm:$0xf]
        %v3782 = vld [vmem:[%s3769 + $0x30] sm:$0xf]
        %v3783 = vld [vmem:[%s3769 + $0x34] sm:$0xf]
        %v3784 = vld [vmem:[%s3769 + $0x38] sm:$0xf]
        %v3785 = vld [vmem:[%s3769 + $0x3c] sm:$0xf]
        %v3786 = vunpack.c.l.b16 %v3733
        %v3787 = vunpack.c.l.b16 %v3736
        %v3788 = vpack.c.b16 %v3787, %v3786
        %v3806 = vunpack.c.l.b16 %v3770
        %v3807 = vunpack.c.l.b16 %v3771
        %v3808 = vunpack.c.l.b16 %v3772
        %v3809 = vunpack.c.l.b16 %v3773
        %v3810 = vunpack.c.l.b16 %v3774
        %v3811 = vunpack.c.l.b16 %v3775
        %v3812 = vunpack.c.l.b16 %v3776
        %v3813 = vunpack.c.l.b16 %v3777
        %v3814 = vunpack.c.l.b16 %v3778
        %v3815 = vunpack.c.l.b16 %v3779
        %v3816 = vunpack.c.l.b16 %v3780
        %v3817 = vunpack.c.l.b16 %v3781
        %v3818 = vunpack.c.l.b16 %v3782
        %v3819 = vunpack.c.l.b16 %v3783
        %v3820 = vunpack.c.l.b16 %v3784
        %v3821 = vunpack.c.l.b16 %v3785
        %v3822 = vpack.c.b16 %v3807, %v3806
        %v3823 = vpack.c.b16 %v3809, %v3808
        %v3824 = vpack.c.b16 %v3811, %v3810
        %v3825 = vpack.c.b16 %v3813, %v3812
        %v3826 = vpack.c.b16 %v3815, %v3814
        %v3827 = vpack.c.b16 %v3817, %v3816
        %v3828 = vpack.c.b16 %v3819, %v3818
        %v3829 = vpack.c.b16 %v3821, %v3820
        %3838 = vmatprep.subr.bf16.mxu0 0
        %3839 = vmatpush1.bf16.msra.mxu0 %v3822
        %3840 = vmatprep.subr.bf16.mxu0 0
        %3841 = vmatpush1.bf16.msra.mxu0 %v3823
        %3842 = vmatprep.subr.bf16.mxu0 0
        %3843 = vmatpush1.bf16.msra.mxu0 %v3824
        %3844 = vmatprep.subr.bf16.mxu0 0
        %3845 = vmatpush1.bf16.msra.mxu0 %v3825
        %3846 = vmatprep.subr.bf16.mxu0 0
        %3847 = vmatpush1.bf16.msra.mxu0 %v3826
        %3848 = vmatprep.subr.bf16.mxu0 0
        %3849 = vmatpush1.bf16.msra.mxu0 %v3827
        %3850 = vmatprep.subr.bf16.mxu0 0
        %3851 = vmatpush1.bf16.msra.mxu0 %v3828
        %3852 = vmatprep.subr.bf16.mxu0 0
        %3853 = vmatpush1.bf16.msra.mxu0 %v3829
        %3854 = vmatprep.subr.bf16.mxu0 0
        %3855 = vmatpush1.bf16.msra.mxu0 0
        %3856 = vmatprep.subr.bf16.mxu0 0
        %3857 = vmatpush1.bf16.msra.mxu0 0
        %3858 = vmatprep.subr.bf16.mxu0 0
        %3859 = vmatpush1.bf16.msra.mxu0 0
        %3860 = vmatprep.subr.bf16.mxu0 0
        %3861 = vmatpush1.bf16.msra.mxu0 0
        %3862 = vmatprep.subr.bf16.mxu0 0
        %3863 = vmatpush1.bf16.msra.mxu0 0
        %3864 = vmatprep.subr.bf16.mxu0 0
        %3865 = vmatpush1.bf16.msra.mxu0 0
        %3866 = vmatprep.subr.bf16.mxu0 0
        %3867 = vmatpush1.bf16.msra.mxu0 0
        %3868 = vmatprep.subr.bf16.mxu0 0
        %3869 = vmatpush1.bf16.msra.mxu0 0
        %3870 = vmatprep.mubr.bf16.mxu0 0
        %3871 = vmatmul.mubr.bf16.gmra.mrb[0].mxu0 %v1736
        %v3872 = vpop.f32.mrb[0].mxu0
        %v3873 = vadd.f32 0.0, %v3872
        %v3874 = vpop.f32.mrb[0].mxu0
        %v3875 = vpop.f32.mrb[0].mxu0
        %v3876 = vadd.f32 0.0, %v3875
        %v3877 = vpop.f32.mrb[0].mxu0
        %3878 = vmatprep.mubr.bf16.mxu0 0
        %3879 = vmatmul.mubr.bf16.gmra.mrb[0].mxu0 %v1737
        %v3880 = vpop.f32.mrb[0].mxu0
        %v3881 = vadd.f32 0.0, %v3880
        %v3882 = vpop.f32.mrb[0].mxu0
        %v3883 = vpop.f32.mrb[0].mxu0
        %v3884 = vadd.f32 0.0, %v3883
        %v3885 = vpop.f32.mrb[0].mxu0
        %3886 = vmatprep.mubr.bf16.mxu0 0
        %3887 = vmatmul.mubr.bf16.gmra.mrb[0].mxu0 %v1738
        %v3888 = vpop.f32.mrb[0].mxu0
        %v3889 = vadd.f32 0.0, %v3888
        %v3890 = vpop.f32.mrb[0].mxu0
        %v3891 = vpop.f32.mrb[0].mxu0
        %v3892 = vadd.f32 0.0, %v3891
        %v3893 = vpop.f32.mrb[0].mxu0
        %3894 = vmatprep.mubr.bf16.mxu0 0
        %3895 = vmatmul.mubr.bf16.gmra.mrb[0].mxu0 %v1739
        %v3896 = vpop.f32.mrb[0].mxu0
        %v3897 = vadd.f32 0.0, %v3896
        %v3898 = vpop.f32.mrb[0].mxu0
        %v3899 = vpop.f32.mrb[0].mxu0
        %v3900 = vadd.f32 0.0, %v3899
        %v3901 = vpop.f32.mrb[0].mxu0
        %3902 = vmatprep.mubr.bf16.mxu0 0
        %3903 = vmatmul.mubr.bf16.gmra.mrb[0].mxu0 %v1740
        %v3904 = vpop.f32.mrb[0].mxu0
        %v3905 = vadd.f32 0.0, %v3904
        %v3906 = vpop.f32.mrb[0].mxu0
        %v3907 = vpop.f32.mrb[0].mxu0
        %v3908 = vadd.f32 0.0, %v3907
        %v3909 = vpop.f32.mrb[0].mxu0
        %3910 = vmatprep.mubr.bf16.mxu0 0
        %3911 = vmatmul.mubr.bf16.gmra.mrb[0].mxu0 %v1741
        %v3912 = vpop.f32.mrb[0].mxu0
        %v3913 = vadd.f32 0.0, %v3912
        %v3914 = vpop.f32.mrb[0].mxu0
        %v3915 = vpop.f32.mrb[0].mxu0
        %v3916 = vadd.f32 0.0, %v3915
        %v3917 = vpop.f32.mrb[0].mxu0
        %3918 = vmatprep.mubr.bf16.mxu0 0
        %3919 = vmatmul.mubr.bf16.gmra.mrb[0].mxu0 %v1742
        %v3920 = vpop.f32.mrb[0].mxu0
        %v3921 = vadd.f32 0.0, %v3920
        %v3922 = vpop.f32.mrb[0].mxu0
        %v3923 = vpop.f32.mrb[0].mxu0
        %v3924 = vadd.f32 0.0, %v3923
        %v3925 = vpop.f32.mrb[0].mxu0
        %3926 = vmatprep.mubr.bf16.mxu0 0
        %3927 = vmatmul.mubr.bf16.gmra.mrb[0].mxu0 %v1743
        %v3928 = vpop.f32.mrb[0].mxu0
        %v3929 = vadd.f32 0.0, %v3928
        %v3930 = vpop.f32.mrb[0].mxu0
        %v3931 = vpop.f32.mrb[0].mxu0
        %v3932 = vadd.f32 0.0, %v3931
        %v3933 = vpop.f32.mrb[0].mxu0
        %3934 = vmatprep.mubr.bf16.mxu0 0
        %3935 = vmatmul.mubr.bf16.gmra.mrb[0].mxu0 %v1744
        %v3936 = vpop.f32.mrb[0].mxu0
        %v3937 = vadd.f32 0.0, %v3936
        %v3938 = vpop.f32.mrb[0].mxu0
        %v3939 = vpop.f32.mrb[0].mxu0
        %v3940 = vadd.f32 0.0, %v3939
        %v3941 = vpop.f32.mrb[0].mxu0
        %3942 = vmatprep.mubr.bf16.mxu0 0
        %3943 = vmatmul.mubr.bf16.gmra.mrb[0].mxu0 %v1745
        %v3944 = vpop.f32.mrb[0].mxu0
        %v3945 = vadd.f32 0.0, %v3944
        %v3946 = vpop.f32.mrb[0].mxu0
        %v3947 = vpop.f32.mrb[0].mxu0
        %v3948 = vadd.f32 0.0, %v3947
        %v3949 = vpop.f32.mrb[0].mxu0
        %3950 = vmatprep.mubr.bf16.mxu0 0
        %3951 = vmatmul.mubr.bf16.gmra.mrb[0].mxu0 %v1746
        %v3952 = vpop.f32.mrb[0].mxu0
        %v3953 = vadd.f32 0.0, %v3952
        %v3954 = vpop.f32.mrb[0].mxu0
        %v3955 = vpop.f32.mrb[0].mxu0
        %v3956 = vadd.f32 0.0, %v3955
        %v3957 = vpop.f32.mrb[0].mxu0
        %3958 = vmatprep.mubr.bf16.mxu0 0
        %3959 = vmatmul.mubr.bf16.gmra.mrb[0].mxu0 %v1747
        %v3960 = vpop.f32.mrb[0].mxu0
        %v3961 = vadd.f32 0.0, %v3960
        %v3962 = vpop.f32.mrb[0].mxu0
        %v3963 = vpop.f32.mrb[0].mxu0
        %v3964 = vadd.f32 0.0, %v3963
        %v3965 = vpop.f32.mrb[0].mxu0
        %3966 = vmatprep.mubr.bf16.mxu0 0
        %3967 = vmatmul.mubr.bf16.gmra.mrb[0].mxu0 %v1748
        %v3968 = vpop.f32.mrb[0].mxu0
        %v3969 = vadd.f32 0.0, %v3968
        %v3970 = vpop.f32.mrb[0].mxu0
        %v3971 = vpop.f32.mrb[0].mxu0
        %v3972 = vadd.f32 0.0, %v3971
        %v3973 = vpop.f32.mrb[0].mxu0
        %3974 = vmatprep.mubr.bf16.mxu0 0
        %3975 = vmatmul.mubr.bf16.gmra.mrb[0].mxu0 %v1749
        %v3976 = vpop.f32.mrb[0].mxu0
        %v3977 = vadd.f32 0.0, %v3976
        %v3978 = vpop.f32.mrb[0].mxu0
        %v3979 = vpop.f32.mrb[0].mxu0
        %v3980 = vadd.f32 0.0, %v3979
        %v3981 = vpop.f32.mrb[0].mxu0
        %3982 = vmatprep.mubr.bf16.mxu0 0
        %3983 = vmatmul.mubr.bf16.gmra.mrb[0].mxu0 %v2776
        %v3984 = vpop.f32.mrb[0].mxu0
        %v3985 = vadd.f32 0.0, %v3984
        %v3986 = vpop.f32.mrb[0].mxu0
        %v3987 = vpop.f32.mrb[0].mxu0
        %v3988 = vadd.f32 0.0, %v3987
        %v3989 = vpop.f32.mrb[0].mxu0
        %3990 = vmatprep.mubr.bf16.mxu0 0
        %3991 = vmatmul.mubr.bf16.gmra.mrb[0].mxu0 %v3788
        %v3992 = vpop.f32.mrb[0].mxu0
        %v3993 = vadd.f32 0.0, %v3992
        %v3994 = vpop.f32.mrb[0].mxu0
        %v3995 = vpop.f32.mrb[0].mxu0
        %v3996 = vadd.f32 0.0, %v3995
        %v3997 = vpop.f32.mrb[0].mxu0
        %3998 = vdwg.mxu0
        %v3999 = vadd.f32 %v3737, %v3873
        %v4000 = vadd.f32 %v3738, %v3876
        %v4001 = vadd.f32 %v3739, %v3881
        %v4002 = vadd.f32 %v3740, %v3884
        %v4003 = vadd.f32 %v3741, %v3889
        %v4004 = vadd.f32 %v3742, %v3892
        %v4005 = vadd.f32 %v3743, %v3897
        %v4006 = vadd.f32 %v3744, %v3900
        %v4007 = vadd.f32 %v3745, %v3905
        %v4008 = vadd.f32 %v3746, %v3908
        %v4009 = vadd.f32 %v3747, %v3913
        %v4010 = vadd.f32 %v3748, %v3916
        %v4011 = vadd.f32 %v3749, %v3921
        %v4012 = vadd.f32 %v3750, %v3924
        %v4013 = vadd.f32 %v3751, %v3929
        %v4014 = vadd.f32 %v3752, %v3932
        %v4015 = vadd.f32 %v3753, %v3937
        %v4016 = vadd.f32 %v3754, %v3940
        %v4017 = vadd.f32 %v3755, %v3945
        %v4018 = vadd.f32 %v3756, %v3948
        %v4019 = vadd.f32 %v3757, %v3953
        %v4020 = vadd.f32 %v3758, %v3956
        %v4021 = vadd.f32 %v3759, %v3961
        %v4022 = vadd.f32 %v3760, %v3964
        %v4023 = vadd.f32 %v3761, %v3969
        %v4024 = vadd.f32 %v3762, %v3972
        %v4025 = vadd.f32 %v3763, %v3977
        %v4026 = vadd.f32 %v3764, %v3980
        %v4027 = vadd.f32 %v3765, %v3985
        %v4028 = vadd.f32 %v3766, %v3988
        %v4029 = vadd.f32 %v3767, %v3993
        %v4030 = vadd.f32 %v3768, %v3996
        %4031 = vst [vmem:[#allocation3] sm:$0xff] %v3999
        %4032 = vst [vmem:[#allocation3 + $0x8] sm:$0xff] %v4000
        %4033 = vst [vmem:[#allocation3 + $0x10] sm:$0xff] %v4001
        %4034 = vst [vmem:[#allocation3 + $0x18] sm:$0xff] %v4002
        %4035 = vst [vmem:[#allocation3 + $0x20] sm:$0xff] %v4003
        %4036 = vst [vmem:[#allocation3 + $0x28] sm:$0xff] %v4004
        %4037 = vst [vmem:[#allocation3 + $0x30] sm:$0xff] %v4005
        %4038 = vst [vmem:[#allocation3 + $0x38] sm:$0xff] %v4006
        %4039 = vst [vmem:[#allocation3 + $0x40] sm:$0xff] %v4007
        %4040 = vst [vmem:[#allocation3 + $0x48] sm:$0xff] %v4008
        %4041 = vst [vmem:[#allocation3 + $0x50] sm:$0xff] %v4009
        %4042 = vst [vmem:[#allocation3 + $0x58] sm:$0xff] %v4010
        %4043 = vst [vmem:[#allocation3 + $0x60] sm:$0xff] %v4011
        %4044 = vst [vmem:[#allocation3 + $0x68] sm:$0xff] %v4012
        %4045 = vst [vmem:[#allocation3 + $0x70] sm:$0xff] %v4013
        %4046 = vst [vmem:[#allocation3 + $0x78] sm:$0xff] %v4014
        %4047 = vst [vmem:[#allocation3 + $0x80] sm:$0xff] %v4015
        %4048 = vst [vmem:[#allocation3 + $0x88] sm:$0xff] %v4016
        %4049 = vst [vmem:[#allocation3 + $0x90] sm:$0xff] %v4017
        %4050 = vst [vmem:[#allocation3 + $0x98] sm:$0xff] %v4018
        %4051 = vst [vmem:[#allocation3 + $0xa0] sm:$0xff] %v4019
        %4052 = vst [vmem:[#allocation3 + $0xa8] sm:$0xff] %v4020
        %4053 = vst [vmem:[#allocation3 + $0xb0] sm:$0xff] %v4021
        %4054 = vst [vmem:[#allocation3 + $0xb8] sm:$0xff] %v4022
        %4055 = vst [vmem:[#allocation3 + $0xc0] sm:$0xff] %v4023
        %4056 = vst [vmem:[#allocation3 + $0xc8] sm:$0xff] %v4024
        %4057 = vst [vmem:[#allocation3 + $0xd0] sm:$0xff] %v4025
        %4058 = vst [vmem:[#allocation3 + $0xd8] sm:$0xff] %v4026
        %4059 = vst [vmem:[#allocation3 + $0xe0] sm:$0xff] %v4027
        %4060 = vst [vmem:[#allocation3 + $0xe8] sm:$0xff] %v4028
        %4061 = vst [vmem:[#allocation3 + $0xf0] sm:$0xff] %v4029
        %4062 = vst [vmem:[#allocation3 + $0xf8] sm:$0xff] %v4030
        %4063 = vst [vmem:[#allocation2] sm:$0xf] 0
        %4064 = vst [vmem:[#allocation2 + $0x4] sm:$0xf] 0
        %4065 = vst [vmem:[#allocation2 + $0x8] sm:$0x1] 0
        %4066 = vst [vmem:[#allocation2 + $0xc] sm:$0xf] 0
        %4067 = vst [vmem:[#allocation2 + $0x10] sm:$0xf] 0
        %4068 = vst [vmem:[#allocation2 + $0x14] sm:$0x1] 0
        %4069 = vst [vmem:[#allocation2 + $0x18] sm:$0xf] 0
        %4070 = vst [vmem:[#allocation2 + $0x1c] sm:$0xf] 0
        %4071 = vst [vmem:[#allocation2 + $0x20] sm:$0x1] 0
        %4072 = vst [vmem:[#allocation2 + $0x24] sm:$0xf] 0
        %4073 = vst [vmem:[#allocation2 + $0x28] sm:$0xf] 0
        %4074 = vst [vmem:[#allocation2 + $0x2c] sm:$0x1] 0
        %4075 = vst [vmem:[#allocation2 + $0x30] sm:$0xf] 0
        %4076 = vst [vmem:[#allocation2 + $0x34] sm:$0xf] 0
        %4077 = vst [vmem:[#allocation2 + $0x38] sm:$0x1] 0
        %4078 = vst [vmem:[#allocation2 + $0x3c] sm:$0xf] 0
        %4079 = vst [vmem:[#allocation2 + $0x40] sm:$0xf] 0
        %4080 = vst [vmem:[#allocation2 + $0x44] sm:$0x1] 0
        %4081 = vst [vmem:[#allocation2 + $0x48] sm:$0xf] 0
        %4082 = vst [vmem:[#allocation2 + $0x4c] sm:$0xf] 0
        %4083 = vst [vmem:[#allocation2 + $0x50] sm:$0x1] 0
        %4084 = vst [vmem:[#allocation2 + $0x54] sm:$0xf] 0
        %4085 = vst [vmem:[#allocation2 + $0x58] sm:$0xf] 0
        %4086 = vst [vmem:[#allocation2 + $0x5c] sm:$0x1] 0
        %4087 = vst [vmem:[#allocation2 + $0x60] sm:$0xf] 0
        %4088 = vst [vmem:[#allocation2 + $0x64] sm:$0xf] 0
        %4089 = vst [vmem:[#allocation2 + $0x68] sm:$0x1] 0
        %4090 = vst [vmem:[#allocation2 + $0x6c] sm:$0xf] 0
        %4091 = vst [vmem:[#allocation2 + $0x70] sm:$0xf] 0
        %4092 = vst [vmem:[#allocation2 + $0x74] sm:$0x1] 0
        %4093 = vst [vmem:[#allocation2 + $0x78] sm:$0xf] 0
        %4094 = vst [vmem:[#allocation2 + $0x7c] sm:$0xf] 0
        %4095 = vst [vmem:[#allocation2 + $0x80] sm:$0x1] 0
        %4096 = vst [vmem:[#allocation2 + $0x84] sm:$0xf] 0
        %4097 = vst [vmem:[#allocation2 + $0x88] sm:$0xf] 0
        %4098 = vst [vmem:[#allocation2 + $0x8c] sm:$0x1] 0
        %4099 = vst [vmem:[#allocation2 + $0x90] sm:$0xf] 0
        %4100 = vst [vmem:[#allocation2 + $0x94] sm:$0xf] 0
        %4101 = vst [vmem:[#allocation2 + $0x98] sm:$0x1] 0
        %4102 = vst [vmem:[#allocation2 + $0x9c] sm:$0xf] 0
        %4103 = vst [vmem:[#allocation2 + $0xa0] sm:$0xf] 0
        %4104 = vst [vmem:[#allocation2 + $0xa4] sm:$0x1] 0
        %4105 = vst [vmem:[#allocation2 + $0xa8] sm:$0xf] 0
        %4106 = vst [vmem:[#allocation2 + $0xac] sm:$0xf] 0
        %4107 = vst [vmem:[#allocation2 + $0xb0] sm:$0x1] 0
        %4108 = vst [vmem:[#allocation2 + $0xb4] sm:$0xf] 0
        %4109 = vst [vmem:[#allocation2 + $0xb8] sm:$0xf] 0
        %4110 = vst [vmem:[#allocation2 + $0xbc] sm:$0x1] 0
        %4111 = vst [vmem:[#allocation2 + $0xc0] sm:$0xf] 0
        %4112 = vst [vmem:[#allocation2 + $0xc4] sm:$0xf] 0
        %4113 = vst [vmem:[#allocation2 + $0xc8] sm:$0x1] 0
        %4114 = vst [vmem:[#allocation2 + $0xcc] sm:$0xf] 0
        %4115 = vst [vmem:[#allocation2 + $0xd0] sm:$0xf] 0
        %4116 = vst [vmem:[#allocation2 + $0xd4] sm:$0x1] 0
        %v4117 = vld [vmem:[#allocation3] sm:$0xff]
        %v4118 = vld [vmem:[#allocation3 + $0x8] sm:$0xff]
        %v4119 = vld [vmem:[#allocation3 + $0x10] sm:$0xff]
        %v4120 = vld [vmem:[#allocation3 + $0x18] sm:$0xff]
        %v4121 = vld [vmem:[#allocation3 + $0x20] sm:$0xff]
        %v4122 = vld [vmem:[#allocation3 + $0x28] sm:$0xff]
        %v4123 = vld [vmem:[#allocation3 + $0x30] sm:$0xff]
        %v4124 = vld [vmem:[#allocation3 + $0x38] sm:$0xff]
        %v4125 = vld [vmem:[#allocation3 + $0x40] sm:$0xff]
        %v4126 = vld [vmem:[#allocation3 + $0x48] sm:$0xff]
        %v4127 = vld [vmem:[#allocation3 + $0x50] sm:$0xff]
        %v4128 = vld [vmem:[#allocation3 + $0x58] sm:$0xff]
        %v4129 = vld [vmem:[#allocation3 + $0x60] sm:$0xff]
        %v4130 = vld [vmem:[#allocation3 + $0x68] sm:$0xff]
        %v4131 = vld [vmem:[#allocation3 + $0x70] sm:$0xff]
        %v4132 = vld [vmem:[#allocation3 + $0x78] sm:$0xff]
        %v4133 = vld [vmem:[#allocation3 + $0x80] sm:$0xff]
        %v4134 = vld [vmem:[#allocation3 + $0x88] sm:$0xff]
        %v4135 = vld [vmem:[#allocation3 + $0x90] sm:$0xff]
        %v4136 = vld [vmem:[#allocation3 + $0x98] sm:$0xff]
        %v4137 = vld [vmem:[#allocation3 + $0xa0] sm:$0xff]
        %v4138 = vld [vmem:[#allocation3 + $0xa8] sm:$0xff]
        %v4139 = vld [vmem:[#allocation3 + $0xb0] sm:$0xff]
        %v4140 = vld [vmem:[#allocation3 + $0xb8] sm:$0xff]
        %v4141 = vld [vmem:[#allocation3 + $0xc0] sm:$0xff]
        %v4142 = vld [vmem:[#allocation3 + $0xc8] sm:$0xff]
        %v4143 = vld [vmem:[#allocation3 + $0xd0] sm:$0xff]
        %v4144 = vld [vmem:[#allocation3 + $0xd8] sm:$0xff]
        %v4145 = vld [vmem:[#allocation3 + $0xe0] sm:$0xff]
        %v4146 = vld [vmem:[#allocation3 + $0xe8] sm:$0xff]
        %v4147 = vld [vmem:[#allocation3 + $0xf0] sm:$0xff]
        %v4148 = vld [vmem:[#allocation3 + $0xf8] sm:$0xff]
        %v4149 = vmax.f32 %v4117, 0.0
        %v4150 = vmax.f32 %v4118, 0.0
        %v4151 = vmax.f32 %v4119, 0.0
        %v4152 = vmax.f32 %v4120, 0.0
        %v4153 = vmax.f32 %v4121, 0.0
        %v4154 = vmax.f32 %v4122, 0.0
        %v4155 = vmax.f32 %v4123, 0.0
        %v4156 = vmax.f32 %v4124, 0.0
        %v4157 = vmax.f32 %v4125, 0.0
        %v4158 = vmax.f32 %v4126, 0.0
        %v4159 = vmax.f32 %v4127, 0.0
        %v4160 = vmax.f32 %v4128, 0.0
        %v4161 = vmax.f32 %v4129, 0.0
        %v4162 = vmax.f32 %v4130, 0.0
        %v4163 = vmax.f32 %v4131, 0.0
        %v4164 = vmax.f32 %v4132, 0.0
        %v4165 = vmax.f32 %v4133, 0.0
        %v4166 = vmax.f32 %v4134, 0.0
        %v4167 = vmax.f32 %v4135, 0.0
        %v4168 = vmax.f32 %v4136, 0.0
        %v4169 = vmax.f32 %v4137, 0.0
        %v4170 = vmax.f32 %v4138, 0.0
        %v4171 = vmax.f32 %v4139, 0.0
        %v4172 = vmax.f32 %v4140, 0.0
        %v4173 = vmax.f32 %v4141, 0.0
        %v4174 = vmax.f32 %v4142, 0.0
        %v4175 = vmax.f32 %v4143, 0.0
        %v4176 = vmax.f32 %v4144, 0.0
        %v4177 = vmax.f32 %v4145, 0.0
        %v4178 = vmax.f32 %v4146, 0.0
        %v4179 = vmax.f32 %v4147, 0.0
        %v4180 = vmax.f32 %v4148, 0.0
        %v4181 = vpack.c.bf16 %v4150, %v4149
        %v4182 = vpack.c.bf16 %v4152, %v4151
        %v4183 = vpack.c.bf16 %v4154, %v4153
        %v4184 = vpack.c.bf16 %v4156, %v4155
        %v4185 = vpack.c.bf16 %v4158, %v4157
        %v4186 = vpack.c.bf16 %v4160, %v4159
        %v4187 = vpack.c.bf16 %v4162, %v4161
        %v4188 = vpack.c.bf16 %v4164, %v4163
        %v4189 = vpack.c.bf16 %v4166, %v4165
        %v4190 = vpack.c.bf16 %v4168, %v4167
        %v4191 = vpack.c.bf16 %v4170, %v4169
        %v4192 = vpack.c.bf16 %v4172, %v4171
        %v4193 = vpack.c.bf16 %v4174, %v4173
        %v4194 = vpack.c.bf16 %v4176, %v4175
        %v4195 = vpack.c.bf16 %v4178, %v4177
        %v4196 = vpack.c.bf16 %v4180, %v4179
        %v4213 = vunpack.c.l.b16 %v4181
        %v4214 = vunpack.c.h.b16 %v4181
        %v4215 = vunpack.c.l.b16 %v4182
        %v4216 = vunpack.c.h.b16 %v4182
        %v4217 = vunpack.c.l.b16 %v4183
        %v4218 = vunpack.c.h.b16 %v4183
        %v4219 = vunpack.c.l.b16 %v4184
        %v4220 = vunpack.c.h.b16 %v4184
        %v4221 = vunpack.c.l.b16 %v4185
        %v4222 = vunpack.c.h.b16 %v4185
        %v4223 = vunpack.c.l.b16 %v4186
        %v4224 = vunpack.c.h.b16 %v4186
        %v4225 = vunpack.c.l.b16 %v4187
        %v4226 = vunpack.c.h.b16 %v4187
        %v4227 = vunpack.c.l.b16 %v4188
        %v4228 = vunpack.c.h.b16 %v4188
        %v4229 = vunpack.c.l.b16 %v4189
        %v4230 = vunpack.c.h.b16 %v4189
        %v4231 = vunpack.c.l.b16 %v4190
        %v4232 = vunpack.c.h.b16 %v4190
        %v4233 = vunpack.c.l.b16 %v4191
        %v4234 = vunpack.c.h.b16 %v4191
        %v4235 = vunpack.c.l.b16 %v4192
        %v4236 = vunpack.c.h.b16 %v4192
        %v4237 = vunpack.c.l.b16 %v4193
        %v4238 = vunpack.c.h.b16 %v4193
        %v4239 = vunpack.c.l.b16 %v4194
        %v4240 = vunpack.c.h.b16 %v4194
        %v4241 = vunpack.c.l.b16 %v4195
        %v4242 = vunpack.c.h.b16 %v4195
        %v4243 = vunpack.c.l.b16 %v4196
        %v4244 = vunpack.c.h.b16 %v4196
        %v4245 = vpack.c.b16 %v4213, %v4213
        %v4246 = vpack.c.b16 %v4214, %v4214
        %v4247 = vpack.c.b16 %v4215, %v4215
        %v4248 = vpack.c.b16 %v4216, %v4216
        %v4249 = vpack.c.b16 %v4217, %v4217
        %v4250 = vpack.c.b16 %v4218, %v4218
        %v4251 = vpack.c.b16 %v4219, %v4219
        %v4252 = vpack.c.b16 %v4220, %v4220
        %v4253 = vpack.c.b16 %v4221, %v4221
        %v4254 = vpack.c.b16 %v4222, %v4222
        %v4255 = vpack.c.b16 %v4223, %v4223
        %v4256 = vpack.c.b16 %v4224, %v4224
        %v4257 = vpack.c.b16 %v4225, %v4225
        %v4258 = vpack.c.b16 %v4226, %v4226
        %v4259 = vpack.c.b16 %v4227, %v4227
        %v4260 = vpack.c.b16 %v4228, %v4228
        %v4261 = vpack.c.b16 %v4229, %v4229
        %v4262 = vpack.c.b16 %v4230, %v4230
        %v4263 = vpack.c.b16 %v4231, %v4231
        %v4264 = vpack.c.b16 %v4232, %v4232
        %v4265 = vpack.c.b16 %v4233, %v4233
        %v4266 = vpack.c.b16 %v4234, %v4234
        %v4267 = vpack.c.b16 %v4235, %v4235
        %v4268 = vpack.c.b16 %v4236, %v4236
        %v4269 = vpack.c.b16 %v4237, %v4237
        %v4270 = vpack.c.b16 %v4238, %v4238
        %v4271 = vpack.c.b16 %v4239, %v4239
        %v4272 = vpack.c.b16 %v4240, %v4240
        %v4273 = vpack.c.b16 %v4241, %v4241
        %v4274 = vpack.c.b16 %v4242, %v4242
        %v4275 = vpack.c.b16 %v4243, %v4243
        %v4276 = vpack.c.b16 %v4244, %v4244
        %vm4277 = vsmask.f32 256
        %vm4278 = vsmask.f32 4368
        %vm4279 = vmor %vm4277, %vm4278
        %v4281 = vshrl.u32 %v4245, 16
        %v4283 = vrot.slane %v4281, 7
        %v4284 = vshll.u32 %v4245, 16
        %v4286 = vor.u32 %v4283, %v4284
        %v4287 = vrot.slane %v4283, 4
        %v4289 = vshrl.u32 %v4246, 16
        %v4291 = vrot.slane %v4289, 7
        %v4292 = vshll.u32 %v4246, 16
        %v4294 = vor.u32 %v4291, %v4292
        %v4295 = vsel %vm4279, %v4287, %v4294
        %v4296 = vrot.slane %v4291, 4
        %v4298 = vshrl.u32 %v4247, 16
        %v4300 = vrot.slane %v4298, 7
        %v4301 = vshll.u32 %v4247, 16
        %v4303 = vor.u32 %v4300, %v4301
        %v4304 = vrot.slane %v4300, 4
        %v4306 = vshrl.u32 %v4248, 16
        %v4308 = vrot.slane %v4306, 7
        %v4309 = vshll.u32 %v4248, 16
        %v4311 = vor.u32 %v4308, %v4309
        %v4312 = vsel %vm4279, %v4304, %v4311
        %v4313 = vrot.slane %v4308, 4
        %v4315 = vshrl.u32 %v4249, 16
        %v4317 = vrot.slane %v4315, 7
        %v4318 = vshll.u32 %v4249, 16
        %v4320 = vor.u32 %v4317, %v4318
        %v4321 = vrot.slane %v4317, 4
        %v4323 = vshrl.u32 %v4250, 16
        %v4325 = vrot.slane %v4323, 7
        %v4326 = vshll.u32 %v4250, 16
        %v4328 = vor.u32 %v4325, %v4326
        %v4329 = vsel %vm4279, %v4321, %v4328
        %v4330 = vrot.slane %v4325, 4
        %v4332 = vshrl.u32 %v4251, 16
        %v4334 = vrot.slane %v4332, 7
        %v4335 = vshll.u32 %v4251, 16
        %v4337 = vor.u32 %v4334, %v4335
        %v4338 = vrot.slane %v4334, 4
        %v4340 = vshrl.u32 %v4252, 16
        %v4342 = vrot.slane %v4340, 7
        %v4343 = vshll.u32 %v4252, 16
        %v4345 = vor.u32 %v4342, %v4343
        %v4346 = vsel %vm4279, %v4338, %v4345
        %v4347 = vrot.slane %v4342, 4
        %v4349 = vshrl.u32 %v4253, 16
        %v4351 = vrot.slane %v4349, 7
        %v4352 = vshll.u32 %v4253, 16
        %v4354 = vor.u32 %v4351, %v4352
        %v4355 = vrot.slane %v4351, 4
        %v4357 = vshrl.u32 %v4254, 16
        %v4359 = vrot.slane %v4357, 7
        %v4360 = vshll.u32 %v4254, 16
        %v4362 = vor.u32 %v4359, %v4360
        %v4363 = vsel %vm4279, %v4355, %v4362
        %v4364 = vrot.slane %v4359, 4
        %v4366 = vshrl.u32 %v4255, 16
        %v4368 = vrot.slane %v4366, 7
        %v4369 = vshll.u32 %v4255, 16
        %v4371 = vor.u32 %v4368, %v4369
        %v4372 = vrot.slane %v4368, 4
        %v4374 = vshrl.u32 %v4256, 16
        %v4376 = vrot.slane %v4374, 7
        %v4377 = vshll.u32 %v4256, 16
        %v4379 = vor.u32 %v4376, %v4377
        %v4380 = vsel %vm4279, %v4372, %v4379
        %v4381 = vrot.slane %v4376, 4
        %v4383 = vshrl.u32 %v4257, 16
        %v4385 = vrot.slane %v4383, 7
        %v4386 = vshll.u32 %v4257, 16
        %v4388 = vor.u32 %v4385, %v4386
        %v4389 = vrot.slane %v4385, 4
        %v4391 = vshrl.u32 %v4258, 16
        %v4393 = vrot.slane %v4391, 7
        %v4394 = vshll.u32 %v4258, 16
        %v4396 = vor.u32 %v4393, %v4394
        %v4397 = vsel %vm4279, %v4389, %v4396
        %v4398 = vrot.slane %v4393, 4
        %v4400 = vshrl.u32 %v4259, 16
        %v4402 = vrot.slane %v4400, 7
        %v4403 = vshll.u32 %v4259, 16
        %v4405 = vor.u32 %v4402, %v4403
        %v4406 = vrot.slane %v4402, 4
        %v4408 = vshrl.u32 %v4260, 16
        %v4410 = vrot.slane %v4408, 7
        %v4411 = vshll.u32 %v4260, 16
        %v4413 = vor.u32 %v4410, %v4411
        %v4414 = vsel %vm4279, %v4406, %v4413
        %v4415 = vrot.slane %v4410, 4
        %v4417 = vshrl.u32 %v4261, 16
        %v4419 = vrot.slane %v4417, 7
        %v4420 = vshll.u32 %v4261, 16
        %v4422 = vor.u32 %v4419, %v4420
        %v4423 = vrot.slane %v4419, 4
        %v4425 = vshrl.u32 %v4262, 16
        %v4427 = vrot.slane %v4425, 7
        %v4428 = vshll.u32 %v4262, 16
        %v4430 = vor.u32 %v4427, %v4428
        %v4431 = vsel %vm4279, %v4423, %v4430
        %v4432 = vrot.slane %v4427, 4
        %v4434 = vshrl.u32 %v4263, 16
        %v4436 = vrot.slane %v4434, 7
        %v4437 = vshll.u32 %v4263, 16
        %v4439 = vor.u32 %v4436, %v4437
        %v4440 = vrot.slane %v4436, 4
        %v4442 = vshrl.u32 %v4264, 16
        %v4444 = vrot.slane %v4442, 7
        %v4445 = vshll.u32 %v4264, 16
        %v4447 = vor.u32 %v4444, %v4445
        %v4448 = vsel %vm4279, %v4440, %v4447
        %v4449 = vrot.slane %v4444, 4
        %v4451 = vshrl.u32 %v4265, 16
        %v4453 = vrot.slane %v4451, 7
        %v4454 = vshll.u32 %v4265, 16
        %v4456 = vor.u32 %v4453, %v4454
        %v4457 = vrot.slane %v4453, 4
        %v4459 = vshrl.u32 %v4266, 16
        %v4461 = vrot.slane %v4459, 7
        %v4462 = vshll.u32 %v4266, 16
        %v4464 = vor.u32 %v4461, %v4462
        %v4465 = vsel %vm4279, %v4457, %v4464
        %v4466 = vrot.slane %v4461, 4
        %v4468 = vshrl.u32 %v4267, 16
        %v4470 = vrot.slane %v4468, 7
        %v4471 = vshll.u32 %v4267, 16
        %v4473 = vor.u32 %v4470, %v4471
        %v4474 = vrot.slane %v4470, 4
        %v4476 = vshrl.u32 %v4268, 16
        %v4478 = vrot.slane %v4476, 7
        %v4479 = vshll.u32 %v4268, 16
        %v4481 = vor.u32 %v4478, %v4479
        %v4482 = vsel %vm4279, %v4474, %v4481
        %v4483 = vrot.slane %v4478, 4
        %v4485 = vshrl.u32 %v4269, 16
        %v4487 = vrot.slane %v4485, 7
        %v4488 = vshll.u32 %v4269, 16
        %v4490 = vor.u32 %v4487, %v4488
        %v4491 = vrot.slane %v4487, 4
        %v4493 = vshrl.u32 %v4270, 16
        %v4495 = vrot.slane %v4493, 7
        %v4496 = vshll.u32 %v4270, 16
        %v4498 = vor.u32 %v4495, %v4496
        %v4499 = vsel %vm4279, %v4491, %v4498
        %v4500 = vrot.slane %v4495, 4
        %v4502 = vshrl.u32 %v4271, 16
        %v4504 = vrot.slane %v4502, 7
        %v4505 = vshll.u32 %v4271, 16
        %v4507 = vor.u32 %v4504, %v4505
        %v4508 = vrot.slane %v4504, 4
        %v4510 = vshrl.u32 %v4272, 16
        %v4512 = vrot.slane %v4510, 7
        %v4513 = vshll.u32 %v4272, 16
        %v4515 = vor.u32 %v4512, %v4513
        %v4516 = vsel %vm4279, %v4508, %v4515
        %v4517 = vrot.slane %v4512, 4
        %v4519 = vshrl.u32 %v4273, 16
        %v4521 = vrot.slane %v4519, 7
        %v4522 = vshll.u32 %v4273, 16
        %v4524 = vor.u32 %v4521, %v4522
        %v4525 = vrot.slane %v4521, 4
        %v4527 = vshrl.u32 %v4274, 16
        %v4529 = vrot.slane %v4527, 7
        %v4530 = vshll.u32 %v4274, 16
        %v4532 = vor.u32 %v4529, %v4530
        %v4533 = vsel %vm4279, %v4525, %v4532
        %v4534 = vrot.slane %v4529, 4
        %v4536 = vshrl.u32 %v4275, 16
        %v4538 = vrot.slane %v4536, 7
        %v4539 = vshll.u32 %v4275, 16
        %v4541 = vor.u32 %v4538, %v4539
        %v4542 = vrot.slane %v4538, 4
        %v4544 = vshrl.u32 %v4276, 16
        %v4546 = vrot.slane %v4544, 7
        %v4547 = vshll.u32 %v4276, 16
        %v4549 = vor.u32 %v4546, %v4547
        %v4550 = vsel %vm4279, %v4542, %v4549
        %v4551 = vrot.slane %v4546, 4
        %s4600 = scalar_lea.vmem [#allocation2], 12
        %vm4601 = vcmask 1043456
        %vm4602 = vsmask.f32 7938
        %vm4603 = vmand %vm4601, %vm4602
        %v4604 = vld [vmem:[%s4600] sm:$0xf]
        %v4605 = vsel %vm4603, %v4286, %v4604
        %4606 = vst [vmem:[%s4600] sm:$0xf] %v4605
        %4607 = vst [vmem:[%s4600 + $0x4] sm:$0xf] %v4295
        %vm4608 = vcmask 1040384
        %vm4609 = vmand %vm4608, %vm4277
        %v4610 = vld [vmem:[%s4600 + $0x8] sm:$0x1]
        %v4611 = vsel %vm4609, %v4296, %v4610
        %4612 = vst [vmem:[%s4600 + $0x8] sm:$0x1] %v4611
        %v4613 = vld [vmem:[%s4600 + $0xc] sm:$0xf]
        %v4614 = vsel %vm4603, %v4303, %v4613
        %4615 = vst [vmem:[%s4600 + $0xc] sm:$0xf] %v4614
        %4616 = vst [vmem:[%s4600 + $0x10] sm:$0xf] %v4312
        %v4617 = vld [vmem:[%s4600 + $0x14] sm:$0x1]
        %v4618 = vsel %vm4609, %v4313, %v4617
        %4619 = vst [vmem:[%s4600 + $0x14] sm:$0x1] %v4618
        %v4620 = vld [vmem:[%s4600 + $0x18] sm:$0xf]
        %v4621 = vsel %vm4603, %v4320, %v4620
        %4622 = vst [vmem:[%s4600 + $0x18] sm:$0xf] %v4621
        %4623 = vst [vmem:[%s4600 + $0x1c] sm:$0xf] %v4329
        %v4624 = vld [vmem:[%s4600 + $0x20] sm:$0x1]
        %v4625 = vsel %vm4609, %v4330, %v4624
        %4626 = vst [vmem:[%s4600 + $0x20] sm:$0x1] %v4625
        %v4627 = vld [vmem:[%s4600 + $0x24] sm:$0xf]
        %v4628 = vsel %vm4603, %v4337, %v4627
        %4629 = vst [vmem:[%s4600 + $0x24] sm:$0xf] %v4628
        %4630 = vst [vmem:[%s4600 + $0x28] sm:$0xf] %v4346
        %v4631 = vld [vmem:[%s4600 + $0x2c] sm:$0x1]
        %v4632 = vsel %vm4609, %v4347, %v4631
        %4633 = vst [vmem:[%s4600 + $0x2c] sm:$0x1] %v4632
        %v4634 = vld [vmem:[%s4600 + $0x30] sm:$0xf]
        %v4635 = vsel %vm4603, %v4354, %v4634
        %4636 = vst [vmem:[%s4600 + $0x30] sm:$0xf] %v4635
        %4637 = vst [vmem:[%s4600 + $0x34] sm:$0xf] %v4363
        %v4638 = vld [vmem:[%s4600 + $0x38] sm:$0x1]
        %v4639 = vsel %vm4609, %v4364, %v4638
        %4640 = vst [vmem:[%s4600 + $0x38] sm:$0x1] %v4639
        %v4641 = vld [vmem:[%s4600 + $0x3c] sm:$0xf]
        %v4642 = vsel %vm4603, %v4371, %v4641
        %4643 = vst [vmem:[%s4600 + $0x3c] sm:$0xf] %v4642
        %4644 = vst [vmem:[%s4600 + $0x40] sm:$0xf] %v4380
        %v4645 = vld [vmem:[%s4600 + $0x44] sm:$0x1]
        %v4646 = vsel %vm4609, %v4381, %v4645
        %4647 = vst [vmem:[%s4600 + $0x44] sm:$0x1] %v4646
        %v4648 = vld [vmem:[%s4600 + $0x48] sm:$0xf]
        %v4649 = vsel %vm4603, %v4388, %v4648
        %4650 = vst [vmem:[%s4600 + $0x48] sm:$0xf] %v4649
        %4651 = vst [vmem:[%s4600 + $0x4c] sm:$0xf] %v4397
        %v4652 = vld [vmem:[%s4600 + $0x50] sm:$0x1]
        %v4653 = vsel %vm4609, %v4398, %v4652
        %4654 = vst [vmem:[%s4600 + $0x50] sm:$0x1] %v4653
        %v4655 = vld [vmem:[%s4600 + $0x54] sm:$0xf]
        %v4656 = vsel %vm4603, %v4405, %v4655
        %4657 = vst [vmem:[%s4600 + $0x54] sm:$0xf] %v4656
        %4658 = vst [vmem:[%s4600 + $0x58] sm:$0xf] %v4414
        %v4659 = vld [vmem:[%s4600 + $0x5c] sm:$0x1]
        %v4660 = vsel %vm4609, %v4415, %v4659
        %4661 = vst [vmem:[%s4600 + $0x5c] sm:$0x1] %v4660
        %v4662 = vld [vmem:[%s4600 + $0x60] sm:$0xf]
        %v4663 = vsel %vm4603, %v4422, %v4662
        %4664 = vst [vmem:[%s4600 + $0x60] sm:$0xf] %v4663
        %4665 = vst [vmem:[%s4600 + $0x64] sm:$0xf] %v4431
        %v4666 = vld [vmem:[%s4600 + $0x68] sm:$0x1]
        %v4667 = vsel %vm4609, %v4432, %v4666
        %4668 = vst [vmem:[%s4600 + $0x68] sm:$0x1] %v4667
        %v4669 = vld [vmem:[%s4600 + $0x6c] sm:$0xf]
        %v4670 = vsel %vm4603, %v4439, %v4669
        %4671 = vst [vmem:[%s4600 + $0x6c] sm:$0xf] %v4670
        %4672 = vst [vmem:[%s4600 + $0x70] sm:$0xf] %v4448
        %v4673 = vld [vmem:[%s4600 + $0x74] sm:$0x1]
        %v4674 = vsel %vm4609, %v4449, %v4673
        %4675 = vst [vmem:[%s4600 + $0x74] sm:$0x1] %v4674
        %v4676 = vld [vmem:[%s4600 + $0x78] sm:$0xf]
        %v4677 = vsel %vm4603, %v4456, %v4676
        %4678 = vst [vmem:[%s4600 + $0x78] sm:$0xf] %v4677
        %4679 = vst [vmem:[%s4600 + $0x7c] sm:$0xf] %v4465
        %v4680 = vld [vmem:[%s4600 + $0x80] sm:$0x1]
        %v4681 = vsel %vm4609, %v4466, %v4680
        %4682 = vst [vmem:[%s4600 + $0x80] sm:$0x1] %v4681
        %v4683 = vld [vmem:[%s4600 + $0x84] sm:$0xf]
        %v4684 = vsel %vm4603, %v4473, %v4683
        %4685 = vst [vmem:[%s4600 + $0x84] sm:$0xf] %v4684
        %4686 = vst [vmem:[%s4600 + $0x88] sm:$0xf] %v4482
        %v4687 = vld [vmem:[%s4600 + $0x8c] sm:$0x1]
        %v4688 = vsel %vm4609, %v4483, %v4687
        %4689 = vst [vmem:[%s4600 + $0x8c] sm:$0x1] %v4688
        %v4690 = vld [vmem:[%s4600 + $0x90] sm:$0xf]
        %v4691 = vsel %vm4603, %v4490, %v4690
        %4692 = vst [vmem:[%s4600 + $0x90] sm:$0xf] %v4691
        %4693 = vst [vmem:[%s4600 + $0x94] sm:$0xf] %v4499
        %v4694 = vld [vmem:[%s4600 + $0x98] sm:$0x1]
        %v4695 = vsel %vm4609, %v4500, %v4694
        %4696 = vst [vmem:[%s4600 + $0x98] sm:$0x1] %v4695
        %v4697 = vld [vmem:[%s4600 + $0x9c] sm:$0xf]
        %v4698 = vsel %vm4603, %v4507, %v4697
        %4699 = vst [vmem:[%s4600 + $0x9c] sm:$0xf] %v4698
        %4700 = vst [vmem:[%s4600 + $0xa0] sm:$0xf] %v4516
        %v4701 = vld [vmem:[%s4600 + $0xa4] sm:$0x1]
        %v4702 = vsel %vm4609, %v4517, %v4701
        %4703 = vst [vmem:[%s4600 + $0xa4] sm:$0x1] %v4702
        %v4704 = vld [vmem:[%s4600 + $0xa8] sm:$0xf]
        %v4705 = vsel %vm4603, %v4524, %v4704
        %4706 = vst [vmem:[%s4600 + $0xa8] sm:$0xf] %v4705
        %4707 = vst [vmem:[%s4600 + $0xac] sm:$0xf] %v4533
        %v4708 = vld [vmem:[%s4600 + $0xb0] sm:$0x1]
        %v4709 = vsel %vm4609, %v4534, %v4708
        %4710 = vst [vmem:[%s4600 + $0xb0] sm:$0x1] %v4709
        %v4711 = vld [vmem:[%s4600 + $0xb4] sm:$0xf]
        %v4712 = vsel %vm4603, %v4541, %v4711
        %4713 = vst [vmem:[%s4600 + $0xb4] sm:$0xf] %v4712
        %4714 = vst [vmem:[%s4600 + $0xb8] sm:$0xf] %v4550
        %v4715 = vld [vmem:[%s4600 + $0xbc] sm:$0x1]
        %v4716 = vsel %vm4609, %v4551, %v4715
        %4717 = vst [vmem:[%s4600 + $0xbc] sm:$0x1] %v4716
        %v4718 = vld [vmem:[%s4] sm:$0x1]
        %v4720 = vlaneseq
        %v4721 = vshrl.u32 %v4720, 7
        %v4722 = vsub.s32 0, %v4721
        %v4723 = vrot.slane %v4718, %v4722
        %4725 = vst [vmem:[#allocation3] sm:$0xff] %v4723
        %4726 = vst [vmem:[#allocation3 + $0x8] sm:$0xff] %v4723
        %4727 = vst [vmem:[#allocation3 + $0x10] sm:$0xff] %v4723
        %4728 = vst [vmem:[#allocation3 + $0x18] sm:$0xff] %v4723
        %4729 = vst [vmem:[#allocation3 + $0x20] sm:$0xff] %v4723
        %4730 = vst [vmem:[#allocation3 + $0x28] sm:$0xff] %v4723
        %4731 = vst [vmem:[#allocation3 + $0x30] sm:$0xff] %v4723
        %4732 = vst [vmem:[#allocation3 + $0x38] sm:$0xff] %v4723
        %4733 = vst [vmem:[#allocation3 + $0x40] sm:$0xff] %v4723
        %4734 = vst [vmem:[#allocation3 + $0x48] sm:$0xff] %v4723
        %4735 = vst [vmem:[#allocation3 + $0x50] sm:$0xff] %v4723
        %4736 = vst [vmem:[#allocation3 + $0x58] sm:$0xff] %v4723
        %4737 = vst [vmem:[#allocation3 + $0x60] sm:$0xff] %v4723
        %4738 = vst [vmem:[#allocation3 + $0x68] sm:$0xff] %v4723
        %4739 = vst [vmem:[#allocation3 + $0x70] sm:$0xff] %v4723
        %4740 = vst [vmem:[#allocation3 + $0x78] sm:$0xff] %v4723
        %4741 = vst [vmem:[#allocation3 + $0x80] sm:$0xff] %v4723
        %4742 = vst [vmem:[#allocation3 + $0x88] sm:$0xff] %v4723
        %4743 = vst [vmem:[#allocation3 + $0x90] sm:$0xff] %v4723
        %4744 = vst [vmem:[#allocation3 + $0x98] sm:$0xff] %v4723
        %4745 = vst [vmem:[#allocation3 + $0xa0] sm:$0xff] %v4723
        %4746 = vst [vmem:[#allocation3 + $0xa8] sm:$0xff] %v4723
        %4747 = vst [vmem:[#allocation3 + $0xb0] sm:$0xff] %v4723
        %4748 = vst [vmem:[#allocation3 + $0xb8] sm:$0xff] %v4723
        %4749 = vst [vmem:[#allocation3 + $0xc0] sm:$0xff] %v4723
        %4750 = vst [vmem:[#allocation3 + $0xc8] sm:$0xff] %v4723
        %4751 = vst [vmem:[#allocation3 + $0xd0] sm:$0xff] %v4723
        %4752 = vst [vmem:[#allocation3 + $0xd8] sm:$0xff] %v4723
        %4753 = vst [vmem:[#allocation3 + $0xe0] sm:$0xff] %v4723
        %4754 = vst [vmem:[#allocation3 + $0xe8] sm:$0xff] %v4723
        %4755 = vst [vmem:[#allocation3 + $0xf0] sm:$0xff] %v4723
        %4756 = vst [vmem:[#allocation3 + $0xf8] sm:$0xff] %v4723
        %v4757 = vld [vmem:[#allocation2] sm:$0xf]
        %v4758 = vld [vmem:[#allocation2 + $0x4] sm:$0xf]
        %v4759 = vld [vmem:[#allocation2 + $0x8] sm:$0x1]
        %v4760 = vld [vmem:[#allocation2 + $0xc] sm:$0xf]
        %v4761 = vld [vmem:[#allocation2 + $0x10] sm:$0xf]
        %v4762 = vld [vmem:[#allocation2 + $0x14] sm:$0x1]
        %v4763 = vld [vmem:[#allocation2 + $0x18] sm:$0xf]
        %v4764 = vld [vmem:[#allocation2 + $0x1c] sm:$0xf]
        %v4765 = vld [vmem:[#allocation2 + $0x20] sm:$0x1]
        %v4766 = vld [vmem:[#allocation2 + $0x24] sm:$0xf]
        %v4767 = vld [vmem:[#allocation2 + $0x28] sm:$0xf]
        %v4768 = vld [vmem:[#allocation2 + $0x2c] sm:$0x1]
        %v4769 = vld [vmem:[#allocation2 + $0x30] sm:$0xf]
        %v4770 = vld [vmem:[#allocation2 + $0x34] sm:$0xf]
        %v4771 = vld [vmem:[#allocation2 + $0x38] sm:$0x1]
        %v4772 = vld [vmem:[#allocation2 + $0x3c] sm:$0xf]
        %v4773 = vld [vmem:[#allocation2 + $0x40] sm:$0xf]
        %v4774 = vld [vmem:[#allocation2 + $0x44] sm:$0x1]
        %v4775 = vld [vmem:[#allocation2 + $0x48] sm:$0xf]
        %v4776 = vld [vmem:[#allocation2 + $0x4c] sm:$0xf]
        %v4777 = vld [vmem:[#allocation2 + $0x50] sm:$0x1]
        %v4778 = vld [vmem:[#allocation2 + $0x54] sm:$0xf]
        %v4779 = vld [vmem:[#allocation2 + $0x58] sm:$0xf]
        %v4780 = vld [vmem:[#allocation2 + $0x5c] sm:$0x1]
        %v4781 = vld [vmem:[#allocation2 + $0x60] sm:$0xf]
        %v4782 = vld [vmem:[#allocation2 + $0x64] sm:$0xf]
        %v4783 = vld [vmem:[#allocation2 + $0x68] sm:$0x1]
        %v4784 = vld [vmem:[#allocation2 + $0x6c] sm:$0xf]
        %v4785 = vld [vmem:[#allocation2 + $0x70] sm:$0xf]
        %v4786 = vld [vmem:[#allocation2 + $0x74] sm:$0x1]
        %v4787 = vld [vmem:[#allocation2 + $0x78] sm:$0xf]
        %v4788 = vld [vmem:[#allocation2 + $0x7c] sm:$0xf]
        %v4789 = vld [vmem:[#allocation2 + $0x80] sm:$0x1]
        %v4790 = vld [vmem:[#allocation2 + $0x84] sm:$0xf]
        %v4791 = vld [vmem:[#allocation2 + $0x88] sm:$0xf]
        %v4792 = vld [vmem:[#allocation2 + $0x8c] sm:$0x1]
        %v4793 = vld [vmem:[#allocation2 + $0x90] sm:$0xf]
        %v4794 = vld [vmem:[#allocation2 + $0x94] sm:$0xf]
        %v4795 = vld [vmem:[#allocation2 + $0x98] sm:$0x1]
        %v4796 = vld [vmem:[#allocation2 + $0x9c] sm:$0xf]
        %v4797 = vld [vmem:[#allocation2 + $0xa0] sm:$0xf]
        %v4798 = vld [vmem:[#allocation2 + $0xa4] sm:$0x1]
        %v4799 = vld [vmem:[#allocation2 + $0xa8] sm:$0xf]
        %v4800 = vld [vmem:[#allocation2 + $0xac] sm:$0xf]
        %v4801 = vld [vmem:[#allocation2 + $0xb0] sm:$0x1]
        %v4802 = vld [vmem:[#allocation2 + $0xb4] sm:$0xf]
        %v4803 = vld [vmem:[#allocation2 + $0xb8] sm:$0xf]
        %v4804 = vld [vmem:[#allocation2 + $0xbc] sm:$0x1]
        %v4805 = vld [vmem:[#allocation2 + $0xc0] sm:$0xf]
        %v4806 = vld [vmem:[#allocation2 + $0xc4] sm:$0xf]
        %v4807 = vld [vmem:[#allocation2 + $0xc8] sm:$0x1]
        %v4808 = vld [vmem:[#allocation2 + $0xcc] sm:$0xf]
        %v4809 = vld [vmem:[#allocation2 + $0xd0] sm:$0xf]
        %v4810 = vld [vmem:[#allocation2 + $0xd4] sm:$0x1]
        %v4811 = vld [vmem:[#allocation3] sm:$0xff]
        %v4812 = vld [vmem:[#allocation3 + $0x8] sm:$0xff]
        %v4813 = vld [vmem:[#allocation3 + $0x10] sm:$0xff]
        %v4814 = vld [vmem:[#allocation3 + $0x18] sm:$0xff]
        %v4815 = vld [vmem:[#allocation3 + $0x20] sm:$0xff]
        %v4816 = vld [vmem:[#allocation3 + $0x28] sm:$0xff]
        %v4817 = vld [vmem:[#allocation3 + $0x30] sm:$0xff]
        %v4818 = vld [vmem:[#allocation3 + $0x38] sm:$0xff]
        %v4819 = vld [vmem:[#allocation3 + $0x40] sm:$0xff]
        %v4820 = vld [vmem:[#allocation3 + $0x48] sm:$0xff]
        %v4821 = vld [vmem:[#allocation3 + $0x50] sm:$0xff]
        %v4822 = vld [vmem:[#allocation3 + $0x58] sm:$0xff]
        %v4823 = vld [vmem:[#allocation3 + $0x60] sm:$0xff]
        %v4824 = vld [vmem:[#allocation3 + $0x68] sm:$0xff]
        %v4825 = vld [vmem:[#allocation3 + $0x70] sm:$0xff]
        %v4826 = vld [vmem:[#allocation3 + $0x78] sm:$0xff]
        %v4827 = vld [vmem:[#allocation3 + $0x80] sm:$0xff]
        %v4828 = vld [vmem:[#allocation3 + $0x88] sm:$0xff]
        %v4829 = vld [vmem:[#allocation3 + $0x90] sm:$0xff]
        %v4830 = vld [vmem:[#allocation3 + $0x98] sm:$0xff]
        %v4831 = vld [vmem:[#allocation3 + $0xa0] sm:$0xff]
        %v4832 = vld [vmem:[#allocation3 + $0xa8] sm:$0xff]
        %v4833 = vld [vmem:[#allocation3 + $0xb0] sm:$0xff]
        %v4834 = vld [vmem:[#allocation3 + $0xb8] sm:$0xff]
        %v4835 = vld [vmem:[#allocation3 + $0xc0] sm:$0xff]
        %v4836 = vld [vmem:[#allocation3 + $0xc8] sm:$0xff]
        %v4837 = vld [vmem:[#allocation3 + $0xd0] sm:$0xff]
        %v4838 = vld [vmem:[#allocation3 + $0xd8] sm:$0xff]
        %v4839 = vld [vmem:[#allocation3 + $0xe0] sm:$0xff]
        %v4840 = vld [vmem:[#allocation3 + $0xe8] sm:$0xff]
        %v4841 = vld [vmem:[#allocation3 + $0xf0] sm:$0xff]
        %v4842 = vld [vmem:[#allocation3 + $0xf8] sm:$0xff]
        %v4843 = vld [vmem:[#allocation4] sm:$0xf]
        %v4844 = vld [vmem:[#allocation4 + $0x4] sm:$0xf]
        %v4845 = vld [vmem:[#allocation4 + $0x8] sm:$0xf]
        %v4846 = vld [vmem:[#allocation4 + $0xc] sm:$0xf]
        %v4847 = vld [vmem:[#allocation4 + $0x10] sm:$0xf]
        %v4848 = vld [vmem:[#allocation4 + $0x14] sm:$0xf]
        %v4849 = vld [vmem:[#allocation4 + $0x18] sm:$0xf]
        %v4850 = vld [vmem:[#allocation4 + $0x1c] sm:$0xf]
        %v4851 = vld [vmem:[#allocation4 + $0x20] sm:$0xf]
        %v4852 = vld [vmem:[#allocation4 + $0x24] sm:$0xf]
        %v4853 = vld [vmem:[#allocation4 + $0x28] sm:$0xf]
        %v4854 = vld [vmem:[#allocation4 + $0x2c] sm:$0xf]
        %v4855 = vld [vmem:[#allocation4 + $0x30] sm:$0xf]
        %v4856 = vld [vmem:[#allocation4 + $0x34] sm:$0xf]
        %v4857 = vld [vmem:[#allocation4 + $0x38] sm:$0xf]
        %v4858 = vld [vmem:[#allocation4 + $0x3c] sm:$0xf]
        %v4891 = vunpack.c.l.b16 %v4757
        %v4892 = vunpack.c.l.b16 %v4758
        %v4893 = vunpack.c.l.b16 %v4760
        %v4894 = vunpack.c.l.b16 %v4761
        %v4895 = vunpack.c.l.b16 %v4763
        %v4896 = vunpack.c.l.b16 %v4764
        %v4897 = vunpack.c.l.b16 %v4766
        %v4898 = vunpack.c.l.b16 %v4767
        %v4899 = vunpack.c.l.b16 %v4769
        %v4900 = vunpack.c.l.b16 %v4770
        %v4901 = vunpack.c.l.b16 %v4772
        %v4902 = vunpack.c.l.b16 %v4773
        %v4903 = vunpack.c.l.b16 %v4775
        %v4904 = vunpack.c.l.b16 %v4776
        %v4905 = vunpack.c.l.b16 %v4778
        %v4906 = vunpack.c.l.b16 %v4779
        %v4907 = vunpack.c.l.b16 %v4781
        %v4908 = vunpack.c.l.b16 %v4782
        %v4909 = vunpack.c.l.b16 %v4784
        %v4910 = vunpack.c.l.b16 %v4785
        %v4911 = vunpack.c.l.b16 %v4787
        %v4912 = vunpack.c.l.b16 %v4788
        %v4913 = vunpack.c.l.b16 %v4790
        %v4914 = vunpack.c.l.b16 %v4791
        %v4915 = vunpack.c.l.b16 %v4793
        %v4916 = vunpack.c.l.b16 %v4794
        %v4917 = vunpack.c.l.b16 %v4796
        %v4918 = vunpack.c.l.b16 %v4797
        %v4919 = vunpack.c.l.b16 %v4799
        %v4920 = vunpack.c.l.b16 %v4800
        %v4921 = vunpack.c.l.b16 %v4802
        %v4922 = vunpack.c.l.b16 %v4803
        %v4923 = vpack.c.b16 %v4892, %v4891
        %v4924 = vpack.c.b16 %v4894, %v4893
        %v4925 = vpack.c.b16 %v4896, %v4895
        %v4926 = vpack.c.b16 %v4898, %v4897
        %v4927 = vpack.c.b16 %v4900, %v4899
        %v4928 = vpack.c.b16 %v4902, %v4901
        %v4929 = vpack.c.b16 %v4904, %v4903
        %v4930 = vpack.c.b16 %v4906, %v4905
        %v4931 = vpack.c.b16 %v4908, %v4907
        %v4932 = vpack.c.b16 %v4910, %v4909
        %v4933 = vpack.c.b16 %v4912, %v4911
        %v4934 = vpack.c.b16 %v4914, %v4913
        %v4935 = vpack.c.b16 %v4916, %v4915
        %v4936 = vpack.c.b16 %v4918, %v4917
        %v4937 = vpack.c.b16 %v4920, %v4919
        %v4938 = vpack.c.b16 %v4922, %v4921
        %v4971 = vunpack.c.l.b16 %v4843
        %v4972 = vunpack.c.l.b16 %v4844
        %v4973 = vunpack.c.l.b16 %v4845
        %v4974 = vunpack.c.l.b16 %v4846
        %v4975 = vunpack.c.l.b16 %v4847
        %v4976 = vunpack.c.l.b16 %v4848
        %v4977 = vunpack.c.l.b16 %v4849
        %v4978 = vunpack.c.l.b16 %v4850
        %v4979 = vunpack.c.l.b16 %v4851
        %v4980 = vunpack.c.l.b16 %v4852
        %v4981 = vunpack.c.l.b16 %v4853
        %v4982 = vunpack.c.l.b16 %v4854
        %v4983 = vunpack.c.l.b16 %v4855
        %v4984 = vunpack.c.l.b16 %v4856
        %v4985 = vunpack.c.l.b16 %v4857
        %v4986 = vunpack.c.l.b16 %v4858
        %v4987 = vpack.c.b16 %v4972, %v4971
        %v4988 = vpack.c.b16 %v4974, %v4973
        %v4989 = vpack.c.b16 %v4976, %v4975
        %v4990 = vpack.c.b16 %v4978, %v4977
        %v4991 = vpack.c.b16 %v4980, %v4979
        %v4992 = vpack.c.b16 %v4982, %v4981
        %v4993 = vpack.c.b16 %v4984, %v4983
        %v4994 = vpack.c.b16 %v4986, %v4985
        %5003 = vmatprep.subr.bf16.mxu0 0
        %5004 = vmatpush1.bf16.msra.mxu0 %v4987
        %5005 = vmatprep.subr.bf16.mxu0 0
        %5006 = vmatpush1.bf16.msra.mxu0 %v4988
        %5007 = vmatprep.subr.bf16.mxu0 0
        %5008 = vmatpush1.bf16.msra.mxu0 %v4989
        %5009 = vmatprep.subr.bf16.mxu0 0
        %5010 = vmatpush1.bf16.msra.mxu0 %v4990
        %5011 = vmatprep.subr.bf16.mxu0 0
        %5012 = vmatpush1.bf16.msra.mxu0 %v4991
        %5013 = vmatprep.subr.bf16.mxu0 0
        %5014 = vmatpush1.bf16.msra.mxu0 %v4992
        %5015 = vmatprep.subr.bf16.mxu0 0
        %5016 = vmatpush1.bf16.msra.mxu0 %v4993
        %5017 = vmatprep.subr.bf16.mxu0 0
        %5018 = vmatpush1.bf16.msra.mxu0 %v4994
        %5019 = vmatprep.subr.bf16.mxu0 0
        %5020 = vmatpush1.bf16.msra.mxu0 0
        %5021 = vmatprep.subr.bf16.mxu0 0
        %5022 = vmatpush1.bf16.msra.mxu0 0
        %5023 = vmatprep.subr.bf16.mxu0 0
        %5024 = vmatpush1.bf16.msra.mxu0 0
        %5025 = vmatprep.subr.bf16.mxu0 0
        %5026 = vmatpush1.bf16.msra.mxu0 0
        %5027 = vmatprep.subr.bf16.mxu0 0
        %5028 = vmatpush1.bf16.msra.mxu0 0
        %5029 = vmatprep.subr.bf16.mxu0 0
        %5030 = vmatpush1.bf16.msra.mxu0 0
        %5031 = vmatprep.subr.bf16.mxu0 0
        %5032 = vmatpush1.bf16.msra.mxu0 0
        %5033 = vmatprep.subr.bf16.mxu0 0
        %5034 = vmatpush1.bf16.msra.mxu0 0
        %5035 = vmatprep.mubr.bf16.mxu0 0
        %5036 = vmatmul.mubr.bf16.gmra.mrb[0].mxu0 %v4923
        %v5037 = vpop.f32.mrb[0].mxu0
        %v5038 = vadd.f32 0.0, %v5037
        %v5039 = vpop.f32.mrb[0].mxu0
        %v5040 = vpop.f32.mrb[0].mxu0
        %v5041 = vadd.f32 0.0, %v5040
        %v5042 = vpop.f32.mrb[0].mxu0
        %5043 = vmatprep.mubr.bf16.mxu0 0
        %5044 = vmatmul.mubr.bf16.gmra.mrb[0].mxu0 %v4924
        %v5045 = vpop.f32.mrb[0].mxu0
        %v5046 = vadd.f32 0.0, %v5045
        %v5047 = vpop.f32.mrb[0].mxu0
        %v5048 = vpop.f32.mrb[0].mxu0
        %v5049 = vadd.f32 0.0, %v5048
        %v5050 = vpop.f32.mrb[0].mxu0
        %5051 = vmatprep.mubr.bf16.mxu0 0
        %5052 = vmatmul.mubr.bf16.gmra.mrb[0].mxu0 %v4925
        %v5053 = vpop.f32.mrb[0].mxu0
        %v5054 = vadd.f32 0.0, %v5053
        %v5055 = vpop.f32.mrb[0].mxu0
        %v5056 = vpop.f32.mrb[0].mxu0
        %v5057 = vadd.f32 0.0, %v5056
        %v5058 = vpop.f32.mrb[0].mxu0
        %5059 = vmatprep.mubr.bf16.mxu0 0
        %5060 = vmatmul.mubr.bf16.gmra.mrb[0].mxu0 %v4926
        %v5061 = vpop.f32.mrb[0].mxu0
        %v5062 = vadd.f32 0.0, %v5061
        %v5063 = vpop.f32.mrb[0].mxu0
        %v5064 = vpop.f32.mrb[0].mxu0
        %v5065 = vadd.f32 0.0, %v5064
        %v5066 = vpop.f32.mrb[0].mxu0
        %5067 = vmatprep.mubr.bf16.mxu0 0
        %5068 = vmatmul.mubr.bf16.gmra.mrb[0].mxu0 %v4927
        %v5069 = vpop.f32.mrb[0].mxu0
        %v5070 = vadd.f32 0.0, %v5069
        %v5071 = vpop.f32.mrb[0].mxu0
        %v5072 = vpop.f32.mrb[0].mxu0
        %v5073 = vadd.f32 0.0, %v5072
        %v5074 = vpop.f32.mrb[0].mxu0
        %5075 = vmatprep.mubr.bf16.mxu0 0
        %5076 = vmatmul.mubr.bf16.gmra.mrb[0].mxu0 %v4928
        %v5077 = vpop.f32.mrb[0].mxu0
        %v5078 = vadd.f32 0.0, %v5077
        %v5079 = vpop.f32.mrb[0].mxu0
        %v5080 = vpop.f32.mrb[0].mxu0
        %v5081 = vadd.f32 0.0, %v5080
        %v5082 = vpop.f32.mrb[0].mxu0
        %5083 = vmatprep.mubr.bf16.mxu0 0
        %5084 = vmatmul.mubr.bf16.gmra.mrb[0].mxu0 %v4929
        %v5085 = vpop.f32.mrb[0].mxu0
        %v5086 = vadd.f32 0.0, %v5085
        %v5087 = vpop.f32.mrb[0].mxu0
        %v5088 = vpop.f32.mrb[0].mxu0
        %v5089 = vadd.f32 0.0, %v5088
        %v5090 = vpop.f32.mrb[0].mxu0
        %5091 = vmatprep.mubr.bf16.mxu0 0
        %5092 = vmatmul.mubr.bf16.gmra.mrb[0].mxu0 %v4930
        %v5093 = vpop.f32.mrb[0].mxu0
        %v5094 = vadd.f32 0.0, %v5093
        %v5095 = vpop.f32.mrb[0].mxu0
        %v5096 = vpop.f32.mrb[0].mxu0
        %v5097 = vadd.f32 0.0, %v5096
        %v5098 = vpop.f32.mrb[0].mxu0
        %5099 = vmatprep.mubr.bf16.mxu0 0
        %5100 = vmatmul.mubr.bf16.gmra.mrb[0].mxu0 %v4931
        %v5101 = vpop.f32.mrb[0].mxu0
        %v5102 = vadd.f32 0.0, %v5101
        %v5103 = vpop.f32.mrb[0].mxu0
        %v5104 = vpop.f32.mrb[0].mxu0
        %v5105 = vadd.f32 0.0, %v5104
        %v5106 = vpop.f32.mrb[0].mxu0
        %5107 = vmatprep.mubr.bf16.mxu0 0
        %5108 = vmatmul.mubr.bf16.gmra.mrb[0].mxu0 %v4932
        %v5109 = vpop.f32.mrb[0].mxu0
        %v5110 = vadd.f32 0.0, %v5109
        %v5111 = vpop.f32.mrb[0].mxu0
        %v5112 = vpop.f32.mrb[0].mxu0
        %v5113 = vadd.f32 0.0, %v5112
        %v5114 = vpop.f32.mrb[0].mxu0
        %5115 = vmatprep.mubr.bf16.mxu0 0
        %5116 = vmatmul.mubr.bf16.gmra.mrb[0].mxu0 %v4933
        %v5117 = vpop.f32.mrb[0].mxu0
        %v5118 = vadd.f32 0.0, %v5117
        %v5119 = vpop.f32.mrb[0].mxu0
        %v5120 = vpop.f32.mrb[0].mxu0
        %v5121 = vadd.f32 0.0, %v5120
        %v5122 = vpop.f32.mrb[0].mxu0
        %5123 = vmatprep.mubr.bf16.mxu0 0
        %5124 = vmatmul.mubr.bf16.gmra.mrb[0].mxu0 %v4934
        %v5125 = vpop.f32.mrb[0].mxu0
        %v5126 = vadd.f32 0.0, %v5125
        %v5127 = vpop.f32.mrb[0].mxu0
        %v5128 = vpop.f32.mrb[0].mxu0
        %v5129 = vadd.f32 0.0, %v5128
        %v5130 = vpop.f32.mrb[0].mxu0
        %5131 = vmatprep.mubr.bf16.mxu0 0
        %5132 = vmatmul.mubr.bf16.gmra.mrb[0].mxu0 %v4935
        %v5133 = vpop.f32.mrb[0].mxu0
        %v5134 = vadd.f32 0.0, %v5133
        %v5135 = vpop.f32.mrb[0].mxu0
        %v5136 = vpop.f32.mrb[0].mxu0
        %v5137 = vadd.f32 0.0, %v5136
        %v5138 = vpop.f32.mrb[0].mxu0
        %5139 = vmatprep.mubr.bf16.mxu0 0
        %5140 = vmatmul.mubr.bf16.gmra.mrb[0].mxu0 %v4936
        %v5141 = vpop.f32.mrb[0].mxu0
        %v5142 = vadd.f32 0.0, %v5141
        %v5143 = vpop.f32.mrb[0].mxu0
        %v5144 = vpop.f32.mrb[0].mxu0
        %v5145 = vadd.f32 0.0, %v5144
        %v5146 = vpop.f32.mrb[0].mxu0
        %5147 = vmatprep.mubr.bf16.mxu0 0
        %5148 = vmatmul.mubr.bf16.gmra.mrb[0].mxu0 %v4937
        %v5149 = vpop.f32.mrb[0].mxu0
        %v5150 = vadd.f32 0.0, %v5149
        %v5151 = vpop.f32.mrb[0].mxu0
        %v5152 = vpop.f32.mrb[0].mxu0
        %v5153 = vadd.f32 0.0, %v5152
        %v5154 = vpop.f32.mrb[0].mxu0
        %5155 = vmatprep.mubr.bf16.mxu0 0
        %5156 = vmatmul.mubr.bf16.gmra.mrb[0].mxu0 %v4938
        %v5157 = vpop.f32.mrb[0].mxu0
        %v5158 = vadd.f32 0.0, %v5157
        %v5159 = vpop.f32.mrb[0].mxu0
        %v5160 = vpop.f32.mrb[0].mxu0
        %v5161 = vadd.f32 0.0, %v5160
        %v5162 = vpop.f32.mrb[0].mxu0
        %5163 = vdwg.mxu0
        %v5164 = vadd.f32 %v4811, %v5038
        %v5165 = vadd.f32 %v4812, %v5041
        %v5166 = vadd.f32 %v4813, %v5046
        %v5167 = vadd.f32 %v4814, %v5049
        %v5168 = vadd.f32 %v4815, %v5054
        %v5169 = vadd.f32 %v4816, %v5057
        %v5170 = vadd.f32 %v4817, %v5062
        %v5171 = vadd.f32 %v4818, %v5065
        %v5172 = vadd.f32 %v4819, %v5070
        %v5173 = vadd.f32 %v4820, %v5073
        %v5174 = vadd.f32 %v4821, %v5078
        %v5175 = vadd.f32 %v4822, %v5081
        %v5176 = vadd.f32 %v4823, %v5086
        %v5177 = vadd.f32 %v4824, %v5089
        %v5178 = vadd.f32 %v4825, %v5094
        %v5179 = vadd.f32 %v4826, %v5097
        %v5180 = vadd.f32 %v4827, %v5102
        %v5181 = vadd.f32 %v4828, %v5105
        %v5182 = vadd.f32 %v4829, %v5110
        %v5183 = vadd.f32 %v4830, %v5113
        %v5184 = vadd.f32 %v4831, %v5118
        %v5185 = vadd.f32 %v4832, %v5121
        %v5186 = vadd.f32 %v4833, %v5126
        %v5187 = vadd.f32 %v4834, %v5129
        %v5188 = vadd.f32 %v4835, %v5134
        %v5189 = vadd.f32 %v4836, %v5137
        %v5190 = vadd.f32 %v4837, %v5142
        %v5191 = vadd.f32 %v4838, %v5145
        %v5192 = vadd.f32 %v4839, %v5150
        %v5193 = vadd.f32 %v4840, %v5153
        %v5194 = vadd.f32 %v4841, %v5158
        %v5195 = vadd.f32 %v4842, %v5161
        %5196 = vst [vmem:[#allocation3] sm:$0xff] %v5164
        %5197 = vst [vmem:[#allocation3 + $0x8] sm:$0xff] %v5165
        %5198 = vst [vmem:[#allocation3 + $0x10] sm:$0xff] %v5166
        %5199 = vst [vmem:[#allocation3 + $0x18] sm:$0xff] %v5167
        %5200 = vst [vmem:[#allocation3 + $0x20] sm:$0xff] %v5168
        %5201 = vst [vmem:[#allocation3 + $0x28] sm:$0xff] %v5169
        %5202 = vst [vmem:[#allocation3 + $0x30] sm:$0xff] %v5170
        %5203 = vst [vmem:[#allocation3 + $0x38] sm:$0xff] %v5171
        %5204 = vst [vmem:[#allocation3 + $0x40] sm:$0xff] %v5172
        %5205 = vst [vmem:[#allocation3 + $0x48] sm:$0xff] %v5173
        %5206 = vst [vmem:[#allocation3 + $0x50] sm:$0xff] %v5174
        %5207 = vst [vmem:[#allocation3 + $0x58] sm:$0xff] %v5175
        %5208 = vst [vmem:[#allocation3 + $0x60] sm:$0xff] %v5176
        %5209 = vst [vmem:[#allocation3 + $0x68] sm:$0xff] %v5177
        %5210 = vst [vmem:[#allocation3 + $0x70] sm:$0xff] %v5178
        %5211 = vst [vmem:[#allocation3 + $0x78] sm:$0xff] %v5179
        %5212 = vst [vmem:[#allocation3 + $0x80] sm:$0xff] %v5180
        %5213 = vst [vmem:[#allocation3 + $0x88] sm:$0xff] %v5181
        %5214 = vst [vmem:[#allocation3 + $0x90] sm:$0xff] %v5182
        %5215 = vst [vmem:[#allocation3 + $0x98] sm:$0xff] %v5183
        %5216 = vst [vmem:[#allocation3 + $0xa0] sm:$0xff] %v5184
        %5217 = vst [vmem:[#allocation3 + $0xa8] sm:$0xff] %v5185
        %5218 = vst [vmem:[#allocation3 + $0xb0] sm:$0xff] %v5186
        %5219 = vst [vmem:[#allocation3 + $0xb8] sm:$0xff] %v5187
        %5220 = vst [vmem:[#allocation3 + $0xc0] sm:$0xff] %v5188
        %5221 = vst [vmem:[#allocation3 + $0xc8] sm:$0xff] %v5189
        %5222 = vst [vmem:[#allocation3 + $0xd0] sm:$0xff] %v5190
        %5223 = vst [vmem:[#allocation3 + $0xd8] sm:$0xff] %v5191
        %5224 = vst [vmem:[#allocation3 + $0xe0] sm:$0xff] %v5192
        %5225 = vst [vmem:[#allocation3 + $0xe8] sm:$0xff] %v5193
        %5226 = vst [vmem:[#allocation3 + $0xf0] sm:$0xff] %v5194
        %5227 = vst [vmem:[#allocation3 + $0xf8] sm:$0xff] %v5195
        %v5229 = vshrl.u32 %v4757, 16
        %v5231 = vrot.slane %v5229, 4
        %v5232 = vshll.u32 %v4757, 16
        %v5234 = vrot.slane %v5232, 5
        %v5235 = vor.u32 %v5231, %v5234
        %v5236 = vrot.slane %v5235, 4
        %v5238 = vshll.u32 %v4758, 16
        %v5240 = vrot.slane %v5238, 5
        %v5241 = vsel %vm751, %v5236, %v5240
        %v5242 = vshrl.u32 %v4758, 16
        %v5244 = vrot.slane %v5242, 4
        %v5245 = vor.u32 %v5244, %v5240
        %v5246 = vrot.slane %v5245, 4
        %v5248 = vshll.u32 %v4759, 16
        %v5250 = vrot.slane %v5248, 5
        %v5251 = vsel %vm751, %v5246, %v5250
        %v5253 = vshrl.u32 %v4760, 16
        %v5255 = vrot.slane %v5253, 4
        %v5256 = vshll.u32 %v4760, 16
        %v5258 = vrot.slane %v5256, 5
        %v5259 = vor.u32 %v5255, %v5258
        %v5260 = vrot.slane %v5259, 4
        %v5262 = vshll.u32 %v4761, 16
        %v5264 = vrot.slane %v5262, 5
        %v5265 = vsel %vm751, %v5260, %v5264
        %v5266 = vshrl.u32 %v4761, 16
        %v5268 = vrot.slane %v5266, 4
        %v5269 = vor.u32 %v5268, %v5264
        %v5270 = vrot.slane %v5269, 4
        %v5272 = vshll.u32 %v4762, 16
        %v5274 = vrot.slane %v5272, 5
        %v5275 = vsel %vm751, %v5270, %v5274
        %v5277 = vshrl.u32 %v4763, 16
        %v5279 = vrot.slane %v5277, 4
        %v5280 = vshll.u32 %v4763, 16
        %v5282 = vrot.slane %v5280, 5
        %v5283 = vor.u32 %v5279, %v5282
        %v5284 = vrot.slane %v5283, 4
        %v5286 = vshll.u32 %v4764, 16
        %v5288 = vrot.slane %v5286, 5
        %v5289 = vsel %vm751, %v5284, %v5288
        %v5290 = vshrl.u32 %v4764, 16
        %v5292 = vrot.slane %v5290, 4
        %v5293 = vor.u32 %v5292, %v5288
        %v5294 = vrot.slane %v5293, 4
        %v5296 = vshll.u32 %v4765, 16
        %v5298 = vrot.slane %v5296, 5
        %v5299 = vsel %vm751, %v5294, %v5298
        %v5301 = vshrl.u32 %v4766, 16
        %v5303 = vrot.slane %v5301, 4
        %v5304 = vshll.u32 %v4766, 16
        %v5306 = vrot.slane %v5304, 5
        %v5307 = vor.u32 %v5303, %v5306
        %v5308 = vrot.slane %v5307, 4
        %v5310 = vshll.u32 %v4767, 16
        %v5312 = vrot.slane %v5310, 5
        %v5313 = vsel %vm751, %v5308, %v5312
        %v5314 = vshrl.u32 %v4767, 16
        %v5316 = vrot.slane %v5314, 4
        %v5317 = vor.u32 %v5316, %v5312
        %v5318 = vrot.slane %v5317, 4
        %v5320 = vshll.u32 %v4768, 16
        %v5322 = vrot.slane %v5320, 5
        %v5323 = vsel %vm751, %v5318, %v5322
        %v5325 = vshrl.u32 %v4769, 16
        %v5327 = vrot.slane %v5325, 4
        %v5328 = vshll.u32 %v4769, 16
        %v5330 = vrot.slane %v5328, 5
        %v5331 = vor.u32 %v5327, %v5330
        %v5332 = vrot.slane %v5331, 4
        %v5334 = vshll.u32 %v4770, 16
        %v5336 = vrot.slane %v5334, 5
        %v5337 = vsel %vm751, %v5332, %v5336
        %v5338 = vshrl.u32 %v4770, 16
        %v5340 = vrot.slane %v5338, 4
        %v5341 = vor.u32 %v5340, %v5336
        %v5342 = vrot.slane %v5341, 4
        %v5344 = vshll.u32 %v4771, 16
        %v5346 = vrot.slane %v5344, 5
        %v5347 = vsel %vm751, %v5342, %v5346
        %v5349 = vshrl.u32 %v4772, 16
        %v5351 = vrot.slane %v5349, 4
        %v5352 = vshll.u32 %v4772, 16
        %v5354 = vrot.slane %v5352, 5
        %v5355 = vor.u32 %v5351, %v5354
        %v5356 = vrot.slane %v5355, 4
        %v5358 = vshll.u32 %v4773, 16
        %v5360 = vrot.slane %v5358, 5
        %v5361 = vsel %vm751, %v5356, %v5360
        %v5362 = vshrl.u32 %v4773, 16
        %v5364 = vrot.slane %v5362, 4
        %v5365 = vor.u32 %v5364, %v5360
        %v5366 = vrot.slane %v5365, 4
        %v5368 = vshll.u32 %v4774, 16
        %v5370 = vrot.slane %v5368, 5
        %v5371 = vsel %vm751, %v5366, %v5370
        %v5373 = vshrl.u32 %v4775, 16
        %v5375 = vrot.slane %v5373, 4
        %v5376 = vshll.u32 %v4775, 16
        %v5378 = vrot.slane %v5376, 5
        %v5379 = vor.u32 %v5375, %v5378
        %v5380 = vrot.slane %v5379, 4
        %v5382 = vshll.u32 %v4776, 16
        %v5384 = vrot.slane %v5382, 5
        %v5385 = vsel %vm751, %v5380, %v5384
        %v5386 = vshrl.u32 %v4776, 16
        %v5388 = vrot.slane %v5386, 4
        %v5389 = vor.u32 %v5388, %v5384
        %v5390 = vrot.slane %v5389, 4
        %v5392 = vshll.u32 %v4777, 16
        %v5394 = vrot.slane %v5392, 5
        %v5395 = vsel %vm751, %v5390, %v5394
        %v5397 = vshrl.u32 %v4778, 16
        %v5399 = vrot.slane %v5397, 4
        %v5400 = vshll.u32 %v4778, 16
        %v5402 = vrot.slane %v5400, 5
        %v5403 = vor.u32 %v5399, %v5402
        %v5404 = vrot.slane %v5403, 4
        %v5406 = vshll.u32 %v4779, 16
        %v5408 = vrot.slane %v5406, 5
        %v5409 = vsel %vm751, %v5404, %v5408
        %v5410 = vshrl.u32 %v4779, 16
        %v5412 = vrot.slane %v5410, 4
        %v5413 = vor.u32 %v5412, %v5408
        %v5414 = vrot.slane %v5413, 4
        %v5416 = vshll.u32 %v4780, 16
        %v5418 = vrot.slane %v5416, 5
        %v5419 = vsel %vm751, %v5414, %v5418
        %v5421 = vshrl.u32 %v4781, 16
        %v5423 = vrot.slane %v5421, 4
        %v5424 = vshll.u32 %v4781, 16
        %v5426 = vrot.slane %v5424, 5
        %v5427 = vor.u32 %v5423, %v5426
        %v5428 = vrot.slane %v5427, 4
        %v5430 = vshll.u32 %v4782, 16
        %v5432 = vrot.slane %v5430, 5
        %v5433 = vsel %vm751, %v5428, %v5432
        %v5434 = vshrl.u32 %v4782, 16
        %v5436 = vrot.slane %v5434, 4
        %v5437 = vor.u32 %v5436, %v5432
        %v5438 = vrot.slane %v5437, 4
        %v5440 = vshll.u32 %v4783, 16
        %v5442 = vrot.slane %v5440, 5
        %v5443 = vsel %vm751, %v5438, %v5442
        %v5445 = vshrl.u32 %v4784, 16
        %v5447 = vrot.slane %v5445, 4
        %v5448 = vshll.u32 %v4784, 16
        %v5450 = vrot.slane %v5448, 5
        %v5451 = vor.u32 %v5447, %v5450
        %v5452 = vrot.slane %v5451, 4
        %v5454 = vshll.u32 %v4785, 16
        %v5456 = vrot.slane %v5454, 5
        %v5457 = vsel %vm751, %v5452, %v5456
        %v5458 = vshrl.u32 %v4785, 16
        %v5460 = vrot.slane %v5458, 4
        %v5461 = vor.u32 %v5460, %v5456
        %v5462 = vrot.slane %v5461, 4
        %v5464 = vshll.u32 %v4786, 16
        %v5466 = vrot.slane %v5464, 5
        %v5467 = vsel %vm751, %v5462, %v5466
        %v5469 = vshrl.u32 %v4787, 16
        %v5471 = vrot.slane %v5469, 4
        %v5472 = vshll.u32 %v4787, 16
        %v5474 = vrot.slane %v5472, 5
        %v5475 = vor.u32 %v5471, %v5474
        %v5476 = vrot.slane %v5475, 4
        %v5478 = vshll.u32 %v4788, 16
        %v5480 = vrot.slane %v5478, 5
        %v5481 = vsel %vm751, %v5476, %v5480
        %v5482 = vshrl.u32 %v4788, 16
        %v5484 = vrot.slane %v5482, 4
        %v5485 = vor.u32 %v5484, %v5480
        %v5486 = vrot.slane %v5485, 4
        %v5488 = vshll.u32 %v4789, 16
        %v5490 = vrot.slane %v5488, 5
        %v5491 = vsel %vm751, %v5486, %v5490
        %v5493 = vshrl.u32 %v4790, 16
        %v5495 = vrot.slane %v5493, 4
        %v5496 = vshll.u32 %v4790, 16
        %v5498 = vrot.slane %v5496, 5
        %v5499 = vor.u32 %v5495, %v5498
        %v5500 = vrot.slane %v5499, 4
        %v5502 = vshll.u32 %v4791, 16
        %v5504 = vrot.slane %v5502, 5
        %v5505 = vsel %vm751, %v5500, %v5504
        %v5506 = vshrl.u32 %v4791, 16
        %v5508 = vrot.slane %v5506, 4
        %v5509 = vor.u32 %v5508, %v5504
        %v5510 = vrot.slane %v5509, 4
        %v5512 = vshll.u32 %v4792, 16
        %v5514 = vrot.slane %v5512, 5
        %v5515 = vsel %vm751, %v5510, %v5514
        %v5517 = vshrl.u32 %v4793, 16
        %v5519 = vrot.slane %v5517, 4
        %v5520 = vshll.u32 %v4793, 16
        %v5522 = vrot.slane %v5520, 5
        %v5523 = vor.u32 %v5519, %v5522
        %v5524 = vrot.slane %v5523, 4
        %v5526 = vshll.u32 %v4794, 16
        %v5528 = vrot.slane %v5526, 5
        %v5529 = vsel %vm751, %v5524, %v5528
        %v5530 = vshrl.u32 %v4794, 16
        %v5532 = vrot.slane %v5530, 4
        %v5533 = vor.u32 %v5532, %v5528
        %v5534 = vrot.slane %v5533, 4
        %v5536 = vshll.u32 %v4795, 16
        %v5538 = vrot.slane %v5536, 5
        %v5539 = vsel %vm751, %v5534, %v5538
        %v5541 = vshrl.u32 %v4796, 16
        %v5543 = vrot.slane %v5541, 4
        %v5544 = vshll.u32 %v4796, 16
        %v5546 = vrot.slane %v5544, 5
        %v5547 = vor.u32 %v5543, %v5546
        %v5548 = vrot.slane %v5547, 4
        %v5550 = vshll.u32 %v4797, 16
        %v5552 = vrot.slane %v5550, 5
        %v5553 = vsel %vm751, %v5548, %v5552
        %v5554 = vshrl.u32 %v4797, 16
        %v5556 = vrot.slane %v5554, 4
        %v5557 = vor.u32 %v5556, %v5552
        %v5558 = vrot.slane %v5557, 4
        %v5560 = vshll.u32 %v4798, 16
        %v5562 = vrot.slane %v5560, 5
        %v5563 = vsel %vm751, %v5558, %v5562
        %v5565 = vshrl.u32 %v4799, 16
        %v5567 = vrot.slane %v5565, 4
        %v5568 = vshll.u32 %v4799, 16
        %v5570 = vrot.slane %v5568, 5
        %v5571 = vor.u32 %v5567, %v5570
        %v5572 = vrot.slane %v5571, 4
        %v5574 = vshll.u32 %v4800, 16
        %v5576 = vrot.slane %v5574, 5
        %v5577 = vsel %vm751, %v5572, %v5576
        %v5578 = vshrl.u32 %v4800, 16
        %v5580 = vrot.slane %v5578, 4
        %v5581 = vor.u32 %v5580, %v5576
        %v5582 = vrot.slane %v5581, 4
        %v5584 = vshll.u32 %v4801, 16
        %v5586 = vrot.slane %v5584, 5
        %v5587 = vsel %vm751, %v5582, %v5586
        %v5589 = vshrl.u32 %v4802, 16
        %v5591 = vrot.slane %v5589, 4
        %v5592 = vshll.u32 %v4802, 16
        %v5594 = vrot.slane %v5592, 5
        %v5595 = vor.u32 %v5591, %v5594
        %v5596 = vrot.slane %v5595, 4
        %v5598 = vshll.u32 %v4803, 16
        %v5600 = vrot.slane %v5598, 5
        %v5601 = vsel %vm751, %v5596, %v5600
        %v5602 = vshrl.u32 %v4803, 16
        %v5604 = vrot.slane %v5602, 4
        %v5605 = vor.u32 %v5604, %v5600
        %v5606 = vrot.slane %v5605, 4
        %v5608 = vshll.u32 %v4804, 16
        %v5610 = vrot.slane %v5608, 5
        %v5611 = vsel %vm751, %v5606, %v5610
        %v5612 = vld [vmem:[#allocation3] sm:$0xff]
        %v5613 = vld [vmem:[#allocation3 + $0x8] sm:$0xff]
        %v5614 = vld [vmem:[#allocation3 + $0x10] sm:$0xff]
        %v5615 = vld [vmem:[#allocation3 + $0x18] sm:$0xff]
        %v5616 = vld [vmem:[#allocation3 + $0x20] sm:$0xff]
        %v5617 = vld [vmem:[#allocation3 + $0x28] sm:$0xff]
        %v5618 = vld [vmem:[#allocation3 + $0x30] sm:$0xff]
        %v5619 = vld [vmem:[#allocation3 + $0x38] sm:$0xff]
        %v5620 = vld [vmem:[#allocation3 + $0x40] sm:$0xff]
        %v5621 = vld [vmem:[#allocation3 + $0x48] sm:$0xff]
        %v5622 = vld [vmem:[#allocation3 + $0x50] sm:$0xff]
        %v5623 = vld [vmem:[#allocation3 + $0x58] sm:$0xff]
        %v5624 = vld [vmem:[#allocation3 + $0x60] sm:$0xff]
        %v5625 = vld [vmem:[#allocation3 + $0x68] sm:$0xff]
        %v5626 = vld [vmem:[#allocation3 + $0x70] sm:$0xff]
        %v5627 = vld [vmem:[#allocation3 + $0x78] sm:$0xff]
        %v5628 = vld [vmem:[#allocation3 + $0x80] sm:$0xff]
        %v5629 = vld [vmem:[#allocation3 + $0x88] sm:$0xff]
        %v5630 = vld [vmem:[#allocation3 + $0x90] sm:$0xff]
        %v5631 = vld [vmem:[#allocation3 + $0x98] sm:$0xff]
        %v5632 = vld [vmem:[#allocation3 + $0xa0] sm:$0xff]
        %v5633 = vld [vmem:[#allocation3 + $0xa8] sm:$0xff]
        %v5634 = vld [vmem:[#allocation3 + $0xb0] sm:$0xff]
        %v5635 = vld [vmem:[#allocation3 + $0xb8] sm:$0xff]
        %v5636 = vld [vmem:[#allocation3 + $0xc0] sm:$0xff]
        %v5637 = vld [vmem:[#allocation3 + $0xc8] sm:$0xff]
        %v5638 = vld [vmem:[#allocation3 + $0xd0] sm:$0xff]
        %v5639 = vld [vmem:[#allocation3 + $0xd8] sm:$0xff]
        %v5640 = vld [vmem:[#allocation3 + $0xe0] sm:$0xff]
        %v5641 = vld [vmem:[#allocation3 + $0xe8] sm:$0xff]
        %v5642 = vld [vmem:[#allocation3 + $0xf0] sm:$0xff]
        %v5643 = vld [vmem:[#allocation3 + $0xf8] sm:$0xff]
        %s5644 = scalar_lea.vmem [#allocation4], 64
        %v5645 = vld [vmem:[%s5644] sm:$0xf]
        %v5646 = vld [vmem:[%s5644 + $0x4] sm:$0xf]
        %v5647 = vld [vmem:[%s5644 + $0x8] sm:$0xf]
        %v5648 = vld [vmem:[%s5644 + $0xc] sm:$0xf]
        %v5649 = vld [vmem:[%s5644 + $0x10] sm:$0xf]
        %v5650 = vld [vmem:[%s5644 + $0x14] sm:$0xf]
        %v5651 = vld [vmem:[%s5644 + $0x18] sm:$0xf]
        %v5652 = vld [vmem:[%s5644 + $0x1c] sm:$0xf]
        %v5653 = vld [vmem:[%s5644 + $0x20] sm:$0xf]
        %v5654 = vld [vmem:[%s5644 + $0x24] sm:$0xf]
        %v5655 = vld [vmem:[%s5644 + $0x28] sm:$0xf]
        %v5656 = vld [vmem:[%s5644 + $0x2c] sm:$0xf]
        %v5657 = vld [vmem:[%s5644 + $0x30] sm:$0xf]
        %v5658 = vld [vmem:[%s5644 + $0x34] sm:$0xf]
        %v5659 = vld [vmem:[%s5644 + $0x38] sm:$0xf]
        %v5660 = vld [vmem:[%s5644 + $0x3c] sm:$0xf]
        %v5661 = vunpack.c.l.b16 %v5241
        %v5662 = vunpack.c.l.b16 %v5251
        %v5663 = vunpack.c.l.b16 %v5265
        %v5664 = vunpack.c.l.b16 %v5275
        %v5665 = vunpack.c.l.b16 %v5289
        %v5666 = vunpack.c.l.b16 %v5299
        %v5667 = vunpack.c.l.b16 %v5313
        %v5668 = vunpack.c.l.b16 %v5323
        %v5669 = vunpack.c.l.b16 %v5337
        %v5670 = vunpack.c.l.b16 %v5347
        %v5671 = vunpack.c.l.b16 %v5361
        %v5672 = vunpack.c.l.b16 %v5371
        %v5673 = vunpack.c.l.b16 %v5385
        %v5674 = vunpack.c.l.b16 %v5395
        %v5675 = vunpack.c.l.b16 %v5409
        %v5676 = vunpack.c.l.b16 %v5419
        %v5677 = vunpack.c.l.b16 %v5433
        %v5678 = vunpack.c.l.b16 %v5443
        %v5679 = vunpack.c.l.b16 %v5457
        %v5680 = vunpack.c.l.b16 %v5467
        %v5681 = vunpack.c.l.b16 %v5481
        %v5682 = vunpack.c.l.b16 %v5491
        %v5683 = vunpack.c.l.b16 %v5505
        %v5684 = vunpack.c.l.b16 %v5515
        %v5685 = vunpack.c.l.b16 %v5529
        %v5686 = vunpack.c.l.b16 %v5539
        %v5687 = vunpack.c.l.b16 %v5553
        %v5688 = vunpack.c.l.b16 %v5563
        %v5689 = vunpack.c.l.b16 %v5577
        %v5690 = vunpack.c.l.b16 %v5587
        %v5691 = vunpack.c.l.b16 %v5601
        %v5692 = vunpack.c.l.b16 %v5611
        %v5693 = vpack.c.b16 %v5662, %v5661
        %v5694 = vpack.c.b16 %v5664, %v5663
        %v5695 = vpack.c.b16 %v5666, %v5665
        %v5696 = vpack.c.b16 %v5668, %v5667
        %v5697 = vpack.c.b16 %v5670, %v5669
        %v5698 = vpack.c.b16 %v5672, %v5671
        %v5699 = vpack.c.b16 %v5674, %v5673
        %v5700 = vpack.c.b16 %v5676, %v5675
        %v5701 = vpack.c.b16 %v5678, %v5677
        %v5702 = vpack.c.b16 %v5680, %v5679
        %v5703 = vpack.c.b16 %v5682, %v5681
        %v5704 = vpack.c.b16 %v5684, %v5683
        %v5705 = vpack.c.b16 %v5686, %v5685
        %v5706 = vpack.c.b16 %v5688, %v5687
        %v5707 = vpack.c.b16 %v5690, %v5689
        %v5708 = vpack.c.b16 %v5692, %v5691
        %v5741 = vunpack.c.l.b16 %v5645
        %v5742 = vunpack.c.l.b16 %v5646
        %v5743 = vunpack.c.l.b16 %v5647
        %v5744 = vunpack.c.l.b16 %v5648
        %v5745 = vunpack.c.l.b16 %v5649
        %v5746 = vunpack.c.l.b16 %v5650
        %v5747 = vunpack.c.l.b16 %v5651
        %v5748 = vunpack.c.l.b16 %v5652
        %v5749 = vunpack.c.l.b16 %v5653
        %v5750 = vunpack.c.l.b16 %v5654
        %v5751 = vunpack.c.l.b16 %v5655
        %v5752 = vunpack.c.l.b16 %v5656
        %v5753 = vunpack.c.l.b16 %v5657
        %v5754 = vunpack.c.l.b16 %v5658
        %v5755 = vunpack.c.l.b16 %v5659
        %v5756 = vunpack.c.l.b16 %v5660
        %v5757 = vpack.c.b16 %v5742, %v5741
        %v5758 = vpack.c.b16 %v5744, %v5743
        %v5759 = vpack.c.b16 %v5746, %v5745
        %v5760 = vpack.c.b16 %v5748, %v5747
        %v5761 = vpack.c.b16 %v5750, %v5749
        %v5762 = vpack.c.b16 %v5752, %v5751
        %v5763 = vpack.c.b16 %v5754, %v5753
        %v5764 = vpack.c.b16 %v5756, %v5755
        %5773 = vmatprep.subr.bf16.mxu0 0
        %5774 = vmatpush1.bf16.msra.mxu0 %v5757
        %5775 = vmatprep.subr.bf16.mxu0 0
        %5776 = vmatpush1.bf16.msra.mxu0 %v5758
        %5777 = vmatprep.subr.bf16.mxu0 0
        %5778 = vmatpush1.bf16.msra.mxu0 %v5759
        %5779 = vmatprep.subr.bf16.mxu0 0
        %5780 = vmatpush1.bf16.msra.mxu0 %v5760
        %5781 = vmatprep.subr.bf16.mxu0 0
        %5782 = vmatpush1.bf16.msra.mxu0 %v5761
        %5783 = vmatprep.subr.bf16.mxu0 0
        %5784 = vmatpush1.bf16.msra.mxu0 %v5762
        %5785 = vmatprep.subr.bf16.mxu0 0
        %5786 = vmatpush1.bf16.msra.mxu0 %v5763
        %5787 = vmatprep.subr.bf16.mxu0 0
        %5788 = vmatpush1.bf16.msra.mxu0 %v5764
        %5789 = vmatprep.subr.bf16.mxu0 0
        %5790 = vmatpush1.bf16.msra.mxu0 0
        %5791 = vmatprep.subr.bf16.mxu0 0
        %5792 = vmatpush1.bf16.msra.mxu0 0
        %5793 = vmatprep.subr.bf16.mxu0 0
        %5794 = vmatpush1.bf16.msra.mxu0 0
        %5795 = vmatprep.subr.bf16.mxu0 0
        %5796 = vmatpush1.bf16.msra.mxu0 0
        %5797 = vmatprep.subr.bf16.mxu0 0
        %5798 = vmatpush1.bf16.msra.mxu0 0
        %5799 = vmatprep.subr.bf16.mxu0 0
        %5800 = vmatpush1.bf16.msra.mxu0 0
        %5801 = vmatprep.subr.bf16.mxu0 0
        %5802 = vmatpush1.bf16.msra.mxu0 0
        %5803 = vmatprep.subr.bf16.mxu0 0
        %5804 = vmatpush1.bf16.msra.mxu0 0
        %5805 = vmatprep.mubr.bf16.mxu0 0
        %5806 = vmatmul.mubr.bf16.gmra.mrb[0].mxu0 %v5693
        %v5807 = vpop.f32.mrb[0].mxu0
        %v5808 = vadd.f32 0.0, %v5807
        %v5809 = vpop.f32.mrb[0].mxu0
        %v5810 = vpop.f32.mrb[0].mxu0
        %v5811 = vadd.f32 0.0, %v5810
        %v5812 = vpop.f32.mrb[0].mxu0
        %5813 = vmatprep.mubr.bf16.mxu0 0
        %5814 = vmatmul.mubr.bf16.gmra.mrb[0].mxu0 %v5694
        %v5815 = vpop.f32.mrb[0].mxu0
        %v5816 = vadd.f32 0.0, %v5815
        %v5817 = vpop.f32.mrb[0].mxu0
        %v5818 = vpop.f32.mrb[0].mxu0
        %v5819 = vadd.f32 0.0, %v5818
        %v5820 = vpop.f32.mrb[0].mxu0
        %5821 = vmatprep.mubr.bf16.mxu0 0
        %5822 = vmatmul.mubr.bf16.gmra.mrb[0].mxu0 %v5695
        %v5823 = vpop.f32.mrb[0].mxu0
        %v5824 = vadd.f32 0.0, %v5823
        %v5825 = vpop.f32.mrb[0].mxu0
        %v5826 = vpop.f32.mrb[0].mxu0
        %v5827 = vadd.f32 0.0, %v5826
        %v5828 = vpop.f32.mrb[0].mxu0
        %5829 = vmatprep.mubr.bf16.mxu0 0
        %5830 = vmatmul.mubr.bf16.gmra.mrb[0].mxu0 %v5696
        %v5831 = vpop.f32.mrb[0].mxu0
        %v5832 = vadd.f32 0.0, %v5831
        %v5833 = vpop.f32.mrb[0].mxu0
        %v5834 = vpop.f32.mrb[0].mxu0
        %v5835 = vadd.f32 0.0, %v5834
        %v5836 = vpop.f32.mrb[0].mxu0
        %5837 = vmatprep.mubr.bf16.mxu0 0
        %5838 = vmatmul.mubr.bf16.gmra.mrb[0].mxu0 %v5697
        %v5839 = vpop.f32.mrb[0].mxu0
        %v5840 = vadd.f32 0.0, %v5839
        %v5841 = vpop.f32.mrb[0].mxu0
        %v5842 = vpop.f32.mrb[0].mxu0
        %v5843 = vadd.f32 0.0, %v5842
        %v5844 = vpop.f32.mrb[0].mxu0
        %5845 = vmatprep.mubr.bf16.mxu0 0
        %5846 = vmatmul.mubr.bf16.gmra.mrb[0].mxu0 %v5698
        %v5847 = vpop.f32.mrb[0].mxu0
        %v5848 = vadd.f32 0.0, %v5847
        %v5849 = vpop.f32.mrb[0].mxu0
        %v5850 = vpop.f32.mrb[0].mxu0
        %v5851 = vadd.f32 0.0, %v5850
        %v5852 = vpop.f32.mrb[0].mxu0
        %5853 = vmatprep.mubr.bf16.mxu0 0
        %5854 = vmatmul.mubr.bf16.gmra.mrb[0].mxu0 %v5699
        %v5855 = vpop.f32.mrb[0].mxu0
        %v5856 = vadd.f32 0.0, %v5855
        %v5857 = vpop.f32.mrb[0].mxu0
        %v5858 = vpop.f32.mrb[0].mxu0
        %v5859 = vadd.f32 0.0, %v5858
        %v5860 = vpop.f32.mrb[0].mxu0
        %5861 = vmatprep.mubr.bf16.mxu0 0
        %5862 = vmatmul.mubr.bf16.gmra.mrb[0].mxu0 %v5700
        %v5863 = vpop.f32.mrb[0].mxu0
        %v5864 = vadd.f32 0.0, %v5863
        %v5865 = vpop.f32.mrb[0].mxu0
        %v5866 = vpop.f32.mrb[0].mxu0
        %v5867 = vadd.f32 0.0, %v5866
        %v5868 = vpop.f32.mrb[0].mxu0
        %5869 = vmatprep.mubr.bf16.mxu0 0
        %5870 = vmatmul.mubr.bf16.gmra.mrb[0].mxu0 %v5701
        %v5871 = vpop.f32.mrb[0].mxu0
        %v5872 = vadd.f32 0.0, %v5871
        %v5873 = vpop.f32.mrb[0].mxu0
        %v5874 = vpop.f32.mrb[0].mxu0
        %v5875 = vadd.f32 0.0, %v5874
        %v5876 = vpop.f32.mrb[0].mxu0
        %5877 = vmatprep.mubr.bf16.mxu0 0
        %5878 = vmatmul.mubr.bf16.gmra.mrb[0].mxu0 %v5702
        %v5879 = vpop.f32.mrb[0].mxu0
        %v5880 = vadd.f32 0.0, %v5879
        %v5881 = vpop.f32.mrb[0].mxu0
        %v5882 = vpop.f32.mrb[0].mxu0
        %v5883 = vadd.f32 0.0, %v5882
        %v5884 = vpop.f32.mrb[0].mxu0
        %5885 = vmatprep.mubr.bf16.mxu0 0
        %5886 = vmatmul.mubr.bf16.gmra.mrb[0].mxu0 %v5703
        %v5887 = vpop.f32.mrb[0].mxu0
        %v5888 = vadd.f32 0.0, %v5887
        %v5889 = vpop.f32.mrb[0].mxu0
        %v5890 = vpop.f32.mrb[0].mxu0
        %v5891 = vadd.f32 0.0, %v5890
        %v5892 = vpop.f32.mrb[0].mxu0
        %5893 = vmatprep.mubr.bf16.mxu0 0
        %5894 = vmatmul.mubr.bf16.gmra.mrb[0].mxu0 %v5704
        %v5895 = vpop.f32.mrb[0].mxu0
        %v5896 = vadd.f32 0.0, %v5895
        %v5897 = vpop.f32.mrb[0].mxu0
        %v5898 = vpop.f32.mrb[0].mxu0
        %v5899 = vadd.f32 0.0, %v5898
        %v5900 = vpop.f32.mrb[0].mxu0
        %5901 = vmatprep.mubr.bf16.mxu0 0
        %5902 = vmatmul.mubr.bf16.gmra.mrb[0].mxu0 %v5705
        %v5903 = vpop.f32.mrb[0].mxu0
        %v5904 = vadd.f32 0.0, %v5903
        %v5905 = vpop.f32.mrb[0].mxu0
        %v5906 = vpop.f32.mrb[0].mxu0
        %v5907 = vadd.f32 0.0, %v5906
        %v5908 = vpop.f32.mrb[0].mxu0
        %5909 = vmatprep.mubr.bf16.mxu0 0
        %5910 = vmatmul.mubr.bf16.gmra.mrb[0].mxu0 %v5706
        %v5911 = vpop.f32.mrb[0].mxu0
        %v5912 = vadd.f32 0.0, %v5911
        %v5913 = vpop.f32.mrb[0].mxu0
        %v5914 = vpop.f32.mrb[0].mxu0
        %v5915 = vadd.f32 0.0, %v5914
        %v5916 = vpop.f32.mrb[0].mxu0
        %5917 = vmatprep.mubr.bf16.mxu0 0
        %5918 = vmatmul.mubr.bf16.gmra.mrb[0].mxu0 %v5707
        %v5919 = vpop.f32.mrb[0].mxu0
        %v5920 = vadd.f32 0.0, %v5919
        %v5921 = vpop.f32.mrb[0].mxu0
        %v5922 = vpop.f32.mrb[0].mxu0
        %v5923 = vadd.f32 0.0, %v5922
        %v5924 = vpop.f32.mrb[0].mxu0
        %5925 = vmatprep.mubr.bf16.mxu0 0
        %5926 = vmatmul.mubr.bf16.gmra.mrb[0].mxu0 %v5708
        %v5927 = vpop.f32.mrb[0].mxu0
        %v5928 = vadd.f32 0.0, %v5927
        %v5929 = vpop.f32.mrb[0].mxu0
        %v5930 = vpop.f32.mrb[0].mxu0
        %v5931 = vadd.f32 0.0, %v5930
        %v5932 = vpop.f32.mrb[0].mxu0
        %5933 = vdwg.mxu0
        %v5934 = vadd.f32 %v5612, %v5808
        %v5935 = vadd.f32 %v5613, %v5811
        %v5936 = vadd.f32 %v5614, %v5816
        %v5937 = vadd.f32 %v5615, %v5819
        %v5938 = vadd.f32 %v5616, %v5824
        %v5939 = vadd.f32 %v5617, %v5827
        %v5940 = vadd.f32 %v5618, %v5832
        %v5941 = vadd.f32 %v5619, %v5835
        %v5942 = vadd.f32 %v5620, %v5840
        %v5943 = vadd.f32 %v5621, %v5843
        %v5944 = vadd.f32 %v5622, %v5848
        %v5945 = vadd.f32 %v5623, %v5851
        %v5946 = vadd.f32 %v5624, %v5856
        %v5947 = vadd.f32 %v5625, %v5859
        %v5948 = vadd.f32 %v5626, %v5864
        %v5949 = vadd.f32 %v5627, %v5867
        %v5950 = vadd.f32 %v5628, %v5872
        %v5951 = vadd.f32 %v5629, %v5875
        %v5952 = vadd.f32 %v5630, %v5880
        %v5953 = vadd.f32 %v5631, %v5883
        %v5954 = vadd.f32 %v5632, %v5888
        %v5955 = vadd.f32 %v5633, %v5891
        %v5956 = vadd.f32 %v5634, %v5896
        %v5957 = vadd.f32 %v5635, %v5899
        %v5958 = vadd.f32 %v5636, %v5904
        %v5959 = vadd.f32 %v5637, %v5907
        %v5960 = vadd.f32 %v5638, %v5912
        %v5961 = vadd.f32 %v5639, %v5915
        %v5962 = vadd.f32 %v5640, %v5920
        %v5963 = vadd.f32 %v5641, %v5923
        %v5964 = vadd.f32 %v5642, %v5928
        %v5965 = vadd.f32 %v5643, %v5931
        %5966 = vst [vmem:[#allocation3] sm:$0xff] %v5934
        %5967 = vst [vmem:[#allocation3 + $0x8] sm:$0xff] %v5935
        %5968 = vst [vmem:[#allocation3 + $0x10] sm:$0xff] %v5936
        %5969 = vst [vmem:[#allocation3 + $0x18] sm:$0xff] %v5937
        %5970 = vst [vmem:[#allocation3 + $0x20] sm:$0xff] %v5938
        %5971 = vst [vmem:[#allocation3 + $0x28] sm:$0xff] %v5939
        %5972 = vst [vmem:[#allocation3 + $0x30] sm:$0xff] %v5940
        %5973 = vst [vmem:[#allocation3 + $0x38] sm:$0xff] %v5941
        %5974 = vst [vmem:[#allocation3 + $0x40] sm:$0xff] %v5942
        %5975 = vst [vmem:[#allocation3 + $0x48] sm:$0xff] %v5943
        %5976 = vst [vmem:[#allocation3 + $0x50] sm:$0xff] %v5944
        %5977 = vst [vmem:[#allocation3 + $0x58] sm:$0xff] %v5945
        %5978 = vst [vmem:[#allocation3 + $0x60] sm:$0xff] %v5946
        %5979 = vst [vmem:[#allocation3 + $0x68] sm:$0xff] %v5947
        %5980 = vst [vmem:[#allocation3 + $0x70] sm:$0xff] %v5948
        %5981 = vst [vmem:[#allocation3 + $0x78] sm:$0xff] %v5949
        %5982 = vst [vmem:[#allocation3 + $0x80] sm:$0xff] %v5950
        %5983 = vst [vmem:[#allocation3 + $0x88] sm:$0xff] %v5951
        %5984 = vst [vmem:[#allocation3 + $0x90] sm:$0xff] %v5952
        %5985 = vst [vmem:[#allocation3 + $0x98] sm:$0xff] %v5953
        %5986 = vst [vmem:[#allocation3 + $0xa0] sm:$0xff] %v5954
        %5987 = vst [vmem:[#allocation3 + $0xa8] sm:$0xff] %v5955
        %5988 = vst [vmem:[#allocation3 + $0xb0] sm:$0xff] %v5956
        %5989 = vst [vmem:[#allocation3 + $0xb8] sm:$0xff] %v5957
        %5990 = vst [vmem:[#allocation3 + $0xc0] sm:$0xff] %v5958
        %5991 = vst [vmem:[#allocation3 + $0xc8] sm:$0xff] %v5959
        %5992 = vst [vmem:[#allocation3 + $0xd0] sm:$0xff] %v5960
        %5993 = vst [vmem:[#allocation3 + $0xd8] sm:$0xff] %v5961
        %5994 = vst [vmem:[#allocation3 + $0xe0] sm:$0xff] %v5962
        %5995 = vst [vmem:[#allocation3 + $0xe8] sm:$0xff] %v5963
        %5996 = vst [vmem:[#allocation3 + $0xf0] sm:$0xff] %v5964
        %5997 = vst [vmem:[#allocation3 + $0xf8] sm:$0xff] %v5965
        %v6014 = vrot.slane %v4757, 5
        %v6015 = vrot.slane %v6014, 4
        %v6016 = vrot.slane %v4758, 5
        %v6017 = vsel %vm1540, %v6015, %v6016
        %v6018 = vrot.slane %v6016, 4
        %v6019 = vrot.slane %v4759, 5
        %v6020 = vsel %vm1540, %v6018, %v6019
        %v6021 = vrot.slane %v4760, 5
        %v6022 = vrot.slane %v6021, 4
        %v6023 = vrot.slane %v4761, 5
        %v6024 = vsel %vm1540, %v6022, %v6023
        %v6025 = vrot.slane %v6023, 4
        %v6026 = vrot.slane %v4762, 5
        %v6027 = vsel %vm1540, %v6025, %v6026
        %v6028 = vrot.slane %v4763, 5
        %v6029 = vrot.slane %v6028, 4
        %v6030 = vrot.slane %v4764, 5
        %v6031 = vsel %vm1540, %v6029, %v6030
        %v6032 = vrot.slane %v6030, 4
        %v6033 = vrot.slane %v4765, 5
        %v6034 = vsel %vm1540, %v6032, %v6033
        %v6035 = vrot.slane %v4766, 5
        %v6036 = vrot.slane %v6035, 4
        %v6037 = vrot.slane %v4767, 5
        %v6038 = vsel %vm1540, %v6036, %v6037
        %v6039 = vrot.slane %v6037, 4
        %v6040 = vrot.slane %v4768, 5
        %v6041 = vsel %vm1540, %v6039, %v6040
        %v6042 = vrot.slane %v4769, 5
        %v6043 = vrot.slane %v6042, 4
        %v6044 = vrot.slane %v4770, 5
        %v6045 = vsel %vm1540, %v6043, %v6044
        %v6046 = vrot.slane %v6044, 4
        %v6047 = vrot.slane %v4771, 5
        %v6048 = vsel %vm1540, %v6046, %v6047
        %v6049 = vrot.slane %v4772, 5
        %v6050 = vrot.slane %v6049, 4
        %v6051 = vrot.slane %v4773, 5
        %v6052 = vsel %vm1540, %v6050, %v6051
        %v6053 = vrot.slane %v6051, 4
        %v6054 = vrot.slane %v4774, 5
        %v6055 = vsel %vm1540, %v6053, %v6054
        %v6056 = vrot.slane %v4775, 5
        %v6057 = vrot.slane %v6056, 4
        %v6058 = vrot.slane %v4776, 5
        %v6059 = vsel %vm1540, %v6057, %v6058
        %v6060 = vrot.slane %v6058, 4
        %v6061 = vrot.slane %v4777, 5
        %v6062 = vsel %vm1540, %v6060, %v6061
        %v6063 = vrot.slane %v4778, 5
        %v6064 = vrot.slane %v6063, 4
        %v6065 = vrot.slane %v4779, 5
        %v6066 = vsel %vm1540, %v6064, %v6065
        %v6067 = vrot.slane %v6065, 4
        %v6068 = vrot.slane %v4780, 5
        %v6069 = vsel %vm1540, %v6067, %v6068
        %v6070 = vrot.slane %v4781, 5
        %v6071 = vrot.slane %v6070, 4
        %v6072 = vrot.slane %v4782, 5
        %v6073 = vsel %vm1540, %v6071, %v6072
        %v6074 = vrot.slane %v6072, 4
        %v6075 = vrot.slane %v4783, 5
        %v6076 = vsel %vm1540, %v6074, %v6075
        %v6077 = vrot.slane %v4784, 5
        %v6078 = vrot.slane %v6077, 4
        %v6079 = vrot.slane %v4785, 5
        %v6080 = vsel %vm1540, %v6078, %v6079
        %v6081 = vrot.slane %v6079, 4
        %v6082 = vrot.slane %v4786, 5
        %v6083 = vsel %vm1540, %v6081, %v6082
        %v6084 = vrot.slane %v4787, 5
        %v6085 = vrot.slane %v6084, 4
        %v6086 = vrot.slane %v4788, 5
        %v6087 = vsel %vm1540, %v6085, %v6086
        %v6088 = vrot.slane %v6086, 4
        %v6089 = vrot.slane %v4789, 5
        %v6090 = vsel %vm1540, %v6088, %v6089
        %v6091 = vrot.slane %v4790, 5
        %v6092 = vrot.slane %v6091, 4
        %v6093 = vrot.slane %v4791, 5
        %v6094 = vsel %vm1540, %v6092, %v6093
        %v6095 = vrot.slane %v6093, 4
        %v6096 = vrot.slane %v4792, 5
        %v6097 = vsel %vm1540, %v6095, %v6096
        %v6098 = vrot.slane %v4793, 5
        %v6099 = vrot.slane %v6098, 4
        %v6100 = vrot.slane %v4794, 5
        %v6101 = vsel %vm1540, %v6099, %v6100
        %v6102 = vrot.slane %v6100, 4
        %v6103 = vrot.slane %v4795, 5
        %v6104 = vsel %vm1540, %v6102, %v6103
        %v6105 = vrot.slane %v4796, 5
        %v6106 = vrot.slane %v6105, 4
        %v6107 = vrot.slane %v4797, 5
        %v6108 = vsel %vm1540, %v6106, %v6107
        %v6109 = vrot.slane %v6107, 4
        %v6110 = vrot.slane %v4798, 5
        %v6111 = vsel %vm1540, %v6109, %v6110
        %v6112 = vrot.slane %v4799, 5
        %v6113 = vrot.slane %v6112, 4
        %v6114 = vrot.slane %v4800, 5
        %v6115 = vsel %vm1540, %v6113, %v6114
        %v6116 = vrot.slane %v6114, 4
        %v6117 = vrot.slane %v4801, 5
        %v6118 = vsel %vm1540, %v6116, %v6117
        %v6119 = vrot.slane %v4802, 5
        %v6120 = vrot.slane %v6119, 4
        %v6121 = vrot.slane %v4803, 5
        %v6122 = vsel %vm1540, %v6120, %v6121
        %v6123 = vrot.slane %v6121, 4
        %v6124 = vrot.slane %v4804, 5
        %v6125 = vsel %vm1540, %v6123, %v6124
        %v6126 = vld [vmem:[#allocation3] sm:$0xff]
        %v6127 = vld [vmem:[#allocation3 + $0x8] sm:$0xff]
        %v6128 = vld [vmem:[#allocation3 + $0x10] sm:$0xff]
        %v6129 = vld [vmem:[#allocation3 + $0x18] sm:$0xff]
        %v6130 = vld [vmem:[#allocation3 + $0x20] sm:$0xff]
        %v6131 = vld [vmem:[#allocation3 + $0x28] sm:$0xff]
        %v6132 = vld [vmem:[#allocation3 + $0x30] sm:$0xff]
        %v6133 = vld [vmem:[#allocation3 + $0x38] sm:$0xff]
        %v6134 = vld [vmem:[#allocation3 + $0x40] sm:$0xff]
        %v6135 = vld [vmem:[#allocation3 + $0x48] sm:$0xff]
        %v6136 = vld [vmem:[#allocation3 + $0x50] sm:$0xff]
        %v6137 = vld [vmem:[#allocation3 + $0x58] sm:$0xff]
        %v6138 = vld [vmem:[#allocation3 + $0x60] sm:$0xff]
        %v6139 = vld [vmem:[#allocation3 + $0x68] sm:$0xff]
        %v6140 = vld [vmem:[#allocation3 + $0x70] sm:$0xff]
        %v6141 = vld [vmem:[#allocation3 + $0x78] sm:$0xff]
        %v6142 = vld [vmem:[#allocation3 + $0x80] sm:$0xff]
        %v6143 = vld [vmem:[#allocation3 + $0x88] sm:$0xff]
        %v6144 = vld [vmem:[#allocation3 + $0x90] sm:$0xff]
        %v6145 = vld [vmem:[#allocation3 + $0x98] sm:$0xff]
        %v6146 = vld [vmem:[#allocation3 + $0xa0] sm:$0xff]
        %v6147 = vld [vmem:[#allocation3 + $0xa8] sm:$0xff]
        %v6148 = vld [vmem:[#allocation3 + $0xb0] sm:$0xff]
        %v6149 = vld [vmem:[#allocation3 + $0xb8] sm:$0xff]
        %v6150 = vld [vmem:[#allocation3 + $0xc0] sm:$0xff]
        %v6151 = vld [vmem:[#allocation3 + $0xc8] sm:$0xff]
        %v6152 = vld [vmem:[#allocation3 + $0xd0] sm:$0xff]
        %v6153 = vld [vmem:[#allocation3 + $0xd8] sm:$0xff]
        %v6154 = vld [vmem:[#allocation3 + $0xe0] sm:$0xff]
        %v6155 = vld [vmem:[#allocation3 + $0xe8] sm:$0xff]
        %v6156 = vld [vmem:[#allocation3 + $0xf0] sm:$0xff]
        %v6157 = vld [vmem:[#allocation3 + $0xf8] sm:$0xff]
        %s6158 = scalar_lea.vmem [#allocation4], 128
        %v6159 = vld [vmem:[%s6158] sm:$0xf]
        %v6160 = vld [vmem:[%s6158 + $0x4] sm:$0xf]
        %v6161 = vld [vmem:[%s6158 + $0x8] sm:$0xf]
        %v6162 = vld [vmem:[%s6158 + $0xc] sm:$0xf]
        %v6163 = vld [vmem:[%s6158 + $0x10] sm:$0xf]
        %v6164 = vld [vmem:[%s6158 + $0x14] sm:$0xf]
        %v6165 = vld [vmem:[%s6158 + $0x18] sm:$0xf]
        %v6166 = vld [vmem:[%s6158 + $0x1c] sm:$0xf]
        %v6167 = vld [vmem:[%s6158 + $0x20] sm:$0xf]
        %v6168 = vld [vmem:[%s6158 + $0x24] sm:$0xf]
        %v6169 = vld [vmem:[%s6158 + $0x28] sm:$0xf]
        %v6170 = vld [vmem:[%s6158 + $0x2c] sm:$0xf]
        %v6171 = vld [vmem:[%s6158 + $0x30] sm:$0xf]
        %v6172 = vld [vmem:[%s6158 + $0x34] sm:$0xf]
        %v6173 = vld [vmem:[%s6158 + $0x38] sm:$0xf]
        %v6174 = vld [vmem:[%s6158 + $0x3c] sm:$0xf]
        %v6175 = vunpack.c.l.b16 %v6017
        %v6176 = vunpack.c.l.b16 %v6020
        %v6177 = vunpack.c.l.b16 %v6024
        %v6178 = vunpack.c.l.b16 %v6027
        %v6179 = vunpack.c.l.b16 %v6031
        %v6180 = vunpack.c.l.b16 %v6034
        %v6181 = vunpack.c.l.b16 %v6038
        %v6182 = vunpack.c.l.b16 %v6041
        %v6183 = vunpack.c.l.b16 %v6045
        %v6184 = vunpack.c.l.b16 %v6048
        %v6185 = vunpack.c.l.b16 %v6052
        %v6186 = vunpack.c.l.b16 %v6055
        %v6187 = vunpack.c.l.b16 %v6059
        %v6188 = vunpack.c.l.b16 %v6062
        %v6189 = vunpack.c.l.b16 %v6066
        %v6190 = vunpack.c.l.b16 %v6069
        %v6191 = vunpack.c.l.b16 %v6073
        %v6192 = vunpack.c.l.b16 %v6076
        %v6193 = vunpack.c.l.b16 %v6080
        %v6194 = vunpack.c.l.b16 %v6083
        %v6195 = vunpack.c.l.b16 %v6087
        %v6196 = vunpack.c.l.b16 %v6090
        %v6197 = vunpack.c.l.b16 %v6094
        %v6198 = vunpack.c.l.b16 %v6097
        %v6199 = vunpack.c.l.b16 %v6101
        %v6200 = vunpack.c.l.b16 %v6104
        %v6201 = vunpack.c.l.b16 %v6108
        %v6202 = vunpack.c.l.b16 %v6111
        %v6203 = vunpack.c.l.b16 %v6115
        %v6204 = vunpack.c.l.b16 %v6118
        %v6205 = vunpack.c.l.b16 %v6122
        %v6206 = vunpack.c.l.b16 %v6125
        %v6207 = vpack.c.b16 %v6176, %v6175
        %v6208 = vpack.c.b16 %v6178, %v6177
        %v6209 = vpack.c.b16 %v6180, %v6179
        %v6210 = vpack.c.b16 %v6182, %v6181
        %v6211 = vpack.c.b16 %v6184, %v6183
        %v6212 = vpack.c.b16 %v6186, %v6185
        %v6213 = vpack.c.b16 %v6188, %v6187
        %v6214 = vpack.c.b16 %v6190, %v6189
        %v6215 = vpack.c.b16 %v6192, %v6191
        %v6216 = vpack.c.b16 %v6194, %v6193
        %v6217 = vpack.c.b16 %v6196, %v6195
        %v6218 = vpack.c.b16 %v6198, %v6197
        %v6219 = vpack.c.b16 %v6200, %v6199
        %v6220 = vpack.c.b16 %v6202, %v6201
        %v6221 = vpack.c.b16 %v6204, %v6203
        %v6222 = vpack.c.b16 %v6206, %v6205
        %v6255 = vunpack.c.l.b16 %v6159
        %v6256 = vunpack.c.l.b16 %v6160
        %v6257 = vunpack.c.l.b16 %v6161
        %v6258 = vunpack.c.l.b16 %v6162
        %v6259 = vunpack.c.l.b16 %v6163
        %v6260 = vunpack.c.l.b16 %v6164
        %v6261 = vunpack.c.l.b16 %v6165
        %v6262 = vunpack.c.l.b16 %v6166
        %v6263 = vunpack.c.l.b16 %v6167
        %v6264 = vunpack.c.l.b16 %v6168
        %v6265 = vunpack.c.l.b16 %v6169
        %v6266 = vunpack.c.l.b16 %v6170
        %v6267 = vunpack.c.l.b16 %v6171
        %v6268 = vunpack.c.l.b16 %v6172
        %v6269 = vunpack.c.l.b16 %v6173
        %v6270 = vunpack.c.l.b16 %v6174
        %v6271 = vpack.c.b16 %v6256, %v6255
        %v6272 = vpack.c.b16 %v6258, %v6257
        %v6273 = vpack.c.b16 %v6260, %v6259
        %v6274 = vpack.c.b16 %v6262, %v6261
        %v6275 = vpack.c.b16 %v6264, %v6263
        %v6276 = vpack.c.b16 %v6266, %v6265
        %v6277 = vpack.c.b16 %v6268, %v6267
        %v6278 = vpack.c.b16 %v6270, %v6269
        %6287 = vmatprep.subr.bf16.mxu0 0
        %6288 = vmatpush1.bf16.msra.mxu0 %v6271
        %6289 = vmatprep.subr.bf16.mxu0 0
        %6290 = vmatpush1.bf16.msra.mxu0 %v6272
        %6291 = vmatprep.subr.bf16.mxu0 0
        %6292 = vmatpush1.bf16.msra.mxu0 %v6273
        %6293 = vmatprep.subr.bf16.mxu0 0
        %6294 = vmatpush1.bf16.msra.mxu0 %v6274
        %6295 = vmatprep.subr.bf16.mxu0 0
        %6296 = vmatpush1.bf16.msra.mxu0 %v6275
        %6297 = vmatprep.subr.bf16.mxu0 0
        %6298 = vmatpush1.bf16.msra.mxu0 %v6276
        %6299 = vmatprep.subr.bf16.mxu0 0
        %6300 = vmatpush1.bf16.msra.mxu0 %v6277
        %6301 = vmatprep.subr.bf16.mxu0 0
        %6302 = vmatpush1.bf16.msra.mxu0 %v6278
        %6303 = vmatprep.subr.bf16.mxu0 0
        %6304 = vmatpush1.bf16.msra.mxu0 0
        %6305 = vmatprep.subr.bf16.mxu0 0
        %6306 = vmatpush1.bf16.msra.mxu0 0
        %6307 = vmatprep.subr.bf16.mxu0 0
        %6308 = vmatpush1.bf16.msra.mxu0 0
        %6309 = vmatprep.subr.bf16.mxu0 0
        %6310 = vmatpush1.bf16.msra.mxu0 0
        %6311 = vmatprep.subr.bf16.mxu0 0
        %6312 = vmatpush1.bf16.msra.mxu0 0
        %6313 = vmatprep.subr.bf16.mxu0 0
        %6314 = vmatpush1.bf16.msra.mxu0 0
        %6315 = vmatprep.subr.bf16.mxu0 0
        %6316 = vmatpush1.bf16.msra.mxu0 0
        %6317 = vmatprep.subr.bf16.mxu0 0
        %6318 = vmatpush1.bf16.msra.mxu0 0
        %6319 = vmatprep.mubr.bf16.mxu0 0
        %6320 = vmatmul.mubr.bf16.gmra.mrb[0].mxu0 %v6207
        %v6321 = vpop.f32.mrb[0].mxu0
        %v6322 = vadd.f32 0.0, %v6321
        %v6323 = vpop.f32.mrb[0].mxu0
        %v6324 = vpop.f32.mrb[0].mxu0
        %v6325 = vadd.f32 0.0, %v6324
        %v6326 = vpop.f32.mrb[0].mxu0
        %6327 = vmatprep.mubr.bf16.mxu0 0
        %6328 = vmatmul.mubr.bf16.gmra.mrb[0].mxu0 %v6208
        %v6329 = vpop.f32.mrb[0].mxu0
        %v6330 = vadd.f32 0.0, %v6329
        %v6331 = vpop.f32.mrb[0].mxu0
        %v6332 = vpop.f32.mrb[0].mxu0
        %v6333 = vadd.f32 0.0, %v6332
        %v6334 = vpop.f32.mrb[0].mxu0
        %6335 = vmatprep.mubr.bf16.mxu0 0
        %6336 = vmatmul.mubr.bf16.gmra.mrb[0].mxu0 %v6209
        %v6337 = vpop.f32.mrb[0].mxu0
        %v6338 = vadd.f32 0.0, %v6337
        %v6339 = vpop.f32.mrb[0].mxu0
        %v6340 = vpop.f32.mrb[0].mxu0
        %v6341 = vadd.f32 0.0, %v6340
        %v6342 = vpop.f32.mrb[0].mxu0
        %6343 = vmatprep.mubr.bf16.mxu0 0
        %6344 = vmatmul.mubr.bf16.gmra.mrb[0].mxu0 %v6210
        %v6345 = vpop.f32.mrb[0].mxu0
        %v6346 = vadd.f32 0.0, %v6345
        %v6347 = vpop.f32.mrb[0].mxu0
        %v6348 = vpop.f32.mrb[0].mxu0
        %v6349 = vadd.f32 0.0, %v6348
        %v6350 = vpop.f32.mrb[0].mxu0
        %6351 = vmatprep.mubr.bf16.mxu0 0
        %6352 = vmatmul.mubr.bf16.gmra.mrb[0].mxu0 %v6211
        %v6353 = vpop.f32.mrb[0].mxu0
        %v6354 = vadd.f32 0.0, %v6353
        %v6355 = vpop.f32.mrb[0].mxu0
        %v6356 = vpop.f32.mrb[0].mxu0
        %v6357 = vadd.f32 0.0, %v6356
        %v6358 = vpop.f32.mrb[0].mxu0
        %6359 = vmatprep.mubr.bf16.mxu0 0
        %6360 = vmatmul.mubr.bf16.gmra.mrb[0].mxu0 %v6212
        %v6361 = vpop.f32.mrb[0].mxu0
        %v6362 = vadd.f32 0.0, %v6361
        %v6363 = vpop.f32.mrb[0].mxu0
        %v6364 = vpop.f32.mrb[0].mxu0
        %v6365 = vadd.f32 0.0, %v6364
        %v6366 = vpop.f32.mrb[0].mxu0
        %6367 = vmatprep.mubr.bf16.mxu0 0
        %6368 = vmatmul.mubr.bf16.gmra.mrb[0].mxu0 %v6213
        %v6369 = vpop.f32.mrb[0].mxu0
        %v6370 = vadd.f32 0.0, %v6369
        %v6371 = vpop.f32.mrb[0].mxu0
        %v6372 = vpop.f32.mrb[0].mxu0
        %v6373 = vadd.f32 0.0, %v6372
        %v6374 = vpop.f32.mrb[0].mxu0
        %6375 = vmatprep.mubr.bf16.mxu0 0
        %6376 = vmatmul.mubr.bf16.gmra.mrb[0].mxu0 %v6214
        %v6377 = vpop.f32.mrb[0].mxu0
        %v6378 = vadd.f32 0.0, %v6377
        %v6379 = vpop.f32.mrb[0].mxu0
        %v6380 = vpop.f32.mrb[0].mxu0
        %v6381 = vadd.f32 0.0, %v6380
        %v6382 = vpop.f32.mrb[0].mxu0
        %6383 = vmatprep.mubr.bf16.mxu0 0
        %6384 = vmatmul.mubr.bf16.gmra.mrb[0].mxu0 %v6215
        %v6385 = vpop.f32.mrb[0].mxu0
        %v6386 = vadd.f32 0.0, %v6385
        %v6387 = vpop.f32.mrb[0].mxu0
        %v6388 = vpop.f32.mrb[0].mxu0
        %v6389 = vadd.f32 0.0, %v6388
        %v6390 = vpop.f32.mrb[0].mxu0
        %6391 = vmatprep.mubr.bf16.mxu0 0
        %6392 = vmatmul.mubr.bf16.gmra.mrb[0].mxu0 %v6216
        %v6393 = vpop.f32.mrb[0].mxu0
        %v6394 = vadd.f32 0.0, %v6393
        %v6395 = vpop.f32.mrb[0].mxu0
        %v6396 = vpop.f32.mrb[0].mxu0
        %v6397 = vadd.f32 0.0, %v6396
        %v6398 = vpop.f32.mrb[0].mxu0
        %6399 = vmatprep.mubr.bf16.mxu0 0
        %6400 = vmatmul.mubr.bf16.gmra.mrb[0].mxu0 %v6217
        %v6401 = vpop.f32.mrb[0].mxu0
        %v6402 = vadd.f32 0.0, %v6401
        %v6403 = vpop.f32.mrb[0].mxu0
        %v6404 = vpop.f32.mrb[0].mxu0
        %v6405 = vadd.f32 0.0, %v6404
        %v6406 = vpop.f32.mrb[0].mxu0
        %6407 = vmatprep.mubr.bf16.mxu0 0
        %6408 = vmatmul.mubr.bf16.gmra.mrb[0].mxu0 %v6218
        %v6409 = vpop.f32.mrb[0].mxu0
        %v6410 = vadd.f32 0.0, %v6409
        %v6411 = vpop.f32.mrb[0].mxu0
        %v6412 = vpop.f32.mrb[0].mxu0
        %v6413 = vadd.f32 0.0, %v6412
        %v6414 = vpop.f32.mrb[0].mxu0
        %6415 = vmatprep.mubr.bf16.mxu0 0
        %6416 = vmatmul.mubr.bf16.gmra.mrb[0].mxu0 %v6219
        %v6417 = vpop.f32.mrb[0].mxu0
        %v6418 = vadd.f32 0.0, %v6417
        %v6419 = vpop.f32.mrb[0].mxu0
        %v6420 = vpop.f32.mrb[0].mxu0
        %v6421 = vadd.f32 0.0, %v6420
        %v6422 = vpop.f32.mrb[0].mxu0
        %6423 = vmatprep.mubr.bf16.mxu0 0
        %6424 = vmatmul.mubr.bf16.gmra.mrb[0].mxu0 %v6220
        %v6425 = vpop.f32.mrb[0].mxu0
        %v6426 = vadd.f32 0.0, %v6425
        %v6427 = vpop.f32.mrb[0].mxu0
        %v6428 = vpop.f32.mrb[0].mxu0
        %v6429 = vadd.f32 0.0, %v6428
        %v6430 = vpop.f32.mrb[0].mxu0
        %6431 = vmatprep.mubr.bf16.mxu0 0
        %6432 = vmatmul.mubr.bf16.gmra.mrb[0].mxu0 %v6221
        %v6433 = vpop.f32.mrb[0].mxu0
        %v6434 = vadd.f32 0.0, %v6433
        %v6435 = vpop.f32.mrb[0].mxu0
        %v6436 = vpop.f32.mrb[0].mxu0
        %v6437 = vadd.f32 0.0, %v6436
        %v6438 = vpop.f32.mrb[0].mxu0
        %6439 = vmatprep.mubr.bf16.mxu0 0
        %6440 = vmatmul.mubr.bf16.gmra.mrb[0].mxu0 %v6222
        %v6441 = vpop.f32.mrb[0].mxu0
        %v6442 = vadd.f32 0.0, %v6441
        %v6443 = vpop.f32.mrb[0].mxu0
        %v6444 = vpop.f32.mrb[0].mxu0
        %v6445 = vadd.f32 0.0, %v6444
        %v6446 = vpop.f32.mrb[0].mxu0
        %6447 = vdwg.mxu0
        %v6448 = vadd.f32 %v6126, %v6322
        %v6449 = vadd.f32 %v6127, %v6325
        %v6450 = vadd.f32 %v6128, %v6330
        %v6451 = vadd.f32 %v6129, %v6333
        %v6452 = vadd.f32 %v6130, %v6338
        %v6453 = vadd.f32 %v6131, %v6341
        %v6454 = vadd.f32 %v6132, %v6346
        %v6455 = vadd.f32 %v6133, %v6349
        %v6456 = vadd.f32 %v6134, %v6354
        %v6457 = vadd.f32 %v6135, %v6357
        %v6458 = vadd.f32 %v6136, %v6362
        %v6459 = vadd.f32 %v6137, %v6365
        %v6460 = vadd.f32 %v6138, %v6370
        %v6461 = vadd.f32 %v6139, %v6373
        %v6462 = vadd.f32 %v6140, %v6378
        %v6463 = vadd.f32 %v6141, %v6381
        %v6464 = vadd.f32 %v6142, %v6386
        %v6465 = vadd.f32 %v6143, %v6389
        %v6466 = vadd.f32 %v6144, %v6394
        %v6467 = vadd.f32 %v6145, %v6397
        %v6468 = vadd.f32 %v6146, %v6402
        %v6469 = vadd.f32 %v6147, %v6405
        %v6470 = vadd.f32 %v6148, %v6410
        %v6471 = vadd.f32 %v6149, %v6413
        %v6472 = vadd.f32 %v6150, %v6418
        %v6473 = vadd.f32 %v6151, %v6421
        %v6474 = vadd.f32 %v6152, %v6426
        %v6475 = vadd.f32 %v6153, %v6429
        %v6476 = vadd.f32 %v6154, %v6434
        %v6477 = vadd.f32 %v6155, %v6437
        %v6478 = vadd.f32 %v6156, %v6442
        %v6479 = vadd.f32 %v6157, %v6445
        %6480 = vst [vmem:[#allocation3] sm:$0xff] %v6448
        %6481 = vst [vmem:[#allocation3 + $0x8] sm:$0xff] %v6449
        %6482 = vst [vmem:[#allocation3 + $0x10] sm:$0xff] %v6450
        %6483 = vst [vmem:[#allocation3 + $0x18] sm:$0xff] %v6451
        %6484 = vst [vmem:[#allocation3 + $0x20] sm:$0xff] %v6452
        %6485 = vst [vmem:[#allocation3 + $0x28] sm:$0xff] %v6453
        %6486 = vst [vmem:[#allocation3 + $0x30] sm:$0xff] %v6454
        %6487 = vst [vmem:[#allocation3 + $0x38] sm:$0xff] %v6455
        %6488 = vst [vmem:[#allocation3 + $0x40] sm:$0xff] %v6456
        %6489 = vst [vmem:[#allocation3 + $0x48] sm:$0xff] %v6457
        %6490 = vst [vmem:[#allocation3 + $0x50] sm:$0xff] %v6458
        %6491 = vst [vmem:[#allocation3 + $0x58] sm:$0xff] %v6459
        %6492 = vst [vmem:[#allocation3 + $0x60] sm:$0xff] %v6460
        %6493 = vst [vmem:[#allocation3 + $0x68] sm:$0xff] %v6461
        %6494 = vst [vmem:[#allocation3 + $0x70] sm:$0xff] %v6462
        %6495 = vst [vmem:[#allocation3 + $0x78] sm:$0xff] %v6463
        %6496 = vst [vmem:[#allocation3 + $0x80] sm:$0xff] %v6464
        %6497 = vst [vmem:[#allocation3 + $0x88] sm:$0xff] %v6465
        %6498 = vst [vmem:[#allocation3 + $0x90] sm:$0xff] %v6466
        %6499 = vst [vmem:[#allocation3 + $0x98] sm:$0xff] %v6467
        %6500 = vst [vmem:[#allocation3 + $0xa0] sm:$0xff] %v6468
        %6501 = vst [vmem:[#allocation3 + $0xa8] sm:$0xff] %v6469
        %6502 = vst [vmem:[#allocation3 + $0xb0] sm:$0xff] %v6470
        %6503 = vst [vmem:[#allocation3 + $0xb8] sm:$0xff] %v6471
        %6504 = vst [vmem:[#allocation3 + $0xc0] sm:$0xff] %v6472
        %6505 = vst [vmem:[#allocation3 + $0xc8] sm:$0xff] %v6473
        %6506 = vst [vmem:[#allocation3 + $0xd0] sm:$0xff] %v6474
        %6507 = vst [vmem:[#allocation3 + $0xd8] sm:$0xff] %v6475
        %6508 = vst [vmem:[#allocation3 + $0xe0] sm:$0xff] %v6476
        %6509 = vst [vmem:[#allocation3 + $0xe8] sm:$0xff] %v6477
        %6510 = vst [vmem:[#allocation3 + $0xf0] sm:$0xff] %v6478
        %6511 = vst [vmem:[#allocation3 + $0xf8] sm:$0xff] %v6479
        %v6512 = vld [vmem:[#allocation3] sm:$0xff]
        %v6513 = vld [vmem:[#allocation3 + $0x8] sm:$0xff]
        %v6514 = vld [vmem:[#allocation3 + $0x10] sm:$0xff]
        %v6515 = vld [vmem:[#allocation3 + $0x18] sm:$0xff]
        %v6516 = vld [vmem:[#allocation3 + $0x20] sm:$0xff]
        %v6517 = vld [vmem:[#allocation3 + $0x28] sm:$0xff]
        %v6518 = vld [vmem:[#allocation3 + $0x30] sm:$0xff]
        %v6519 = vld [vmem:[#allocation3 + $0x38] sm:$0xff]
        %v6520 = vld [vmem:[#allocation3 + $0x40] sm:$0xff]
        %v6521 = vld [vmem:[#allocation3 + $0x48] sm:$0xff]
        %v6522 = vld [vmem:[#allocation3 + $0x50] sm:$0xff]
        %v6523 = vld [vmem:[#allocation3 + $0x58] sm:$0xff]
        %v6524 = vld [vmem:[#allocation3 + $0x60] sm:$0xff]
        %v6525 = vld [vmem:[#allocation3 + $0x68] sm:$0xff]
        %v6526 = vld [vmem:[#allocation3 + $0x70] sm:$0xff]
        %v6527 = vld [vmem:[#allocation3 + $0x78] sm:$0xff]
        %v6528 = vld [vmem:[#allocation3 + $0x80] sm:$0xff]
        %v6529 = vld [vmem:[#allocation3 + $0x88] sm:$0xff]
        %v6530 = vld [vmem:[#allocation3 + $0x90] sm:$0xff]
        %v6531 = vld [vmem:[#allocation3 + $0x98] sm:$0xff]
        %v6532 = vld [vmem:[#allocation3 + $0xa0] sm:$0xff]
        %v6533 = vld [vmem:[#allocation3 + $0xa8] sm:$0xff]
        %v6534 = vld [vmem:[#allocation3 + $0xb0] sm:$0xff]
        %v6535 = vld [vmem:[#allocation3 + $0xb8] sm:$0xff]
        %v6536 = vld [vmem:[#allocation3 + $0xc0] sm:$0xff]
        %v6537 = vld [vmem:[#allocation3 + $0xc8] sm:$0xff]
        %v6538 = vld [vmem:[#allocation3 + $0xd0] sm:$0xff]
        %v6539 = vld [vmem:[#allocation3 + $0xd8] sm:$0xff]
        %v6540 = vld [vmem:[#allocation3 + $0xe0] sm:$0xff]
        %v6541 = vld [vmem:[#allocation3 + $0xe8] sm:$0xff]
        %v6542 = vld [vmem:[#allocation3 + $0xf0] sm:$0xff]
        %v6543 = vld [vmem:[#allocation3 + $0xf8] sm:$0xff]
        %s6544 = scalar_lea.vmem [#allocation4], 192
        %v6545 = vld [vmem:[%s6544] sm:$0xf]
        %v6546 = vld [vmem:[%s6544 + $0x4] sm:$0xf]
        %v6547 = vld [vmem:[%s6544 + $0x8] sm:$0xf]
        %v6548 = vld [vmem:[%s6544 + $0xc] sm:$0xf]
        %v6549 = vld [vmem:[%s6544 + $0x10] sm:$0xf]
        %v6550 = vld [vmem:[%s6544 + $0x14] sm:$0xf]
        %v6551 = vld [vmem:[%s6544 + $0x18] sm:$0xf]
        %v6552 = vld [vmem:[%s6544 + $0x1c] sm:$0xf]
        %v6553 = vld [vmem:[%s6544 + $0x20] sm:$0xf]
        %v6554 = vld [vmem:[%s6544 + $0x24] sm:$0xf]
        %v6555 = vld [vmem:[%s6544 + $0x28] sm:$0xf]
        %v6556 = vld [vmem:[%s6544 + $0x2c] sm:$0xf]
        %v6557 = vld [vmem:[%s6544 + $0x30] sm:$0xf]
        %v6558 = vld [vmem:[%s6544 + $0x34] sm:$0xf]
        %v6559 = vld [vmem:[%s6544 + $0x38] sm:$0xf]
        %v6560 = vld [vmem:[%s6544 + $0x3c] sm:$0xf]
        %v6563 = vunpack.c.l.b16 %v4805
        %v6564 = vunpack.c.l.b16 %v4806
        %v6565 = vpack.c.b16 %v6564, %v6563
        %v6583 = vunpack.c.l.b16 %v6545
        %v6584 = vunpack.c.l.b16 %v6546
        %v6585 = vunpack.c.l.b16 %v6547
        %v6586 = vunpack.c.l.b16 %v6548
        %v6587 = vunpack.c.l.b16 %v6549
        %v6588 = vunpack.c.l.b16 %v6550
        %v6589 = vunpack.c.l.b16 %v6551
        %v6590 = vunpack.c.l.b16 %v6552
        %v6591 = vunpack.c.l.b16 %v6553
        %v6592 = vunpack.c.l.b16 %v6554
        %v6593 = vunpack.c.l.b16 %v6555
        %v6594 = vunpack.c.l.b16 %v6556
        %v6595 = vunpack.c.l.b16 %v6557
        %v6596 = vunpack.c.l.b16 %v6558
        %v6597 = vunpack.c.l.b16 %v6559
        %v6598 = vunpack.c.l.b16 %v6560
        %v6599 = vpack.c.b16 %v6584, %v6583
        %v6600 = vpack.c.b16 %v6586, %v6585
        %v6601 = vpack.c.b16 %v6588, %v6587
        %v6602 = vpack.c.b16 %v6590, %v6589
        %v6603 = vpack.c.b16 %v6592, %v6591
        %v6604 = vpack.c.b16 %v6594, %v6593
        %v6605 = vpack.c.b16 %v6596, %v6595
        %v6606 = vpack.c.b16 %v6598, %v6597
        %6615 = vmatprep.subr.bf16.mxu0 0
        %6616 = vmatpush1.bf16.msra.mxu0 %v6599
        %6617 = vmatprep.subr.bf16.mxu0 0
        %6618 = vmatpush1.bf16.msra.mxu0 %v6600
        %6619 = vmatprep.subr.bf16.mxu0 0
        %6620 = vmatpush1.bf16.msra.mxu0 %v6601
        %6621 = vmatprep.subr.bf16.mxu0 0
        %6622 = vmatpush1.bf16.msra.mxu0 %v6602
        %6623 = vmatprep.subr.bf16.mxu0 0
        %6624 = vmatpush1.bf16.msra.mxu0 %v6603
        %6625 = vmatprep.subr.bf16.mxu0 0
        %6626 = vmatpush1.bf16.msra.mxu0 %v6604
        %6627 = vmatprep.subr.bf16.mxu0 0
        %6628 = vmatpush1.bf16.msra.mxu0 %v6605
        %6629 = vmatprep.subr.bf16.mxu0 0
        %6630 = vmatpush1.bf16.msra.mxu0 %v6606
        %6631 = vmatprep.subr.bf16.mxu0 0
        %6632 = vmatpush1.bf16.msra.mxu0 0
        %6633 = vmatprep.subr.bf16.mxu0 0
        %6634 = vmatpush1.bf16.msra.mxu0 0
        %6635 = vmatprep.subr.bf16.mxu0 0
        %6636 = vmatpush1.bf16.msra.mxu0 0
        %6637 = vmatprep.subr.bf16.mxu0 0
        %6638 = vmatpush1.bf16.msra.mxu0 0
        %6639 = vmatprep.subr.bf16.mxu0 0
        %6640 = vmatpush1.bf16.msra.mxu0 0
        %6641 = vmatprep.subr.bf16.mxu0 0
        %6642 = vmatpush1.bf16.msra.mxu0 0
        %6643 = vmatprep.subr.bf16.mxu0 0
        %6644 = vmatpush1.bf16.msra.mxu0 0
        %6645 = vmatprep.subr.bf16.mxu0 0
        %6646 = vmatpush1.bf16.msra.mxu0 0
        %6647 = vmatprep.mubr.bf16.mxu0 0
        %6648 = vmatmul.mubr.bf16.gmra.mrb[0].mxu0 %v4924
        %v6649 = vpop.f32.mrb[0].mxu0
        %v6650 = vadd.f32 0.0, %v6649
        %v6651 = vpop.f32.mrb[0].mxu0
        %v6652 = vpop.f32.mrb[0].mxu0
        %v6653 = vadd.f32 0.0, %v6652
        %v6654 = vpop.f32.mrb[0].mxu0
        %6655 = vmatprep.mubr.bf16.mxu0 0
        %6656 = vmatmul.mubr.bf16.gmra.mrb[0].mxu0 %v4925
        %v6657 = vpop.f32.mrb[0].mxu0
        %v6658 = vadd.f32 0.0, %v6657
        %v6659 = vpop.f32.mrb[0].mxu0
        %v6660 = vpop.f32.mrb[0].mxu0
        %v6661 = vadd.f32 0.0, %v6660
        %v6662 = vpop.f32.mrb[0].mxu0
        %6663 = vmatprep.mubr.bf16.mxu0 0
        %6664 = vmatmul.mubr.bf16.gmra.mrb[0].mxu0 %v4926
        %v6665 = vpop.f32.mrb[0].mxu0
        %v6666 = vadd.f32 0.0, %v6665
        %v6667 = vpop.f32.mrb[0].mxu0
        %v6668 = vpop.f32.mrb[0].mxu0
        %v6669 = vadd.f32 0.0, %v6668
        %v6670 = vpop.f32.mrb[0].mxu0
        %6671 = vmatprep.mubr.bf16.mxu0 0
        %6672 = vmatmul.mubr.bf16.gmra.mrb[0].mxu0 %v4927
        %v6673 = vpop.f32.mrb[0].mxu0
        %v6674 = vadd.f32 0.0, %v6673
        %v6675 = vpop.f32.mrb[0].mxu0
        %v6676 = vpop.f32.mrb[0].mxu0
        %v6677 = vadd.f32 0.0, %v6676
        %v6678 = vpop.f32.mrb[0].mxu0
        %6679 = vmatprep.mubr.bf16.mxu0 0
        %6680 = vmatmul.mubr.bf16.gmra.mrb[0].mxu0 %v4928
        %v6681 = vpop.f32.mrb[0].mxu0
        %v6682 = vadd.f32 0.0, %v6681
        %v6683 = vpop.f32.mrb[0].mxu0
        %v6684 = vpop.f32.mrb[0].mxu0
        %v6685 = vadd.f32 0.0, %v6684
        %v6686 = vpop.f32.mrb[0].mxu0
        %6687 = vmatprep.mubr.bf16.mxu0 0
        %6688 = vmatmul.mubr.bf16.gmra.mrb[0].mxu0 %v4929
        %v6689 = vpop.f32.mrb[0].mxu0
        %v6690 = vadd.f32 0.0, %v6689
        %v6691 = vpop.f32.mrb[0].mxu0
        %v6692 = vpop.f32.mrb[0].mxu0
        %v6693 = vadd.f32 0.0, %v6692
        %v6694 = vpop.f32.mrb[0].mxu0
        %6695 = vmatprep.mubr.bf16.mxu0 0
        %6696 = vmatmul.mubr.bf16.gmra.mrb[0].mxu0 %v4930
        %v6697 = vpop.f32.mrb[0].mxu0
        %v6698 = vadd.f32 0.0, %v6697
        %v6699 = vpop.f32.mrb[0].mxu0
        %v6700 = vpop.f32.mrb[0].mxu0
        %v6701 = vadd.f32 0.0, %v6700
        %v6702 = vpop.f32.mrb[0].mxu0
        %6703 = vmatprep.mubr.bf16.mxu0 0
        %6704 = vmatmul.mubr.bf16.gmra.mrb[0].mxu0 %v4931
        %v6705 = vpop.f32.mrb[0].mxu0
        %v6706 = vadd.f32 0.0, %v6705
        %v6707 = vpop.f32.mrb[0].mxu0
        %v6708 = vpop.f32.mrb[0].mxu0
        %v6709 = vadd.f32 0.0, %v6708
        %v6710 = vpop.f32.mrb[0].mxu0
        %6711 = vmatprep.mubr.bf16.mxu0 0
        %6712 = vmatmul.mubr.bf16.gmra.mrb[0].mxu0 %v4932
        %v6713 = vpop.f32.mrb[0].mxu0
        %v6714 = vadd.f32 0.0, %v6713
        %v6715 = vpop.f32.mrb[0].mxu0
        %v6716 = vpop.f32.mrb[0].mxu0
        %v6717 = vadd.f32 0.0, %v6716
        %v6718 = vpop.f32.mrb[0].mxu0
        %6719 = vmatprep.mubr.bf16.mxu0 0
        %6720 = vmatmul.mubr.bf16.gmra.mrb[0].mxu0 %v4933
        %v6721 = vpop.f32.mrb[0].mxu0
        %v6722 = vadd.f32 0.0, %v6721
        %v6723 = vpop.f32.mrb[0].mxu0
        %v6724 = vpop.f32.mrb[0].mxu0
        %v6725 = vadd.f32 0.0, %v6724
        %v6726 = vpop.f32.mrb[0].mxu0
        %6727 = vmatprep.mubr.bf16.mxu0 0
        %6728 = vmatmul.mubr.bf16.gmra.mrb[0].mxu0 %v4934
        %v6729 = vpop.f32.mrb[0].mxu0
        %v6730 = vadd.f32 0.0, %v6729
        %v6731 = vpop.f32.mrb[0].mxu0
        %v6732 = vpop.f32.mrb[0].mxu0
        %v6733 = vadd.f32 0.0, %v6732
        %v6734 = vpop.f32.mrb[0].mxu0
        %6735 = vmatprep.mubr.bf16.mxu0 0
        %6736 = vmatmul.mubr.bf16.gmra.mrb[0].mxu0 %v4935
        %v6737 = vpop.f32.mrb[0].mxu0
        %v6738 = vadd.f32 0.0, %v6737
        %v6739 = vpop.f32.mrb[0].mxu0
        %v6740 = vpop.f32.mrb[0].mxu0
        %v6741 = vadd.f32 0.0, %v6740
        %v6742 = vpop.f32.mrb[0].mxu0
        %6743 = vmatprep.mubr.bf16.mxu0 0
        %6744 = vmatmul.mubr.bf16.gmra.mrb[0].mxu0 %v4936
        %v6745 = vpop.f32.mrb[0].mxu0
        %v6746 = vadd.f32 0.0, %v6745
        %v6747 = vpop.f32.mrb[0].mxu0
        %v6748 = vpop.f32.mrb[0].mxu0
        %v6749 = vadd.f32 0.0, %v6748
        %v6750 = vpop.f32.mrb[0].mxu0
        %6751 = vmatprep.mubr.bf16.mxu0 0
        %6752 = vmatmul.mubr.bf16.gmra.mrb[0].mxu0 %v4937
        %v6753 = vpop.f32.mrb[0].mxu0
        %v6754 = vadd.f32 0.0, %v6753
        %v6755 = vpop.f32.mrb[0].mxu0
        %v6756 = vpop.f32.mrb[0].mxu0
        %v6757 = vadd.f32 0.0, %v6756
        %v6758 = vpop.f32.mrb[0].mxu0
        %6759 = vmatprep.mubr.bf16.mxu0 0
        %6760 = vmatmul.mubr.bf16.gmra.mrb[0].mxu0 %v4938
        %v6761 = vpop.f32.mrb[0].mxu0
        %v6762 = vadd.f32 0.0, %v6761
        %v6763 = vpop.f32.mrb[0].mxu0
        %v6764 = vpop.f32.mrb[0].mxu0
        %v6765 = vadd.f32 0.0, %v6764
        %v6766 = vpop.f32.mrb[0].mxu0
        %6767 = vmatprep.mubr.bf16.mxu0 0
        %6768 = vmatmul.mubr.bf16.gmra.mrb[0].mxu0 %v6565
        %v6769 = vpop.f32.mrb[0].mxu0
        %v6770 = vadd.f32 0.0, %v6769
        %v6771 = vpop.f32.mrb[0].mxu0
        %v6772 = vpop.f32.mrb[0].mxu0
        %v6773 = vadd.f32 0.0, %v6772
        %v6774 = vpop.f32.mrb[0].mxu0
        %6775 = vdwg.mxu0
        %v6776 = vadd.f32 %v6512, %v6650
        %v6777 = vadd.f32 %v6513, %v6653
        %v6778 = vadd.f32 %v6514, %v6658
        %v6779 = vadd.f32 %v6515, %v6661
        %v6780 = vadd.f32 %v6516, %v6666
        %v6781 = vadd.f32 %v6517, %v6669
        %v6782 = vadd.f32 %v6518, %v6674
        %v6783 = vadd.f32 %v6519, %v6677
        %v6784 = vadd.f32 %v6520, %v6682
        %v6785 = vadd.f32 %v6521, %v6685
        %v6786 = vadd.f32 %v6522, %v6690
        %v6787 = vadd.f32 %v6523, %v6693
        %v6788 = vadd.f32 %v6524, %v6698
        %v6789 = vadd.f32 %v6525, %v6701
        %v6790 = vadd.f32 %v6526, %v6706
        %v6791 = vadd.f32 %v6527, %v6709
        %v6792 = vadd.f32 %v6528, %v6714
        %v6793 = vadd.f32 %v6529, %v6717
        %v6794 = vadd.f32 %v6530, %v6722
        %v6795 = vadd.f32 %v6531, %v6725
        %v6796 = vadd.f32 %v6532, %v6730
        %v6797 = vadd.f32 %v6533, %v6733
        %v6798 = vadd.f32 %v6534, %v6738
        %v6799 = vadd.f32 %v6535, %v6741
        %v6800 = vadd.f32 %v6536, %v6746
        %v6801 = vadd.f32 %v6537, %v6749
        %v6802 = vadd.f32 %v6538, %v6754
        %v6803 = vadd.f32 %v6539, %v6757
        %v6804 = vadd.f32 %v6540, %v6762
        %v6805 = vadd.f32 %v6541, %v6765
        %v6806 = vadd.f32 %v6542, %v6770
        %v6807 = vadd.f32 %v6543, %v6773
        %6808 = vst [vmem:[#allocation3] sm:$0xff] %v6776
        %6809 = vst [vmem:[#allocation3 + $0x8] sm:$0xff] %v6777
        %6810 = vst [vmem:[#allocation3 + $0x10] sm:$0xff] %v6778
        %6811 = vst [vmem:[#allocation3 + $0x18] sm:$0xff] %v6779
        %6812 = vst [vmem:[#allocation3 + $0x20] sm:$0xff] %v6780
        %6813 = vst [vmem:[#allocation3 + $0x28] sm:$0xff] %v6781
        %6814 = vst [vmem:[#allocation3 + $0x30] sm:$0xff] %v6782
        %6815 = vst [vmem:[#allocation3 + $0x38] sm:$0xff] %v6783
        %6816 = vst [vmem:[#allocation3 + $0x40] sm:$0xff] %v6784
        %6817 = vst [vmem:[#allocation3 + $0x48] sm:$0xff] %v6785
        %6818 = vst [vmem:[#allocation3 + $0x50] sm:$0xff] %v6786
        %6819 = vst [vmem:[#allocation3 + $0x58] sm:$0xff] %v6787
        %6820 = vst [vmem:[#allocation3 + $0x60] sm:$0xff] %v6788
        %6821 = vst [vmem:[#allocation3 + $0x68] sm:$0xff] %v6789
        %6822 = vst [vmem:[#allocation3 + $0x70] sm:$0xff] %v6790
        %6823 = vst [vmem:[#allocation3 + $0x78] sm:$0xff] %v6791
        %6824 = vst [vmem:[#allocation3 + $0x80] sm:$0xff] %v6792
        %6825 = vst [vmem:[#allocation3 + $0x88] sm:$0xff] %v6793
        %6826 = vst [vmem:[#allocation3 + $0x90] sm:$0xff] %v6794
        %6827 = vst [vmem:[#allocation3 + $0x98] sm:$0xff] %v6795
        %6828 = vst [vmem:[#allocation3 + $0xa0] sm:$0xff] %v6796
        %6829 = vst [vmem:[#allocation3 + $0xa8] sm:$0xff] %v6797
        %6830 = vst [vmem:[#allocation3 + $0xb0] sm:$0xff] %v6798
        %6831 = vst [vmem:[#allocation3 + $0xb8] sm:$0xff] %v6799
        %6832 = vst [vmem:[#allocation3 + $0xc0] sm:$0xff] %v6800
        %6833 = vst [vmem:[#allocation3 + $0xc8] sm:$0xff] %v6801
        %6834 = vst [vmem:[#allocation3 + $0xd0] sm:$0xff] %v6802
        %6835 = vst [vmem:[#allocation3 + $0xd8] sm:$0xff] %v6803
        %6836 = vst [vmem:[#allocation3 + $0xe0] sm:$0xff] %v6804
        %6837 = vst [vmem:[#allocation3 + $0xe8] sm:$0xff] %v6805
        %6838 = vst [vmem:[#allocation3 + $0xf0] sm:$0xff] %v6806
        %6839 = vst [vmem:[#allocation3 + $0xf8] sm:$0xff] %v6807
        %v6841 = vshrl.u32 %v4805, 16
        %v6843 = vrot.slane %v6841, 4
        %v6844 = vshll.u32 %v4805, 16
        %v6846 = vrot.slane %v6844, 5
        %v6847 = vor.u32 %v6843, %v6846
        %v6848 = vrot.slane %v6847, 4
        %v6850 = vshll.u32 %v4806, 16
        %v6852 = vrot.slane %v6850, 5
        %v6853 = vsel %vm751, %v6848, %v6852
        %v6854 = vshrl.u32 %v4806, 16
        %v6856 = vrot.slane %v6854, 4
        %v6857 = vor.u32 %v6856, %v6852
        %v6858 = vrot.slane %v6857, 4
        %v6860 = vshll.u32 %v4807, 16
        %v6862 = vrot.slane %v6860, 5
        %v6863 = vsel %vm751, %v6858, %v6862
        %v6864 = vld [vmem:[#allocation3] sm:$0xff]
        %v6865 = vld [vmem:[#allocation3 + $0x8] sm:$0xff]
        %v6866 = vld [vmem:[#allocation3 + $0x10] sm:$0xff]
        %v6867 = vld [vmem:[#allocation3 + $0x18] sm:$0xff]
        %v6868 = vld [vmem:[#allocation3 + $0x20] sm:$0xff]
        %v6869 = vld [vmem:[#allocation3 + $0x28] sm:$0xff]
        %v6870 = vld [vmem:[#allocation3 + $0x30] sm:$0xff]
        %v6871 = vld [vmem:[#allocation3 + $0x38] sm:$0xff]
        %v6872 = vld [vmem:[#allocation3 + $0x40] sm:$0xff]
        %v6873 = vld [vmem:[#allocation3 + $0x48] sm:$0xff]
        %v6874 = vld [vmem:[#allocation3 + $0x50] sm:$0xff]
        %v6875 = vld [vmem:[#allocation3 + $0x58] sm:$0xff]
        %v6876 = vld [vmem:[#allocation3 + $0x60] sm:$0xff]
        %v6877 = vld [vmem:[#allocation3 + $0x68] sm:$0xff]
        %v6878 = vld [vmem:[#allocation3 + $0x70] sm:$0xff]
        %v6879 = vld [vmem:[#allocation3 + $0x78] sm:$0xff]
        %v6880 = vld [vmem:[#allocation3 + $0x80] sm:$0xff]
        %v6881 = vld [vmem:[#allocation3 + $0x88] sm:$0xff]
        %v6882 = vld [vmem:[#allocation3 + $0x90] sm:$0xff]
        %v6883 = vld [vmem:[#allocation3 + $0x98] sm:$0xff]
        %v6884 = vld [vmem:[#allocation3 + $0xa0] sm:$0xff]
        %v6885 = vld [vmem:[#allocation3 + $0xa8] sm:$0xff]
        %v6886 = vld [vmem:[#allocation3 + $0xb0] sm:$0xff]
        %v6887 = vld [vmem:[#allocation3 + $0xb8] sm:$0xff]
        %v6888 = vld [vmem:[#allocation3 + $0xc0] sm:$0xff]
        %v6889 = vld [vmem:[#allocation3 + $0xc8] sm:$0xff]
        %v6890 = vld [vmem:[#allocation3 + $0xd0] sm:$0xff]
        %v6891 = vld [vmem:[#allocation3 + $0xd8] sm:$0xff]
        %v6892 = vld [vmem:[#allocation3 + $0xe0] sm:$0xff]
        %v6893 = vld [vmem:[#allocation3 + $0xe8] sm:$0xff]
        %v6894 = vld [vmem:[#allocation3 + $0xf0] sm:$0xff]
        %v6895 = vld [vmem:[#allocation3 + $0xf8] sm:$0xff]
        %s6896 = scalar_lea.vmem [#allocation4], 256
        %v6897 = vld [vmem:[%s6896] sm:$0xf]
        %v6898 = vld [vmem:[%s6896 + $0x4] sm:$0xf]
        %v6899 = vld [vmem:[%s6896 + $0x8] sm:$0xf]
        %v6900 = vld [vmem:[%s6896 + $0xc] sm:$0xf]
        %v6901 = vld [vmem:[%s6896 + $0x10] sm:$0xf]
        %v6902 = vld [vmem:[%s6896 + $0x14] sm:$0xf]
        %v6903 = vld [vmem:[%s6896 + $0x18] sm:$0xf]
        %v6904 = vld [vmem:[%s6896 + $0x1c] sm:$0xf]
        %v6905 = vld [vmem:[%s6896 + $0x20] sm:$0xf]
        %v6906 = vld [vmem:[%s6896 + $0x24] sm:$0xf]
        %v6907 = vld [vmem:[%s6896 + $0x28] sm:$0xf]
        %v6908 = vld [vmem:[%s6896 + $0x2c] sm:$0xf]
        %v6909 = vld [vmem:[%s6896 + $0x30] sm:$0xf]
        %v6910 = vld [vmem:[%s6896 + $0x34] sm:$0xf]
        %v6911 = vld [vmem:[%s6896 + $0x38] sm:$0xf]
        %v6912 = vld [vmem:[%s6896 + $0x3c] sm:$0xf]
        %v6913 = vunpack.c.l.b16 %v6853
        %v6914 = vunpack.c.l.b16 %v6863
        %v6915 = vpack.c.b16 %v6914, %v6913
        %v6933 = vunpack.c.l.b16 %v6897
        %v6934 = vunpack.c.l.b16 %v6898
        %v6935 = vunpack.c.l.b16 %v6899
        %v6936 = vunpack.c.l.b16 %v6900
        %v6937 = vunpack.c.l.b16 %v6901
        %v6938 = vunpack.c.l.b16 %v6902
        %v6939 = vunpack.c.l.b16 %v6903
        %v6940 = vunpack.c.l.b16 %v6904
        %v6941 = vunpack.c.l.b16 %v6905
        %v6942 = vunpack.c.l.b16 %v6906
        %v6943 = vunpack.c.l.b16 %v6907
        %v6944 = vunpack.c.l.b16 %v6908
        %v6945 = vunpack.c.l.b16 %v6909
        %v6946 = vunpack.c.l.b16 %v6910
        %v6947 = vunpack.c.l.b16 %v6911
        %v6948 = vunpack.c.l.b16 %v6912
        %v6949 = vpack.c.b16 %v6934, %v6933
        %v6950 = vpack.c.b16 %v6936, %v6935
        %v6951 = vpack.c.b16 %v6938, %v6937
        %v6952 = vpack.c.b16 %v6940, %v6939
        %v6953 = vpack.c.b16 %v6942, %v6941
        %v6954 = vpack.c.b16 %v6944, %v6943
        %v6955 = vpack.c.b16 %v6946, %v6945
        %v6956 = vpack.c.b16 %v6948, %v6947
        %6965 = vmatprep.subr.bf16.mxu0 0
        %6966 = vmatpush1.bf16.msra.mxu0 %v6949
        %6967 = vmatprep.subr.bf16.mxu0 0
        %6968 = vmatpush1.bf16.msra.mxu0 %v6950
        %6969 = vmatprep.subr.bf16.mxu0 0
        %6970 = vmatpush1.bf16.msra.mxu0 %v6951
        %6971 = vmatprep.subr.bf16.mxu0 0
        %6972 = vmatpush1.bf16.msra.mxu0 %v6952
        %6973 = vmatprep.subr.bf16.mxu0 0
        %6974 = vmatpush1.bf16.msra.mxu0 %v6953
        %6975 = vmatprep.subr.bf16.mxu0 0
        %6976 = vmatpush1.bf16.msra.mxu0 %v6954
        %6977 = vmatprep.subr.bf16.mxu0 0
        %6978 = vmatpush1.bf16.msra.mxu0 %v6955
        %6979 = vmatprep.subr.bf16.mxu0 0
        %6980 = vmatpush1.bf16.msra.mxu0 %v6956
        %6981 = vmatprep.subr.bf16.mxu0 0
        %6982 = vmatpush1.bf16.msra.mxu0 0
        %6983 = vmatprep.subr.bf16.mxu0 0
        %6984 = vmatpush1.bf16.msra.mxu0 0
        %6985 = vmatprep.subr.bf16.mxu0 0
        %6986 = vmatpush1.bf16.msra.mxu0 0
        %6987 = vmatprep.subr.bf16.mxu0 0
        %6988 = vmatpush1.bf16.msra.mxu0 0
        %6989 = vmatprep.subr.bf16.mxu0 0
        %6990 = vmatpush1.bf16.msra.mxu0 0
        %6991 = vmatprep.subr.bf16.mxu0 0
        %6992 = vmatpush1.bf16.msra.mxu0 0
        %6993 = vmatprep.subr.bf16.mxu0 0
        %6994 = vmatpush1.bf16.msra.mxu0 0
        %6995 = vmatprep.subr.bf16.mxu0 0
        %6996 = vmatpush1.bf16.msra.mxu0 0
        %6997 = vmatprep.mubr.bf16.mxu0 0
        %6998 = vmatmul.mubr.bf16.gmra.mrb[0].mxu0 %v5694
        %v6999 = vpop.f32.mrb[0].mxu0
        %v7000 = vadd.f32 0.0, %v6999
        %v7001 = vpop.f32.mrb[0].mxu0
        %v7002 = vpop.f32.mrb[0].mxu0
        %v7003 = vadd.f32 0.0, %v7002
        %v7004 = vpop.f32.mrb[0].mxu0
        %7005 = vmatprep.mubr.bf16.mxu0 0
        %7006 = vmatmul.mubr.bf16.gmra.mrb[0].mxu0 %v5695
        %v7007 = vpop.f32.mrb[0].mxu0
        %v7008 = vadd.f32 0.0, %v7007
        %v7009 = vpop.f32.mrb[0].mxu0
        %v7010 = vpop.f32.mrb[0].mxu0
        %v7011 = vadd.f32 0.0, %v7010
        %v7012 = vpop.f32.mrb[0].mxu0
        %7013 = vmatprep.mubr.bf16.mxu0 0
        %7014 = vmatmul.mubr.bf16.gmra.mrb[0].mxu0 %v5696
        %v7015 = vpop.f32.mrb[0].mxu0
        %v7016 = vadd.f32 0.0, %v7015
        %v7017 = vpop.f32.mrb[0].mxu0
        %v7018 = vpop.f32.mrb[0].mxu0
        %v7019 = vadd.f32 0.0, %v7018
        %v7020 = vpop.f32.mrb[0].mxu0
        %7021 = vmatprep.mubr.bf16.mxu0 0
        %7022 = vmatmul.mubr.bf16.gmra.mrb[0].mxu0 %v5697
        %v7023 = vpop.f32.mrb[0].mxu0
        %v7024 = vadd.f32 0.0, %v7023
        %v7025 = vpop.f32.mrb[0].mxu0
        %v7026 = vpop.f32.mrb[0].mxu0
        %v7027 = vadd.f32 0.0, %v7026
        %v7028 = vpop.f32.mrb[0].mxu0
        %7029 = vmatprep.mubr.bf16.mxu0 0
        %7030 = vmatmul.mubr.bf16.gmra.mrb[0].mxu0 %v5698
        %v7031 = vpop.f32.mrb[0].mxu0
        %v7032 = vadd.f32 0.0, %v7031
        %v7033 = vpop.f32.mrb[0].mxu0
        %v7034 = vpop.f32.mrb[0].mxu0
        %v7035 = vadd.f32 0.0, %v7034
        %v7036 = vpop.f32.mrb[0].mxu0
        %7037 = vmatprep.mubr.bf16.mxu0 0
        %7038 = vmatmul.mubr.bf16.gmra.mrb[0].mxu0 %v5699
        %v7039 = vpop.f32.mrb[0].mxu0
        %v7040 = vadd.f32 0.0, %v7039
        %v7041 = vpop.f32.mrb[0].mxu0
        %v7042 = vpop.f32.mrb[0].mxu0
        %v7043 = vadd.f32 0.0, %v7042
        %v7044 = vpop.f32.mrb[0].mxu0
        %7045 = vmatprep.mubr.bf16.mxu0 0
        %7046 = vmatmul.mubr.bf16.gmra.mrb[0].mxu0 %v5700
        %v7047 = vpop.f32.mrb[0].mxu0
        %v7048 = vadd.f32 0.0, %v7047
        %v7049 = vpop.f32.mrb[0].mxu0
        %v7050 = vpop.f32.mrb[0].mxu0
        %v7051 = vadd.f32 0.0, %v7050
        %v7052 = vpop.f32.mrb[0].mxu0
        %7053 = vmatprep.mubr.bf16.mxu0 0
        %7054 = vmatmul.mubr.bf16.gmra.mrb[0].mxu0 %v5701
        %v7055 = vpop.f32.mrb[0].mxu0
        %v7056 = vadd.f32 0.0, %v7055
        %v7057 = vpop.f32.mrb[0].mxu0
        %v7058 = vpop.f32.mrb[0].mxu0
        %v7059 = vadd.f32 0.0, %v7058
        %v7060 = vpop.f32.mrb[0].mxu0
        %7061 = vmatprep.mubr.bf16.mxu0 0
        %7062 = vmatmul.mubr.bf16.gmra.mrb[0].mxu0 %v5702
        %v7063 = vpop.f32.mrb[0].mxu0
        %v7064 = vadd.f32 0.0, %v7063
        %v7065 = vpop.f32.mrb[0].mxu0
        %v7066 = vpop.f32.mrb[0].mxu0
        %v7067 = vadd.f32 0.0, %v7066
        %v7068 = vpop.f32.mrb[0].mxu0
        %7069 = vmatprep.mubr.bf16.mxu0 0
        %7070 = vmatmul.mubr.bf16.gmra.mrb[0].mxu0 %v5703
        %v7071 = vpop.f32.mrb[0].mxu0
        %v7072 = vadd.f32 0.0, %v7071
        %v7073 = vpop.f32.mrb[0].mxu0
        %v7074 = vpop.f32.mrb[0].mxu0
        %v7075 = vadd.f32 0.0, %v7074
        %v7076 = vpop.f32.mrb[0].mxu0
        %7077 = vmatprep.mubr.bf16.mxu0 0
        %7078 = vmatmul.mubr.bf16.gmra.mrb[0].mxu0 %v5704
        %v7079 = vpop.f32.mrb[0].mxu0
        %v7080 = vadd.f32 0.0, %v7079
        %v7081 = vpop.f32.mrb[0].mxu0
        %v7082 = vpop.f32.mrb[0].mxu0
        %v7083 = vadd.f32 0.0, %v7082
        %v7084 = vpop.f32.mrb[0].mxu0
        %7085 = vmatprep.mubr.bf16.mxu0 0
        %7086 = vmatmul.mubr.bf16.gmra.mrb[0].mxu0 %v5705
        %v7087 = vpop.f32.mrb[0].mxu0
        %v7088 = vadd.f32 0.0, %v7087
        %v7089 = vpop.f32.mrb[0].mxu0
        %v7090 = vpop.f32.mrb[0].mxu0
        %v7091 = vadd.f32 0.0, %v7090
        %v7092 = vpop.f32.mrb[0].mxu0
        %7093 = vmatprep.mubr.bf16.mxu0 0
        %7094 = vmatmul.mubr.bf16.gmra.mrb[0].mxu0 %v5706
        %v7095 = vpop.f32.mrb[0].mxu0
        %v7096 = vadd.f32 0.0, %v7095
        %v7097 = vpop.f32.mrb[0].mxu0
        %v7098 = vpop.f32.mrb[0].mxu0
        %v7099 = vadd.f32 0.0, %v7098
        %v7100 = vpop.f32.mrb[0].mxu0
        %7101 = vmatprep.mubr.bf16.mxu0 0
        %7102 = vmatmul.mubr.bf16.gmra.mrb[0].mxu0 %v5707
        %v7103 = vpop.f32.mrb[0].mxu0
        %v7104 = vadd.f32 0.0, %v7103
        %v7105 = vpop.f32.mrb[0].mxu0
        %v7106 = vpop.f32.mrb[0].mxu0
        %v7107 = vadd.f32 0.0, %v7106
        %v7108 = vpop.f32.mrb[0].mxu0
        %7109 = vmatprep.mubr.bf16.mxu0 0
        %7110 = vmatmul.mubr.bf16.gmra.mrb[0].mxu0 %v5708
        %v7111 = vpop.f32.mrb[0].mxu0
        %v7112 = vadd.f32 0.0, %v7111
        %v7113 = vpop.f32.mrb[0].mxu0
        %v7114 = vpop.f32.mrb[0].mxu0
        %v7115 = vadd.f32 0.0, %v7114
        %v7116 = vpop.f32.mrb[0].mxu0
        %7117 = vmatprep.mubr.bf16.mxu0 0
        %7118 = vmatmul.mubr.bf16.gmra.mrb[0].mxu0 %v6915
        %v7119 = vpop.f32.mrb[0].mxu0
        %v7120 = vadd.f32 0.0, %v7119
        %v7121 = vpop.f32.mrb[0].mxu0
        %v7122 = vpop.f32.mrb[0].mxu0
        %v7123 = vadd.f32 0.0, %v7122
        %v7124 = vpop.f32.mrb[0].mxu0
        %7125 = vdwg.mxu0
        %v7126 = vadd.f32 %v6864, %v7000
        %v7127 = vadd.f32 %v6865, %v7003
        %v7128 = vadd.f32 %v6866, %v7008
        %v7129 = vadd.f32 %v6867, %v7011
        %v7130 = vadd.f32 %v6868, %v7016
        %v7131 = vadd.f32 %v6869, %v7019
        %v7132 = vadd.f32 %v6870, %v7024
        %v7133 = vadd.f32 %v6871, %v7027
        %v7134 = vadd.f32 %v6872, %v7032
        %v7135 = vadd.f32 %v6873, %v7035
        %v7136 = vadd.f32 %v6874, %v7040
        %v7137 = vadd.f32 %v6875, %v7043
        %v7138 = vadd.f32 %v6876, %v7048
        %v7139 = vadd.f32 %v6877, %v7051
        %v7140 = vadd.f32 %v6878, %v7056
        %v7141 = vadd.f32 %v6879, %v7059
        %v7142 = vadd.f32 %v6880, %v7064
        %v7143 = vadd.f32 %v6881, %v7067
        %v7144 = vadd.f32 %v6882, %v7072
        %v7145 = vadd.f32 %v6883, %v7075
        %v7146 = vadd.f32 %v6884, %v7080
        %v7147 = vadd.f32 %v6885, %v7083
        %v7148 = vadd.f32 %v6886, %v7088
        %v7149 = vadd.f32 %v6887, %v7091
        %v7150 = vadd.f32 %v6888, %v7096
        %v7151 = vadd.f32 %v6889, %v7099
        %v7152 = vadd.f32 %v6890, %v7104
        %v7153 = vadd.f32 %v6891, %v7107
        %v7154 = vadd.f32 %v6892, %v7112
        %v7155 = vadd.f32 %v6893, %v7115
        %v7156 = vadd.f32 %v6894, %v7120
        %v7157 = vadd.f32 %v6895, %v7123
        %7158 = vst [vmem:[#allocation3] sm:$0xff] %v7126
        %7159 = vst [vmem:[#allocation3 + $0x8] sm:$0xff] %v7127
        %7160 = vst [vmem:[#allocation3 + $0x10] sm:$0xff] %v7128
        %7161 = vst [vmem:[#allocation3 + $0x18] sm:$0xff] %v7129
        %7162 = vst [vmem:[#allocation3 + $0x20] sm:$0xff] %v7130
        %7163 = vst [vmem:[#allocation3 + $0x28] sm:$0xff] %v7131
        %7164 = vst [vmem:[#allocation3 + $0x30] sm:$0xff] %v7132
        %7165 = vst [vmem:[#allocation3 + $0x38] sm:$0xff] %v7133
        %7166 = vst [vmem:[#allocation3 + $0x40] sm:$0xff] %v7134
        %7167 = vst [vmem:[#allocation3 + $0x48] sm:$0xff] %v7135
        %7168 = vst [vmem:[#allocation3 + $0x50] sm:$0xff] %v7136
        %7169 = vst [vmem:[#allocation3 + $0x58] sm:$0xff] %v7137
        %7170 = vst [vmem:[#allocation3 + $0x60] sm:$0xff] %v7138
        %7171 = vst [vmem:[#allocation3 + $0x68] sm:$0xff] %v7139
        %7172 = vst [vmem:[#allocation3 + $0x70] sm:$0xff] %v7140
        %7173 = vst [vmem:[#allocation3 + $0x78] sm:$0xff] %v7141
        %7174 = vst [vmem:[#allocation3 + $0x80] sm:$0xff] %v7142
        %7175 = vst [vmem:[#allocation3 + $0x88] sm:$0xff] %v7143
        %7176 = vst [vmem:[#allocation3 + $0x90] sm:$0xff] %v7144
        %7177 = vst [vmem:[#allocation3 + $0x98] sm:$0xff] %v7145
        %7178 = vst [vmem:[#allocation3 + $0xa0] sm:$0xff] %v7146
        %7179 = vst [vmem:[#allocation3 + $0xa8] sm:$0xff] %v7147
        %7180 = vst [vmem:[#allocation3 + $0xb0] sm:$0xff] %v7148
        %7181 = vst [vmem:[#allocation3 + $0xb8] sm:$0xff] %v7149
        %7182 = vst [vmem:[#allocation3 + $0xc0] sm:$0xff] %v7150
        %7183 = vst [vmem:[#allocation3 + $0xc8] sm:$0xff] %v7151
        %7184 = vst [vmem:[#allocation3 + $0xd0] sm:$0xff] %v7152
        %7185 = vst [vmem:[#allocation3 + $0xd8] sm:$0xff] %v7153
        %7186 = vst [vmem:[#allocation3 + $0xe0] sm:$0xff] %v7154
        %7187 = vst [vmem:[#allocation3 + $0xe8] sm:$0xff] %v7155
        %7188 = vst [vmem:[#allocation3 + $0xf0] sm:$0xff] %v7156
        %7189 = vst [vmem:[#allocation3 + $0xf8] sm:$0xff] %v7157
        %v7191 = vrot.slane %v4805, 5
        %v7192 = vrot.slane %v7191, 4
        %v7193 = vrot.slane %v4806, 5
        %v7194 = vsel %vm1540, %v7192, %v7193
        %v7195 = vrot.slane %v7193, 4
        %v7196 = vrot.slane %v4807, 5
        %v7197 = vsel %vm1540, %v7195, %v7196
        %v7198 = vld [vmem:[#allocation3] sm:$0xff]
        %v7199 = vld [vmem:[#allocation3 + $0x8] sm:$0xff]
        %v7200 = vld [vmem:[#allocation3 + $0x10] sm:$0xff]
        %v7201 = vld [vmem:[#allocation3 + $0x18] sm:$0xff]
        %v7202 = vld [vmem:[#allocation3 + $0x20] sm:$0xff]
        %v7203 = vld [vmem:[#allocation3 + $0x28] sm:$0xff]
        %v7204 = vld [vmem:[#allocation3 + $0x30] sm:$0xff]
        %v7205 = vld [vmem:[#allocation3 + $0x38] sm:$0xff]
        %v7206 = vld [vmem:[#allocation3 + $0x40] sm:$0xff]
        %v7207 = vld [vmem:[#allocation3 + $0x48] sm:$0xff]
        %v7208 = vld [vmem:[#allocation3 + $0x50] sm:$0xff]
        %v7209 = vld [vmem:[#allocation3 + $0x58] sm:$0xff]
        %v7210 = vld [vmem:[#allocation3 + $0x60] sm:$0xff]
        %v7211 = vld [vmem:[#allocation3 + $0x68] sm:$0xff]
        %v7212 = vld [vmem:[#allocation3 + $0x70] sm:$0xff]
        %v7213 = vld [vmem:[#allocation3 + $0x78] sm:$0xff]
        %v7214 = vld [vmem:[#allocation3 + $0x80] sm:$0xff]
        %v7215 = vld [vmem:[#allocation3 + $0x88] sm:$0xff]
        %v7216 = vld [vmem:[#allocation3 + $0x90] sm:$0xff]
        %v7217 = vld [vmem:[#allocation3 + $0x98] sm:$0xff]
        %v7218 = vld [vmem:[#allocation3 + $0xa0] sm:$0xff]
        %v7219 = vld [vmem:[#allocation3 + $0xa8] sm:$0xff]
        %v7220 = vld [vmem:[#allocation3 + $0xb0] sm:$0xff]
        %v7221 = vld [vmem:[#allocation3 + $0xb8] sm:$0xff]
        %v7222 = vld [vmem:[#allocation3 + $0xc0] sm:$0xff]
        %v7223 = vld [vmem:[#allocation3 + $0xc8] sm:$0xff]
        %v7224 = vld [vmem:[#allocation3 + $0xd0] sm:$0xff]
        %v7225 = vld [vmem:[#allocation3 + $0xd8] sm:$0xff]
        %v7226 = vld [vmem:[#allocation3 + $0xe0] sm:$0xff]
        %v7227 = vld [vmem:[#allocation3 + $0xe8] sm:$0xff]
        %v7228 = vld [vmem:[#allocation3 + $0xf0] sm:$0xff]
        %v7229 = vld [vmem:[#allocation3 + $0xf8] sm:$0xff]
        %s7230 = scalar_lea.vmem [#allocation4], 320
        %v7231 = vld [vmem:[%s7230] sm:$0xf]
        %v7232 = vld [vmem:[%s7230 + $0x4] sm:$0xf]
        %v7233 = vld [vmem:[%s7230 + $0x8] sm:$0xf]
        %v7234 = vld [vmem:[%s7230 + $0xc] sm:$0xf]
        %v7235 = vld [vmem:[%s7230 + $0x10] sm:$0xf]
        %v7236 = vld [vmem:[%s7230 + $0x14] sm:$0xf]
        %v7237 = vld [vmem:[%s7230 + $0x18] sm:$0xf]
        %v7238 = vld [vmem:[%s7230 + $0x1c] sm:$0xf]
        %v7239 = vld [vmem:[%s7230 + $0x20] sm:$0xf]
        %v7240 = vld [vmem:[%s7230 + $0x24] sm:$0xf]
        %v7241 = vld [vmem:[%s7230 + $0x28] sm:$0xf]
        %v7242 = vld [vmem:[%s7230 + $0x2c] sm:$0xf]
        %v7243 = vld [vmem:[%s7230 + $0x30] sm:$0xf]
        %v7244 = vld [vmem:[%s7230 + $0x34] sm:$0xf]
        %v7245 = vld [vmem:[%s7230 + $0x38] sm:$0xf]
        %v7246 = vld [vmem:[%s7230 + $0x3c] sm:$0xf]
        %v7247 = vunpack.c.l.b16 %v7194
        %v7248 = vunpack.c.l.b16 %v7197
        %v7249 = vpack.c.b16 %v7248, %v7247
        %v7267 = vunpack.c.l.b16 %v7231
        %v7268 = vunpack.c.l.b16 %v7232
        %v7269 = vunpack.c.l.b16 %v7233
        %v7270 = vunpack.c.l.b16 %v7234
        %v7271 = vunpack.c.l.b16 %v7235
        %v7272 = vunpack.c.l.b16 %v7236
        %v7273 = vunpack.c.l.b16 %v7237
        %v7274 = vunpack.c.l.b16 %v7238
        %v7275 = vunpack.c.l.b16 %v7239
        %v7276 = vunpack.c.l.b16 %v7240
        %v7277 = vunpack.c.l.b16 %v7241
        %v7278 = vunpack.c.l.b16 %v7242
        %v7279 = vunpack.c.l.b16 %v7243
        %v7280 = vunpack.c.l.b16 %v7244
        %v7281 = vunpack.c.l.b16 %v7245
        %v7282 = vunpack.c.l.b16 %v7246
        %v7283 = vpack.c.b16 %v7268, %v7267
        %v7284 = vpack.c.b16 %v7270, %v7269
        %v7285 = vpack.c.b16 %v7272, %v7271
        %v7286 = vpack.c.b16 %v7274, %v7273
        %v7287 = vpack.c.b16 %v7276, %v7275
        %v7288 = vpack.c.b16 %v7278, %v7277
        %v7289 = vpack.c.b16 %v7280, %v7279
        %v7290 = vpack.c.b16 %v7282, %v7281
        %7299 = vmatprep.subr.bf16.mxu0 0
        %7300 = vmatpush1.bf16.msra.mxu0 %v7283
        %7301 = vmatprep.subr.bf16.mxu0 0
        %7302 = vmatpush1.bf16.msra.mxu0 %v7284
        %7303 = vmatprep.subr.bf16.mxu0 0
        %7304 = vmatpush1.bf16.msra.mxu0 %v7285
        %7305 = vmatprep.subr.bf16.mxu0 0
        %7306 = vmatpush1.bf16.msra.mxu0 %v7286
        %7307 = vmatprep.subr.bf16.mxu0 0
        %7308 = vmatpush1.bf16.msra.mxu0 %v7287
        %7309 = vmatprep.subr.bf16.mxu0 0
        %7310 = vmatpush1.bf16.msra.mxu0 %v7288
        %7311 = vmatprep.subr.bf16.mxu0 0
        %7312 = vmatpush1.bf16.msra.mxu0 %v7289
        %7313 = vmatprep.subr.bf16.mxu0 0
        %7314 = vmatpush1.bf16.msra.mxu0 %v7290
        %7315 = vmatprep.subr.bf16.mxu0 0
        %7316 = vmatpush1.bf16.msra.mxu0 0
        %7317 = vmatprep.subr.bf16.mxu0 0
        %7318 = vmatpush1.bf16.msra.mxu0 0
        %7319 = vmatprep.subr.bf16.mxu0 0
        %7320 = vmatpush1.bf16.msra.mxu0 0
        %7321 = vmatprep.subr.bf16.mxu0 0
        %7322 = vmatpush1.bf16.msra.mxu0 0
        %7323 = vmatprep.subr.bf16.mxu0 0
        %7324 = vmatpush1.bf16.msra.mxu0 0
        %7325 = vmatprep.subr.bf16.mxu0 0
        %7326 = vmatpush1.bf16.msra.mxu0 0
        %7327 = vmatprep.subr.bf16.mxu0 0
        %7328 = vmatpush1.bf16.msra.mxu0 0
        %7329 = vmatprep.subr.bf16.mxu0 0
        %7330 = vmatpush1.bf16.msra.mxu0 0
        %7331 = vmatprep.mubr.bf16.mxu0 0
        %7332 = vmatmul.mubr.bf16.gmra.mrb[0].mxu0 %v6208
        %v7333 = vpop.f32.mrb[0].mxu0
        %v7334 = vadd.f32 0.0, %v7333
        %v7335 = vpop.f32.mrb[0].mxu0
        %v7336 = vpop.f32.mrb[0].mxu0
        %v7337 = vadd.f32 0.0, %v7336
        %v7338 = vpop.f32.mrb[0].mxu0
        %7339 = vmatprep.mubr.bf16.mxu0 0
        %7340 = vmatmul.mubr.bf16.gmra.mrb[0].mxu0 %v6209
        %v7341 = vpop.f32.mrb[0].mxu0
        %v7342 = vadd.f32 0.0, %v7341
        %v7343 = vpop.f32.mrb[0].mxu0
        %v7344 = vpop.f32.mrb[0].mxu0
        %v7345 = vadd.f32 0.0, %v7344
        %v7346 = vpop.f32.mrb[0].mxu0
        %7347 = vmatprep.mubr.bf16.mxu0 0
        %7348 = vmatmul.mubr.bf16.gmra.mrb[0].mxu0 %v6210
        %v7349 = vpop.f32.mrb[0].mxu0
        %v7350 = vadd.f32 0.0, %v7349
        %v7351 = vpop.f32.mrb[0].mxu0
        %v7352 = vpop.f32.mrb[0].mxu0
        %v7353 = vadd.f32 0.0, %v7352
        %v7354 = vpop.f32.mrb[0].mxu0
        %7355 = vmatprep.mubr.bf16.mxu0 0
        %7356 = vmatmul.mubr.bf16.gmra.mrb[0].mxu0 %v6211
        %v7357 = vpop.f32.mrb[0].mxu0
        %v7358 = vadd.f32 0.0, %v7357
        %v7359 = vpop.f32.mrb[0].mxu0
        %v7360 = vpop.f32.mrb[0].mxu0
        %v7361 = vadd.f32 0.0, %v7360
        %v7362 = vpop.f32.mrb[0].mxu0
        %7363 = vmatprep.mubr.bf16.mxu0 0
        %7364 = vmatmul.mubr.bf16.gmra.mrb[0].mxu0 %v6212
        %v7365 = vpop.f32.mrb[0].mxu0
        %v7366 = vadd.f32 0.0, %v7365
        %v7367 = vpop.f32.mrb[0].mxu0
        %v7368 = vpop.f32.mrb[0].mxu0
        %v7369 = vadd.f32 0.0, %v7368
        %v7370 = vpop.f32.mrb[0].mxu0
        %7371 = vmatprep.mubr.bf16.mxu0 0
        %7372 = vmatmul.mubr.bf16.gmra.mrb[0].mxu0 %v6213
        %v7373 = vpop.f32.mrb[0].mxu0
        %v7374 = vadd.f32 0.0, %v7373
        %v7375 = vpop.f32.mrb[0].mxu0
        %v7376 = vpop.f32.mrb[0].mxu0
        %v7377 = vadd.f32 0.0, %v7376
        %v7378 = vpop.f32.mrb[0].mxu0
        %7379 = vmatprep.mubr.bf16.mxu0 0
        %7380 = vmatmul.mubr.bf16.gmra.mrb[0].mxu0 %v6214
        %v7381 = vpop.f32.mrb[0].mxu0
        %v7382 = vadd.f32 0.0, %v7381
        %v7383 = vpop.f32.mrb[0].mxu0
        %v7384 = vpop.f32.mrb[0].mxu0
        %v7385 = vadd.f32 0.0, %v7384
        %v7386 = vpop.f32.mrb[0].mxu0
        %7387 = vmatprep.mubr.bf16.mxu0 0
        %7388 = vmatmul.mubr.bf16.gmra.mrb[0].mxu0 %v6215
        %v7389 = vpop.f32.mrb[0].mxu0
        %v7390 = vadd.f32 0.0, %v7389
        %v7391 = vpop.f32.mrb[0].mxu0
        %v7392 = vpop.f32.mrb[0].mxu0
        %v7393 = vadd.f32 0.0, %v7392
        %v7394 = vpop.f32.mrb[0].mxu0
        %7395 = vmatprep.mubr.bf16.mxu0 0
        %7396 = vmatmul.mubr.bf16.gmra.mrb[0].mxu0 %v6216
        %v7397 = vpop.f32.mrb[0].mxu0
        %v7398 = vadd.f32 0.0, %v7397
        %v7399 = vpop.f32.mrb[0].mxu0
        %v7400 = vpop.f32.mrb[0].mxu0
        %v7401 = vadd.f32 0.0, %v7400
        %v7402 = vpop.f32.mrb[0].mxu0
        %7403 = vmatprep.mubr.bf16.mxu0 0
        %7404 = vmatmul.mubr.bf16.gmra.mrb[0].mxu0 %v6217
        %v7405 = vpop.f32.mrb[0].mxu0
        %v7406 = vadd.f32 0.0, %v7405
        %v7407 = vpop.f32.mrb[0].mxu0
        %v7408 = vpop.f32.mrb[0].mxu0
        %v7409 = vadd.f32 0.0, %v7408
        %v7410 = vpop.f32.mrb[0].mxu0
        %7411 = vmatprep.mubr.bf16.mxu0 0
        %7412 = vmatmul.mubr.bf16.gmra.mrb[0].mxu0 %v6218
        %v7413 = vpop.f32.mrb[0].mxu0
        %v7414 = vadd.f32 0.0, %v7413
        %v7415 = vpop.f32.mrb[0].mxu0
        %v7416 = vpop.f32.mrb[0].mxu0
        %v7417 = vadd.f32 0.0, %v7416
        %v7418 = vpop.f32.mrb[0].mxu0
        %7419 = vmatprep.mubr.bf16.mxu0 0
        %7420 = vmatmul.mubr.bf16.gmra.mrb[0].mxu0 %v6219
        %v7421 = vpop.f32.mrb[0].mxu0
        %v7422 = vadd.f32 0.0, %v7421
        %v7423 = vpop.f32.mrb[0].mxu0
        %v7424 = vpop.f32.mrb[0].mxu0
        %v7425 = vadd.f32 0.0, %v7424
        %v7426 = vpop.f32.mrb[0].mxu0
        %7427 = vmatprep.mubr.bf16.mxu0 0
        %7428 = vmatmul.mubr.bf16.gmra.mrb[0].mxu0 %v6220
        %v7429 = vpop.f32.mrb[0].mxu0
        %v7430 = vadd.f32 0.0, %v7429
        %v7431 = vpop.f32.mrb[0].mxu0
        %v7432 = vpop.f32.mrb[0].mxu0
        %v7433 = vadd.f32 0.0, %v7432
        %v7434 = vpop.f32.mrb[0].mxu0
        %7435 = vmatprep.mubr.bf16.mxu0 0
        %7436 = vmatmul.mubr.bf16.gmra.mrb[0].mxu0 %v6221
        %v7437 = vpop.f32.mrb[0].mxu0
        %v7438 = vadd.f32 0.0, %v7437
        %v7439 = vpop.f32.mrb[0].mxu0
        %v7440 = vpop.f32.mrb[0].mxu0
        %v7441 = vadd.f32 0.0, %v7440
        %v7442 = vpop.f32.mrb[0].mxu0
        %7443 = vmatprep.mubr.bf16.mxu0 0
        %7444 = vmatmul.mubr.bf16.gmra.mrb[0].mxu0 %v6222
        %v7445 = vpop.f32.mrb[0].mxu0
        %v7446 = vadd.f32 0.0, %v7445
        %v7447 = vpop.f32.mrb[0].mxu0
        %v7448 = vpop.f32.mrb[0].mxu0
        %v7449 = vadd.f32 0.0, %v7448
        %v7450 = vpop.f32.mrb[0].mxu0
        %7451 = vmatprep.mubr.bf16.mxu0 0
        %7452 = vmatmul.mubr.bf16.gmra.mrb[0].mxu0 %v7249
        %v7453 = vpop.f32.mrb[0].mxu0
        %v7454 = vadd.f32 0.0, %v7453
        %v7455 = vpop.f32.mrb[0].mxu0
        %v7456 = vpop.f32.mrb[0].mxu0
        %v7457 = vadd.f32 0.0, %v7456
        %v7458 = vpop.f32.mrb[0].mxu0
        %7459 = vdwg.mxu0
        %v7460 = vadd.f32 %v7198, %v7334
        %v7461 = vadd.f32 %v7199, %v7337
        %v7462 = vadd.f32 %v7200, %v7342
        %v7463 = vadd.f32 %v7201, %v7345
        %v7464 = vadd.f32 %v7202, %v7350
        %v7465 = vadd.f32 %v7203, %v7353
        %v7466 = vadd.f32 %v7204, %v7358
        %v7467 = vadd.f32 %v7205, %v7361
        %v7468 = vadd.f32 %v7206, %v7366
        %v7469 = vadd.f32 %v7207, %v7369
        %v7470 = vadd.f32 %v7208, %v7374
        %v7471 = vadd.f32 %v7209, %v7377
        %v7472 = vadd.f32 %v7210, %v7382
        %v7473 = vadd.f32 %v7211, %v7385
        %v7474 = vadd.f32 %v7212, %v7390
        %v7475 = vadd.f32 %v7213, %v7393
        %v7476 = vadd.f32 %v7214, %v7398
        %v7477 = vadd.f32 %v7215, %v7401
        %v7478 = vadd.f32 %v7216, %v7406
        %v7479 = vadd.f32 %v7217, %v7409
        %v7480 = vadd.f32 %v7218, %v7414
        %v7481 = vadd.f32 %v7219, %v7417
        %v7482 = vadd.f32 %v7220, %v7422
        %v7483 = vadd.f32 %v7221, %v7425
        %v7484 = vadd.f32 %v7222, %v7430
        %v7485 = vadd.f32 %v7223, %v7433
        %v7486 = vadd.f32 %v7224, %v7438
        %v7487 = vadd.f32 %v7225, %v7441
        %v7488 = vadd.f32 %v7226, %v7446
        %v7489 = vadd.f32 %v7227, %v7449
        %v7490 = vadd.f32 %v7228, %v7454
        %v7491 = vadd.f32 %v7229, %v7457
        %7492 = vst [vmem:[#allocation3] sm:$0xff] %v7460
        %7493 = vst [vmem:[#allocation3 + $0x8] sm:$0xff] %v7461
        %7494 = vst [vmem:[#allocation3 + $0x10] sm:$0xff] %v7462
        %7495 = vst [vmem:[#allocation3 + $0x18] sm:$0xff] %v7463
        %7496 = vst [vmem:[#allocation3 + $0x20] sm:$0xff] %v7464
        %7497 = vst [vmem:[#allocation3 + $0x28] sm:$0xff] %v7465
        %7498 = vst [vmem:[#allocation3 + $0x30] sm:$0xff] %v7466
        %7499 = vst [vmem:[#allocation3 + $0x38] sm:$0xff] %v7467
        %7500 = vst [vmem:[#allocation3 + $0x40] sm:$0xff] %v7468
        %7501 = vst [vmem:[#allocation3 + $0x48] sm:$0xff] %v7469
        %7502 = vst [vmem:[#allocation3 + $0x50] sm:$0xff] %v7470
        %7503 = vst [vmem:[#allocation3 + $0x58] sm:$0xff] %v7471
        %7504 = vst [vmem:[#allocation3 + $0x60] sm:$0xff] %v7472
        %7505 = vst [vmem:[#allocation3 + $0x68] sm:$0xff] %v7473
        %7506 = vst [vmem:[#allocation3 + $0x70] sm:$0xff] %v7474
        %7507 = vst [vmem:[#allocation3 + $0x78] sm:$0xff] %v7475
        %7508 = vst [vmem:[#allocation3 + $0x80] sm:$0xff] %v7476
        %7509 = vst [vmem:[#allocation3 + $0x88] sm:$0xff] %v7477
        %7510 = vst [vmem:[#allocation3 + $0x90] sm:$0xff] %v7478
        %7511 = vst [vmem:[#allocation3 + $0x98] sm:$0xff] %v7479
        %7512 = vst [vmem:[#allocation3 + $0xa0] sm:$0xff] %v7480
        %7513 = vst [vmem:[#allocation3 + $0xa8] sm:$0xff] %v7481
        %7514 = vst [vmem:[#allocation3 + $0xb0] sm:$0xff] %v7482
        %7515 = vst [vmem:[#allocation3 + $0xb8] sm:$0xff] %v7483
        %7516 = vst [vmem:[#allocation3 + $0xc0] sm:$0xff] %v7484
        %7517 = vst [vmem:[#allocation3 + $0xc8] sm:$0xff] %v7485
        %7518 = vst [vmem:[#allocation3 + $0xd0] sm:$0xff] %v7486
        %7519 = vst [vmem:[#allocation3 + $0xd8] sm:$0xff] %v7487
        %7520 = vst [vmem:[#allocation3 + $0xe0] sm:$0xff] %v7488
        %7521 = vst [vmem:[#allocation3 + $0xe8] sm:$0xff] %v7489
        %7522 = vst [vmem:[#allocation3 + $0xf0] sm:$0xff] %v7490
        %7523 = vst [vmem:[#allocation3 + $0xf8] sm:$0xff] %v7491
        %v7524 = vld [vmem:[#allocation3] sm:$0xff]
        %v7525 = vld [vmem:[#allocation3 + $0x8] sm:$0xff]
        %v7526 = vld [vmem:[#allocation3 + $0x10] sm:$0xff]
        %v7527 = vld [vmem:[#allocation3 + $0x18] sm:$0xff]
        %v7528 = vld [vmem:[#allocation3 + $0x20] sm:$0xff]
        %v7529 = vld [vmem:[#allocation3 + $0x28] sm:$0xff]
        %v7530 = vld [vmem:[#allocation3 + $0x30] sm:$0xff]
        %v7531 = vld [vmem:[#allocation3 + $0x38] sm:$0xff]
        %v7532 = vld [vmem:[#allocation3 + $0x40] sm:$0xff]
        %v7533 = vld [vmem:[#allocation3 + $0x48] sm:$0xff]
        %v7534 = vld [vmem:[#allocation3 + $0x50] sm:$0xff]
        %v7535 = vld [vmem:[#allocation3 + $0x58] sm:$0xff]
        %v7536 = vld [vmem:[#allocation3 + $0x60] sm:$0xff]
        %v7537 = vld [vmem:[#allocation3 + $0x68] sm:$0xff]
        %v7538 = vld [vmem:[#allocation3 + $0x70] sm:$0xff]
        %v7539 = vld [vmem:[#allocation3 + $0x78] sm:$0xff]
        %v7540 = vld [vmem:[#allocation3 + $0x80] sm:$0xff]
        %v7541 = vld [vmem:[#allocation3 + $0x88] sm:$0xff]
        %v7542 = vld [vmem:[#allocation3 + $0x90] sm:$0xff]
        %v7543 = vld [vmem:[#allocation3 + $0x98] sm:$0xff]
        %v7544 = vld [vmem:[#allocation3 + $0xa0] sm:$0xff]
        %v7545 = vld [vmem:[#allocation3 + $0xa8] sm:$0xff]
        %v7546 = vld [vmem:[#allocation3 + $0xb0] sm:$0xff]
        %v7547 = vld [vmem:[#allocation3 + $0xb8] sm:$0xff]
        %v7548 = vld [vmem:[#allocation3 + $0xc0] sm:$0xff]
        %v7549 = vld [vmem:[#allocation3 + $0xc8] sm:$0xff]
        %v7550 = vld [vmem:[#allocation3 + $0xd0] sm:$0xff]
        %v7551 = vld [vmem:[#allocation3 + $0xd8] sm:$0xff]
        %v7552 = vld [vmem:[#allocation3 + $0xe0] sm:$0xff]
        %v7553 = vld [vmem:[#allocation3 + $0xe8] sm:$0xff]
        %v7554 = vld [vmem:[#allocation3 + $0xf0] sm:$0xff]
        %v7555 = vld [vmem:[#allocation3 + $0xf8] sm:$0xff]
        %s7556 = scalar_lea.vmem [#allocation4], 384
        %v7557 = vld [vmem:[%s7556] sm:$0xf]
        %v7558 = vld [vmem:[%s7556 + $0x4] sm:$0xf]
        %v7559 = vld [vmem:[%s7556 + $0x8] sm:$0xf]
        %v7560 = vld [vmem:[%s7556 + $0xc] sm:$0xf]
        %v7561 = vld [vmem:[%s7556 + $0x10] sm:$0xf]
        %v7562 = vld [vmem:[%s7556 + $0x14] sm:$0xf]
        %v7563 = vld [vmem:[%s7556 + $0x18] sm:$0xf]
        %v7564 = vld [vmem:[%s7556 + $0x1c] sm:$0xf]
        %v7565 = vld [vmem:[%s7556 + $0x20] sm:$0xf]
        %v7566 = vld [vmem:[%s7556 + $0x24] sm:$0xf]
        %v7567 = vld [vmem:[%s7556 + $0x28] sm:$0xf]
        %v7568 = vld [vmem:[%s7556 + $0x2c] sm:$0xf]
        %v7569 = vld [vmem:[%s7556 + $0x30] sm:$0xf]
        %v7570 = vld [vmem:[%s7556 + $0x34] sm:$0xf]
        %v7571 = vld [vmem:[%s7556 + $0x38] sm:$0xf]
        %v7572 = vld [vmem:[%s7556 + $0x3c] sm:$0xf]
        %v7575 = vunpack.c.l.b16 %v4808
        %v7576 = vunpack.c.l.b16 %v4809
        %v7577 = vpack.c.b16 %v7576, %v7575
        %v7595 = vunpack.c.l.b16 %v7557
        %v7596 = vunpack.c.l.b16 %v7558
        %v7597 = vunpack.c.l.b16 %v7559
        %v7598 = vunpack.c.l.b16 %v7560
        %v7599 = vunpack.c.l.b16 %v7561
        %v7600 = vunpack.c.l.b16 %v7562
        %v7601 = vunpack.c.l.b16 %v7563
        %v7602 = vunpack.c.l.b16 %v7564
        %v7603 = vunpack.c.l.b16 %v7565
        %v7604 = vunpack.c.l.b16 %v7566
        %v7605 = vunpack.c.l.b16 %v7567
        %v7606 = vunpack.c.l.b16 %v7568
        %v7607 = vunpack.c.l.b16 %v7569
        %v7608 = vunpack.c.l.b16 %v7570
        %v7609 = vunpack.c.l.b16 %v7571
        %v7610 = vunpack.c.l.b16 %v7572
        %v7611 = vpack.c.b16 %v7596, %v7595
        %v7612 = vpack.c.b16 %v7598, %v7597
        %v7613 = vpack.c.b16 %v7600, %v7599
        %v7614 = vpack.c.b16 %v7602, %v7601
        %v7615 = vpack.c.b16 %v7604, %v7603
        %v7616 = vpack.c.b16 %v7606, %v7605
        %v7617 = vpack.c.b16 %v7608, %v7607
        %v7618 = vpack.c.b16 %v7610, %v7609
        %7627 = vmatprep.subr.bf16.mxu0 0
        %7628 = vmatpush1.bf16.msra.mxu0 %v7611
        %7629 = vmatprep.subr.bf16.mxu0 0
        %7630 = vmatpush1.bf16.msra.mxu0 %v7612
        %7631 = vmatprep.subr.bf16.mxu0 0
        %7632 = vmatpush1.bf16.msra.mxu0 %v7613
        %7633 = vmatprep.subr.bf16.mxu0 0
        %7634 = vmatpush1.bf16.msra.mxu0 %v7614
        %7635 = vmatprep.subr.bf16.mxu0 0
        %7636 = vmatpush1.bf16.msra.mxu0 %v7615
        %7637 = vmatprep.subr.bf16.mxu0 0
        %7638 = vmatpush1.bf16.msra.mxu0 %v7616
        %7639 = vmatprep.subr.bf16.mxu0 0
        %7640 = vmatpush1.bf16.msra.mxu0 %v7617
        %7641 = vmatprep.subr.bf16.mxu0 0
        %7642 = vmatpush1.bf16.msra.mxu0 %v7618
        %7643 = vmatprep.subr.bf16.mxu0 0
        %7644 = vmatpush1.bf16.msra.mxu0 0
        %7645 = vmatprep.subr.bf16.mxu0 0
        %7646 = vmatpush1.bf16.msra.mxu0 0
        %7647 = vmatprep.subr.bf16.mxu0 0
        %7648 = vmatpush1.bf16.msra.mxu0 0
        %7649 = vmatprep.subr.bf16.mxu0 0
        %7650 = vmatpush1.bf16.msra.mxu0 0
        %7651 = vmatprep.subr.bf16.mxu0 0
        %7652 = vmatpush1.bf16.msra.mxu0 0
        %7653 = vmatprep.subr.bf16.mxu0 0
        %7654 = vmatpush1.bf16.msra.mxu0 0
        %7655 = vmatprep.subr.bf16.mxu0 0
        %7656 = vmatpush1.bf16.msra.mxu0 0
        %7657 = vmatprep.subr.bf16.mxu0 0
        %7658 = vmatpush1.bf16.msra.mxu0 0
        %7659 = vmatprep.mubr.bf16.mxu0 0
        %7660 = vmatmul.mubr.bf16.gmra.mrb[0].mxu0 %v4925
        %v7661 = vpop.f32.mrb[0].mxu0
        %v7662 = vadd.f32 0.0, %v7661
        %v7663 = vpop.f32.mrb[0].mxu0
        %v7664 = vpop.f32.mrb[0].mxu0
        %v7665 = vadd.f32 0.0, %v7664
        %v7666 = vpop.f32.mrb[0].mxu0
        %7667 = vmatprep.mubr.bf16.mxu0 0
        %7668 = vmatmul.mubr.bf16.gmra.mrb[0].mxu0 %v4926
        %v7669 = vpop.f32.mrb[0].mxu0
        %v7670 = vadd.f32 0.0, %v7669
        %v7671 = vpop.f32.mrb[0].mxu0
        %v7672 = vpop.f32.mrb[0].mxu0
        %v7673 = vadd.f32 0.0, %v7672
        %v7674 = vpop.f32.mrb[0].mxu0
        %7675 = vmatprep.mubr.bf16.mxu0 0
        %7676 = vmatmul.mubr.bf16.gmra.mrb[0].mxu0 %v4927
        %v7677 = vpop.f32.mrb[0].mxu0
        %v7678 = vadd.f32 0.0, %v7677
        %v7679 = vpop.f32.mrb[0].mxu0
        %v7680 = vpop.f32.mrb[0].mxu0
        %v7681 = vadd.f32 0.0, %v7680
        %v7682 = vpop.f32.mrb[0].mxu0
        %7683 = vmatprep.mubr.bf16.mxu0 0
        %7684 = vmatmul.mubr.bf16.gmra.mrb[0].mxu0 %v4928
        %v7685 = vpop.f32.mrb[0].mxu0
        %v7686 = vadd.f32 0.0, %v7685
        %v7687 = vpop.f32.mrb[0].mxu0
        %v7688 = vpop.f32.mrb[0].mxu0
        %v7689 = vadd.f32 0.0, %v7688
        %v7690 = vpop.f32.mrb[0].mxu0
        %7691 = vmatprep.mubr.bf16.mxu0 0
        %7692 = vmatmul.mubr.bf16.gmra.mrb[0].mxu0 %v4929
        %v7693 = vpop.f32.mrb[0].mxu0
        %v7694 = vadd.f32 0.0, %v7693
        %v7695 = vpop.f32.mrb[0].mxu0
        %v7696 = vpop.f32.mrb[0].mxu0
        %v7697 = vadd.f32 0.0, %v7696
        %v7698 = vpop.f32.mrb[0].mxu0
        %7699 = vmatprep.mubr.bf16.mxu0 0
        %7700 = vmatmul.mubr.bf16.gmra.mrb[0].mxu0 %v4930
        %v7701 = vpop.f32.mrb[0].mxu0
        %v7702 = vadd.f32 0.0, %v7701
        %v7703 = vpop.f32.mrb[0].mxu0
        %v7704 = vpop.f32.mrb[0].mxu0
        %v7705 = vadd.f32 0.0, %v7704
        %v7706 = vpop.f32.mrb[0].mxu0
        %7707 = vmatprep.mubr.bf16.mxu0 0
        %7708 = vmatmul.mubr.bf16.gmra.mrb[0].mxu0 %v4931
        %v7709 = vpop.f32.mrb[0].mxu0
        %v7710 = vadd.f32 0.0, %v7709
        %v7711 = vpop.f32.mrb[0].mxu0
        %v7712 = vpop.f32.mrb[0].mxu0
        %v7713 = vadd.f32 0.0, %v7712
        %v7714 = vpop.f32.mrb[0].mxu0
        %7715 = vmatprep.mubr.bf16.mxu0 0
        %7716 = vmatmul.mubr.bf16.gmra.mrb[0].mxu0 %v4932
        %v7717 = vpop.f32.mrb[0].mxu0
        %v7718 = vadd.f32 0.0, %v7717
        %v7719 = vpop.f32.mrb[0].mxu0
        %v7720 = vpop.f32.mrb[0].mxu0
        %v7721 = vadd.f32 0.0, %v7720
        %v7722 = vpop.f32.mrb[0].mxu0
        %7723 = vmatprep.mubr.bf16.mxu0 0
        %7724 = vmatmul.mubr.bf16.gmra.mrb[0].mxu0 %v4933
        %v7725 = vpop.f32.mrb[0].mxu0
        %v7726 = vadd.f32 0.0, %v7725
        %v7727 = vpop.f32.mrb[0].mxu0
        %v7728 = vpop.f32.mrb[0].mxu0
        %v7729 = vadd.f32 0.0, %v7728
        %v7730 = vpop.f32.mrb[0].mxu0
        %7731 = vmatprep.mubr.bf16.mxu0 0
        %7732 = vmatmul.mubr.bf16.gmra.mrb[0].mxu0 %v4934
        %v7733 = vpop.f32.mrb[0].mxu0
        %v7734 = vadd.f32 0.0, %v7733
        %v7735 = vpop.f32.mrb[0].mxu0
        %v7736 = vpop.f32.mrb[0].mxu0
        %v7737 = vadd.f32 0.0, %v7736
        %v7738 = vpop.f32.mrb[0].mxu0
        %7739 = vmatprep.mubr.bf16.mxu0 0
        %7740 = vmatmul.mubr.bf16.gmra.mrb[0].mxu0 %v4935
        %v7741 = vpop.f32.mrb[0].mxu0
        %v7742 = vadd.f32 0.0, %v7741
        %v7743 = vpop.f32.mrb[0].mxu0
        %v7744 = vpop.f32.mrb[0].mxu0
        %v7745 = vadd.f32 0.0, %v7744
        %v7746 = vpop.f32.mrb[0].mxu0
        %7747 = vmatprep.mubr.bf16.mxu0 0
        %7748 = vmatmul.mubr.bf16.gmra.mrb[0].mxu0 %v4936
        %v7749 = vpop.f32.mrb[0].mxu0
        %v7750 = vadd.f32 0.0, %v7749
        %v7751 = vpop.f32.mrb[0].mxu0
        %v7752 = vpop.f32.mrb[0].mxu0
        %v7753 = vadd.f32 0.0, %v7752
        %v7754 = vpop.f32.mrb[0].mxu0
        %7755 = vmatprep.mubr.bf16.mxu0 0
        %7756 = vmatmul.mubr.bf16.gmra.mrb[0].mxu0 %v4937
        %v7757 = vpop.f32.mrb[0].mxu0
        %v7758 = vadd.f32 0.0, %v7757
        %v7759 = vpop.f32.mrb[0].mxu0
        %v7760 = vpop.f32.mrb[0].mxu0
        %v7761 = vadd.f32 0.0, %v7760
        %v7762 = vpop.f32.mrb[0].mxu0
        %7763 = vmatprep.mubr.bf16.mxu0 0
        %7764 = vmatmul.mubr.bf16.gmra.mrb[0].mxu0 %v4938
        %v7765 = vpop.f32.mrb[0].mxu0
        %v7766 = vadd.f32 0.0, %v7765
        %v7767 = vpop.f32.mrb[0].mxu0
        %v7768 = vpop.f32.mrb[0].mxu0
        %v7769 = vadd.f32 0.0, %v7768
        %v7770 = vpop.f32.mrb[0].mxu0
        %7771 = vmatprep.mubr.bf16.mxu0 0
        %7772 = vmatmul.mubr.bf16.gmra.mrb[0].mxu0 %v6565
        %v7773 = vpop.f32.mrb[0].mxu0
        %v7774 = vadd.f32 0.0, %v7773
        %v7775 = vpop.f32.mrb[0].mxu0
        %v7776 = vpop.f32.mrb[0].mxu0
        %v7777 = vadd.f32 0.0, %v7776
        %v7778 = vpop.f32.mrb[0].mxu0
        %7779 = vmatprep.mubr.bf16.mxu0 0
        %7780 = vmatmul.mubr.bf16.gmra.mrb[0].mxu0 %v7577
        %v7781 = vpop.f32.mrb[0].mxu0
        %v7782 = vadd.f32 0.0, %v7781
        %v7783 = vpop.f32.mrb[0].mxu0
        %v7784 = vpop.f32.mrb[0].mxu0
        %v7785 = vadd.f32 0.0, %v7784
        %v7786 = vpop.f32.mrb[0].mxu0
        %7787 = vdwg.mxu0
        %v7788 = vadd.f32 %v7524, %v7662
        %v7789 = vadd.f32 %v7525, %v7665
        %v7790 = vadd.f32 %v7526, %v7670
        %v7791 = vadd.f32 %v7527, %v7673
        %v7792 = vadd.f32 %v7528, %v7678
        %v7793 = vadd.f32 %v7529, %v7681
        %v7794 = vadd.f32 %v7530, %v7686
        %v7795 = vadd.f32 %v7531, %v7689
        %v7796 = vadd.f32 %v7532, %v7694
        %v7797 = vadd.f32 %v7533, %v7697
        %v7798 = vadd.f32 %v7534, %v7702
        %v7799 = vadd.f32 %v7535, %v7705
        %v7800 = vadd.f32 %v7536, %v7710
        %v7801 = vadd.f32 %v7537, %v7713
        %v7802 = vadd.f32 %v7538, %v7718
        %v7803 = vadd.f32 %v7539, %v7721
        %v7804 = vadd.f32 %v7540, %v7726
        %v7805 = vadd.f32 %v7541, %v7729
        %v7806 = vadd.f32 %v7542, %v7734
        %v7807 = vadd.f32 %v7543, %v7737
        %v7808 = vadd.f32 %v7544, %v7742
        %v7809 = vadd.f32 %v7545, %v7745
        %v7810 = vadd.f32 %v7546, %v7750
        %v7811 = vadd.f32 %v7547, %v7753
        %v7812 = vadd.f32 %v7548, %v7758
        %v7813 = vadd.f32 %v7549, %v7761
        %v7814 = vadd.f32 %v7550, %v7766
        %v7815 = vadd.f32 %v7551, %v7769
        %v7816 = vadd.f32 %v7552, %v7774
        %v7817 = vadd.f32 %v7553, %v7777
        %v7818 = vadd.f32 %v7554, %v7782
        %v7819 = vadd.f32 %v7555, %v7785
        %7820 = vst [vmem:[#allocation3] sm:$0xff] %v7788
        %7821 = vst [vmem:[#allocation3 + $0x8] sm:$0xff] %v7789
        %7822 = vst [vmem:[#allocation3 + $0x10] sm:$0xff] %v7790
        %7823 = vst [vmem:[#allocation3 + $0x18] sm:$0xff] %v7791
        %7824 = vst [vmem:[#allocation3 + $0x20] sm:$0xff] %v7792
        %7825 = vst [vmem:[#allocation3 + $0x28] sm:$0xff] %v7793
        %7826 = vst [vmem:[#allocation3 + $0x30] sm:$0xff] %v7794
        %7827 = vst [vmem:[#allocation3 + $0x38] sm:$0xff] %v7795
        %7828 = vst [vmem:[#allocation3 + $0x40] sm:$0xff] %v7796
        %7829 = vst [vmem:[#allocation3 + $0x48] sm:$0xff] %v7797
        %7830 = vst [vmem:[#allocation3 + $0x50] sm:$0xff] %v7798
        %7831 = vst [vmem:[#allocation3 + $0x58] sm:$0xff] %v7799
        %7832 = vst [vmem:[#allocation3 + $0x60] sm:$0xff] %v7800
        %7833 = vst [vmem:[#allocation3 + $0x68] sm:$0xff] %v7801
        %7834 = vst [vmem:[#allocation3 + $0x70] sm:$0xff] %v7802
        %7835 = vst [vmem:[#allocation3 + $0x78] sm:$0xff] %v7803
        %7836 = vst [vmem:[#allocation3 + $0x80] sm:$0xff] %v7804
        %7837 = vst [vmem:[#allocation3 + $0x88] sm:$0xff] %v7805
        %7838 = vst [vmem:[#allocation3 + $0x90] sm:$0xff] %v7806
        %7839 = vst [vmem:[#allocation3 + $0x98] sm:$0xff] %v7807
        %7840 = vst [vmem:[#allocation3 + $0xa0] sm:$0xff] %v7808
        %7841 = vst [vmem:[#allocation3 + $0xa8] sm:$0xff] %v7809
        %7842 = vst [vmem:[#allocation3 + $0xb0] sm:$0xff] %v7810
        %7843 = vst [vmem:[#allocation3 + $0xb8] sm:$0xff] %v7811
        %7844 = vst [vmem:[#allocation3 + $0xc0] sm:$0xff] %v7812
        %7845 = vst [vmem:[#allocation3 + $0xc8] sm:$0xff] %v7813
        %7846 = vst [vmem:[#allocation3 + $0xd0] sm:$0xff] %v7814
        %7847 = vst [vmem:[#allocation3 + $0xd8] sm:$0xff] %v7815
        %7848 = vst [vmem:[#allocation3 + $0xe0] sm:$0xff] %v7816
        %7849 = vst [vmem:[#allocation3 + $0xe8] sm:$0xff] %v7817
        %7850 = vst [vmem:[#allocation3 + $0xf0] sm:$0xff] %v7818
        %7851 = vst [vmem:[#allocation3 + $0xf8] sm:$0xff] %v7819
        %v7853 = vshrl.u32 %v4808, 16
        %v7855 = vrot.slane %v7853, 4
        %v7856 = vshll.u32 %v4808, 16
        %v7858 = vrot.slane %v7856, 5
        %v7859 = vor.u32 %v7855, %v7858
        %v7860 = vrot.slane %v7859, 4
        %v7862 = vshll.u32 %v4809, 16
        %v7864 = vrot.slane %v7862, 5
        %v7865 = vsel %vm751, %v7860, %v7864
        %v7866 = vshrl.u32 %v4809, 16
        %v7868 = vrot.slane %v7866, 4
        %v7869 = vor.u32 %v7868, %v7864
        %v7870 = vrot.slane %v7869, 4
        %v7872 = vshll.u32 %v4810, 16
        %v7874 = vrot.slane %v7872, 5
        %v7875 = vsel %vm751, %v7870, %v7874
        %v7876 = vld [vmem:[#allocation3] sm:$0xff]
        %v7877 = vld [vmem:[#allocation3 + $0x8] sm:$0xff]
        %v7878 = vld [vmem:[#allocation3 + $0x10] sm:$0xff]
        %v7879 = vld [vmem:[#allocation3 + $0x18] sm:$0xff]
        %v7880 = vld [vmem:[#allocation3 + $0x20] sm:$0xff]
        %v7881 = vld [vmem:[#allocation3 + $0x28] sm:$0xff]
        %v7882 = vld [vmem:[#allocation3 + $0x30] sm:$0xff]
        %v7883 = vld [vmem:[#allocation3 + $0x38] sm:$0xff]
        %v7884 = vld [vmem:[#allocation3 + $0x40] sm:$0xff]
        %v7885 = vld [vmem:[#allocation3 + $0x48] sm:$0xff]
        %v7886 = vld [vmem:[#allocation3 + $0x50] sm:$0xff]
        %v7887 = vld [vmem:[#allocation3 + $0x58] sm:$0xff]
        %v7888 = vld [vmem:[#allocation3 + $0x60] sm:$0xff]
        %v7889 = vld [vmem:[#allocation3 + $0x68] sm:$0xff]
        %v7890 = vld [vmem:[#allocation3 + $0x70] sm:$0xff]
        %v7891 = vld [vmem:[#allocation3 + $0x78] sm:$0xff]
        %v7892 = vld [vmem:[#allocation3 + $0x80] sm:$0xff]
        %v7893 = vld [vmem:[#allocation3 + $0x88] sm:$0xff]
        %v7894 = vld [vmem:[#allocation3 + $0x90] sm:$0xff]
        %v7895 = vld [vmem:[#allocation3 + $0x98] sm:$0xff]
        %v7896 = vld [vmem:[#allocation3 + $0xa0] sm:$0xff]
        %v7897 = vld [vmem:[#allocation3 + $0xa8] sm:$0xff]
        %v7898 = vld [vmem:[#allocation3 + $0xb0] sm:$0xff]
        %v7899 = vld [vmem:[#allocation3 + $0xb8] sm:$0xff]
        %v7900 = vld [vmem:[#allocation3 + $0xc0] sm:$0xff]
        %v7901 = vld [vmem:[#allocation3 + $0xc8] sm:$0xff]
        %v7902 = vld [vmem:[#allocation3 + $0xd0] sm:$0xff]
        %v7903 = vld [vmem:[#allocation3 + $0xd8] sm:$0xff]
        %v7904 = vld [vmem:[#allocation3 + $0xe0] sm:$0xff]
        %v7905 = vld [vmem:[#allocation3 + $0xe8] sm:$0xff]
        %v7906 = vld [vmem:[#allocation3 + $0xf0] sm:$0xff]
        %v7907 = vld [vmem:[#allocation3 + $0xf8] sm:$0xff]
        %s7908 = scalar_lea.vmem [#allocation4], 448
        %v7909 = vld [vmem:[%s7908] sm:$0xf]
        %v7910 = vld [vmem:[%s7908 + $0x4] sm:$0xf]
        %v7911 = vld [vmem:[%s7908 + $0x8] sm:$0xf]
        %v7912 = vld [vmem:[%s7908 + $0xc] sm:$0xf]
        %v7913 = vld [vmem:[%s7908 + $0x10] sm:$0xf]
        %v7914 = vld [vmem:[%s7908 + $0x14] sm:$0xf]
        %v7915 = vld [vmem:[%s7908 + $0x18] sm:$0xf]
        %v7916 = vld [vmem:[%s7908 + $0x1c] sm:$0xf]
        %v7917 = vld [vmem:[%s7908 + $0x20] sm:$0xf]
        %v7918 = vld [vmem:[%s7908 + $0x24] sm:$0xf]
        %v7919 = vld [vmem:[%s7908 + $0x28] sm:$0xf]
        %v7920 = vld [vmem:[%s7908 + $0x2c] sm:$0xf]
        %v7921 = vld [vmem:[%s7908 + $0x30] sm:$0xf]
        %v7922 = vld [vmem:[%s7908 + $0x34] sm:$0xf]
        %v7923 = vld [vmem:[%s7908 + $0x38] sm:$0xf]
        %v7924 = vld [vmem:[%s7908 + $0x3c] sm:$0xf]
        %v7925 = vunpack.c.l.b16 %v7865
        %v7926 = vunpack.c.l.b16 %v7875
        %v7927 = vpack.c.b16 %v7926, %v7925
        %v7945 = vunpack.c.l.b16 %v7909
        %v7946 = vunpack.c.l.b16 %v7910
        %v7947 = vunpack.c.l.b16 %v7911
        %v7948 = vunpack.c.l.b16 %v7912
        %v7949 = vunpack.c.l.b16 %v7913
        %v7950 = vunpack.c.l.b16 %v7914
        %v7951 = vunpack.c.l.b16 %v7915
        %v7952 = vunpack.c.l.b16 %v7916
        %v7953 = vunpack.c.l.b16 %v7917
        %v7954 = vunpack.c.l.b16 %v7918
        %v7955 = vunpack.c.l.b16 %v7919
        %v7956 = vunpack.c.l.b16 %v7920
        %v7957 = vunpack.c.l.b16 %v7921
        %v7958 = vunpack.c.l.b16 %v7922
        %v7959 = vunpack.c.l.b16 %v7923
        %v7960 = vunpack.c.l.b16 %v7924
        %v7961 = vpack.c.b16 %v7946, %v7945
        %v7962 = vpack.c.b16 %v7948, %v7947
        %v7963 = vpack.c.b16 %v7950, %v7949
        %v7964 = vpack.c.b16 %v7952, %v7951
        %v7965 = vpack.c.b16 %v7954, %v7953
        %v7966 = vpack.c.b16 %v7956, %v7955
        %v7967 = vpack.c.b16 %v7958, %v7957
        %v7968 = vpack.c.b16 %v7960, %v7959
        %7977 = vmatprep.subr.bf16.mxu0 0
        %7978 = vmatpush1.bf16.msra.mxu0 %v7961
        %7979 = vmatprep.subr.bf16.mxu0 0
        %7980 = vmatpush1.bf16.msra.mxu0 %v7962
        %7981 = vmatprep.subr.bf16.mxu0 0
        %7982 = vmatpush1.bf16.msra.mxu0 %v7963
        %7983 = vmatprep.subr.bf16.mxu0 0
        %7984 = vmatpush1.bf16.msra.mxu0 %v7964
        %7985 = vmatprep.subr.bf16.mxu0 0
        %7986 = vmatpush1.bf16.msra.mxu0 %v7965
        %7987 = vmatprep.subr.bf16.mxu0 0
        %7988 = vmatpush1.bf16.msra.mxu0 %v7966
        %7989 = vmatprep.subr.bf16.mxu0 0
        %7990 = vmatpush1.bf16.msra.mxu0 %v7967
        %7991 = vmatprep.subr.bf16.mxu0 0
        %7992 = vmatpush1.bf16.msra.mxu0 %v7968
        %7993 = vmatprep.subr.bf16.mxu0 0
        %7994 = vmatpush1.bf16.msra.mxu0 0
        %7995 = vmatprep.subr.bf16.mxu0 0
        %7996 = vmatpush1.bf16.msra.mxu0 0
        %7997 = vmatprep.subr.bf16.mxu0 0
        %7998 = vmatpush1.bf16.msra.mxu0 0
        %7999 = vmatprep.subr.bf16.mxu0 0
        %8000 = vmatpush1.bf16.msra.mxu0 0
        %8001 = vmatprep.subr.bf16.mxu0 0
        %8002 = vmatpush1.bf16.msra.mxu0 0
        %8003 = vmatprep.subr.bf16.mxu0 0
        %8004 = vmatpush1.bf16.msra.mxu0 0
        %8005 = vmatprep.subr.bf16.mxu0 0
        %8006 = vmatpush1.bf16.msra.mxu0 0
        %8007 = vmatprep.subr.bf16.mxu0 0
        %8008 = vmatpush1.bf16.msra.mxu0 0
        %8009 = vmatprep.mubr.bf16.mxu0 0
        %8010 = vmatmul.mubr.bf16.gmra.mrb[0].mxu0 %v5695
        %v8011 = vpop.f32.mrb[0].mxu0
        %v8012 = vadd.f32 0.0, %v8011
        %v8013 = vpop.f32.mrb[0].mxu0
        %v8014 = vpop.f32.mrb[0].mxu0
        %v8015 = vadd.f32 0.0, %v8014
        %v8016 = vpop.f32.mrb[0].mxu0
        %8017 = vmatprep.mubr.bf16.mxu0 0
        %8018 = vmatmul.mubr.bf16.gmra.mrb[0].mxu0 %v5696
        %v8019 = vpop.f32.mrb[0].mxu0
        %v8020 = vadd.f32 0.0, %v8019
        %v8021 = vpop.f32.mrb[0].mxu0
        %v8022 = vpop.f32.mrb[0].mxu0
        %v8023 = vadd.f32 0.0, %v8022
        %v8024 = vpop.f32.mrb[0].mxu0
        %8025 = vmatprep.mubr.bf16.mxu0 0
        %8026 = vmatmul.mubr.bf16.gmra.mrb[0].mxu0 %v5697
        %v8027 = vpop.f32.mrb[0].mxu0
        %v8028 = vadd.f32 0.0, %v8027
        %v8029 = vpop.f32.mrb[0].mxu0
        %v8030 = vpop.f32.mrb[0].mxu0
        %v8031 = vadd.f32 0.0, %v8030
        %v8032 = vpop.f32.mrb[0].mxu0
        %8033 = vmatprep.mubr.bf16.mxu0 0
        %8034 = vmatmul.mubr.bf16.gmra.mrb[0].mxu0 %v5698
        %v8035 = vpop.f32.mrb[0].mxu0
        %v8036 = vadd.f32 0.0, %v8035
        %v8037 = vpop.f32.mrb[0].mxu0
        %v8038 = vpop.f32.mrb[0].mxu0
        %v8039 = vadd.f32 0.0, %v8038
        %v8040 = vpop.f32.mrb[0].mxu0
        %8041 = vmatprep.mubr.bf16.mxu0 0
        %8042 = vmatmul.mubr.bf16.gmra.mrb[0].mxu0 %v5699
        %v8043 = vpop.f32.mrb[0].mxu0
        %v8044 = vadd.f32 0.0, %v8043
        %v8045 = vpop.f32.mrb[0].mxu0
        %v8046 = vpop.f32.mrb[0].mxu0
        %v8047 = vadd.f32 0.0, %v8046
        %v8048 = vpop.f32.mrb[0].mxu0
        %8049 = vmatprep.mubr.bf16.mxu0 0
        %8050 = vmatmul.mubr.bf16.gmra.mrb[0].mxu0 %v5700
        %v8051 = vpop.f32.mrb[0].mxu0
        %v8052 = vadd.f32 0.0, %v8051
        %v8053 = vpop.f32.mrb[0].mxu0
        %v8054 = vpop.f32.mrb[0].mxu0
        %v8055 = vadd.f32 0.0, %v8054
        %v8056 = vpop.f32.mrb[0].mxu0
        %8057 = vmatprep.mubr.bf16.mxu0 0
        %8058 = vmatmul.mubr.bf16.gmra.mrb[0].mxu0 %v5701
        %v8059 = vpop.f32.mrb[0].mxu0
        %v8060 = vadd.f32 0.0, %v8059
        %v8061 = vpop.f32.mrb[0].mxu0
        %v8062 = vpop.f32.mrb[0].mxu0
        %v8063 = vadd.f32 0.0, %v8062
        %v8064 = vpop.f32.mrb[0].mxu0
        %8065 = vmatprep.mubr.bf16.mxu0 0
        %8066 = vmatmul.mubr.bf16.gmra.mrb[0].mxu0 %v5702
        %v8067 = vpop.f32.mrb[0].mxu0
        %v8068 = vadd.f32 0.0, %v8067
        %v8069 = vpop.f32.mrb[0].mxu0
        %v8070 = vpop.f32.mrb[0].mxu0
        %v8071 = vadd.f32 0.0, %v8070
        %v8072 = vpop.f32.mrb[0].mxu0
        %8073 = vmatprep.mubr.bf16.mxu0 0
        %8074 = vmatmul.mubr.bf16.gmra.mrb[0].mxu0 %v5703
        %v8075 = vpop.f32.mrb[0].mxu0
        %v8076 = vadd.f32 0.0, %v8075
        %v8077 = vpop.f32.mrb[0].mxu0
        %v8078 = vpop.f32.mrb[0].mxu0
        %v8079 = vadd.f32 0.0, %v8078
        %v8080 = vpop.f32.mrb[0].mxu0
        %8081 = vmatprep.mubr.bf16.mxu0 0
        %8082 = vmatmul.mubr.bf16.gmra.mrb[0].mxu0 %v5704
        %v8083 = vpop.f32.mrb[0].mxu0
        %v8084 = vadd.f32 0.0, %v8083
        %v8085 = vpop.f32.mrb[0].mxu0
        %v8086 = vpop.f32.mrb[0].mxu0
        %v8087 = vadd.f32 0.0, %v8086
        %v8088 = vpop.f32.mrb[0].mxu0
        %8089 = vmatprep.mubr.bf16.mxu0 0
        %8090 = vmatmul.mubr.bf16.gmra.mrb[0].mxu0 %v5705
        %v8091 = vpop.f32.mrb[0].mxu0
        %v8092 = vadd.f32 0.0, %v8091
        %v8093 = vpop.f32.mrb[0].mxu0
        %v8094 = vpop.f32.mrb[0].mxu0
        %v8095 = vadd.f32 0.0, %v8094
        %v8096 = vpop.f32.mrb[0].mxu0
        %8097 = vmatprep.mubr.bf16.mxu0 0
        %8098 = vmatmul.mubr.bf16.gmra.mrb[0].mxu0 %v5706
        %v8099 = vpop.f32.mrb[0].mxu0
        %v8100 = vadd.f32 0.0, %v8099
        %v8101 = vpop.f32.mrb[0].mxu0
        %v8102 = vpop.f32.mrb[0].mxu0
        %v8103 = vadd.f32 0.0, %v8102
        %v8104 = vpop.f32.mrb[0].mxu0
        %8105 = vmatprep.mubr.bf16.mxu0 0
        %8106 = vmatmul.mubr.bf16.gmra.mrb[0].mxu0 %v5707
        %v8107 = vpop.f32.mrb[0].mxu0
        %v8108 = vadd.f32 0.0, %v8107
        %v8109 = vpop.f32.mrb[0].mxu0
        %v8110 = vpop.f32.mrb[0].mxu0
        %v8111 = vadd.f32 0.0, %v8110
        %v8112 = vpop.f32.mrb[0].mxu0
        %8113 = vmatprep.mubr.bf16.mxu0 0
        %8114 = vmatmul.mubr.bf16.gmra.mrb[0].mxu0 %v5708
        %v8115 = vpop.f32.mrb[0].mxu0
        %v8116 = vadd.f32 0.0, %v8115
        %v8117 = vpop.f32.mrb[0].mxu0
        %v8118 = vpop.f32.mrb[0].mxu0
        %v8119 = vadd.f32 0.0, %v8118
        %v8120 = vpop.f32.mrb[0].mxu0
        %8121 = vmatprep.mubr.bf16.mxu0 0
        %8122 = vmatmul.mubr.bf16.gmra.mrb[0].mxu0 %v6915
        %v8123 = vpop.f32.mrb[0].mxu0
        %v8124 = vadd.f32 0.0, %v8123
        %v8125 = vpop.f32.mrb[0].mxu0
        %v8126 = vpop.f32.mrb[0].mxu0
        %v8127 = vadd.f32 0.0, %v8126
        %v8128 = vpop.f32.mrb[0].mxu0
        %8129 = vmatprep.mubr.bf16.mxu0 0
        %8130 = vmatmul.mubr.bf16.gmra.mrb[0].mxu0 %v7927
        %v8131 = vpop.f32.mrb[0].mxu0
        %v8132 = vadd.f32 0.0, %v8131
        %v8133 = vpop.f32.mrb[0].mxu0
        %v8134 = vpop.f32.mrb[0].mxu0
        %v8135 = vadd.f32 0.0, %v8134
        %v8136 = vpop.f32.mrb[0].mxu0
        %8137 = vdwg.mxu0
        %v8138 = vadd.f32 %v7876, %v8012
        %v8139 = vadd.f32 %v7877, %v8015
        %v8140 = vadd.f32 %v7878, %v8020
        %v8141 = vadd.f32 %v7879, %v8023
        %v8142 = vadd.f32 %v7880, %v8028
        %v8143 = vadd.f32 %v7881, %v8031
        %v8144 = vadd.f32 %v7882, %v8036
        %v8145 = vadd.f32 %v7883, %v8039
        %v8146 = vadd.f32 %v7884, %v8044
        %v8147 = vadd.f32 %v7885, %v8047
        %v8148 = vadd.f32 %v7886, %v8052
        %v8149 = vadd.f32 %v7887, %v8055
        %v8150 = vadd.f32 %v7888, %v8060
        %v8151 = vadd.f32 %v7889, %v8063
        %v8152 = vadd.f32 %v7890, %v8068
        %v8153 = vadd.f32 %v7891, %v8071
        %v8154 = vadd.f32 %v7892, %v8076
        %v8155 = vadd.f32 %v7893, %v8079
        %v8156 = vadd.f32 %v7894, %v8084
        %v8157 = vadd.f32 %v7895, %v8087
        %v8158 = vadd.f32 %v7896, %v8092
        %v8159 = vadd.f32 %v7897, %v8095
        %v8160 = vadd.f32 %v7898, %v8100
        %v8161 = vadd.f32 %v7899, %v8103
        %v8162 = vadd.f32 %v7900, %v8108
        %v8163 = vadd.f32 %v7901, %v8111
        %v8164 = vadd.f32 %v7902, %v8116
        %v8165 = vadd.f32 %v7903, %v8119
        %v8166 = vadd.f32 %v7904, %v8124
        %v8167 = vadd.f32 %v7905, %v8127
        %v8168 = vadd.f32 %v7906, %v8132
        %v8169 = vadd.f32 %v7907, %v8135
        %8170 = vst [vmem:[#allocation3] sm:$0xff] %v8138
        %8171 = vst [vmem:[#allocation3 + $0x8] sm:$0xff] %v8139
        %8172 = vst [vmem:[#allocation3 + $0x10] sm:$0xff] %v8140
        %8173 = vst [vmem:[#allocation3 + $0x18] sm:$0xff] %v8141
        %8174 = vst [vmem:[#allocation3 + $0x20] sm:$0xff] %v8142
        %8175 = vst [vmem:[#allocation3 + $0x28] sm:$0xff] %v8143
        %8176 = vst [vmem:[#allocation3 + $0x30] sm:$0xff] %v8144
        %8177 = vst [vmem:[#allocation3 + $0x38] sm:$0xff] %v8145
        %8178 = vst [vmem:[#allocation3 + $0x40] sm:$0xff] %v8146
        %8179 = vst [vmem:[#allocation3 + $0x48] sm:$0xff] %v8147
        %8180 = vst [vmem:[#allocation3 + $0x50] sm:$0xff] %v8148
        %8181 = vst [vmem:[#allocation3 + $0x58] sm:$0xff] %v8149
        %8182 = vst [vmem:[#allocation3 + $0x60] sm:$0xff] %v8150
        %8183 = vst [vmem:[#allocation3 + $0x68] sm:$0xff] %v8151
        %8184 = vst [vmem:[#allocation3 + $0x70] sm:$0xff] %v8152
        %8185 = vst [vmem:[#allocation3 + $0x78] sm:$0xff] %v8153
        %8186 = vst [vmem:[#allocation3 + $0x80] sm:$0xff] %v8154
        %8187 = vst [vmem:[#allocation3 + $0x88] sm:$0xff] %v8155
        %8188 = vst [vmem:[#allocation3 + $0x90] sm:$0xff] %v8156
        %8189 = vst [vmem:[#allocation3 + $0x98] sm:$0xff] %v8157
        %8190 = vst [vmem:[#allocation3 + $0xa0] sm:$0xff] %v8158
        %8191 = vst [vmem:[#allocation3 + $0xa8] sm:$0xff] %v8159
        %8192 = vst [vmem:[#allocation3 + $0xb0] sm:$0xff] %v8160
        %8193 = vst [vmem:[#allocation3 + $0xb8] sm:$0xff] %v8161
        %8194 = vst [vmem:[#allocation3 + $0xc0] sm:$0xff] %v8162
        %8195 = vst [vmem:[#allocation3 + $0xc8] sm:$0xff] %v8163
        %8196 = vst [vmem:[#allocation3 + $0xd0] sm:$0xff] %v8164
        %8197 = vst [vmem:[#allocation3 + $0xd8] sm:$0xff] %v8165
        %8198 = vst [vmem:[#allocation3 + $0xe0] sm:$0xff] %v8166
        %8199 = vst [vmem:[#allocation3 + $0xe8] sm:$0xff] %v8167
        %8200 = vst [vmem:[#allocation3 + $0xf0] sm:$0xff] %v8168
        %8201 = vst [vmem:[#allocation3 + $0xf8] sm:$0xff] %v8169
        %v8203 = vrot.slane %v4808, 5
        %v8204 = vrot.slane %v8203, 4
        %v8205 = vrot.slane %v4809, 5
        %v8206 = vsel %vm1540, %v8204, %v8205
        %v8207 = vrot.slane %v8205, 4
        %v8208 = vrot.slane %v4810, 5
        %v8209 = vsel %vm1540, %v8207, %v8208
        %v8210 = vld [vmem:[#allocation3] sm:$0xff]
        %v8211 = vld [vmem:[#allocation3 + $0x8] sm:$0xff]
        %v8212 = vld [vmem:[#allocation3 + $0x10] sm:$0xff]
        %v8213 = vld [vmem:[#allocation3 + $0x18] sm:$0xff]
        %v8214 = vld [vmem:[#allocation3 + $0x20] sm:$0xff]
        %v8215 = vld [vmem:[#allocation3 + $0x28] sm:$0xff]
        %v8216 = vld [vmem:[#allocation3 + $0x30] sm:$0xff]
        %v8217 = vld [vmem:[#allocation3 + $0x38] sm:$0xff]
        %v8218 = vld [vmem:[#allocation3 + $0x40] sm:$0xff]
        %v8219 = vld [vmem:[#allocation3 + $0x48] sm:$0xff]
        %v8220 = vld [vmem:[#allocation3 + $0x50] sm:$0xff]
        %v8221 = vld [vmem:[#allocation3 + $0x58] sm:$0xff]
        %v8222 = vld [vmem:[#allocation3 + $0x60] sm:$0xff]
        %v8223 = vld [vmem:[#allocation3 + $0x68] sm:$0xff]
        %v8224 = vld [vmem:[#allocation3 + $0x70] sm:$0xff]
        %v8225 = vld [vmem:[#allocation3 + $0x78] sm:$0xff]
        %v8226 = vld [vmem:[#allocation3 + $0x80] sm:$0xff]
        %v8227 = vld [vmem:[#allocation3 + $0x88] sm:$0xff]
        %v8228 = vld [vmem:[#allocation3 + $0x90] sm:$0xff]
        %v8229 = vld [vmem:[#allocation3 + $0x98] sm:$0xff]
        %v8230 = vld [vmem:[#allocation3 + $0xa0] sm:$0xff]
        %v8231 = vld [vmem:[#allocation3 + $0xa8] sm:$0xff]
        %v8232 = vld [vmem:[#allocation3 + $0xb0] sm:$0xff]
        %v8233 = vld [vmem:[#allocation3 + $0xb8] sm:$0xff]
        %v8234 = vld [vmem:[#allocation3 + $0xc0] sm:$0xff]
        %v8235 = vld [vmem:[#allocation3 + $0xc8] sm:$0xff]
        %v8236 = vld [vmem:[#allocation3 + $0xd0] sm:$0xff]
        %v8237 = vld [vmem:[#allocation3 + $0xd8] sm:$0xff]
        %v8238 = vld [vmem:[#allocation3 + $0xe0] sm:$0xff]
        %v8239 = vld [vmem:[#allocation3 + $0xe8] sm:$0xff]
        %v8240 = vld [vmem:[#allocation3 + $0xf0] sm:$0xff]
        %v8241 = vld [vmem:[#allocation3 + $0xf8] sm:$0xff]
        %s8242 = scalar_lea.vmem [#allocation4], 512
        %v8243 = vld [vmem:[%s8242] sm:$0xf]
        %v8244 = vld [vmem:[%s8242 + $0x4] sm:$0xf]
        %v8245 = vld [vmem:[%s8242 + $0x8] sm:$0xf]
        %v8246 = vld [vmem:[%s8242 + $0xc] sm:$0xf]
        %v8247 = vld [vmem:[%s8242 + $0x10] sm:$0xf]
        %v8248 = vld [vmem:[%s8242 + $0x14] sm:$0xf]
        %v8249 = vld [vmem:[%s8242 + $0x18] sm:$0xf]
        %v8250 = vld [vmem:[%s8242 + $0x1c] sm:$0xf]
        %v8251 = vld [vmem:[%s8242 + $0x20] sm:$0xf]
        %v8252 = vld [vmem:[%s8242 + $0x24] sm:$0xf]
        %v8253 = vld [vmem:[%s8242 + $0x28] sm:$0xf]
        %v8254 = vld [vmem:[%s8242 + $0x2c] sm:$0xf]
        %v8255 = vld [vmem:[%s8242 + $0x30] sm:$0xf]
        %v8256 = vld [vmem:[%s8242 + $0x34] sm:$0xf]
        %v8257 = vld [vmem:[%s8242 + $0x38] sm:$0xf]
        %v8258 = vld [vmem:[%s8242 + $0x3c] sm:$0xf]
        %v8259 = vunpack.c.l.b16 %v8206
        %v8260 = vunpack.c.l.b16 %v8209
        %v8261 = vpack.c.b16 %v8260, %v8259
        %v8279 = vunpack.c.l.b16 %v8243
        %v8280 = vunpack.c.l.b16 %v8244
        %v8281 = vunpack.c.l.b16 %v8245
        %v8282 = vunpack.c.l.b16 %v8246
        %v8283 = vunpack.c.l.b16 %v8247
        %v8284 = vunpack.c.l.b16 %v8248
        %v8285 = vunpack.c.l.b16 %v8249
        %v8286 = vunpack.c.l.b16 %v8250
        %v8287 = vunpack.c.l.b16 %v8251
        %v8288 = vunpack.c.l.b16 %v8252
        %v8289 = vunpack.c.l.b16 %v8253
        %v8290 = vunpack.c.l.b16 %v8254
        %v8291 = vunpack.c.l.b16 %v8255
        %v8292 = vunpack.c.l.b16 %v8256
        %v8293 = vunpack.c.l.b16 %v8257
        %v8294 = vunpack.c.l.b16 %v8258
        %v8295 = vpack.c.b16 %v8280, %v8279
        %v8296 = vpack.c.b16 %v8282, %v8281
        %v8297 = vpack.c.b16 %v8284, %v8283
        %v8298 = vpack.c.b16 %v8286, %v8285
        %v8299 = vpack.c.b16 %v8288, %v8287
        %v8300 = vpack.c.b16 %v8290, %v8289
        %v8301 = vpack.c.b16 %v8292, %v8291
        %v8302 = vpack.c.b16 %v8294, %v8293
        %8311 = vmatprep.subr.bf16.mxu0 0
        %8312 = vmatpush1.bf16.msra.mxu0 %v8295
        %8313 = vmatprep.subr.bf16.mxu0 0
        %8314 = vmatpush1.bf16.msra.mxu0 %v8296
        %8315 = vmatprep.subr.bf16.mxu0 0
        %8316 = vmatpush1.bf16.msra.mxu0 %v8297
        %8317 = vmatprep.subr.bf16.mxu0 0
        %8318 = vmatpush1.bf16.msra.mxu0 %v8298
        %8319 = vmatprep.subr.bf16.mxu0 0
        %8320 = vmatpush1.bf16.msra.mxu0 %v8299
        %8321 = vmatprep.subr.bf16.mxu0 0
        %8322 = vmatpush1.bf16.msra.mxu0 %v8300
        %8323 = vmatprep.subr.bf16.mxu0 0
        %8324 = vmatpush1.bf16.msra.mxu0 %v8301
        %8325 = vmatprep.subr.bf16.mxu0 0
        %8326 = vmatpush1.bf16.msra.mxu0 %v8302
        %8327 = vmatprep.subr.bf16.mxu0 0
        %8328 = vmatpush1.bf16.msra.mxu0 0
        %8329 = vmatprep.subr.bf16.mxu0 0
        %8330 = vmatpush1.bf16.msra.mxu0 0
        %8331 = vmatprep.subr.bf16.mxu0 0
        %8332 = vmatpush1.bf16.msra.mxu0 0
        %8333 = vmatprep.subr.bf16.mxu0 0
        %8334 = vmatpush1.bf16.msra.mxu0 0
        %8335 = vmatprep.subr.bf16.mxu0 0
        %8336 = vmatpush1.bf16.msra.mxu0 0
        %8337 = vmatprep.subr.bf16.mxu0 0
        %8338 = vmatpush1.bf16.msra.mxu0 0
        %8339 = vmatprep.subr.bf16.mxu0 0
        %8340 = vmatpush1.bf16.msra.mxu0 0
        %8341 = vmatprep.subr.bf16.mxu0 0
        %8342 = vmatpush1.bf16.msra.mxu0 0
        %8343 = vmatprep.mubr.bf16.mxu0 0
        %8344 = vmatmul.mubr.bf16.gmra.mrb[0].mxu0 %v6209
        %v8345 = vpop.f32.mrb[0].mxu0
        %v8346 = vadd.f32 0.0, %v8345
        %v8347 = vpop.f32.mrb[0].mxu0
        %v8348 = vpop.f32.mrb[0].mxu0
        %v8349 = vadd.f32 0.0, %v8348
        %v8350 = vpop.f32.mrb[0].mxu0
        %8351 = vmatprep.mubr.bf16.mxu0 0
        %8352 = vmatmul.mubr.bf16.gmra.mrb[0].mxu0 %v6210
        %v8353 = vpop.f32.mrb[0].mxu0
        %v8354 = vadd.f32 0.0, %v8353
        %v8355 = vpop.f32.mrb[0].mxu0
        %v8356 = vpop.f32.mrb[0].mxu0
        %v8357 = vadd.f32 0.0, %v8356
        %v8358 = vpop.f32.mrb[0].mxu0
        %8359 = vmatprep.mubr.bf16.mxu0 0
        %8360 = vmatmul.mubr.bf16.gmra.mrb[0].mxu0 %v6211
        %v8361 = vpop.f32.mrb[0].mxu0
        %v8362 = vadd.f32 0.0, %v8361
        %v8363 = vpop.f32.mrb[0].mxu0
        %v8364 = vpop.f32.mrb[0].mxu0
        %v8365 = vadd.f32 0.0, %v8364
        %v8366 = vpop.f32.mrb[0].mxu0
        %8367 = vmatprep.mubr.bf16.mxu0 0
        %8368 = vmatmul.mubr.bf16.gmra.mrb[0].mxu0 %v6212
        %v8369 = vpop.f32.mrb[0].mxu0
        %v8370 = vadd.f32 0.0, %v8369
        %v8371 = vpop.f32.mrb[0].mxu0
        %v8372 = vpop.f32.mrb[0].mxu0
        %v8373 = vadd.f32 0.0, %v8372
        %v8374 = vpop.f32.mrb[0].mxu0
        %8375 = vmatprep.mubr.bf16.mxu0 0
        %8376 = vmatmul.mubr.bf16.gmra.mrb[0].mxu0 %v6213
        %v8377 = vpop.f32.mrb[0].mxu0
        %v8378 = vadd.f32 0.0, %v8377
        %v8379 = vpop.f32.mrb[0].mxu0
        %v8380 = vpop.f32.mrb[0].mxu0
        %v8381 = vadd.f32 0.0, %v8380
        %v8382 = vpop.f32.mrb[0].mxu0
        %8383 = vmatprep.mubr.bf16.mxu0 0
        %8384 = vmatmul.mubr.bf16.gmra.mrb[0].mxu0 %v6214
        %v8385 = vpop.f32.mrb[0].mxu0
        %v8386 = vadd.f32 0.0, %v8385
        %v8387 = vpop.f32.mrb[0].mxu0
        %v8388 = vpop.f32.mrb[0].mxu0
        %v8389 = vadd.f32 0.0, %v8388
        %v8390 = vpop.f32.mrb[0].mxu0
        %8391 = vmatprep.mubr.bf16.mxu0 0
        %8392 = vmatmul.mubr.bf16.gmra.mrb[0].mxu0 %v6215
        %v8393 = vpop.f32.mrb[0].mxu0
        %v8394 = vadd.f32 0.0, %v8393
        %v8395 = vpop.f32.mrb[0].mxu0
        %v8396 = vpop.f32.mrb[0].mxu0
        %v8397 = vadd.f32 0.0, %v8396
        %v8398 = vpop.f32.mrb[0].mxu0
        %8399 = vmatprep.mubr.bf16.mxu0 0
        %8400 = vmatmul.mubr.bf16.gmra.mrb[0].mxu0 %v6216
        %v8401 = vpop.f32.mrb[0].mxu0
        %v8402 = vadd.f32 0.0, %v8401
        %v8403 = vpop.f32.mrb[0].mxu0
        %v8404 = vpop.f32.mrb[0].mxu0
        %v8405 = vadd.f32 0.0, %v8404
        %v8406 = vpop.f32.mrb[0].mxu0
        %8407 = vmatprep.mubr.bf16.mxu0 0
        %8408 = vmatmul.mubr.bf16.gmra.mrb[0].mxu0 %v6217
        %v8409 = vpop.f32.mrb[0].mxu0
        %v8410 = vadd.f32 0.0, %v8409
        %v8411 = vpop.f32.mrb[0].mxu0
        %v8412 = vpop.f32.mrb[0].mxu0
        %v8413 = vadd.f32 0.0, %v8412
        %v8414 = vpop.f32.mrb[0].mxu0
        %8415 = vmatprep.mubr.bf16.mxu0 0
        %8416 = vmatmul.mubr.bf16.gmra.mrb[0].mxu0 %v6218
        %v8417 = vpop.f32.mrb[0].mxu0
        %v8418 = vadd.f32 0.0, %v8417
        %v8419 = vpop.f32.mrb[0].mxu0
        %v8420 = vpop.f32.mrb[0].mxu0
        %v8421 = vadd.f32 0.0, %v8420
        %v8422 = vpop.f32.mrb[0].mxu0
        %8423 = vmatprep.mubr.bf16.mxu0 0
        %8424 = vmatmul.mubr.bf16.gmra.mrb[0].mxu0 %v6219
        %v8425 = vpop.f32.mrb[0].mxu0
        %v8426 = vadd.f32 0.0, %v8425
        %v8427 = vpop.f32.mrb[0].mxu0
        %v8428 = vpop.f32.mrb[0].mxu0
        %v8429 = vadd.f32 0.0, %v8428
        %v8430 = vpop.f32.mrb[0].mxu0
        %8431 = vmatprep.mubr.bf16.mxu0 0
        %8432 = vmatmul.mubr.bf16.gmra.mrb[0].mxu0 %v6220
        %v8433 = vpop.f32.mrb[0].mxu0
        %v8434 = vadd.f32 0.0, %v8433
        %v8435 = vpop.f32.mrb[0].mxu0
        %v8436 = vpop.f32.mrb[0].mxu0
        %v8437 = vadd.f32 0.0, %v8436
        %v8438 = vpop.f32.mrb[0].mxu0
        %8439 = vmatprep.mubr.bf16.mxu0 0
        %8440 = vmatmul.mubr.bf16.gmra.mrb[0].mxu0 %v6221
        %v8441 = vpop.f32.mrb[0].mxu0
        %v8442 = vadd.f32 0.0, %v8441
        %v8443 = vpop.f32.mrb[0].mxu0
        %v8444 = vpop.f32.mrb[0].mxu0
        %v8445 = vadd.f32 0.0, %v8444
        %v8446 = vpop.f32.mrb[0].mxu0
        %8447 = vmatprep.mubr.bf16.mxu0 0
        %8448 = vmatmul.mubr.bf16.gmra.mrb[0].mxu0 %v6222
        %v8449 = vpop.f32.mrb[0].mxu0
        %v8450 = vadd.f32 0.0, %v8449
        %v8451 = vpop.f32.mrb[0].mxu0
        %v8452 = vpop.f32.mrb[0].mxu0
        %v8453 = vadd.f32 0.0, %v8452
        %v8454 = vpop.f32.mrb[0].mxu0
        %8455 = vmatprep.mubr.bf16.mxu0 0
        %8456 = vmatmul.mubr.bf16.gmra.mrb[0].mxu0 %v7249
        %v8457 = vpop.f32.mrb[0].mxu0
        %v8458 = vadd.f32 0.0, %v8457
        %v8459 = vpop.f32.mrb[0].mxu0
        %v8460 = vpop.f32.mrb[0].mxu0
        %v8461 = vadd.f32 0.0, %v8460
        %v8462 = vpop.f32.mrb[0].mxu0
        %8463 = vmatprep.mubr.bf16.mxu0 0
        %8464 = vmatmul.mubr.bf16.gmra.mrb[0].mxu0 %v8261
        %v8465 = vpop.f32.mrb[0].mxu0
        %v8466 = vadd.f32 0.0, %v8465
        %v8467 = vpop.f32.mrb[0].mxu0
        %v8468 = vpop.f32.mrb[0].mxu0
        %v8469 = vadd.f32 0.0, %v8468
        %v8470 = vpop.f32.mrb[0].mxu0
        %8471 = vdwg.mxu0
        %v8472 = vadd.f32 %v8210, %v8346
        %v8473 = vadd.f32 %v8211, %v8349
        %v8474 = vadd.f32 %v8212, %v8354
        %v8475 = vadd.f32 %v8213, %v8357
        %v8476 = vadd.f32 %v8214, %v8362
        %v8477 = vadd.f32 %v8215, %v8365
        %v8478 = vadd.f32 %v8216, %v8370
        %v8479 = vadd.f32 %v8217, %v8373
        %v8480 = vadd.f32 %v8218, %v8378
        %v8481 = vadd.f32 %v8219, %v8381
        %v8482 = vadd.f32 %v8220, %v8386
        %v8483 = vadd.f32 %v8221, %v8389
        %v8484 = vadd.f32 %v8222, %v8394
        %v8485 = vadd.f32 %v8223, %v8397
        %v8486 = vadd.f32 %v8224, %v8402
        %v8487 = vadd.f32 %v8225, %v8405
        %v8488 = vadd.f32 %v8226, %v8410
        %v8489 = vadd.f32 %v8227, %v8413
        %v8490 = vadd.f32 %v8228, %v8418
        %v8491 = vadd.f32 %v8229, %v8421
        %v8492 = vadd.f32 %v8230, %v8426
        %v8493 = vadd.f32 %v8231, %v8429
        %v8494 = vadd.f32 %v8232, %v8434
        %v8495 = vadd.f32 %v8233, %v8437
        %v8496 = vadd.f32 %v8234, %v8442
        %v8497 = vadd.f32 %v8235, %v8445
        %v8498 = vadd.f32 %v8236, %v8450
        %v8499 = vadd.f32 %v8237, %v8453
        %v8500 = vadd.f32 %v8238, %v8458
        %v8501 = vadd.f32 %v8239, %v8461
        %v8502 = vadd.f32 %v8240, %v8466
        %v8503 = vadd.f32 %v8241, %v8469
        %8504 = vst [vmem:[#allocation3] sm:$0xff] %v8472
        %8505 = vst [vmem:[#allocation3 + $0x8] sm:$0xff] %v8473
        %8506 = vst [vmem:[#allocation3 + $0x10] sm:$0xff] %v8474
        %8507 = vst [vmem:[#allocation3 + $0x18] sm:$0xff] %v8475
        %8508 = vst [vmem:[#allocation3 + $0x20] sm:$0xff] %v8476
        %8509 = vst [vmem:[#allocation3 + $0x28] sm:$0xff] %v8477
        %8510 = vst [vmem:[#allocation3 + $0x30] sm:$0xff] %v8478
        %8511 = vst [vmem:[#allocation3 + $0x38] sm:$0xff] %v8479
        %8512 = vst [vmem:[#allocation3 + $0x40] sm:$0xff] %v8480
        %8513 = vst [vmem:[#allocation3 + $0x48] sm:$0xff] %v8481
        %8514 = vst [vmem:[#allocation3 + $0x50] sm:$0xff] %v8482
        %8515 = vst [vmem:[#allocation3 + $0x58] sm:$0xff] %v8483
        %8516 = vst [vmem:[#allocation3 + $0x60] sm:$0xff] %v8484
        %8517 = vst [vmem:[#allocation3 + $0x68] sm:$0xff] %v8485
        %8518 = vst [vmem:[#allocation3 + $0x70] sm:$0xff] %v8486
        %8519 = vst [vmem:[#allocation3 + $0x78] sm:$0xff] %v8487
        %8520 = vst [vmem:[#allocation3 + $0x80] sm:$0xff] %v8488
        %8521 = vst [vmem:[#allocation3 + $0x88] sm:$0xff] %v8489
        %8522 = vst [vmem:[#allocation3 + $0x90] sm:$0xff] %v8490
        %8523 = vst [vmem:[#allocation3 + $0x98] sm:$0xff] %v8491
        %8524 = vst [vmem:[#allocation3 + $0xa0] sm:$0xff] %v8492
        %8525 = vst [vmem:[#allocation3 + $0xa8] sm:$0xff] %v8493
        %8526 = vst [vmem:[#allocation3 + $0xb0] sm:$0xff] %v8494
        %8527 = vst [vmem:[#allocation3 + $0xb8] sm:$0xff] %v8495
        %8528 = vst [vmem:[#allocation3 + $0xc0] sm:$0xff] %v8496
        %8529 = vst [vmem:[#allocation3 + $0xc8] sm:$0xff] %v8497
        %8530 = vst [vmem:[#allocation3 + $0xd0] sm:$0xff] %v8498
        %8531 = vst [vmem:[#allocation3 + $0xd8] sm:$0xff] %v8499
        %8532 = vst [vmem:[#allocation3 + $0xe0] sm:$0xff] %v8500
        %8533 = vst [vmem:[#allocation3 + $0xe8] sm:$0xff] %v8501
        %8534 = vst [vmem:[#allocation3 + $0xf0] sm:$0xff] %v8502
        %8535 = vst [vmem:[#allocation3 + $0xf8] sm:$0xff] %v8503
        %v8536 = vunpack.c.l.bf16 %v242
        %v8537 = vunpack.c.l.bf16 %v243
        %v8538 = vunpack.c.l.bf16 %v244
        %v8539 = vunpack.c.l.bf16 %v245
        %v8540 = vunpack.c.l.bf16 %v246
        %v8541 = vunpack.c.l.bf16 %v247
        %v8542 = vunpack.c.l.bf16 %v248
        %v8543 = vunpack.c.l.bf16 %v249
        %v8544 = vunpack.c.l.bf16 %v250
        %v8545 = vunpack.c.l.bf16 %v251
        %v8546 = vunpack.c.l.bf16 %v252
        %v8547 = vunpack.c.l.bf16 %v253
        %v8548 = vunpack.c.l.bf16 %v254
        %v8549 = vunpack.c.l.bf16 %v255
        %v8550 = vunpack.c.l.bf16 %v256
        %v8551 = vunpack.c.l.bf16 %v257
        %v8552 = vunpack.c.l.bf16 %v258
        %v8553 = vunpack.c.l.bf16 %v259
        %v8554 = vunpack.c.l.bf16 %v260
        %v8555 = vunpack.c.l.bf16 %v261
        %v8556 = vunpack.c.l.bf16 %v262
        %v8557 = vunpack.c.l.bf16 %v263
        %v8558 = vunpack.c.l.bf16 %v264
        %v8559 = vunpack.c.l.bf16 %v265
        %v8560 = vunpack.c.l.bf16 %v266
        %v8561 = vunpack.c.l.bf16 %v267
        %v8562 = vunpack.c.l.bf16 %v268
        %v8563 = vunpack.c.l.bf16 %v269
        %v8564 = vunpack.c.l.bf16 %v270
        %v8565 = vunpack.c.l.bf16 %v271
        %v8566 = vunpack.c.l.bf16 %v272
        %v8567 = vunpack.c.l.bf16 %v273
        %v8568 = vunpack.c.l.bf16 %v274
        %v8569 = vunpack.c.l.bf16 %v275
        %v8570 = vunpack.c.l.bf16 %v276
        %v8571 = vunpack.c.l.bf16 %v277
        %v8572 = vunpack.c.l.bf16 %v278
        %v8573 = vunpack.c.l.bf16 %v279
        %v8574 = vunpack.c.l.bf16 %v280
        %v8575 = vunpack.c.l.bf16 %v281
        %v8576 = vunpack.c.l.bf16 %v282
        %v8577 = vunpack.c.l.bf16 %v283
        %v8578 = vunpack.c.l.bf16 %v284
        %v8579 = vunpack.c.l.bf16 %v285
        %v8580 = vunpack.c.l.bf16 %v286
        %v8581 = vunpack.c.l.bf16 %v287
        %v8582 = vunpack.c.l.bf16 %v288
        %v8583 = vunpack.c.l.bf16 %v289
        %vm8632 = vcmask 1046528
        %v8633 = vrot.slane %v8536, 1
        %v8634 = vrot.slane %v8537, 1
        %v8635 = vsel %vm8632, %v8633, %v8634
        %v8636 = vrot.slane %v8538, 1
        %v8637 = vsel %vm8632, %v8634, %v8636
        %v8638 = vrot.slane %v8539, 1
        %v8639 = vrot.slane %v8540, 1
        %v8640 = vsel %vm8632, %v8638, %v8639
        %v8641 = vrot.slane %v8541, 1
        %v8642 = vsel %vm8632, %v8639, %v8641
        %v8643 = vrot.slane %v8542, 1
        %v8644 = vrot.slane %v8543, 1
        %v8645 = vsel %vm8632, %v8643, %v8644
        %v8646 = vrot.slane %v8544, 1
        %v8647 = vsel %vm8632, %v8644, %v8646
        %v8648 = vrot.slane %v8545, 1
        %v8649 = vrot.slane %v8546, 1
        %v8650 = vsel %vm8632, %v8648, %v8649
        %v8651 = vrot.slane %v8547, 1
        %v8652 = vsel %vm8632, %v8649, %v8651
        %v8653 = vrot.slane %v8548, 1
        %v8654 = vrot.slane %v8549, 1
        %v8655 = vsel %vm8632, %v8653, %v8654
        %v8656 = vrot.slane %v8550, 1
        %v8657 = vsel %vm8632, %v8654, %v8656
        %v8658 = vrot.slane %v8551, 1
        %v8659 = vrot.slane %v8552, 1
        %v8660 = vsel %vm8632, %v8658, %v8659
        %v8661 = vrot.slane %v8553, 1
        %v8662 = vsel %vm8632, %v8659, %v8661
        %v8663 = vrot.slane %v8554, 1
        %v8664 = vrot.slane %v8555, 1
        %v8665 = vsel %vm8632, %v8663, %v8664
        %v8666 = vrot.slane %v8556, 1
        %v8667 = vsel %vm8632, %v8664, %v8666
        %v8668 = vrot.slane %v8557, 1
        %v8669 = vrot.slane %v8558, 1
        %v8670 = vsel %vm8632, %v8668, %v8669
        %v8671 = vrot.slane %v8559, 1
        %v8672 = vsel %vm8632, %v8669, %v8671
        %v8673 = vrot.slane %v8560, 1
        %v8674 = vrot.slane %v8561, 1
        %v8675 = vsel %vm8632, %v8673, %v8674
        %v8676 = vrot.slane %v8562, 1
        %v8677 = vsel %vm8632, %v8674, %v8676
        %v8678 = vrot.slane %v8563, 1
        %v8679 = vrot.slane %v8564, 1
        %v8680 = vsel %vm8632, %v8678, %v8679
        %v8681 = vrot.slane %v8565, 1
        %v8682 = vsel %vm8632, %v8679, %v8681
        %v8683 = vrot.slane %v8566, 1
        %v8684 = vrot.slane %v8567, 1
        %v8685 = vsel %vm8632, %v8683, %v8684
        %v8686 = vrot.slane %v8568, 1
        %v8687 = vsel %vm8632, %v8684, %v8686
        %v8688 = vrot.slane %v8569, 1
        %v8689 = vrot.slane %v8570, 1
        %v8690 = vsel %vm8632, %v8688, %v8689
        %v8691 = vrot.slane %v8571, 1
        %v8692 = vsel %vm8632, %v8689, %v8691
        %v8693 = vrot.slane %v8572, 1
        %v8694 = vrot.slane %v8573, 1
        %v8695 = vsel %vm8632, %v8693, %v8694
        %v8696 = vrot.slane %v8574, 1
        %v8697 = vsel %vm8632, %v8694, %v8696
        %v8698 = vrot.slane %v8575, 1
        %v8699 = vrot.slane %v8576, 1
        %v8700 = vsel %vm8632, %v8698, %v8699
        %v8701 = vrot.slane %v8577, 1
        %v8702 = vsel %vm8632, %v8699, %v8701
        %v8703 = vrot.slane %v8578, 1
        %v8704 = vrot.slane %v8579, 1
        %v8705 = vsel %vm8632, %v8703, %v8704
        %v8706 = vrot.slane %v8580, 1
        %v8707 = vsel %vm8632, %v8704, %v8706
        %v8708 = vrot.slane %v8581, 1
        %v8709 = vrot.slane %v8582, 1
        %v8710 = vsel %vm8632, %v8708, %v8709
        %v8711 = vrot.slane %v8583, 1
        %v8712 = vsel %vm8632, %v8709, %v8711
        %v8745 = vld [vmem:[#allocation3] sm:$0xff]
        %v8746 = vld [vmem:[#allocation3 + $0x8] sm:$0xff]
        %v8747 = vld [vmem:[#allocation3 + $0x10] sm:$0xff]
        %v8748 = vld [vmem:[#allocation3 + $0x18] sm:$0xff]
        %v8749 = vld [vmem:[#allocation3 + $0x20] sm:$0xff]
        %v8750 = vld [vmem:[#allocation3 + $0x28] sm:$0xff]
        %v8751 = vld [vmem:[#allocation3 + $0x30] sm:$0xff]
        %v8752 = vld [vmem:[#allocation3 + $0x38] sm:$0xff]
        %v8753 = vld [vmem:[#allocation3 + $0x40] sm:$0xff]
        %v8754 = vld [vmem:[#allocation3 + $0x48] sm:$0xff]
        %v8755 = vld [vmem:[#allocation3 + $0x50] sm:$0xff]
        %v8756 = vld [vmem:[#allocation3 + $0x58] sm:$0xff]
        %v8757 = vld [vmem:[#allocation3 + $0x60] sm:$0xff]
        %v8758 = vld [vmem:[#allocation3 + $0x68] sm:$0xff]
        %v8759 = vld [vmem:[#allocation3 + $0x70] sm:$0xff]
        %v8760 = vld [vmem:[#allocation3 + $0x78] sm:$0xff]
        %v8761 = vld [vmem:[#allocation3 + $0x80] sm:$0xff]
        %v8762 = vld [vmem:[#allocation3 + $0x88] sm:$0xff]
        %v8763 = vld [vmem:[#allocation3 + $0x90] sm:$0xff]
        %v8764 = vld [vmem:[#allocation3 + $0x98] sm:$0xff]
        %v8765 = vld [vmem:[#allocation3 + $0xa0] sm:$0xff]
        %v8766 = vld [vmem:[#allocation3 + $0xa8] sm:$0xff]
        %v8767 = vld [vmem:[#allocation3 + $0xb0] sm:$0xff]
        %v8768 = vld [vmem:[#allocation3 + $0xb8] sm:$0xff]
        %v8769 = vld [vmem:[#allocation3 + $0xc0] sm:$0xff]
        %v8770 = vld [vmem:[#allocation3 + $0xc8] sm:$0xff]
        %v8771 = vld [vmem:[#allocation3 + $0xd0] sm:$0xff]
        %v8772 = vld [vmem:[#allocation3 + $0xd8] sm:$0xff]
        %v8773 = vld [vmem:[#allocation3 + $0xe0] sm:$0xff]
        %v8774 = vld [vmem:[#allocation3 + $0xe8] sm:$0xff]
        %v8775 = vld [vmem:[#allocation3 + $0xf0] sm:$0xff]
        %v8776 = vld [vmem:[#allocation3 + $0xf8] sm:$0xff]
        %v8777 = vadd.f32 %v8745, %v8635
        %v8778 = vadd.f32 %v8746, %v8637
        %v8779 = vadd.f32 %v8747, %v8640
        %v8780 = vadd.f32 %v8748, %v8642
        %v8781 = vadd.f32 %v8749, %v8645
        %v8782 = vadd.f32 %v8750, %v8647
        %v8783 = vadd.f32 %v8751, %v8650
        %v8784 = vadd.f32 %v8752, %v8652
        %v8785 = vadd.f32 %v8753, %v8655
        %v8786 = vadd.f32 %v8754, %v8657
        %v8787 = vadd.f32 %v8755, %v8660
        %v8788 = vadd.f32 %v8756, %v8662
        %v8789 = vadd.f32 %v8757, %v8665
        %v8790 = vadd.f32 %v8758, %v8667
        %v8791 = vadd.f32 %v8759, %v8670
        %v8792 = vadd.f32 %v8760, %v8672
        %v8793 = vadd.f32 %v8761, %v8675
        %v8794 = vadd.f32 %v8762, %v8677
        %v8795 = vadd.f32 %v8763, %v8680
        %v8796 = vadd.f32 %v8764, %v8682
        %v8797 = vadd.f32 %v8765, %v8685
        %v8798 = vadd.f32 %v8766, %v8687
        %v8799 = vadd.f32 %v8767, %v8690
        %v8800 = vadd.f32 %v8768, %v8692
        %v8801 = vadd.f32 %v8769, %v8695
        %v8802 = vadd.f32 %v8770, %v8697
        %v8803 = vadd.f32 %v8771, %v8700
        %v8804 = vadd.f32 %v8772, %v8702
        %v8805 = vadd.f32 %v8773, %v8705
        %v8806 = vadd.f32 %v8774, %v8707
        %v8807 = vadd.f32 %v8775, %v8710
        %v8808 = vadd.f32 %v8776, %v8712
        %v8809 = vmax.f32 %v8777, 0.0
        %v8810 = vmax.f32 %v8778, 0.0
        %v8811 = vmax.f32 %v8779, 0.0
        %v8812 = vmax.f32 %v8780, 0.0
        %v8813 = vmax.f32 %v8781, 0.0
        %v8814 = vmax.f32 %v8782, 0.0
        %v8815 = vmax.f32 %v8783, 0.0
        %v8816 = vmax.f32 %v8784, 0.0
        %v8817 = vmax.f32 %v8785, 0.0
        %v8818 = vmax.f32 %v8786, 0.0
        %v8819 = vmax.f32 %v8787, 0.0
        %v8820 = vmax.f32 %v8788, 0.0
        %v8821 = vmax.f32 %v8789, 0.0
        %v8822 = vmax.f32 %v8790, 0.0
        %v8823 = vmax.f32 %v8791, 0.0
        %v8824 = vmax.f32 %v8792, 0.0
        %v8825 = vmax.f32 %v8793, 0.0
        %v8826 = vmax.f32 %v8794, 0.0
        %v8827 = vmax.f32 %v8795, 0.0
        %v8828 = vmax.f32 %v8796, 0.0
        %v8829 = vmax.f32 %v8797, 0.0
        %v8830 = vmax.f32 %v8798, 0.0
        %v8831 = vmax.f32 %v8799, 0.0
        %v8832 = vmax.f32 %v8800, 0.0
        %v8833 = vmax.f32 %v8801, 0.0
        %v8834 = vmax.f32 %v8802, 0.0
        %v8835 = vmax.f32 %v8803, 0.0
        %v8836 = vmax.f32 %v8804, 0.0
        %v8837 = vmax.f32 %v8805, 0.0
        %v8838 = vmax.f32 %v8806, 0.0
        %v8839 = vmax.f32 %v8807, 0.0
        %v8840 = vmax.f32 %v8808, 0.0
        %8841 = vst [vmem:[%s232] sm:$0xff] %v8809
        %8842 = vst [vmem:[%s232 + $0x8] sm:$0xff] %v8810
        %8843 = vst [vmem:[%s232 + $0x10] sm:$0xff] %v8811
        %8844 = vst [vmem:[%s232 + $0x18] sm:$0xff] %v8812
        %8845 = vst [vmem:[%s232 + $0x20] sm:$0xff] %v8813
        %8846 = vst [vmem:[%s232 + $0x28] sm:$0xff] %v8814
        %8847 = vst [vmem:[%s232 + $0x30] sm:$0xff] %v8815
        %8848 = vst [vmem:[%s232 + $0x38] sm:$0xff] %v8816
        %8849 = vst [vmem:[%s232 + $0x40] sm:$0xff] %v8817
        %8850 = vst [vmem:[%s232 + $0x48] sm:$0xff] %v8818
        %8851 = vst [vmem:[%s232 + $0x50] sm:$0xff] %v8819
        %8852 = vst [vmem:[%s232 + $0x58] sm:$0xff] %v8820
        %8853 = vst [vmem:[%s232 + $0x60] sm:$0xff] %v8821
        %8854 = vst [vmem:[%s232 + $0x68] sm:$0xff] %v8822
        %8855 = vst [vmem:[%s232 + $0x70] sm:$0xff] %v8823
        %8856 = vst [vmem:[%s232 + $0x78] sm:$0xff] %v8824
        %8857 = vst [vmem:[%s232 + $0x80] sm:$0xff] %v8825
        %8858 = vst [vmem:[%s232 + $0x88] sm:$0xff] %v8826
        %8859 = vst [vmem:[%s232 + $0x90] sm:$0xff] %v8827
        %8860 = vst [vmem:[%s232 + $0x98] sm:$0xff] %v8828
        %8861 = vst [vmem:[%s232 + $0xa0] sm:$0xff] %v8829
        %8862 = vst [vmem:[%s232 + $0xa8] sm:$0xff] %v8830
        %8863 = vst [vmem:[%s232 + $0xb0] sm:$0xff] %v8831
        %8864 = vst [vmem:[%s232 + $0xb8] sm:$0xff] %v8832
        %8865 = vst [vmem:[%s232 + $0xc0] sm:$0xff] %v8833
        %8866 = vst [vmem:[%s232 + $0xc8] sm:$0xff] %v8834
        %8867 = vst [vmem:[%s232 + $0xd0] sm:$0xff] %v8835
        %8868 = vst [vmem:[%s232 + $0xd8] sm:$0xff] %v8836
        %8869 = vst [vmem:[%s232 + $0xe0] sm:$0xff] %v8837
        %8870 = vst [vmem:[%s232 + $0xe8] sm:$0xff] %v8838
        %8871 = vst [vmem:[%s232 + $0xf0] sm:$0xff] %v8839
        %8872 = vst [vmem:[%s232 + $0xf8] sm:$0xff] %v8840
        %s8873 = sand.u32 %s138, 1
        %s8874 = scalar_lea.sflag [#allocation6], %s8873
        %s8875 = sand.u32 %s138, 1
        %s8876 = smul.addr %s8875, 256
        %s8877 = scalar_lea.vmem [#allocation7], %s8876
        // Predicated region
        $region45: #{tpu_custom_call.1} parent=39 // pred_check
          %p8878 = pneg %p148
        $region46: #{tpu_custom_call.1} parent=39 // pred_check_branch
          %8880 = sbr.rel (%p8878) target = $region48
        $region47: #{tpu_custom_call.1} parent=39 // pred_region
          %s8882 = ssub.s32 4096, 4096
          %8883 = vsyncadd %s8874, %s8882
          %s8884 = smul.addr %s20, 32
          %s8885 = smul.addr %s8884, 128
          %s8886 = scalar_lea.hbm %s5, %s8885
          %s8887 = sshll.u32 %s8877, 4
          %s8888 = int_to_ptr.vmem [resolvable:$true] %s8887
          %8893 = dma.vmem_to_hbm [thread:$0]  %s8888, 4096, %s8886, %s8874, 128, 128, 8
        $region48: #{tpu_custom_call.1} parent=39 // pred_fallthru
          _
      $region40: #{tpu_custom_call.1} parent=5 // pred_fallthru
        _
      %p8894 = scmp.le.s32.totalorder 2, %s15
      // Predicated region
      $region49: #{tpu_custom_call.1} parent=5 // pred_check
        %p8895 = pneg %p8894
      $region50: #{tpu_custom_call.1} parent=5 // pred_check_branch
        %8897 = sbr.rel (%p8895) target = $region52
      $region51: #{tpu_custom_call.1} parent=5 // pred_region
        %s8898 = ssub.s32 %s15, 2
        // Predicated region
        $region53: #{tpu_custom_call.1} parent=51 // pred_check
          %p8899 = pneg %p154
        $region54: #{tpu_custom_call.1} parent=51 // pred_check_branch
          %8901 = sbr.rel (%p8899) target = $region56
        $region55: #{tpu_custom_call.1} parent=51 // pred_region
          %s8902 = sand.u32 %s139, 1
          %s8903 = scalar_lea.sflag [#allocation6], %s8902
          %s8904 = sand.u32 %s139, 1
          %s8905 = smul.addr %s8904, 256
          %s8906 = scalar_lea.vmem [#allocation7], %s8905
          %8907 = dma.done %s8903, 4096
        $region56: #{tpu_custom_call.1} parent=51 // pred_fallthru
          _
      $region52: #{tpu_custom_call.1} parent=5 // pred_fallthru
        _
    $region6: #{tpu_custom_call.1} parent=1 // loop_footer
      %s19 = sadd.s32 1, %s15
    $region7: #{tpu_custom_call.1} parent=1 // loop_footer_branch
      %14 = sbr.rel target = $region3
    $region8: #{tpu_custom_call.1} parent=1 // loop_exit
      _
    %8908 = vsyncpa [#allocation5], 1
    %s8909 = scalar_lea.sflag [#allocation5], 1
    %8910 = vsyncpa %s8909, 1
    %8911 = vsyncpa [#allocation6], 1
    %s8912 = scalar_lea.sflag [#allocation6], 1
    %8913 = vsyncpa %s8912, 1

</llo_original>
